<compile_context>
chip_gen: v7x
topology: tpu7x:2x2x1
jax: 0.10.0
libtpu: 0.0.40
codegen_flags: <defaults>
</compile_context>

<pallas_src>
import jax
import jax.numpy as jnp
from jax import lax
from jax.experimental import pallas as pl
from jax.experimental.pallas import tpu as pltpu

HID = 256        # GRU hidden size (GRUCell(684, 256) / GRUCell(256, 256))
ENC_C = 684      # encoder feature size (ua / wc / gru input dims)
ENC_PAD = 768    # ENC_C zero-padded to an MXU-friendly contraction size


def _sigmoid(x):
    return 1.0 / (1.0 + jnp.exp(-x))


def _gru_gates(gi, gh, h):
    """PyTorch GRUCell gate math given gi = x@Wih^T+bih, gh = h@Whh^T+bhh (row form)."""
    hs = h.shape[-1]
    r = _sigmoid(gi[:, :hs] + gh[:, :hs])
    z = _sigmoid(gi[:, hs:2 * hs] + gh[:, hs:2 * hs])
    n = jnp.tanh(gi[:, 2 * hs:] + r * gh[:, 2 * hs:])
    return (1.0 - z) * n + z * h


# ------------------------------ fused Pallas kernel ------------------------------- #

def _fused_decode_kernel(
    # scalar-prefetch (SMEM)
    tok_ref,
    # resident inputs (constant index_map -> DMA'd once, VMEM-resident)
    emb_tab_ref, h0_ref, asum0_ref, dec_seq_ref,
    enc_ref, enc1t_ref, convmt_ref, convb_ref,
    g1_wih_ref, g1_whh_ref, g1_bih_ref, g1_bhh_ref,
    hid_w_ref, hid_b_ref,
    uf_w_ref, uf_b_ref,
    v_w_ref, v_b_ref,
    g2_wih_ref, g2_whh_ref, g2_bih_ref, g2_bhh_ref,
    head_w_ref, head_b_ref,
    out_w_ref, out_b_ref,
    # outputs (resident across the grid, one row written per step)
    logits_ref, hid_out_ref, etdiv_ref, asum_out_ref,
    # VMEM scratch carrying the recurrent state across grid steps
    h_scr, asum_scr,
):
    f32, bf16 = jnp.float32, jnp.bfloat16
    t = pl.program_id(0)

    @pl.when(t == 0)
    def _():
        h_scr[...] = h0_ref[...]
        asum_scr[...] = asum0_ref[...]

    # ---- embedding gather (table is VMEM-resident; token id from SMEM prefetch)
    tok = tok_ref[t]
    emb = emb_tab_ref[pl.ds(tok, 1), :]                       # (1, 256) f32
    emb_bf = emb.astype(bf16)
    h_prev = h_scr[...]                                       # (1, 256) f32

    # ---- st = gru1(embedded, hidden): bf16 x bf16 MXU, f32 accumulate
    gi = jnp.dot(emb_bf, g1_wih_ref[...], preferred_element_type=f32) + g1_bih_ref[...]
    gh = jnp.dot(h_prev.astype(bf16), g1_whh_ref[...],
                 preferred_element_type=f32) + g1_bhh_ref[...]
    st = _gru_gates(gi, gh, h_prev)                           # (1, 256) f32
    st_bf = st.astype(bf16)

    # ---- attention_sum += conv3x3(decoder_attention), lane-dense (1, HW) row
    dec_row = dec_seq_ref[pl.ds(t, 1), :]                     # (1, HW)
    attn_new = (asum_scr[...]
                + jnp.dot(dec_row, convmt_ref[...], preferred_element_type=f32)
                + convb_ref[...])                             # (1, HW)
    asum_scr[...] = attn_new
    asum_out_ref[pl.ds(t, 1), :] = attn_new

    # ---- attention energies, transposed orientation (HID, HW) so everything HW-sized
    #      stays lane-dense and the score matmul gets N = HW.
    hidden1 = jnp.dot(st_bf, hid_w_ref[...],
                      preferred_element_type=f32) + hid_b_ref[...]      # (1, HID)
    # Row -> column bridge without relying on 2-D transpose lowering: select the
    # diagonal of the broadcast and lane-reduce (negligible VPU/XLU work).
    rows = lax.broadcasted_iota(jnp.int32, (HID, HID), 0)
    cols = lax.broadcasted_iota(jnp.int32, (HID, HID), 1)
    hidden1_col = jnp.sum(jnp.where(rows == cols, hidden1, 0.0),
                          axis=1, keepdims=True)                        # (HID, 1)

    et_T = jnp.tanh(hidden1_col + enc1t_ref[...]
                    + uf_w_ref[...] * attn_new + uf_b_ref[...])         # (HID, HW) f32
    score = jnp.dot(v_w_ref[...], et_T.astype(bf16),
                    preferred_element_type=f32) + v_b_ref[...]          # (1, HW)

    # Reference uses raw exp (no max-subtraction); safe because et in [-1,1] keeps
    # |score| <= ~16 which cannot overflow f32.
    e = jnp.exp(score)
    inv = pl.reciprocal(jnp.sum(e, axis=-1, keepdims=True), approx=True)
    et_div = e * inv                                                     # (1, HW)
    etdiv_ref[pl.ds(t, 1), :] = et_div

    # ---- context vector on the MXU: (1,HW) @ (HW, ENC_PAD)
    ct = jnp.dot(et_div.astype(bf16), enc_ref[...],
                 preferred_element_type=f32)                             # (1, ENC_PAD)
    ct_bf = ct.astype(bf16)

    # ---- hidden_next = gru(ct, st)
    gi2 = jnp.dot(ct_bf, g2_wih_ref[...], preferred_element_type=f32) + g2_bih_ref[...]
    gh2 = jnp.dot(st_bf, g2_whh_ref[...], preferred_element_type=f32) + g2_bhh_ref[...]
    hnext = _gru_gates(gi2, gh2, st)                                     # (1, 256) f32
    h_scr[...] = hnext
    hid_out_ref[pl.ds(t, 1), :] = hnext

    # ---- head: one fused (1, 2*HID+ENC_PAD) @ (., 128) matmul, then out + log_softmax
    cat = jnp.concatenate([hnext.astype(bf16), emb_bf, ct_bf], axis=1)   # (1, 1280)
    mid = jnp.dot(cat, head_w_ref[...],
                  preferred_element_type=f32) + head_b_ref[...]          # (1, 128)
    logits = jnp.dot(mid.astype(bf16), out_w_ref[...],
                     preferred_element_type=f32) + out_b_ref[...]        # (1, Vpad)
    m = jnp.max(logits, axis=-1, keepdims=True)
    s = logits - m
    logits_ref[pl.ds(t, 1), :] = s - jnp.log(jnp.sum(jnp.exp(s), axis=-1, keepdims=True))


# ------------------------ once-per-sequence precompute ----------------------------- #

def _conv_operator_matrix(w3x3, H, W):
    """(HW, HW) matrix M with (M @ a_flat)[p] == 3x3 'same' conv(a)[p] (p = i*W + j)."""
    hw = H * W
    pos = jnp.arange(hw, dtype=jnp.int32)
    ri, cj = pos // W, pos % W
    di = ri[None, :] - ri[:, None]
    dj = cj[None, :] - cj[:, None]
    valid = (jnp.abs(di) <= 1) & (jnp.abs(dj) <= 1)
    k = w3x3[jnp.clip(di + 1, 0, 2), jnp.clip(dj + 1, 0, 2)]
    return jnp.where(valid, k, 0.0).astype(jnp.float32)


def prepare_sequence(params, encoder_outputs):
    """Decoder-step-invariant precompute (hoisted out of the kernel): position-major
    encoder slab (padded to ENC_PAD), its transposed Ua projection, conv operator."""
    C, H, W = encoder_outputs.shape
    assert C == ENC_C and (H * W) % 128 == 0
    hw = H * W
    enc_t = jnp.transpose(encoder_outputs, (1, 2, 0)).reshape(hw, C).astype(jnp.float32)
    enc1 = enc_t @ params["ua_w_t"] + params["ua_b"]                 # (hw, 256) f32
    enc_pad = jnp.zeros((hw, ENC_PAD), jnp.float32).at[:, :C].set(enc_t)
    conv_m = _conv_operator_matrix(params["conv_w"], H, W)
    return {"H": H, "W": W,
            "enc_bf": enc_pad.astype(jnp.bfloat16),                  # (hw, ENC_PAD) bf16
            "enc1_T": enc1.T,                                        # (256, hw) f32
            "conv_mat_T": conv_m.T}                                  # (hw, hw) f32


# ----------------------------------- wrapper --------------------------------------- #

def attn_decoder_decode(params, prep, tok_ids, hidden0, bb, attention_sum0,
                        decoder_attention_seq, dense_input):
    """T applications of AttnDecoderRNN.forward fused into one pallas_call.
    hidden / attention_sum are carried across grid steps in VMEM scratch."""
    del bb                                      # unused by the reference forward
    T = int(tok_ids.shape[0])
    H, W = prep["H"], prep["W"]
    hw = H * W
    V = params["vocab"]
    Vp = params["out_b_pad"].shape[-1]

    h0 = hidden0.reshape(1, HID).astype(jnp.float32)
    asum0 = attention_sum0.reshape(1, hw).astype(jnp.float32)
    dec_rows = decoder_attention_seq.reshape(T, hw).astype(jnp.float32)

    operands = (
        params["emb_table"], h0, asum0, dec_rows,
        prep["enc_bf"], prep["enc1_T"], prep["conv_mat_T"], params["conv_b"],
        params["gru1_w_ih_t"], params["gru1_w_hh_t"], params["gru1_b_ih"], params["gru1_b_hh"],
        params["hidden_w_t"], params["hidden_b"],
        params["uf_w_col"], params["uf_b_col"],
        params["v_w_row"], params["v_b"],
        params["gru2_w_ih_t"], params["gru2_w_hh_t"], params["gru2_b_ih"], params["gru2_b_hh"],
        params["head_w"], params["head_b"],
        params["out_w_pad"], params["out_b_pad"],
    )

    def resident(shape):
        return pl.BlockSpec(shape, lambda *_: (0,) * len(shape))

    grid_spec = pltpu.PrefetchScalarGridSpec(
        num_scalar_prefetch=1,
        grid=(T,),
        in_specs=[resident(x.shape) for x in operands],
        out_specs=[resident((T, Vp)), resident((T, HID)),
                   resident((T, hw)), resident((T, hw))],
        scratch_shapes=[pltpu.VMEM((1, HID), jnp.float32),   # hidden carry
                        pltpu.VMEM((1, hw), jnp.float32)],   # attention_sum carry
    )

    logits_seq, hid_seq, etdiv_seq, asum_seq = pl.pallas_call(
        _fused_decode_kernel,
        out_shape=(jax.ShapeDtypeStruct((T, Vp), jnp.float32),
                   jax.ShapeDtypeStruct((T, HID), jnp.float32),
                   jax.ShapeDtypeStruct((T, hw), jnp.float32),
                   jax.ShapeDtypeStruct((T, hw), jnp.float32)),
        grid_spec=grid_spec,
        compiler_params=pltpu.CompilerParams(
            dimension_semantics=("arbitrary",),
            vmem_limit_bytes=16 * 1024 * 1024),
    )(tok_ids, *operands)

    outputs = logits_seq[:, None, :V]                        # (T, 1, V) log-probs
    hiddens = hid_seq[:, None, :]                            # (T, 1, 256)
    et_divs = etdiv_seq.reshape(T, 1, dense_input, -1)       # (T, 1, H, W)
    attn_sums = asum_seq.reshape(T, 1, H, W)                 # (T, 1, H, W)
    return outputs, hiddens, et_divs, attn_sums


# -------------------------- deterministic parameters -------------------------------- #

def init_params(key, output_size):
    """Weights pre-transposed/stacked/padded; matmul weights stored bf16, biases f32."""
    f32, bf16 = jnp.float32, jnp.bfloat16

    def lin(k, out_f, in_f):
        k1, k2 = jax.random.split(k)
        b = 1.0 / (in_f ** 0.5)
        return (jax.random.uniform(k1, (out_f, in_f), f32, -b, b),
                jax.random.uniform(k2, (out_f,), f32, -b, b))

    def gru(k, in_f, hid):
        k1, k2, k3, k4 = jax.random.split(k, 4)
        b = 1.0 / (hid ** 0.5)
        return (jax.random.uniform(k1, (3 * hid, in_f), f32, -b, b),
                jax.random.uniform(k2, (3 * hid, hid), f32, -b, b),
                jax.random.uniform(k3, (3 * hid,), f32, -b, b),
                jax.random.uniform(k4, (3 * hid,), f32, -b, b))

    keys = jax.random.split(key, 13)
    p = {"vocab": output_size}
    # Embedding table kept f32 (tiny, VMEM-resident) for clean dynamic-row gathers.
    p["emb_table"] = jax.random.normal(keys[0], (output_size, HID), f32)

    w_ih, w_hh, b_ih, b_hh = gru(keys[1], HID, HID)            # self.gru1
    p["gru1_w_ih_t"], p["gru1_w_hh_t"] = w_ih.T.astype(bf16), w_hh.T.astype(bf16)
    p["gru1_b_ih"], p["gru1_b_hh"] = b_ih[None, :], b_hh[None, :]

    w_ih, w_hh, b_ih, b_hh = gru(keys[2], ENC_C, HID)          # self.gru
    wt = jnp.zeros((ENC_PAD, 3 * HID), f32).at[:ENC_C].set(w_ih.T)
    p["gru2_w_ih_t"], p["gru2_w_hh_t"] = wt.astype(bf16), w_hh.T.astype(bf16)
    p["gru2_b_ih"], p["gru2_b_hh"] = b_ih[None, :], b_hh[None, :]

    w, b = lin(keys[3], 256, 256)                              # self.hidden
    p["hidden_w_t"], p["hidden_b"] = w.T.astype(bf16), b[None, :]

    h2_w, h2_b = lin(keys[4], 128, 256)                        # self.hidden2
    e2_w, e2_b = lin(keys[5], 128, 256)                        # self.emb2
    ua_w, ua_b = lin(keys[6], 256, ENC_C)                      # self.ua (used in prepare)
    uf_w, uf_b = lin(keys[7], 256, 1)                          # self.uf (Linear(1,256))
    v_w, v_b = lin(keys[8], 1, 256)                            # self.v  (Linear(256,1))
    wc_w, wc_b = lin(keys[9], 128, ENC_C)                      # self.wc
    out_w, out_b = lin(keys[10], output_size, 128)             # self.out

    wc_t = jnp.zeros((ENC_PAD, 128), f32).at[:ENC_C].set(wc_w.T)
    p["head_w"] = jnp.concatenate([h2_w.T, e2_w.T, wc_t], axis=0).astype(bf16)  # (1280,128)
    p["head_b"] = (h2_b + e2_b + wc_b)[None, :]

    p["ua_w_t"], p["ua_b"] = ua_w.T, ua_b[None, :]             # f32 (outside the kernel)
    p["uf_w_col"], p["uf_b_col"] = uf_w, uf_b[:, None]         # (256,1) f32 columns
    p["v_w_row"], p["v_b"] = v_w.astype(bf16), v_b.reshape(1, 1)

    Vp = ((output_size + 127) // 128) * 128                    # lane-dense out layer
    ow = jnp.zeros((128, Vp), f32).at[:, :output_size].set(out_w.T)
    ob = jnp.full((1, Vp), -1e30, f32).at[0, :output_size].set(out_b)
    p["out_w_pad"], p["out_b_pad"] = ow.astype(bf16), ob

    kc1, kc2 = jax.random.split(keys[11])
    cb = 1.0 / 3.0
    p["conv_w"] = jax.random.uniform(kc1, (3, 3), f32, -cb, cb)
    p["conv_b"] = jax.random.uniform(kc2, (1, 1), f32, -cb, cb)
    return p


# -------------------------------- pure-JAX reference -------------------------------- #

def _gru_ref(x, h, w_ih_t, w_hh_t, b_ih, b_hh):
    return _gru_gates(x @ w_ih_t + b_ih, h @ w_hh_t + b_hh, h)


def reference_step(params, tok, hidden, encoder_outputs, attention_sum,
                   decoder_attention, dense_input):
    """Single forward step, f32 activations, same (bf16-rounded) weights as the kernel."""
    f32 = jnp.float32
    V = params["vocab"]
    embedded = params["emb_table"][tok].reshape(1, HID)
    st = _gru_ref(embedded, hidden.reshape(1, HID),
                  params["gru1_w_ih_t"].astype(f32), params["gru1_w_hh_t"].astype(f32),
                  params["gru1_b_ih"], params["gru1_b_hh"])
    hidden1 = st @ params["hidden_w_t"].astype(f32) + params["hidden_b"]
    conv = lax.conv_general_dilated(
        decoder_attention[None], params["conv_w"].reshape(1, 1, 3, 3), (1, 1), "SAME",
        dimension_numbers=("NCHW", "OIHW", "NCHW")) + params["conv_b"].reshape(1, 1, 1, 1)
    attention_sum = attention_sum + conv[0]                              # (1, H, W)
    enc_trans = jnp.transpose(encoder_outputs, (1, 2, 0))                # (H, W, 684)
    attn_trans = jnp.transpose(attention_sum, (1, 2, 0))                 # (H, W, 1)
    enc1 = enc_trans @ params["ua_w_t"] + params["ua_b"]
    attn1 = attn_trans @ params["uf_w_col"].T + params["uf_b_col"].T
    et = jnp.tanh(hidden1 + enc1 + attn1)
    et = et @ params["v_w_row"].astype(f32).T + params["v_b"]
    et = et.reshape(dense_input, -1)
    et_exp = jnp.exp(et)
    et_div = (et_exp / jnp.sum(et_exp))[None]                            # (1, H, W)
    ct = (et_div * encoder_outputs).sum(axis=1).sum(axis=1)[None]        # (1, 684)
    hidden_next = _gru_ref(ct, st, params["gru2_w_ih_t"][:ENC_C].astype(f32),
                           params["gru2_w_hh_t"].astype(f32),
                           params["gru2_b_ih"], params["gru2_b_hh"])
    head_w = params["head_w"].astype(f32)
    mid = (hidden_next @ head_w[:HID] + embedded @ head_w[HID:2 * HID]
           + ct @ head_w[2 * HID:2 * HID + ENC_C] + params["head_b"])
    out_w = params["out_w_pad"].astype(f32)[:, :V]
    out_b = params["out_b_pad"][:, :V]
    logits = mid @ out_w + out_b
    m = jnp.max(logits, axis=1, keepdims=True)
    output = (logits - m) - jnp.log(jnp.sum(jnp.exp(logits - m), axis=1, keepdims=True))
    return output, hidden_next, et_div, attention_sum


def reference_decode(params, tok_ids, hidden0, encoder_outputs, attention_sum0,
                     decoder_attention_seq, dense_input):
    h = hidden0.reshape(1, HID)
    asum = attention_sum0
    outs, hids, eds, asums = [], [], [], []
    for t in range(int(tok_ids.shape[0])):
        o, h, ed, asum = reference_step(params, tok_ids[t], h, encoder_outputs,
                                        asum, decoder_attention_seq[t], dense_input)
        outs.append(o); hids.append(h); eds.append(ed); asums.append(asum)
    return jnp.stack(outs), jnp.stack(hids), jnp.stack(eds), jnp.stack(asums)


# ------------------------------------- main ----------------------------------------- #

if __name__ == "__main__":
    V = 32                 # output_size (vocab)
    H, W = 8, 16           # attention-map spatial size (HW = 128, lane-aligned)
    T = 8                  # fused decode steps
    dense_input = H

    key = jax.random.PRNGKey(0)
    k_par, k_in = jax.random.split(key)
    params = init_params(k_par, V)

    ks = jax.random.split(k_in, 5)
    tok_ids = jax.random.randint(ks[0], (T,), 0, V, dtype=jnp.int32)
    hidden0 = jax.random.normal(ks[1], (1, 1, HID), jnp.float32)
    encoder_outputs = 0.1 * jax.random.normal(ks[2], (ENC_C, H, W), jnp.float32)
    attention_sum0 = 0.1 * jax.random.normal(ks[3], (1, H, W), jnp.float32)
    dec_attn_seq = 0.1 * jax.random.normal(ks[4], (T, 1, H, W), jnp.float32)
    bb = None  # unused by the reference forward

    prep = prepare_sequence(params, encoder_outputs)   # once per sequence (hoisted)

    outs = attn_decoder_decode(params, prep, tok_ids, hidden0, bb,
                               attention_sum0, dec_attn_seq, dense_input)
    jax.block_until_ready(outs)

    refs = reference_decode(params, tok_ids, hidden0, encoder_outputs,
                            attention_sum0, dec_attn_seq, dense_input)

    # Tolerance reflects bf16 MXU inputs (weights AND 1-row activations) in the kernel
    # vs an f32-activation reference, accumulated over an 8-step recurrence.
    for got, want in zip(outs, refs):
        assert got.shape == want.shape, (got.shape, want.shape)
        assert jnp.allclose(got, want, atol=2e-2, rtol=2e-2), \
            float(jnp.max(jnp.abs(got - want)))

    print("KERNEL_OK")
</pallas_src>

<mosaic_0001>
module attributes {stable_mosaic.version = 11 : i64} {
  func.func @_fused_decode_kernel(%arg0: i32, %arg1: memref<8xi32, #tpu.memory_space<smem>>, %arg2: memref<32x256xf32, #tpu.memory_space<vmem>>, %arg3: memref<1x256xf32, #tpu.memory_space<vmem>>, %arg4: memref<1x128xf32, #tpu.memory_space<vmem>>, %arg5: memref<8x128xf32, #tpu.memory_space<vmem>>, %arg6: memref<128x768xbf16, #tpu.memory_space<vmem>>, %arg7: memref<256x128xf32, #tpu.memory_space<vmem>>, %arg8: memref<128x128xf32, #tpu.memory_space<vmem>>, %arg9: memref<1x1xf32, #tpu.memory_space<vmem>>, %arg10: memref<256x768xbf16, #tpu.memory_space<vmem>>, %arg11: memref<256x768xbf16, #tpu.memory_space<vmem>>, %arg12: memref<1x768xf32, #tpu.memory_space<vmem>>, %arg13: memref<1x768xf32, #tpu.memory_space<vmem>>, %arg14: memref<256x256xbf16, #tpu.memory_space<vmem>>, %arg15: memref<1x256xf32, #tpu.memory_space<vmem>>, %arg16: memref<256x1xf32, #tpu.memory_space<vmem>>, %arg17: memref<256x1xf32, #tpu.memory_space<vmem>>, %arg18: memref<1x256xbf16, #tpu.memory_space<vmem>>, %arg19: memref<1x1xf32, #tpu.memory_space<vmem>>, %arg20: memref<768x768xbf16, #tpu.memory_space<vmem>>, %arg21: memref<256x768xbf16, #tpu.memory_space<vmem>>, %arg22: memref<1x768xf32, #tpu.memory_space<vmem>>, %arg23: memref<1x768xf32, #tpu.memory_space<vmem>>, %arg24: memref<1280x128xbf16, #tpu.memory_space<vmem>>, %arg25: memref<1x128xf32, #tpu.memory_space<vmem>>, %arg26: memref<128x128xbf16, #tpu.memory_space<vmem>>, %arg27: memref<1x128xf32, #tpu.memory_space<vmem>>, %arg28: memref<8x128xf32, #tpu.memory_space<vmem>>, %arg29: memref<8x256xf32, #tpu.memory_space<vmem>>, %arg30: memref<8x128xf32, #tpu.memory_space<vmem>>, %arg31: memref<8x128xf32, #tpu.memory_space<vmem>>, %arg32: memref<1x256xf32, #tpu.memory_space<vmem>>, %arg33: memref<1x128xf32, #tpu.memory_space<vmem>>) attributes {dimension_semantics = [#tpu.dimension_semantics<arbitrary>], iteration_bounds = array<i64: 8>, scalar_prefetch = 1 : i64, scratch_operands = 2 : i64, tpu.core_type = #tpu.core_type<tc>, window_params = [{pipeline_mode = #tpu.pipeline_mode<synchronous>, transform_indices = @transform_0, window_bounds = array<i64: 32, 256>}, {pipeline_mode = #tpu.pipeline_mode<synchronous>, transform_indices = @transform_1, window_bounds = array<i64: 1, 256>}, {pipeline_mode = #tpu.pipeline_mode<synchronous>, transform_indices = @transform_2, window_bounds = array<i64: 1, 128>}, {pipeline_mode = #tpu.pipeline_mode<synchronous>, transform_indices = @transform_3, window_bounds = array<i64: 8, 128>}, {pipeline_mode = #tpu.pipeline_mode<synchronous>, transform_indices = @transform_4, window_bounds = array<i64: 128, 768>}, {pipeline_mode = #tpu.pipeline_mode<synchronous>, transform_indices = @transform_5, window_bounds = array<i64: 256, 128>}, {pipeline_mode = #tpu.pipeline_mode<synchronous>, transform_indices = @transform_6, window_bounds = array<i64: 128, 128>}, {pipeline_mode = #tpu.pipeline_mode<synchronous>, transform_indices = @transform_7, window_bounds = array<i64: 1, 1>}, {pipeline_mode = #tpu.pipeline_mode<synchronous>, transform_indices = @transform_8, window_bounds = array<i64: 256, 768>}, {pipeline_mode = #tpu.pipeline_mode<synchronous>, transform_indices = @transform_9, window_bounds = array<i64: 256, 768>}, {pipeline_mode = #tpu.pipeline_mode<synchronous>, transform_indices = @transform_10, window_bounds = array<i64: 1, 768>}, {pipeline_mode = #tpu.pipeline_mode<synchronous>, transform_indices = @transform_11, window_bounds = array<i64: 1, 768>}, {pipeline_mode = #tpu.pipeline_mode<synchronous>, transform_indices = @transform_12, window_bounds = array<i64: 256, 256>}, {pipeline_mode = #tpu.pipeline_mode<synchronous>, transform_indices = @transform_13, window_bounds = array<i64: 1, 256>}, {pipeline_mode = #tpu.pipeline_mode<synchronous>, transform_indices = @transform_14, window_bounds = array<i64: 256, 1>}, {pipeline_mode = #tpu.pipeline_mode<synchronous>, transform_indices = @transform_15, window_bounds = array<i64: 256, 1>}, {pipeline_mode = #tpu.pipeline_mode<synchronous>, transform_indices = @transform_16, window_bounds = array<i64: 1, 256>}, {pipeline_mode = #tpu.pipeline_mode<synchronous>, transform_indices = @transform_17, window_bounds = array<i64: 1, 1>}, {pipeline_mode = #tpu.pipeline_mode<synchronous>, transform_indices = @transform_18, window_bounds = array<i64: 768, 768>}, {pipeline_mode = #tpu.pipeline_mode<synchronous>, transform_indices = @transform_19, window_bounds = array<i64: 256, 768>}, {pipeline_mode = #tpu.pipeline_mode<synchronous>, transform_indices = @transform_20, window_bounds = array<i64: 1, 768>}, {pipeline_mode = #tpu.pipeline_mode<synchronous>, transform_indices = @transform_21, window_bounds = array<i64: 1, 768>}, {pipeline_mode = #tpu.pipeline_mode<synchronous>, transform_indices = @transform_22, window_bounds = array<i64: 1280, 128>}, {pipeline_mode = #tpu.pipeline_mode<synchronous>, transform_indices = @transform_23, window_bounds = array<i64: 1, 128>}, {pipeline_mode = #tpu.pipeline_mode<synchronous>, transform_indices = @transform_24, window_bounds = array<i64: 128, 128>}, {pipeline_mode = #tpu.pipeline_mode<synchronous>, transform_indices = @transform_25, window_bounds = array<i64: 1, 128>}, {pipeline_mode = #tpu.pipeline_mode<synchronous>, transform_indices = @transform_26, window_bounds = array<i64: 8, 128>}, {pipeline_mode = #tpu.pipeline_mode<synchronous>, transform_indices = @transform_27, window_bounds = array<i64: 8, 256>}, {pipeline_mode = #tpu.pipeline_mode<synchronous>, transform_indices = @transform_28, window_bounds = array<i64: 8, 128>}, {pipeline_mode = #tpu.pipeline_mode<synchronous>, transform_indices = @transform_29, window_bounds = array<i64: 8, 128>}]} {
    %c0_i32 = arith.constant 0 : i32
    %0 = arith.cmpi eq, %arg0, %c0_i32 : i32
    %1 = arith.extui %0 : i1 to i32
    %c0_i32_0 = arith.constant 0 : i32
    %2 = arith.cmpi ne, %1, %c0_i32_0 : i32
    scf.if %2 {
      %c0_86 = arith.constant 0 : index
      %c0_87 = arith.constant 0 : index
      %168 = vector.load %arg3[%c0_86, %c0_87] : memref<1x256xf32, #tpu.memory_space<vmem>>, vector<1x256xf32>
      %c0_88 = arith.constant 0 : index
      %c0_89 = arith.constant 0 : index
      %169 = vector.load %arg32[%c0_88, %c0_89] : memref<1x256xf32, #tpu.memory_space<vmem>>, vector<1x256xf32>
      tpu.vector_store %arg32[%c0_88, %c0_89], %168 {strides = array<i32>} : memref<1x256xf32, #tpu.memory_space<vmem>>, vector<1x256xf32>,
      %c0_90 = arith.constant 0 : index
      %c0_91 = arith.constant 0 : index
      %170 = vector.load %arg4[%c0_90, %c0_91] : memref<1x128xf32, #tpu.memory_space<vmem>>, vector<1x128xf32>
      %c0_92 = arith.constant 0 : index
      %c0_93 = arith.constant 0 : index
      %171 = vector.load %arg33[%c0_92, %c0_93] : memref<1x128xf32, #tpu.memory_space<vmem>>, vector<1x128xf32>
      tpu.vector_store %arg33[%c0_92, %c0_93], %170 {strides = array<i32>} : memref<1x128xf32, #tpu.memory_space<vmem>>, vector<1x128xf32>,
    } else {
    }
    %3 = arith.index_cast %arg0 : i32 to index
    %4 = memref.load %arg1[%3] : memref<8xi32, #tpu.memory_space<smem>>
    %5 = arith.index_cast %4 : i32 to index
    %c0 = arith.constant 0 : index
    %6 = vector.load %arg2[%5, %c0] : memref<32x256xf32, #tpu.memory_space<vmem>>, vector<1x256xf32>
    %7 = arith.truncf %6 : vector<1x256xf32> to vector<1x256xbf16>
    %c0_1 = arith.constant 0 : index
    %c0_2 = arith.constant 0 : index
    %8 = vector.load %arg32[%c0_1, %c0_2] : memref<1x256xf32, #tpu.memory_space<vmem>>, vector<1x256xf32>
    %c0_3 = arith.constant 0 : index
    %c0_4 = arith.constant 0 : index
    %9 = vector.load %arg10[%c0_3, %c0_4] : memref<256x768xbf16, #tpu.memory_space<vmem>>, vector<256x768xbf16>
    %cst = arith.constant dense<0.000000e+00> : vector<1x768xf32>
    %10 = tpu.matmul %7, %9, %cst {dimension_numbers = #tpu.dot_dimension_numbers<[1], [0], [0], [1], [0, 0, 1, 1], [], []>} : vector<1x256xbf16>, vector<256x768xbf16>, vector<1x768xf32> -> vector<1x768xf32>
    %c0_5 = arith.constant 0 : index
    %c0_6 = arith.constant 0 : index
    %11 = vector.load %arg12[%c0_5, %c0_6] : memref<1x768xf32, #tpu.memory_space<vmem>>, vector<1x768xf32>
    %12 = arith.addf %10, %11 : vector<1x768xf32>
    %13 = arith.truncf %8 : vector<1x256xf32> to vector<1x256xbf16>
    %c0_7 = arith.constant 0 : index
    %c0_8 = arith.constant 0 : index
    %14 = vector.load %arg11[%c0_7, %c0_8] : memref<256x768xbf16, #tpu.memory_space<vmem>>, vector<256x768xbf16>
    %cst_9 = arith.constant dense<0.000000e+00> : vector<1x768xf32>
    %15 = tpu.matmul %13, %14, %cst_9 {dimension_numbers = #tpu.dot_dimension_numbers<[1], [0], [0], [1], [0, 0, 1, 1], [], []>} : vector<1x256xbf16>, vector<256x768xbf16>, vector<1x768xf32> -> vector<1x768xf32>
    %c0_10 = arith.constant 0 : index
    %c0_11 = arith.constant 0 : index
    %16 = vector.load %arg13[%c0_10, %c0_11] : memref<1x768xf32, #tpu.memory_space<vmem>>, vector<1x768xf32>
    %17 = arith.addf %15, %16 : vector<1x768xf32>
    %18 = vector.extract_strided_slice %12 {offsets = [0, 0], sizes = [1, 256], strides = [1, 1]} : vector<1x768xf32> to vector<1x256xf32>
    %19 = vector.extract_strided_slice %17 {offsets = [0, 0], sizes = [1, 256], strides = [1, 1]} : vector<1x768xf32> to vector<1x256xf32>
    %20 = arith.addf %18, %19 : vector<1x256xf32>
    %cst_12 = arith.constant 0.000000e+00 : f32
    %21 = vector.broadcast %cst_12 : f32 to vector<1x256xf32>
    %22 = arith.subf %21, %20 : vector<1x256xf32>
    %23 = math.exp %22 : vector<1x256xf32>
    %cst_13 = arith.constant 1.000000e+00 : f32
    %24 = vector.broadcast %cst_13 : f32 to vector<1x256xf32>
    %25 = arith.addf %24, %23 : vector<1x256xf32>
    %cst_14 = arith.constant 1.000000e+00 : f32
    %26 = vector.broadcast %cst_14 : f32 to vector<1x256xf32>
    %27 = arith.divf %26, %25 : vector<1x256xf32>
    %28 = vector.extract_strided_slice %12 {offsets = [0, 256], sizes = [1, 256], strides = [1, 1]} : vector<1x768xf32> to vector<1x256xf32>
    %29 = vector.extract_strided_slice %17 {offsets = [0, 256], sizes = [1, 256], strides = [1, 1]} : vector<1x768xf32> to vector<1x256xf32>
    %30 = arith.addf %28, %29 : vector<1x256xf32>
    %cst_15 = arith.constant 0.000000e+00 : f32
    %31 = vector.broadcast %cst_15 : f32 to vector<1x256xf32>
    %32 = arith.subf %31, %30 : vector<1x256xf32>
    %33 = math.exp %32 : vector<1x256xf32>
    %cst_16 = arith.constant 1.000000e+00 : f32
    %34 = vector.broadcast %cst_16 : f32 to vector<1x256xf32>
    %35 = arith.addf %34, %33 : vector<1x256xf32>
    %cst_17 = arith.constant 1.000000e+00 : f32
    %36 = vector.broadcast %cst_17 : f32 to vector<1x256xf32>
    %37 = arith.divf %36, %35 : vector<1x256xf32>
    %38 = vector.extract_strided_slice %12 {offsets = [0, 512], sizes = [1, 256], strides = [1, 1]} : vector<1x768xf32> to vector<1x256xf32>
    %39 = vector.extract_strided_slice %17 {offsets = [0, 512], sizes = [1, 256], strides = [1, 1]} : vector<1x768xf32> to vector<1x256xf32>
    %40 = arith.mulf %27, %39 : vector<1x256xf32>
    %41 = arith.addf %38, %40 : vector<1x256xf32>
    %42 = math.tanh %41 : vector<1x256xf32>
    %cst_18 = arith.constant 1.000000e+00 : f32
    %43 = vector.broadcast %cst_18 : f32 to vector<1x256xf32>
    %44 = arith.subf %43, %37 : vector<1x256xf32>
    %45 = arith.mulf %44, %42 : vector<1x256xf32>
    %46 = arith.mulf %37, %8 : vector<1x256xf32>
    %47 = arith.addf %45, %46 : vector<1x256xf32>
    %48 = arith.truncf %47 : vector<1x256xf32> to vector<1x256xbf16>
    %49 = arith.index_cast %arg0 : i32 to index
    %c0_19 = arith.constant 0 : index
    %50 = vector.load %arg5[%49, %c0_19] : memref<8x128xf32, #tpu.memory_space<vmem>>, vector<1x128xf32>
    %c0_20 = arith.constant 0 : index
    %c0_21 = arith.constant 0 : index
    %51 = vector.load %arg33[%c0_20, %c0_21] : memref<1x128xf32, #tpu.memory_space<vmem>>, vector<1x128xf32>
    %c0_22 = arith.constant 0 : index
    %c0_23 = arith.constant 0 : index
    %52 = vector.load %arg8[%c0_22, %c0_23] : memref<128x128xf32, #tpu.memory_space<vmem>>, vector<128x128xf32>
    %cst_24 = arith.constant dense<0.000000e+00> : vector<1x128xf32>
    %53 = tpu.matmul %50, %52, %cst_24 {dimension_numbers = #tpu.dot_dimension_numbers<[1], [0], [0], [1], [0, 0, 1, 1], [], []>} : vector<1x128xf32>, vector<128x128xf32>, vector<1x128xf32> -> vector<1x128xf32>
    %54 = arith.addf %51, %53 : vector<1x128xf32>
    %c0_25 = arith.constant 0 : index
    %c0_26 = arith.constant 0 : index
    %55 = vector.load %arg9[%c0_25, %c0_26] : memref<1x1xf32, #tpu.memory_space<vmem>>, vector<1x1xf32>
    %56 = vector.broadcast %55 : vector<1x1xf32> to vector<1x128xf32>
    %57 = arith.addf %54, %56 : vector<1x128xf32>
    %c0_27 = arith.constant 0 : index
    %c0_28 = arith.constant 0 : index
    %58 = vector.load %arg33[%c0_27, %c0_28] : memref<1x128xf32, #tpu.memory_space<vmem>>, vector<1x128xf32>
    tpu.vector_store %arg33[%c0_27, %c0_28], %57 {strides = array<i32>} : memref<1x128xf32, #tpu.memory_space<vmem>>, vector<1x128xf32>,
    %59 = arith.index_cast %arg0 : i32 to index
    %c0_29 = arith.constant 0 : index
    %60 = vector.load %arg31[%59, %c0_29] : memref<8x128xf32, #tpu.memory_space<vmem>>, vector<1x128xf32>
    tpu.vector_store %arg31[%59, %c0_29], %57 {strides = array<i32>} : memref<8x128xf32, #tpu.memory_space<vmem>>, vector<1x128xf32>,
    %c0_30 = arith.constant 0 : index
    %c0_31 = arith.constant 0 : index
    %61 = vector.load %arg14[%c0_30, %c0_31] : memref<256x256xbf16, #tpu.memory_space<vmem>>, vector<256x256xbf16>
    %cst_32 = arith.constant dense<0.000000e+00> : vector<1x256xf32>
    %62 = tpu.matmul %48, %61, %cst_32 {dimension_numbers = #tpu.dot_dimension_numbers<[1], [0], [0], [1], [0, 0, 1, 1], [], []>} : vector<1x256xbf16>, vector<256x256xbf16>, vector<1x256xf32> -> vector<1x256xf32>
    %c0_33 = arith.constant 0 : index
    %c0_34 = arith.constant 0 : index
    %63 = vector.load %arg15[%c0_33, %c0_34] : memref<1x256xf32, #tpu.memory_space<vmem>>, vector<1x256xf32>
    %64 = arith.addf %62, %63 : vector<1x256xf32>
    %65 = tpu.iota {dimensions = array<i32: 0>} : vector<256x256xi32>
    %66 = tpu.iota {dimensions = array<i32: 1>} : vector<256x256xi32>
    %67 = arith.cmpi eq, %65, %66 : vector<256x256xi32>
    %cst_35 = arith.constant 0.000000e+00 : f32
    %68 = vector.shape_cast %64 : vector<1x256xf32> to vector<1x256xf32>
    %69 = vector.broadcast %68 : vector<1x256xf32> to vector<256x256xf32>
    %70 = vector.broadcast %cst_35 : f32 to vector<256x256xf32>
    %71 = arith.select %67, %69, %70 : vector<256x256xi1>, vector<256x256xf32>
    %cst_36 = arith.constant dense<0.000000e+00> : vector<256xf32>
    %72 = vector.multi_reduction <add>, %71, %cst_36 [1] : vector<256x256xf32> to vector<256xf32>
    %73 = vector.shape_cast %72 : vector<256xf32> to vector<256x1xf32>
    %c0_37 = arith.constant 0 : index
    %c0_38 = arith.constant 0 : index
    %74 = vector.load %arg7[%c0_37, %c0_38] : memref<256x128xf32, #tpu.memory_space<vmem>>, vector<256x128xf32>
    %75 = vector.broadcast %73 : vector<256x1xf32> to vector<256x128xf32>
    %76 = arith.addf %75, %74 : vector<256x128xf32>
    %c0_39 = arith.constant 0 : index
    %c0_40 = arith.constant 0 : index
    %77 = vector.load %arg16[%c0_39, %c0_40] : memref<256x1xf32, #tpu.memory_space<vmem>>, vector<256x1xf32>
    %78 = vector.broadcast %77 : vector<256x1xf32> to vector<256x128xf32>
    %79 = vector.broadcast %57 : vector<1x128xf32> to vector<256x128xf32>
    %80 = arith.mulf %78, %79 : vector<256x128xf32>
    %81 = arith.addf %76, %80 : vector<256x128xf32>
    %c0_41 = arith.constant 0 : index
    %c0_42 = arith.constant 0 : index
    %82 = vector.load %arg17[%c0_41, %c0_42] : memref<256x1xf32, #tpu.memory_space<vmem>>, vector<256x1xf32>
    %83 = vector.broadcast %82 : vector<256x1xf32> to vector<256x128xf32>
    %84 = arith.addf %81, %83 : vector<256x128xf32>
    %85 = math.tanh %84 : vector<256x128xf32>
    %c0_43 = arith.constant 0 : index
    %c0_44 = arith.constant 0 : index
    %86 = vector.load %arg18[%c0_43, %c0_44] : memref<1x256xbf16, #tpu.memory_space<vmem>>, vector<1x256xbf16>
    %87 = arith.truncf %85 : vector<256x128xf32> to vector<256x128xbf16>
    %cst_45 = arith.constant dense<0.000000e+00> : vector<1x128xf32>
    %88 = tpu.matmul %86, %87, %cst_45 {dimension_numbers = #tpu.dot_dimension_numbers<[1], [0], [0], [1], [0, 0, 1, 1], [], []>} : vector<1x256xbf16>, vector<256x128xbf16>, vector<1x128xf32> -> vector<1x128xf32>
    %c0_46 = arith.constant 0 : index
    %c0_47 = arith.constant 0 : index
    %89 = vector.load %arg19[%c0_46, %c0_47] : memref<1x1xf32, #tpu.memory_space<vmem>>, vector<1x1xf32>
    %90 = vector.broadcast %89 : vector<1x1xf32> to vector<1x128xf32>
    %91 = arith.addf %88, %90 : vector<1x128xf32>
    %92 = math.exp %91 : vector<1x128xf32>
    %cst_48 = arith.constant dense<0.000000e+00> : vector<1xf32>
    %93 = vector.multi_reduction <add>, %92, %cst_48 [1] : vector<1x128xf32> to vector<1xf32>
    %94 = vector.shape_cast %93 : vector<1xf32> to vector<1x1xf32>
    %95 = tpu.reciprocal %94 {approx = true} : vector<1x1xf32> -> vector<1x1xf32>
    %96 = vector.broadcast %95 : vector<1x1xf32> to vector<1x128xf32>
    %97 = arith.mulf %92, %96 : vector<1x128xf32>
    %98 = arith.index_cast %arg0 : i32 to index
    %c0_49 = arith.constant 0 : index
    %99 = vector.load %arg30[%98, %c0_49] : memref<8x128xf32, #tpu.memory_space<vmem>>, vector<1x128xf32>
    tpu.vector_store %arg30[%98, %c0_49], %97 {strides = array<i32>} : memref<8x128xf32, #tpu.memory_space<vmem>>, vector<1x128xf32>,
    %100 = arith.truncf %97 : vector<1x128xf32> to vector<1x128xbf16>
    %c0_50 = arith.constant 0 : index
    %c0_51 = arith.constant 0 : index
    %101 = vector.load %arg6[%c0_50, %c0_51] : memref<128x768xbf16, #tpu.memory_space<vmem>>, vector<128x768xbf16>
    %cst_52 = arith.constant dense<0.000000e+00> : vector<1x768xf32>
    %102 = tpu.matmul %100, %101, %cst_52 {dimension_numbers = #tpu.dot_dimension_numbers<[1], [0], [0], [1], [0, 0, 1, 1], [], []>} : vector<1x128xbf16>, vector<128x768xbf16>, vector<1x768xf32> -> vector<1x768xf32>
    %103 = arith.truncf %102 : vector<1x768xf32> to vector<1x768xbf16>
    %c0_53 = arith.constant 0 : index
    %c0_54 = arith.constant 0 : index
    %104 = vector.load %arg20[%c0_53, %c0_54] : memref<768x768xbf16, #tpu.memory_space<vmem>>, vector<768x768xbf16>
    %cst_55 = arith.constant dense<0.000000e+00> : vector<1x768xf32>
    %105 = tpu.matmul %103, %104, %cst_55 {dimension_numbers = #tpu.dot_dimension_numbers<[1], [0], [0], [1], [0, 0, 1, 1], [], []>} : vector<1x768xbf16>, vector<768x768xbf16>, vector<1x768xf32> -> vector<1x768xf32>
    %c0_56 = arith.constant 0 : index
    %c0_57 = arith.constant 0 : index
    %106 = vector.load %arg22[%c0_56, %c0_57] : memref<1x768xf32, #tpu.memory_space<vmem>>, vector<1x768xf32>
    %107 = arith.addf %105, %106 : vector<1x768xf32>
    %c0_58 = arith.constant 0 : index
    %c0_59 = arith.constant 0 : index
    %108 = vector.load %arg21[%c0_58, %c0_59] : memref<256x768xbf16, #tpu.memory_space<vmem>>, vector<256x768xbf16>
    %cst_60 = arith.constant dense<0.000000e+00> : vector<1x768xf32>
    %109 = tpu.matmul %48, %108, %cst_60 {dimension_numbers = #tpu.dot_dimension_numbers<[1], [0], [0], [1], [0, 0, 1, 1], [], []>} : vector<1x256xbf16>, vector<256x768xbf16>, vector<1x768xf32> -> vector<1x768xf32>
    %c0_61 = arith.constant 0 : index
    %c0_62 = arith.constant 0 : index
    %110 = vector.load %arg23[%c0_61, %c0_62] : memref<1x768xf32, #tpu.memory_space<vmem>>, vector<1x768xf32>
    %111 = arith.addf %109, %110 : vector<1x768xf32>
    %112 = vector.extract_strided_slice %107 {offsets = [0, 0], sizes = [1, 256], strides = [1, 1]} : vector<1x768xf32> to vector<1x256xf32>
    %113 = vector.extract_strided_slice %111 {offsets = [0, 0], sizes = [1, 256], strides = [1, 1]} : vector<1x768xf32> to vector<1x256xf32>
    %114 = arith.addf %112, %113 : vector<1x256xf32>
    %cst_63 = arith.constant 0.000000e+00 : f32
    %115 = vector.broadcast %cst_63 : f32 to vector<1x256xf32>
    %116 = arith.subf %115, %114 : vector<1x256xf32>
    %117 = math.exp %116 : vector<1x256xf32>
    %cst_64 = arith.constant 1.000000e+00 : f32
    %118 = vector.broadcast %cst_64 : f32 to vector<1x256xf32>
    %119 = arith.addf %118, %117 : vector<1x256xf32>
    %cst_65 = arith.constant 1.000000e+00 : f32
    %120 = vector.broadcast %cst_65 : f32 to vector<1x256xf32>
    %121 = arith.divf %120, %119 : vector<1x256xf32>
    %122 = vector.extract_strided_slice %107 {offsets = [0, 256], sizes = [1, 256], strides = [1, 1]} : vector<1x768xf32> to vector<1x256xf32>
    %123 = vector.extract_strided_slice %111 {offsets = [0, 256], sizes = [1, 256], strides = [1, 1]} : vector<1x768xf32> to vector<1x256xf32>
    %124 = arith.addf %122, %123 : vector<1x256xf32>
    %cst_66 = arith.constant 0.000000e+00 : f32
    %125 = vector.broadcast %cst_66 : f32 to vector<1x256xf32>
    %126 = arith.subf %125, %124 : vector<1x256xf32>
    %127 = math.exp %126 : vector<1x256xf32>
    %cst_67 = arith.constant 1.000000e+00 : f32
    %128 = vector.broadcast %cst_67 : f32 to vector<1x256xf32>
    %129 = arith.addf %128, %127 : vector<1x256xf32>
    %cst_68 = arith.constant 1.000000e+00 : f32
    %130 = vector.broadcast %cst_68 : f32 to vector<1x256xf32>
    %131 = arith.divf %130, %129 : vector<1x256xf32>
    %132 = vector.extract_strided_slice %107 {offsets = [0, 512], sizes = [1, 256], strides = [1, 1]} : vector<1x768xf32> to vector<1x256xf32>
    %133 = vector.extract_strided_slice %111 {offsets = [0, 512], sizes = [1, 256], strides = [1, 1]} : vector<1x768xf32> to vector<1x256xf32>
    %134 = arith.mulf %121, %133 : vector<1x256xf32>
    %135 = arith.addf %132, %134 : vector<1x256xf32>
    %136 = math.tanh %135 : vector<1x256xf32>
    %cst_69 = arith.constant 1.000000e+00 : f32
    %137 = vector.broadcast %cst_69 : f32 to vector<1x256xf32>
    %138 = arith.subf %137, %131 : vector<1x256xf32>
    %139 = arith.mulf %138, %136 : vector<1x256xf32>
    %140 = arith.mulf %131, %47 : vector<1x256xf32>
    %141 = arith.addf %139, %140 : vector<1x256xf32>
    %c0_70 = arith.constant 0 : index
    %c0_71 = arith.constant 0 : index
    %142 = vector.load %arg32[%c0_70, %c0_71] : memref<1x256xf32, #tpu.memory_space<vmem>>, vector<1x256xf32>
    tpu.vector_store %arg32[%c0_70, %c0_71], %141 {strides = array<i32>} : memref<1x256xf32, #tpu.memory_space<vmem>>, vector<1x256xf32>,
    %143 = arith.index_cast %arg0 : i32 to index
    %c0_72 = arith.constant 0 : index
    %144 = vector.load %arg29[%143, %c0_72] : memref<8x256xf32, #tpu.memory_space<vmem>>, vector<1x256xf32>
    tpu.vector_store %arg29[%143, %c0_72], %141 {strides = array<i32>} : memref<8x256xf32, #tpu.memory_space<vmem>>, vector<1x256xf32>,
    %145 = arith.truncf %141 : vector<1x256xf32> to vector<1x256xbf16>
    %146 = tpu.concatenate %145, %7, %103 in 1 : vector<1x256xbf16>, vector<1x256xbf16>, vector<1x768xbf16> -> vector<1x1280xbf16>
    %c0_73 = arith.constant 0 : index
    %c0_74 = arith.constant 0 : index
    %147 = vector.load %arg24[%c0_73, %c0_74] : memref<1280x128xbf16, #tpu.memory_space<vmem>>, vector<1280x128xbf16>
    %cst_75 = arith.constant dense<0.000000e+00> : vector<1x128xf32>
    %148 = tpu.matmul %146, %147, %cst_75 {dimension_numbers = #tpu.dot_dimension_numbers<[1], [0], [0], [1], [0, 0, 1, 1], [], []>} : vector<1x1280xbf16>, vector<1280x128xbf16>, vector<1x128xf32> -> vector<1x128xf32>
    %c0_76 = arith.constant 0 : index
    %c0_77 = arith.constant 0 : index
    %149 = vector.load %arg25[%c0_76, %c0_77] : memref<1x128xf32, #tpu.memory_space<vmem>>, vector<1x128xf32>
    %150 = arith.addf %148, %149 : vector<1x128xf32>
    %151 = arith.truncf %150 : vector<1x128xf32> to vector<1x128xbf16>
    %c0_78 = arith.constant 0 : index
    %c0_79 = arith.constant 0 : index
    %152 = vector.load %arg26[%c0_78, %c0_79] : memref<128x128xbf16, #tpu.memory_space<vmem>>, vector<128x128xbf16>
    %cst_80 = arith.constant dense<0.000000e+00> : vector<1x128xf32>
    %153 = tpu.matmul %151, %152, %cst_80 {dimension_numbers = #tpu.dot_dimension_numbers<[1], [0], [0], [1], [0, 0, 1, 1], [], []>} : vector<1x128xbf16>, vector<128x128xbf16>, vector<1x128xf32> -> vector<1x128xf32>
    %c0_81 = arith.constant 0 : index
    %c0_82 = arith.constant 0 : index
    %154 = vector.load %arg27[%c0_81, %c0_82] : memref<1x128xf32, #tpu.memory_space<vmem>>, vector<1x128xf32>
    %155 = arith.addf %153, %154 : vector<1x128xf32>
    %cst_83 = arith.constant dense<0xFF800000> : vector<1xf32>
    %156 = vector.multi_reduction <maximumf>, %155, %cst_83 [1] : vector<1x128xf32> to vector<1xf32>
    %157 = vector.shape_cast %156 : vector<1xf32> to vector<1x1xf32>
    %158 = vector.broadcast %157 : vector<1x1xf32> to vector<1x128xf32>
    %159 = arith.subf %155, %158 : vector<1x128xf32>
    %160 = math.exp %159 : vector<1x128xf32>
    %cst_84 = arith.constant dense<0.000000e+00> : vector<1xf32>
    %161 = vector.multi_reduction <add>, %160, %cst_84 [1] : vector<1x128xf32> to vector<1xf32>
    %162 = vector.shape_cast %161 : vector<1xf32> to vector<1x1xf32>
    %163 = math.log %162 : vector<1x1xf32>
    %164 = vector.broadcast %163 : vector<1x1xf32> to vector<1x128xf32>
    %165 = arith.subf %159, %164 : vector<1x128xf32>
    %166 = arith.index_cast %arg0 : i32 to index
    %c0_85 = arith.constant 0 : index
    %167 = vector.load %arg28[%166, %c0_85] : memref<8x128xf32, #tpu.memory_space<vmem>>, vector<1x128xf32>
    tpu.vector_store %arg28[%166, %c0_85], %165 {strides = array<i32>} : memref<8x128xf32, #tpu.memory_space<vmem>>, vector<1x128xf32>,
    return
  }
  func.func @transform_0(%arg0: i32, %arg1: memref<8xi32, #tpu.memory_space<smem>>) -> (i32, i32) {
    %c0_i32 = arith.constant 0 : i32
    %c0_i32_0 = arith.constant 0 : i32
    %c0_i32_1 = arith.constant 0 : i32
    return %c0_i32, %c0_i32_0 : i32, i32
  }
  func.func @transform_1(%arg0: i32, %arg1: memref<8xi32, #tpu.memory_space<smem>>) -> (i32, i32) {
    %c0_i32 = arith.constant 0 : i32
    %c0_i32_0 = arith.constant 0 : i32
    %c0_i32_1 = arith.constant 0 : i32
    return %c0_i32, %c0_i32_0 : i32, i32
  }
  func.func @transform_2(%arg0: i32, %arg1: memref<8xi32, #tpu.memory_space<smem>>) -> (i32, i32) {
    %c0_i32 = arith.constant 0 : i32
    %c0_i32_0 = arith.constant 0 : i32
    %c0_i32_1 = arith.constant 0 : i32
    return %c0_i32, %c0_i32_0 : i32, i32
  }
  func.func @transform_3(%arg0: i32, %arg1: memref<8xi32, #tpu.memory_space<smem>>) -> (i32, i32) {
    %c0_i32 = arith.constant 0 : i32
    %c0_i32_0 = arith.constant 0 : i32
    %c0_i32_1 = arith.constant 0 : i32
    return %c0_i32, %c0_i32_0 : i32, i32
  }
  func.func @transform_4(%arg0: i32, %arg1: memref<8xi32, #tpu.memory_space<smem>>) -> (i32, i32) {
    %c0_i32 = arith.constant 0 : i32
    %c0_i32_0 = arith.constant 0 : i32
    %c0_i32_1 = arith.constant 0 : i32
    return %c0_i32, %c0_i32_0 : i32, i32
  }
  func.func @transform_5(%arg0: i32, %arg1: memref<8xi32, #tpu.memory_space<smem>>) -> (i32, i32) {
    %c0_i32 = arith.constant 0 : i32
    %c0_i32_0 = arith.constant 0 : i32
    %c0_i32_1 = arith.constant 0 : i32
    return %c0_i32, %c0_i32_0 : i32, i32
  }
  func.func @transform_6(%arg0: i32, %arg1: memref<8xi32, #tpu.memory_space<smem>>) -> (i32, i32) {
    %c0_i32 = arith.constant 0 : i32
    %c0_i32_0 = arith.constant 0 : i32
    %c0_i32_1 = arith.constant 0 : i32
    return %c0_i32, %c0_i32_0 : i32, i32
  }
  func.func @transform_7(%arg0: i32, %arg1: memref<8xi32, #tpu.memory_space<smem>>) -> (i32, i32) {
    %c0_i32 = arith.constant 0 : i32
    %c0_i32_0 = arith.constant 0 : i32
    %c0_i32_1 = arith.constant 0 : i32
    return %c0_i32, %c0_i32_0 : i32, i32
  }
  func.func @transform_8(%arg0: i32, %arg1: memref<8xi32, #tpu.memory_space<smem>>) -> (i32, i32) {
    %c0_i32 = arith.constant 0 : i32
    %c0_i32_0 = arith.constant 0 : i32
    %c0_i32_1 = arith.constant 0 : i32
    return %c0_i32, %c0_i32_0 : i32, i32
  }
  func.func @transform_9(%arg0: i32, %arg1: memref<8xi32, #tpu.memory_space<smem>>) -> (i32, i32) {
    %c0_i32 = arith.constant 0 : i32
    %c0_i32_0 = arith.constant 0 : i32
    %c0_i32_1 = arith.constant 0 : i32
    return %c0_i32, %c0_i32_0 : i32, i32
  }
  func.func @transform_10(%arg0: i32, %arg1: memref<8xi32, #tpu.memory_space<smem>>) -> (i32, i32) {
    %c0_i32 = arith.constant 0 : i32
    %c0_i32_0 = arith.constant 0 : i32
    %c0_i32_1 = arith.constant 0 : i32
    return %c0_i32, %c0_i32_0 : i32, i32
  }
  func.func @transform_11(%arg0: i32, %arg1: memref<8xi32, #tpu.memory_space<smem>>) -> (i32, i32) {
    %c0_i32 = arith.constant 0 : i32
    %c0_i32_0 = arith.constant 0 : i32
    %c0_i32_1 = arith.constant 0 : i32
    return %c0_i32, %c0_i32_0 : i32, i32
  }
  func.func @transform_12(%arg0: i32, %arg1: memref<8xi32, #tpu.memory_space<smem>>) -> (i32, i32) {
    %c0_i32 = arith.constant 0 : i32
    %c0_i32_0 = arith.constant 0 : i32
    %c0_i32_1 = arith.constant 0 : i32
    return %c0_i32, %c0_i32_0 : i32, i32
  }
  func.func @transform_13(%arg0: i32, %arg1: memref<8xi32, #tpu.memory_space<smem>>) -> (i32, i32) {
    %c0_i32 = arith.constant 0 : i32
    %c0_i32_0 = arith.constant 0 : i32
    %c0_i32_1 = arith.constant 0 : i32
    return %c0_i32, %c0_i32_0 : i32, i32
  }
  func.func @transform_14(%arg0: i32, %arg1: memref<8xi32, #tpu.memory_space<smem>>) -> (i32, i32) {
    %c0_i32 = arith.constant 0 : i32
    %c0_i32_0 = arith.constant 0 : i32
    %c0_i32_1 = arith.constant 0 : i32
    return %c0_i32, %c0_i32_0 : i32, i32
  }
  func.func @transform_15(%arg0: i32, %arg1: memref<8xi32, #tpu.memory_space<smem>>) -> (i32, i32) {
    %c0_i32 = arith.constant 0 : i32
    %c0_i32_0 = arith.constant 0 : i32
    %c0_i32_1 = arith.constant 0 : i32
    return %c0_i32, %c0_i32_0 : i32, i32
  }
  func.func @transform_16(%arg0: i32, %arg1: memref<8xi32, #tpu.memory_space<smem>>) -> (i32, i32) {
    %c0_i32 = arith.constant 0 : i32
    %c0_i32_0 = arith.constant 0 : i32
    %c0_i32_1 = arith.constant 0 : i32
    return %c0_i32, %c0_i32_0 : i32, i32
  }
  func.func @transform_17(%arg0: i32, %arg1: memref<8xi32, #tpu.memory_space<smem>>) -> (i32, i32) {
    %c0_i32 = arith.constant 0 : i32
    %c0_i32_0 = arith.constant 0 : i32
    %c0_i32_1 = arith.constant 0 : i32
    return %c0_i32, %c0_i32_0 : i32, i32
  }
  func.func @transform_18(%arg0: i32, %arg1: memref<8xi32, #tpu.memory_space<smem>>) -> (i32, i32) {
    %c0_i32 = arith.constant 0 : i32
    %c0_i32_0 = arith.constant 0 : i32
    %c0_i32_1 = arith.constant 0 : i32
    return %c0_i32, %c0_i32_0 : i32, i32
  }
  func.func @transform_19(%arg0: i32, %arg1: memref<8xi32, #tpu.memory_space<smem>>) -> (i32, i32) {
    %c0_i32 = arith.constant 0 : i32
    %c0_i32_0 = arith.constant 0 : i32
    %c0_i32_1 = arith.constant 0 : i32
    return %c0_i32, %c0_i32_0 : i32, i32
  }
  func.func @transform_20(%arg0: i32, %arg1: memref<8xi32, #tpu.memory_space<smem>>) -> (i32, i32) {
    %c0_i32 = arith.constant 0 : i32
    %c0_i32_0 = arith.constant 0 : i32
    %c0_i32_1 = arith.constant 0 : i32
    return %c0_i32, %c0_i32_0 : i32, i32
  }
  func.func @transform_21(%arg0: i32, %arg1: memref<8xi32, #tpu.memory_space<smem>>) -> (i32, i32) {
    %c0_i32 = arith.constant 0 : i32
    %c0_i32_0 = arith.constant 0 : i32
    %c0_i32_1 = arith.constant 0 : i32
    return %c0_i32, %c0_i32_0 : i32, i32
  }
  func.func @transform_22(%arg0: i32, %arg1: memref<8xi32, #tpu.memory_space<smem>>) -> (i32, i32) {
    %c0_i32 = arith.constant 0 : i32
    %c0_i32_0 = arith.constant 0 : i32
    %c0_i32_1 = arith.constant 0 : i32
    return %c0_i32, %c0_i32_0 : i32, i32
  }
  func.func @transform_23(%arg0: i32, %arg1: memref<8xi32, #tpu.memory_space<smem>>) -> (i32, i32) {
    %c0_i32 = arith.constant 0 : i32
    %c0_i32_0 = arith.constant 0 : i32
    %c0_i32_1 = arith.constant 0 : i32
    return %c0_i32, %c0_i32_0 : i32, i32
  }
  func.func @transform_24(%arg0: i32, %arg1: memref<8xi32, #tpu.memory_space<smem>>) -> (i32, i32) {
    %c0_i32 = arith.constant 0 : i32
    %c0_i32_0 = arith.constant 0 : i32
    %c0_i32_1 = arith.constant 0 : i32
    return %c0_i32, %c0_i32_0 : i32, i32
  }
  func.func @transform_25(%arg0: i32, %arg1: memref<8xi32, #tpu.memory_space<smem>>) -> (i32, i32) {
    %c0_i32 = arith.constant 0 : i32
    %c0_i32_0 = arith.constant 0 : i32
    %c0_i32_1 = arith.constant 0 : i32
    return %c0_i32, %c0_i32_0 : i32, i32
  }
  func.func @transform_26(%arg0: i32, %arg1: memref<8xi32, #tpu.memory_space<smem>>) -> (i32, i32) {
    %c0_i32 = arith.constant 0 : i32
    %c0_i32_0 = arith.constant 0 : i32
    %c0_i32_1 = arith.constant 0 : i32
    return %c0_i32, %c0_i32_0 : i32, i32
  }
  func.func @transform_27(%arg0: i32, %arg1: memref<8xi32, #tpu.memory_space<smem>>) -> (i32, i32) {
    %c0_i32 = arith.constant 0 : i32
    %c0_i32_0 = arith.constant 0 : i32
    %c0_i32_1 = arith.constant 0 : i32
    return %c0_i32, %c0_i32_0 : i32, i32
  }
  func.func @transform_28(%arg0: i32, %arg1: memref<8xi32, #tpu.memory_space<smem>>) -> (i32, i32) {
    %c0_i32 = arith.constant 0 : i32
    %c0_i32_0 = arith.constant 0 : i32
    %c0_i32_1 = arith.constant 0 : i32
    return %c0_i32, %c0_i32_0 : i32, i32
  }
  func.func @transform_29(%arg0: i32, %arg1: memref<8xi32, #tpu.memory_space<smem>>) -> (i32, i32) {
    %c0_i32 = arith.constant 0 : i32
    %c0_i32_0 = arith.constant 0 : i32
    %c0_i32_1 = arith.constant 0 : i32
    return %c0_i32, %c0_i32_0 : i32, i32
  }
}

</mosaic_0001>

<llo_original>
// kernel: tpu_custom_call.1
$region0: #{tpu_custom_call.1}
  #allocation0 [shape = 'u32[]', space=smem, size = 0x4, offset = 0x4, fixed_abs, tag = 'smem constant byte address 0x4 - core index']
  #allocation1 [shape = 'u32[144,128]{1,0:T(1,128)}', space=vmem, size = 0x12000, scoped, tag = 'internal scratch']
  #allocation2 [shape = 'f32[1,256]{1,0:T(1,128)}', space=vmem, size = 0x400, scoped, tag = 'scratch operand']
  #allocation3 [shape = 'f32[1,128]{1,0:T(1,128)}', space=vmem, size = 0x200, scoped, tag = 'scratch operand']
  #allocation4 [shape = 's32[1]{0}', space=sflag, size = 0x4, scoped, tag = 'scoped memory for tpu_custom_call.1']
  #allocation5 [shape = 'u8[512]{0}', space=smem, size = 0x200, scoped, tag = 'prefetched SMEM operand 0']
  #allocation6 [shape = 'f32[1,1]{1,0:T(1,128)S(1)}', space=vmem, size = 0x200, scoped, tag = 'scoped memory for tpu_custom_call.1']
  #allocation7 [shape = 'f32[1,1]{1,0:T(1,128)S(1)}', space=vmem, size = 0x200, scoped, tag = 'scoped memory for tpu_custom_call.1']
  %s0 = inlined_call_operand.smem [shape: u32[31], index: -1, kind: input, shape index: {}]
  %s1 = sld [smem:[%s0]]
  %s2 = scalar_lea.smem %s0, 1
  %s3 = sld [smem:[%s2]]
  %s4 = scalar_lea.smem %s0, 2
  %s5 = sld [smem:[%s4]]
  %s6 = scalar_lea.smem %s0, 3
  %s7 = sld [smem:[%s6]]
  %s8 = scalar_lea.smem %s0, 4
  %s9 = sld [smem:[%s8]]
  %s10 = scalar_lea.smem %s0, 5
  %s11 = sld [smem:[%s10]]
  %s12 = scalar_lea.smem %s0, 6
  %s13 = sld [smem:[%s12]]
  %s14 = scalar_lea.smem %s0, 7
  %s15 = sld [smem:[%s14]]
  %s16 = scalar_lea.smem %s0, 8
  %s17 = sld [smem:[%s16]]
  %s18 = scalar_lea.smem %s0, 9
  %s19 = sld [smem:[%s18]]
  %s20 = scalar_lea.smem %s0, 10
  %s21 = sld [smem:[%s20]]
  %s22 = scalar_lea.smem %s0, 11
  %s23 = sld [smem:[%s22]]
  %s24 = scalar_lea.smem %s0, 12
  %s25 = sld [smem:[%s24]]
  %s26 = scalar_lea.smem %s0, 13
  %s27 = sld [smem:[%s26]]
  %s28 = scalar_lea.smem %s0, 14
  %s29 = sld [smem:[%s28]]
  %s30 = scalar_lea.smem %s0, 15
  %s31 = sld [smem:[%s30]]
  %s32 = scalar_lea.smem %s0, 16
  %s33 = sld [smem:[%s32]]
  %s34 = scalar_lea.smem %s0, 17
  %s35 = sld [smem:[%s34]]
  %s36 = scalar_lea.smem %s0, 18
  %s37 = sld [smem:[%s36]]
  %s38 = scalar_lea.smem %s0, 19
  %s39 = sld [smem:[%s38]]
  %s40 = scalar_lea.smem %s0, 20
  %s41 = sld [smem:[%s40]]
  %s42 = scalar_lea.smem %s0, 21
  %s43 = sld [smem:[%s42]]
  %s44 = scalar_lea.smem %s0, 22
  %s45 = sld [smem:[%s44]]
  %s46 = scalar_lea.smem %s0, 23
  %s47 = sld [smem:[%s46]]
  %s48 = scalar_lea.smem %s0, 24
  %s49 = sld [smem:[%s48]]
  %s50 = scalar_lea.smem %s0, 25
  %s51 = sld [smem:[%s50]]
  %s52 = scalar_lea.smem %s0, 26
  %s53 = sld [smem:[%s52]]
  %s54 = scalar_lea.smem %s0, 27
  %s55 = sld [smem:[%s54]]
  %s56 = scalar_lea.smem %s0, 28
  %s57 = sld [smem:[%s56]]
  %s58 = scalar_lea.smem %s0, 29
  %s59 = sld [smem:[%s58]]
  %s60 = scalar_lea.smem %s0, 30
  %s61 = sld [smem:[%s60]]
  %62 = xla_tuple %s55, %s57, %s59, %s61
  %s63 = sld [smem:[#allocation0]]
  $region253: #{tpu_custom_call.1} parent=0
    _
  %s65 = ssub.s32 1, %s63
  %s66 = scalar_select 0, %s65, %s63
  %68 = dma.hbm_to_smem %s1, 16, [#allocation5], [#allocation4]
  %v69 = vstv %s17
  %70 = vst [vmem:[#allocation6] sm:$0x1] %v69
  %v71 = vstv %s37
  %72 = vst [vmem:[#allocation7] sm:$0x1] %v71
  %73 = dma.done [#allocation4], 16
  %74 = sfence
  $region1: #{tpu_custom_call.1} parent=0
    #allocation8 [shape = 'u8[32768]{0}', space=vmem, size = 0x8000, scoped, tag = 'input window, operand 1, single buffered']
    #allocation9 [shape = 's32[2]{0}', space=sflag, size = 0x8, scoped, tag = 'scoped memory for tpu_custom_call.1']
    #allocation10 [shape = 's32[2]{0}', space=sflag, size = 0x8, scoped, tag = 'scoped memory for tpu_custom_call.1']
    #allocation11 [shape = 'u8[1024]{0}', space=vmem, size = 0x400, scoped, tag = 'input window, operand 2, single buffered']
    #allocation12 [shape = 's32[1]{0}', space=sflag, size = 0x4, scoped, tag = 'scoped memory for tpu_custom_call.1']
    #allocation13 [shape = 'u8[512]{0}', space=vmem, size = 0x400, scoped, tag = 'input window, operand 3, single buffered']
    #allocation14 [shape = 'u8[4096]{0}', space=vmem, size = 0x1000, scoped, tag = 'input window, operand 4, single buffered']
    #allocation15 [shape = 's32[1]{0}', space=sflag, size = 0x4, scoped, tag = 'scoped memory for tpu_custom_call.1']
    #allocation16 [shape = 'u8[196608]{0}', space=vmem, size = 0x30000, scoped, tag = 'input window, operand 5, single buffered']
    #allocation17 [shape = 'u8[131072]{0}', space=vmem, size = 0x20000, scoped, tag = 'input window, operand 6, single buffered']
    #allocation18 [shape = 's32[1]{0}', space=sflag, size = 0x4, scoped, tag = 'scoped memory for tpu_custom_call.1']
    #allocation19 [shape = 'u8[65536]{0}', space=vmem, size = 0x10000, scoped, tag = 'input window, operand 7, single buffered']
    #allocation20 [shape = 'u8[393216]{0}', space=vmem, size = 0x60000, scoped, tag = 'input window, operand 9, single buffered']
    #allocation21 [shape = 's32[1]{0}', space=sflag, size = 0x4, scoped, tag = 'scoped memory for tpu_custom_call.1']
    #allocation22 [shape = 'u8[393216]{0}', space=vmem, size = 0x60000, scoped, tag = 'input window, operand 10, single buffered']
    #allocation23 [shape = 'u8[3072]{0}', space=vmem, size = 0xc00, scoped, tag = 'input window, operand 11, single buffered']
    #allocation24 [shape = 's32[1]{0}', space=sflag, size = 0x4, scoped, tag = 'scoped memory for tpu_custom_call.1']
    #allocation25 [shape = 'u8[3072]{0}', space=vmem, size = 0xc00, scoped, tag = 'input window, operand 12, single buffered']
    #allocation26 [shape = 'u8[131072]{0}', space=vmem, size = 0x20000, scoped, tag = 'input window, operand 13, single buffered']
    #allocation27 [shape = 's32[1]{0}', space=sflag, size = 0x4, scoped, tag = 'scoped memory for tpu_custom_call.1']
    #allocation28 [shape = 'u8[1024]{0}', space=vmem, size = 0x400, scoped, tag = 'input window, operand 14, single buffered']
    #allocation29 [shape = 'u8[1024]{0}', space=vmem, size = 0x400, scoped, tag = 'input window, operand 17, single buffered']
    #allocation30 [shape = 's32[1]{0}', space=sflag, size = 0x4, scoped, tag = 'scoped memory for tpu_custom_call.1']
    #allocation31 [shape = 'u8[1179648]{0}', space=vmem, size = 0x120000, scoped, tag = 'input window, operand 19, single buffered']
    #allocation32 [shape = 'u8[393216]{0}', space=vmem, size = 0x60000, scoped, tag = 'input window, operand 20, single buffered']
    #allocation33 [shape = 's32[1]{0}', space=sflag, size = 0x4, scoped, tag = 'scoped memory for tpu_custom_call.1']
    #allocation34 [shape = 'u8[3072]{0}', space=vmem, size = 0xc00, scoped, tag = 'input window, operand 21, single buffered']
    #allocation35 [shape = 'u8[3072]{0}', space=vmem, size = 0xc00, scoped, tag = 'input window, operand 22, single buffered']
    #allocation36 [shape = 's32[1]{0}', space=sflag, size = 0x4, scoped, tag = 'scoped memory for tpu_custom_call.1']
    #allocation37 [shape = 'u8[327680]{0}', space=vmem, size = 0x50000, scoped, tag = 'input window, operand 23, single buffered']
    #allocation38 [shape = 'u8[512]{0}', space=vmem, size = 0x400, scoped, tag = 'input window, operand 24, single buffered']
    #allocation39 [shape = 's32[1]{0}', space=sflag, size = 0x4, scoped, tag = 'scoped memory for tpu_custom_call.1']
    #allocation40 [shape = 'u8[32768]{0}', space=vmem, size = 0x8000, scoped, tag = 'input window, operand 25, single buffered']
    #allocation41 [shape = 'u8[512]{0}', space=vmem, size = 0x400, scoped, tag = 'input window, operand 26, single buffered']
    #allocation42 [shape = 's32[1]{0}', space=sflag, size = 0x4, scoped, tag = 'scoped memory for tpu_custom_call.1']
    #allocation43 [shape = 'u8[4096]{0}', space=vmem, size = 0x1000, scoped, tag = 'output window, operand 0, single buffered']
    #allocation44 [shape = 'u8[8192]{0}', space=vmem, size = 0x2000, scoped, tag = 'output window, operand 1, single buffered']
    #allocation45 [shape = 's32[1]{0}', space=sflag, size = 0x4, scoped, tag = 'scoped memory for tpu_custom_call.1']
    #allocation46 [shape = 'u8[4096]{0}', space=vmem, size = 0x1000, scoped, tag = 'output window, operand 2, single buffered']
    #allocation47 [shape = 'u8[4096]{0}', space=vmem, size = 0x1000, scoped, tag = 'output window, operand 3, single buffered']
    #allocation48 [shape = 's32[1]{0}', space=sflag, size = 0x4, scoped, tag = 'scoped memory for tpu_custom_call.1']
    %75 = vsyncpa [#allocation9], 0
    %76 = vsyncpa [#allocation12], 0
    %77 = vsyncpa [#allocation15], 0
    %78 = vsyncpa [#allocation18], 0
    %79 = vsyncpa [#allocation21], 0
    %80 = vsyncpa [#allocation24], 0
    %81 = vsyncpa [#allocation27], 0
    %82 = vsyncpa [#allocation30], 0
    %83 = vsyncpa [#allocation33], 0
    %84 = vsyncpa [#allocation36], 0
    %85 = vsyncpa [#allocation39], 0
    %86 = vsyncpa [#allocation42], 0
    %87 = vsyncpa [#allocation10], 0
    %88 = vsyncpa [#allocation45], 0
    %89 = vsyncpa [#allocation48], 0
    loop: start=0, step=1, limit=10
    $region2: #{tpu_custom_call.1} parent=1 // loop_pre_header
      _
    $region3: #{tpu_custom_call.1} parent=1 // loop_header
      %s91 = sphi 0, %s95
      %p92 = scmp.ge.s32.totalorder %s91, 10
      %s99 = sphi 0, %s99
      %s101 = sphi 0, %s99
      %s102 = sphi 0, %s101
      %s116 = sphi 0, %s102
      %s120 = sphi 0, %s120
      %s122 = sphi 0, %s120
      %s123 = sphi 0, %s122
      %s137 = sphi 0, %s123
      %s141 = sphi 0, %s141
      %s143 = sphi 0, %s141
      %s144 = sphi 0, %s143
      %s158 = sphi 0, %s144
      %s162 = sphi 0, %s162
      %s164 = sphi 0, %s162
      %s165 = sphi 0, %s164
      %s179 = sphi 0, %s165
      %s183 = sphi 0, %s183
      %s185 = sphi 0, %s183
      %s186 = sphi 0, %s185
      %s200 = sphi 0, %s186
      %s204 = sphi 0, %s204
      %s206 = sphi 0, %s204
      %s207 = sphi 0, %s206
      %s221 = sphi 0, %s207
      %s225 = sphi 0, %s225
      %s227 = sphi 0, %s225
      %s228 = sphi 0, %s227
      %s242 = sphi 0, %s228
      %s246 = sphi 0, %s246
      %s248 = sphi 0, %s246
      %s249 = sphi 0, %s248
      %s263 = sphi 0, %s249
      %s267 = sphi 0, %s267
      %s269 = sphi 0, %s267
      %s270 = sphi 0, %s269
      %s284 = sphi 0, %s270
      %s288 = sphi 0, %s288
      %s290 = sphi 0, %s288
      %s291 = sphi 0, %s290
      %s305 = sphi 0, %s291
      %s309 = sphi 0, %s309
      %s311 = sphi 0, %s309
      %s312 = sphi 0, %s311
      %s326 = sphi 0, %s312
      %s330 = sphi 0, %s330
      %s332 = sphi 0, %s330
      %s333 = sphi 0, %s332
      %s347 = sphi 0, %s333
      %s351 = sphi 0, %s351
      %s353 = sphi 0, %s351
      %s354 = sphi 0, %s353
      %s368 = sphi 0, %s354
      %s372 = sphi 0, %s372
      %s374 = sphi 0, %s372
      %s375 = sphi 0, %s374
      %s389 = sphi 0, %s375
      %s393 = sphi 0, %s393
      %s395 = sphi 0, %s393
      %s396 = sphi 0, %s395
      %s410 = sphi 0, %s396
      %s414 = sphi 0, %s414
      %s416 = sphi 0, %s414
      %s417 = sphi 0, %s416
      %s431 = sphi 0, %s417
      %s435 = sphi 0, %s435
      %s437 = sphi 0, %s435
      %s438 = sphi 0, %s437
      %s452 = sphi 0, %s438
      %s456 = sphi 0, %s456
      %s458 = sphi 0, %s456
      %s459 = sphi 0, %s458
      %s473 = sphi 0, %s459
      %s477 = sphi 0, %s477
      %s479 = sphi 0, %s477
      %s480 = sphi 0, %s479
      %s494 = sphi 0, %s480
      %s498 = sphi 0, %s498
      %s500 = sphi 0, %s498
      %s501 = sphi 0, %s500
      %s515 = sphi 0, %s501
      %s519 = sphi 0, %s519
      %s521 = sphi 0, %s519
      %s522 = sphi 0, %s521
      %s536 = sphi 0, %s522
      %s540 = sphi 0, %s540
      %s542 = sphi 0, %s540
      %s543 = sphi 0, %s542
      %s557 = sphi 0, %s543
      %s561 = sphi 0, %s561
      %s563 = sphi 0, %s561
      %s564 = sphi 0, %s563
      %s578 = sphi 0, %s564
      %s582 = sphi 0, %s582
      %s584 = sphi 0, %s582
      %s585 = sphi 0, %s584
      %s599 = sphi 0, %s585
      %s603 = sphi 0, %s603
      %s605 = sphi 0, %s603
      %s606 = sphi 0, %s605
      %s620 = sphi 0, %s606
      %s624 = sphi 0, %s624
      %s626 = sphi 0, %s624
      %s627 = sphi 0, %s626
      %s641 = sphi 0, %s627
      %s645 = sphi 0, %s645
      %s647 = sphi 0, %s645
      %s648 = sphi 0, %s647
      %s662 = sphi 0, %s648
      %s666 = sphi 0, %s666
      %s668 = sphi 0, %s666
      %s669 = sphi 0, %s668
      %s683 = sphi 0, %s669
      %s687 = sphi 0, %s687
      %s689 = sphi 0, %s687
      %s690 = sphi 0, %s689
      %s704 = sphi 0, %s690
      %s708 = sphi 0, %s708
      %s710 = sphi 0, %s708
      %s711 = sphi 0, %s710
      %s725 = sphi 0, %s711
    $region4: #{tpu_custom_call.1} parent=1 // loop_header_branch
      %94 = sbr.rel (%p92) target = $region8
    $region5: #{tpu_custom_call.1} parent=1 // loop_body
      %s96 = ssub.s32 %s91, 1
      %s97 = ssub.s32 %s91, 2
      %s98 = sadd.s32 %s91, 1
      %s100 = sadd.s32 %s99, 1
      %p103 = scmp.eq.s32.totalorder %s91, 7
      %p104 = scmp.ne.s32.totalorder %s99, %s101
      %p105 = scmp.eq.s32.totalorder %s91, 0
      %p106 = por %p104, %p105
      %p107 = scmp.ne.s32.totalorder %s99, %s101
      %p108 = scmp.eq.s32.totalorder %s96, 7
      %p109 = por %p107, %p108
      %p110 = scmp.ne.s32.totalorder %s101, %s102
      %p111 = scmp.eq.s32.totalorder %s96, 0
      %p112 = por %p110, %p111
      %p113 = scmp.ne.s32.totalorder %s101, %s102
      %p114 = scmp.eq.s32.totalorder %s97, 7
      %p115 = por %p113, %p114
      %p117 = scmp.ne.s32.totalorder %s102, %s116
      %p118 = scmp.eq.s32.totalorder %s97, 0
      %p119 = por %p117, %p118
      %s121 = sadd.s32 %s120, 1
      %p124 = scmp.eq.s32.totalorder %s91, 7
      %p125 = scmp.ne.s32.totalorder %s120, %s122
      %p126 = scmp.eq.s32.totalorder %s91, 0
      %p127 = por %p125, %p126
      %p128 = scmp.ne.s32.totalorder %s120, %s122
      %p129 = scmp.eq.s32.totalorder %s96, 7
      %p130 = por %p128, %p129
      %p131 = scmp.ne.s32.totalorder %s122, %s123
      %p132 = scmp.eq.s32.totalorder %s96, 0
      %p133 = por %p131, %p132
      %p134 = scmp.ne.s32.totalorder %s122, %s123
      %p135 = scmp.eq.s32.totalorder %s97, 7
      %p136 = por %p134, %p135
      %p138 = scmp.ne.s32.totalorder %s123, %s137
      %p139 = scmp.eq.s32.totalorder %s97, 0
      %p140 = por %p138, %p139
      %s142 = sadd.s32 %s141, 1
      %p145 = scmp.eq.s32.totalorder %s91, 7
      %p146 = scmp.ne.s32.totalorder %s141, %s143
      %p147 = scmp.eq.s32.totalorder %s91, 0
      %p148 = por %p146, %p147
      %p149 = scmp.ne.s32.totalorder %s141, %s143
      %p150 = scmp.eq.s32.totalorder %s96, 7
      %p151 = por %p149, %p150
      %p152 = scmp.ne.s32.totalorder %s143, %s144
      %p153 = scmp.eq.s32.totalorder %s96, 0
      %p154 = por %p152, %p153
      %p155 = scmp.ne.s32.totalorder %s143, %s144
      %p156 = scmp.eq.s32.totalorder %s97, 7
      %p157 = por %p155, %p156
      %p159 = scmp.ne.s32.totalorder %s144, %s158
      %p160 = scmp.eq.s32.totalorder %s97, 0
      %p161 = por %p159, %p160
      %s163 = sadd.s32 %s162, 1
      %p166 = scmp.eq.s32.totalorder %s91, 7
      %p167 = scmp.ne.s32.totalorder %s162, %s164
      %p168 = scmp.eq.s32.totalorder %s91, 0
      %p169 = por %p167, %p168
      %p170 = scmp.ne.s32.totalorder %s162, %s164
      %p171 = scmp.eq.s32.totalorder %s96, 7
      %p172 = por %p170, %p171
      %p173 = scmp.ne.s32.totalorder %s164, %s165
      %p174 = scmp.eq.s32.totalorder %s96, 0
      %p175 = por %p173, %p174
      %p176 = scmp.ne.s32.totalorder %s164, %s165
      %p177 = scmp.eq.s32.totalorder %s97, 7
      %p178 = por %p176, %p177
      %p180 = scmp.ne.s32.totalorder %s165, %s179
      %p181 = scmp.eq.s32.totalorder %s97, 0
      %p182 = por %p180, %p181
      %s184 = sadd.s32 %s183, 1
      %p187 = scmp.eq.s32.totalorder %s91, 7
      %p188 = scmp.ne.s32.totalorder %s183, %s185
      %p189 = scmp.eq.s32.totalorder %s91, 0
      %p190 = por %p188, %p189
      %p191 = scmp.ne.s32.totalorder %s183, %s185
      %p192 = scmp.eq.s32.totalorder %s96, 7
      %p193 = por %p191, %p192
      %p194 = scmp.ne.s32.totalorder %s185, %s186
      %p195 = scmp.eq.s32.totalorder %s96, 0
      %p196 = por %p194, %p195
      %p197 = scmp.ne.s32.totalorder %s185, %s186
      %p198 = scmp.eq.s32.totalorder %s97, 7
      %p199 = por %p197, %p198
      %p201 = scmp.ne.s32.totalorder %s186, %s200
      %p202 = scmp.eq.s32.totalorder %s97, 0
      %p203 = por %p201, %p202
      %s205 = sadd.s32 %s204, 1
      %p208 = scmp.eq.s32.totalorder %s91, 7
      %p209 = scmp.ne.s32.totalorder %s204, %s206
      %p210 = scmp.eq.s32.totalorder %s91, 0
      %p211 = por %p209, %p210
      %p212 = scmp.ne.s32.totalorder %s204, %s206
      %p213 = scmp.eq.s32.totalorder %s96, 7
      %p214 = por %p212, %p213
      %p215 = scmp.ne.s32.totalorder %s206, %s207
      %p216 = scmp.eq.s32.totalorder %s96, 0
      %p217 = por %p215, %p216
      %p218 = scmp.ne.s32.totalorder %s206, %s207
      %p219 = scmp.eq.s32.totalorder %s97, 7
      %p220 = por %p218, %p219
      %p222 = scmp.ne.s32.totalorder %s207, %s221
      %p223 = scmp.eq.s32.totalorder %s97, 0
      %p224 = por %p222, %p223
      %s226 = sadd.s32 %s225, 1
      %p229 = scmp.eq.s32.totalorder %s91, 7
      %p230 = scmp.ne.s32.totalorder %s225, %s227
      %p231 = scmp.eq.s32.totalorder %s91, 0
      %p232 = por %p230, %p231
      %p233 = scmp.ne.s32.totalorder %s225, %s227
      %p234 = scmp.eq.s32.totalorder %s96, 7
      %p235 = por %p233, %p234
      %p236 = scmp.ne.s32.totalorder %s227, %s228
      %p237 = scmp.eq.s32.totalorder %s96, 0
      %p238 = por %p236, %p237
      %p239 = scmp.ne.s32.totalorder %s227, %s228
      %p240 = scmp.eq.s32.totalorder %s97, 7
      %p241 = por %p239, %p240
      %p243 = scmp.ne.s32.totalorder %s228, %s242
      %p244 = scmp.eq.s32.totalorder %s97, 0
      %p245 = por %p243, %p244
      %s247 = sadd.s32 %s246, 1
      %p250 = scmp.eq.s32.totalorder %s91, 7
      %p251 = scmp.ne.s32.totalorder %s246, %s248
      %p252 = scmp.eq.s32.totalorder %s91, 0
      %p253 = por %p251, %p252
      %p254 = scmp.ne.s32.totalorder %s246, %s248
      %p255 = scmp.eq.s32.totalorder %s96, 7
      %p256 = por %p254, %p255
      %p257 = scmp.ne.s32.totalorder %s248, %s249
      %p258 = scmp.eq.s32.totalorder %s96, 0
      %p259 = por %p257, %p258
      %p260 = scmp.ne.s32.totalorder %s248, %s249
      %p261 = scmp.eq.s32.totalorder %s97, 7
      %p262 = por %p260, %p261
      %p264 = scmp.ne.s32.totalorder %s249, %s263
      %p265 = scmp.eq.s32.totalorder %s97, 0
      %p266 = por %p264, %p265
      %s268 = sadd.s32 %s267, 1
      %p271 = scmp.eq.s32.totalorder %s91, 7
      %p272 = scmp.ne.s32.totalorder %s267, %s269
      %p273 = scmp.eq.s32.totalorder %s91, 0
      %p274 = por %p272, %p273
      %p275 = scmp.ne.s32.totalorder %s267, %s269
      %p276 = scmp.eq.s32.totalorder %s96, 7
      %p277 = por %p275, %p276
      %p278 = scmp.ne.s32.totalorder %s269, %s270
      %p279 = scmp.eq.s32.totalorder %s96, 0
      %p280 = por %p278, %p279
      %p281 = scmp.ne.s32.totalorder %s269, %s270
      %p282 = scmp.eq.s32.totalorder %s97, 7
      %p283 = por %p281, %p282
      %p285 = scmp.ne.s32.totalorder %s270, %s284
      %p286 = scmp.eq.s32.totalorder %s97, 0
      %p287 = por %p285, %p286
      %s289 = sadd.s32 %s288, 1
      %p292 = scmp.eq.s32.totalorder %s91, 7
      %p293 = scmp.ne.s32.totalorder %s288, %s290
      %p294 = scmp.eq.s32.totalorder %s91, 0
      %p295 = por %p293, %p294
      %p296 = scmp.ne.s32.totalorder %s288, %s290
      %p297 = scmp.eq.s32.totalorder %s96, 7
      %p298 = por %p296, %p297
      %p299 = scmp.ne.s32.totalorder %s290, %s291
      %p300 = scmp.eq.s32.totalorder %s96, 0
      %p301 = por %p299, %p300
      %p302 = scmp.ne.s32.totalorder %s290, %s291
      %p303 = scmp.eq.s32.totalorder %s97, 7
      %p304 = por %p302, %p303
      %p306 = scmp.ne.s32.totalorder %s291, %s305
      %p307 = scmp.eq.s32.totalorder %s97, 0
      %p308 = por %p306, %p307
      %s310 = sadd.s32 %s309, 1
      %p313 = scmp.eq.s32.totalorder %s91, 7
      %p314 = scmp.ne.s32.totalorder %s309, %s311
      %p315 = scmp.eq.s32.totalorder %s91, 0
      %p316 = por %p314, %p315
      %p317 = scmp.ne.s32.totalorder %s309, %s311
      %p318 = scmp.eq.s32.totalorder %s96, 7
      %p319 = por %p317, %p318
      %p320 = scmp.ne.s32.totalorder %s311, %s312
      %p321 = scmp.eq.s32.totalorder %s96, 0
      %p322 = por %p320, %p321
      %p323 = scmp.ne.s32.totalorder %s311, %s312
      %p324 = scmp.eq.s32.totalorder %s97, 7
      %p325 = por %p323, %p324
      %p327 = scmp.ne.s32.totalorder %s312, %s326
      %p328 = scmp.eq.s32.totalorder %s97, 0
      %p329 = por %p327, %p328
      %s331 = sadd.s32 %s330, 1
      %p334 = scmp.eq.s32.totalorder %s91, 7
      %p335 = scmp.ne.s32.totalorder %s330, %s332
      %p336 = scmp.eq.s32.totalorder %s91, 0
      %p337 = por %p335, %p336
      %p338 = scmp.ne.s32.totalorder %s330, %s332
      %p339 = scmp.eq.s32.totalorder %s96, 7
      %p340 = por %p338, %p339
      %p341 = scmp.ne.s32.totalorder %s332, %s333
      %p342 = scmp.eq.s32.totalorder %s96, 0
      %p343 = por %p341, %p342
      %p344 = scmp.ne.s32.totalorder %s332, %s333
      %p345 = scmp.eq.s32.totalorder %s97, 7
      %p346 = por %p344, %p345
      %p348 = scmp.ne.s32.totalorder %s333, %s347
      %p349 = scmp.eq.s32.totalorder %s97, 0
      %p350 = por %p348, %p349
      %s352 = sadd.s32 %s351, 1
      %p355 = scmp.eq.s32.totalorder %s91, 7
      %p356 = scmp.ne.s32.totalorder %s351, %s353
      %p357 = scmp.eq.s32.totalorder %s91, 0
      %p358 = por %p356, %p357
      %p359 = scmp.ne.s32.totalorder %s351, %s353
      %p360 = scmp.eq.s32.totalorder %s96, 7
      %p361 = por %p359, %p360
      %p362 = scmp.ne.s32.totalorder %s353, %s354
      %p363 = scmp.eq.s32.totalorder %s96, 0
      %p364 = por %p362, %p363
      %p365 = scmp.ne.s32.totalorder %s353, %s354
      %p366 = scmp.eq.s32.totalorder %s97, 7
      %p367 = por %p365, %p366
      %p369 = scmp.ne.s32.totalorder %s354, %s368
      %p370 = scmp.eq.s32.totalorder %s97, 0
      %p371 = por %p369, %p370
      %s373 = sadd.s32 %s372, 1
      %p376 = scmp.eq.s32.totalorder %s91, 7
      %p377 = scmp.ne.s32.totalorder %s372, %s374
      %p378 = scmp.eq.s32.totalorder %s91, 0
      %p379 = por %p377, %p378
      %p380 = scmp.ne.s32.totalorder %s372, %s374
      %p381 = scmp.eq.s32.totalorder %s96, 7
      %p382 = por %p380, %p381
      %p383 = scmp.ne.s32.totalorder %s374, %s375
      %p384 = scmp.eq.s32.totalorder %s96, 0
      %p385 = por %p383, %p384
      %p386 = scmp.ne.s32.totalorder %s374, %s375
      %p387 = scmp.eq.s32.totalorder %s97, 7
      %p388 = por %p386, %p387
      %p390 = scmp.ne.s32.totalorder %s375, %s389
      %p391 = scmp.eq.s32.totalorder %s97, 0
      %p392 = por %p390, %p391
      %s394 = sadd.s32 %s393, 1
      %p397 = scmp.eq.s32.totalorder %s91, 7
      %p398 = scmp.ne.s32.totalorder %s393, %s395
      %p399 = scmp.eq.s32.totalorder %s91, 0
      %p400 = por %p398, %p399
      %p401 = scmp.ne.s32.totalorder %s393, %s395
      %p402 = scmp.eq.s32.totalorder %s96, 7
      %p403 = por %p401, %p402
      %p404 = scmp.ne.s32.totalorder %s395, %s396
      %p405 = scmp.eq.s32.totalorder %s96, 0
      %p406 = por %p404, %p405
      %p407 = scmp.ne.s32.totalorder %s395, %s396
      %p408 = scmp.eq.s32.totalorder %s97, 7
      %p409 = por %p407, %p408
      %p411 = scmp.ne.s32.totalorder %s396, %s410
      %p412 = scmp.eq.s32.totalorder %s97, 0
      %p413 = por %p411, %p412
      %s415 = sadd.s32 %s414, 1
      %p418 = scmp.eq.s32.totalorder %s91, 7
      %p419 = scmp.ne.s32.totalorder %s414, %s416
      %p420 = scmp.eq.s32.totalorder %s91, 0
      %p421 = por %p419, %p420
      %p422 = scmp.ne.s32.totalorder %s414, %s416
      %p423 = scmp.eq.s32.totalorder %s96, 7
      %p424 = por %p422, %p423
      %p425 = scmp.ne.s32.totalorder %s416, %s417
      %p426 = scmp.eq.s32.totalorder %s96, 0
      %p427 = por %p425, %p426
      %p428 = scmp.ne.s32.totalorder %s416, %s417
      %p429 = scmp.eq.s32.totalorder %s97, 7
      %p430 = por %p428, %p429
      %p432 = scmp.ne.s32.totalorder %s417, %s431
      %p433 = scmp.eq.s32.totalorder %s97, 0
      %p434 = por %p432, %p433
      %s436 = sadd.s32 %s435, 1
      %p439 = scmp.eq.s32.totalorder %s91, 7
      %p440 = scmp.ne.s32.totalorder %s435, %s437
      %p441 = scmp.eq.s32.totalorder %s91, 0
      %p442 = por %p440, %p441
      %p443 = scmp.ne.s32.totalorder %s435, %s437
      %p444 = scmp.eq.s32.totalorder %s96, 7
      %p445 = por %p443, %p444
      %p446 = scmp.ne.s32.totalorder %s437, %s438
      %p447 = scmp.eq.s32.totalorder %s96, 0
      %p448 = por %p446, %p447
      %p449 = scmp.ne.s32.totalorder %s437, %s438
      %p450 = scmp.eq.s32.totalorder %s97, 7
      %p451 = por %p449, %p450
      %p453 = scmp.ne.s32.totalorder %s438, %s452
      %p454 = scmp.eq.s32.totalorder %s97, 0
      %p455 = por %p453, %p454
      %s457 = sadd.s32 %s456, 1
      %p460 = scmp.eq.s32.totalorder %s91, 7
      %p461 = scmp.ne.s32.totalorder %s456, %s458
      %p462 = scmp.eq.s32.totalorder %s91, 0
      %p463 = por %p461, %p462
      %p464 = scmp.ne.s32.totalorder %s456, %s458
      %p465 = scmp.eq.s32.totalorder %s96, 7
      %p466 = por %p464, %p465
      %p467 = scmp.ne.s32.totalorder %s458, %s459
      %p468 = scmp.eq.s32.totalorder %s96, 0
      %p469 = por %p467, %p468
      %p470 = scmp.ne.s32.totalorder %s458, %s459
      %p471 = scmp.eq.s32.totalorder %s97, 7
      %p472 = por %p470, %p471
      %p474 = scmp.ne.s32.totalorder %s459, %s473
      %p475 = scmp.eq.s32.totalorder %s97, 0
      %p476 = por %p474, %p475
      %s478 = sadd.s32 %s477, 1
      %p481 = scmp.eq.s32.totalorder %s91, 7
      %p482 = scmp.ne.s32.totalorder %s477, %s479
      %p483 = scmp.eq.s32.totalorder %s91, 0
      %p484 = por %p482, %p483
      %p485 = scmp.ne.s32.totalorder %s477, %s479
      %p486 = scmp.eq.s32.totalorder %s96, 7
      %p487 = por %p485, %p486
      %p488 = scmp.ne.s32.totalorder %s479, %s480
      %p489 = scmp.eq.s32.totalorder %s96, 0
      %p490 = por %p488, %p489
      %p491 = scmp.ne.s32.totalorder %s479, %s480
      %p492 = scmp.eq.s32.totalorder %s97, 7
      %p493 = por %p491, %p492
      %p495 = scmp.ne.s32.totalorder %s480, %s494
      %p496 = scmp.eq.s32.totalorder %s97, 0
      %p497 = por %p495, %p496
      %s499 = sadd.s32 %s498, 1
      %p502 = scmp.eq.s32.totalorder %s91, 7
      %p503 = scmp.ne.s32.totalorder %s498, %s500
      %p504 = scmp.eq.s32.totalorder %s91, 0
      %p505 = por %p503, %p504
      %p506 = scmp.ne.s32.totalorder %s498, %s500
      %p507 = scmp.eq.s32.totalorder %s96, 7
      %p508 = por %p506, %p507
      %p509 = scmp.ne.s32.totalorder %s500, %s501
      %p510 = scmp.eq.s32.totalorder %s96, 0
      %p511 = por %p509, %p510
      %p512 = scmp.ne.s32.totalorder %s500, %s501
      %p513 = scmp.eq.s32.totalorder %s97, 7
      %p514 = por %p512, %p513
      %p516 = scmp.ne.s32.totalorder %s501, %s515
      %p517 = scmp.eq.s32.totalorder %s97, 0
      %p518 = por %p516, %p517
      %s520 = sadd.s32 %s519, 1
      %p523 = scmp.eq.s32.totalorder %s91, 7
      %p524 = scmp.ne.s32.totalorder %s519, %s521
      %p525 = scmp.eq.s32.totalorder %s91, 0
      %p526 = por %p524, %p525
      %p527 = scmp.ne.s32.totalorder %s519, %s521
      %p528 = scmp.eq.s32.totalorder %s96, 7
      %p529 = por %p527, %p528
      %p530 = scmp.ne.s32.totalorder %s521, %s522
      %p531 = scmp.eq.s32.totalorder %s96, 0
      %p532 = por %p530, %p531
      %p533 = scmp.ne.s32.totalorder %s521, %s522
      %p534 = scmp.eq.s32.totalorder %s97, 7
      %p535 = por %p533, %p534
      %p537 = scmp.ne.s32.totalorder %s522, %s536
      %p538 = scmp.eq.s32.totalorder %s97, 0
      %p539 = por %p537, %p538
      %s541 = sadd.s32 %s540, 1
      %p544 = scmp.eq.s32.totalorder %s91, 7
      %p545 = scmp.ne.s32.totalorder %s540, %s542
      %p546 = scmp.eq.s32.totalorder %s91, 0
      %p547 = por %p545, %p546
      %p548 = scmp.ne.s32.totalorder %s540, %s542
      %p549 = scmp.eq.s32.totalorder %s96, 7
      %p550 = por %p548, %p549
      %p551 = scmp.ne.s32.totalorder %s542, %s543
      %p552 = scmp.eq.s32.totalorder %s96, 0
      %p553 = por %p551, %p552
      %p554 = scmp.ne.s32.totalorder %s542, %s543
      %p555 = scmp.eq.s32.totalorder %s97, 7
      %p556 = por %p554, %p555
      %p558 = scmp.ne.s32.totalorder %s543, %s557
      %p559 = scmp.eq.s32.totalorder %s97, 0
      %p560 = por %p558, %p559
      %s562 = sadd.s32 %s561, 1
      %p565 = scmp.eq.s32.totalorder %s91, 7
      %p566 = scmp.ne.s32.totalorder %s561, %s563
      %p567 = scmp.eq.s32.totalorder %s91, 0
      %p568 = por %p566, %p567
      %p569 = scmp.ne.s32.totalorder %s561, %s563
      %p570 = scmp.eq.s32.totalorder %s96, 7
      %p571 = por %p569, %p570
      %p572 = scmp.ne.s32.totalorder %s563, %s564
      %p573 = scmp.eq.s32.totalorder %s96, 0
      %p574 = por %p572, %p573
      %p575 = scmp.ne.s32.totalorder %s563, %s564
      %p576 = scmp.eq.s32.totalorder %s97, 7
      %p577 = por %p575, %p576
      %p579 = scmp.ne.s32.totalorder %s564, %s578
      %p580 = scmp.eq.s32.totalorder %s97, 0
      %p581 = por %p579, %p580
      %s583 = sadd.s32 %s582, 1
      %p586 = scmp.eq.s32.totalorder %s91, 7
      %p587 = scmp.ne.s32.totalorder %s582, %s584
      %p588 = scmp.eq.s32.totalorder %s91, 0
      %p589 = por %p587, %p588
      %p590 = scmp.ne.s32.totalorder %s582, %s584
      %p591 = scmp.eq.s32.totalorder %s96, 7
      %p592 = por %p590, %p591
      %p593 = scmp.ne.s32.totalorder %s584, %s585
      %p594 = scmp.eq.s32.totalorder %s96, 0
      %p595 = por %p593, %p594
      %p596 = scmp.ne.s32.totalorder %s584, %s585
      %p597 = scmp.eq.s32.totalorder %s97, 7
      %p598 = por %p596, %p597
      %p600 = scmp.ne.s32.totalorder %s585, %s599
      %p601 = scmp.eq.s32.totalorder %s97, 0
      %p602 = por %p600, %p601
      %s604 = sadd.s32 %s603, 1
      %p607 = scmp.eq.s32.totalorder %s91, 7
      %p608 = scmp.ne.s32.totalorder %s603, %s605
      %p609 = scmp.eq.s32.totalorder %s91, 0
      %p610 = por %p608, %p609
      %p611 = scmp.ne.s32.totalorder %s603, %s605
      %p612 = scmp.eq.s32.totalorder %s96, 7
      %p613 = por %p611, %p612
      %p614 = scmp.ne.s32.totalorder %s605, %s606
      %p615 = scmp.eq.s32.totalorder %s96, 0
      %p616 = por %p614, %p615
      %p617 = scmp.ne.s32.totalorder %s605, %s606
      %p618 = scmp.eq.s32.totalorder %s97, 7
      %p619 = por %p617, %p618
      %p621 = scmp.ne.s32.totalorder %s606, %s620
      %p622 = scmp.eq.s32.totalorder %s97, 0
      %p623 = por %p621, %p622
      %s625 = sadd.s32 %s624, 1
      %p628 = scmp.eq.s32.totalorder %s91, 7
      %p629 = scmp.ne.s32.totalorder %s624, %s626
      %p630 = scmp.eq.s32.totalorder %s91, 0
      %p631 = por %p629, %p630
      %p632 = scmp.ne.s32.totalorder %s624, %s626
      %p633 = scmp.eq.s32.totalorder %s96, 7
      %p634 = por %p632, %p633
      %p635 = scmp.ne.s32.totalorder %s626, %s627
      %p636 = scmp.eq.s32.totalorder %s96, 0
      %p637 = por %p635, %p636
      %p638 = scmp.ne.s32.totalorder %s626, %s627
      %p639 = scmp.eq.s32.totalorder %s97, 7
      %p640 = por %p638, %p639
      %p642 = scmp.ne.s32.totalorder %s627, %s641
      %p643 = scmp.eq.s32.totalorder %s97, 0
      %p644 = por %p642, %p643
      %s646 = sadd.s32 %s645, 1
      %p649 = scmp.eq.s32.totalorder %s91, 7
      %p650 = scmp.ne.s32.totalorder %s645, %s647
      %p651 = scmp.eq.s32.totalorder %s91, 0
      %p652 = por %p650, %p651
      %p653 = scmp.ne.s32.totalorder %s645, %s647
      %p654 = scmp.eq.s32.totalorder %s96, 7
      %p655 = por %p653, %p654
      %p656 = scmp.ne.s32.totalorder %s647, %s648
      %p657 = scmp.eq.s32.totalorder %s96, 0
      %p658 = por %p656, %p657
      %p659 = scmp.ne.s32.totalorder %s647, %s648
      %p660 = scmp.eq.s32.totalorder %s97, 7
      %p661 = por %p659, %p660
      %p663 = scmp.ne.s32.totalorder %s648, %s662
      %p664 = scmp.eq.s32.totalorder %s97, 0
      %p665 = por %p663, %p664
      %s667 = sadd.s32 %s666, 1
      %p670 = scmp.eq.s32.totalorder %s91, 7
      %p671 = scmp.ne.s32.totalorder %s666, %s668
      %p672 = scmp.eq.s32.totalorder %s91, 0
      %p673 = por %p671, %p672
      %p674 = scmp.ne.s32.totalorder %s666, %s668
      %p675 = scmp.eq.s32.totalorder %s96, 7
      %p676 = por %p674, %p675
      %p677 = scmp.ne.s32.totalorder %s668, %s669
      %p678 = scmp.eq.s32.totalorder %s96, 0
      %p679 = por %p677, %p678
      %p680 = scmp.ne.s32.totalorder %s668, %s669
      %p681 = scmp.eq.s32.totalorder %s97, 7
      %p682 = por %p680, %p681
      %p684 = scmp.ne.s32.totalorder %s669, %s683
      %p685 = scmp.eq.s32.totalorder %s97, 0
      %p686 = por %p684, %p685
      %s688 = sadd.s32 %s687, 1
      %p691 = scmp.eq.s32.totalorder %s91, 7
      %p692 = scmp.ne.s32.totalorder %s687, %s689
      %p693 = scmp.eq.s32.totalorder %s91, 0
      %p694 = por %p692, %p693
      %p695 = scmp.ne.s32.totalorder %s687, %s689
      %p696 = scmp.eq.s32.totalorder %s96, 7
      %p697 = por %p695, %p696
      %p698 = scmp.ne.s32.totalorder %s689, %s690
      %p699 = scmp.eq.s32.totalorder %s96, 0
      %p700 = por %p698, %p699
      %p701 = scmp.ne.s32.totalorder %s689, %s690
      %p702 = scmp.eq.s32.totalorder %s97, 7
      %p703 = por %p701, %p702
      %p705 = scmp.ne.s32.totalorder %s690, %s704
      %p706 = scmp.eq.s32.totalorder %s97, 0
      %p707 = por %p705, %p706
      %s709 = sadd.s32 %s708, 1
      %p712 = scmp.eq.s32.totalorder %s91, 7
      %p713 = scmp.ne.s32.totalorder %s708, %s710
      %p714 = scmp.eq.s32.totalorder %s91, 0
      %p715 = por %p713, %p714
      %p716 = scmp.ne.s32.totalorder %s708, %s710
      %p717 = scmp.eq.s32.totalorder %s96, 7
      %p718 = por %p716, %p717
      %p719 = scmp.ne.s32.totalorder %s710, %s711
      %p720 = scmp.eq.s32.totalorder %s96, 0
      %p721 = por %p719, %p720
      %p722 = scmp.ne.s32.totalorder %s710, %s711
      %p723 = scmp.eq.s32.totalorder %s97, 7
      %p724 = por %p722, %p723
      %p726 = scmp.ne.s32.totalorder %s711, %s725
      %p727 = scmp.eq.s32.totalorder %s97, 0
      %p728 = por %p726, %p727
      %p729 = scmp.le.s32.totalorder 1, %s91
      %p730 = scmp.lt.s32.totalorder %s91, 9
      %p731 = pnand %p729, %p730
      %p732 = pneg %p731
      // Predicated region
      $region9: #{tpu_custom_call.1} parent=5 // pred_check
        _
      $region10: #{tpu_custom_call.1} parent=5 // pred_check_branch
        %734 = sbr.rel (%p731) target = $region12
      $region11: #{tpu_custom_call.1} parent=5 // pred_region
        %s735 = ssub.s32 %s91, 1
        // Predicated region
        $region13: #{tpu_custom_call.1} parent=11 // pred_check
          %p736 = pneg %p112
        $region14: #{tpu_custom_call.1} parent=11 // pred_check_branch
          %738 = sbr.rel (%p736) target = $region16
        $region15: #{tpu_custom_call.1} parent=11 // pred_region
          %s740 = ssub.s32 1024, 1024
          %741 = vsyncadd [#allocation9], %s740
          %s742 = sshll.u32 [#allocation8], 4
          %s743 = int_to_ptr.vmem [resolvable:$true] %s742
          %748 = dma.hbm_to_vmem [thread:$0]  %s3, 1024, %s743, [#allocation9], 256, 256, 16
        $region16: #{tpu_custom_call.1} parent=11 // pred_fallthru
          _
        // Predicated region
        $region17: #{tpu_custom_call.1} parent=11 // pred_check
          %p749 = pneg %p133
        $region18: #{tpu_custom_call.1} parent=11 // pred_check_branch
          %751 = sbr.rel (%p749) target = $region20
        $region19: #{tpu_custom_call.1} parent=11 // pred_region
          %s753 = ssub.s32 32, 32
          %754 = vsyncadd [#allocation12], %s753
          %s756 = sshll.u32 [#allocation11], 4
          %s757 = int_to_ptr.vmem [resolvable:$true] %s756
          %759 = dma.hbm_to_vmem [thread:$0]  %s5, 32, %s757, [#allocation12]
        $region20: #{tpu_custom_call.1} parent=11 // pred_fallthru
          _
        // Predicated region
        $region21: #{tpu_custom_call.1} parent=11 // pred_check
          %p760 = pneg %p154
        $region22: #{tpu_custom_call.1} parent=11 // pred_check_branch
          %762 = sbr.rel (%p760) target = $region24
        $region23: #{tpu_custom_call.1} parent=11 // pred_region
          %s764 = ssub.s32 16, 16
          %765 = vsyncadd [#allocation12], %s764
          %s767 = sshll.u32 [#allocation13], 4
          %s768 = int_to_ptr.vmem [resolvable:$true] %s767
          %770 = dma.hbm_to_vmem [thread:$0]  %s7, 16, %s768, [#allocation12]
        $region24: #{tpu_custom_call.1} parent=11 // pred_fallthru
          _
        // Predicated region
        $region25: #{tpu_custom_call.1} parent=11 // pred_check
          %p771 = pneg %p175
        $region26: #{tpu_custom_call.1} parent=11 // pred_check_branch
          %773 = sbr.rel (%p771) target = $region28
        $region27: #{tpu_custom_call.1} parent=11 // pred_region
          %s775 = ssub.s32 128, 128
          %776 = vsyncadd [#allocation15], %s775
          %s778 = sshll.u32 [#allocation14], 4
          %s779 = int_to_ptr.vmem [resolvable:$true] %s778
          %781 = dma.hbm_to_vmem [thread:$0]  %s9, 128, %s779, [#allocation15]
        $region28: #{tpu_custom_call.1} parent=11 // pred_fallthru
          _
        // Predicated region
        $region29: #{tpu_custom_call.1} parent=11 // pred_check
          %p782 = pneg %p196
        $region30: #{tpu_custom_call.1} parent=11 // pred_check_branch
          %784 = sbr.rel (%p782) target = $region32
        $region31: #{tpu_custom_call.1} parent=11 // pred_region
          %s786 = ssub.s32 6144, 6144
          %787 = vsyncadd [#allocation15], %s786
          %s788 = sshll.u32 [#allocation16], 4
          %s789 = int_to_ptr.vmem [resolvable:$true] %s788
          %794 = dma.hbm_to_vmem [thread:$0]  %s11, 6144, %s789, [#allocation15], 384, 384, 24
        $region32: #{tpu_custom_call.1} parent=11 // pred_fallthru
          _
        // Predicated region
        $region33: #{tpu_custom_call.1} parent=11 // pred_check
          %p795 = pneg %p217
        $region34: #{tpu_custom_call.1} parent=11 // pred_check_branch
          %797 = sbr.rel (%p795) target = $region36
        $region35: #{tpu_custom_call.1} parent=11 // pred_region
          %s799 = ssub.s32 4096, 4096
          %800 = vsyncadd [#allocation18], %s799
          %s801 = sshll.u32 [#allocation17], 4
          %s802 = int_to_ptr.vmem [resolvable:$true] %s801
          %807 = dma.hbm_to_vmem [thread:$0]  %s13, 4096, %s802, [#allocation18], 128, 128, 8
        $region36: #{tpu_custom_call.1} parent=11 // pred_fallthru
          _
        // Predicated region
        $region37: #{tpu_custom_call.1} parent=11 // pred_check
          %p808 = pneg %p238
        $region38: #{tpu_custom_call.1} parent=11 // pred_check_branch
          %810 = sbr.rel (%p808) target = $region40
        $region39: #{tpu_custom_call.1} parent=11 // pred_region
          %s812 = ssub.s32 2048, 2048
          %813 = vsyncadd [#allocation18], %s812
          %s814 = sshll.u32 [#allocation19], 4
          %s815 = int_to_ptr.vmem [resolvable:$true] %s814
          %820 = dma.hbm_to_vmem [thread:$0]  %s15, 2048, %s815, [#allocation18], 128, 128, 8
        $region40: #{tpu_custom_call.1} parent=11 // pred_fallthru
          _
        // Predicated region
        $region41: #{tpu_custom_call.1} parent=11 // pred_check
          %p821 = pneg %p259
        $region42: #{tpu_custom_call.1} parent=11 // pred_check_branch
          %823 = sbr.rel (%p821) target = $region44
        $region43: #{tpu_custom_call.1} parent=11 // pred_region
          _
        $region44: #{tpu_custom_call.1} parent=11 // pred_fallthru
          _
        // Predicated region
        $region45: #{tpu_custom_call.1} parent=11 // pred_check
          %p824 = pneg %p280
        $region46: #{tpu_custom_call.1} parent=11 // pred_check_branch
          %826 = sbr.rel (%p824) target = $region48
        $region47: #{tpu_custom_call.1} parent=11 // pred_region
          %s828 = ssub.s32 12288, 12288
          %829 = vsyncadd [#allocation21], %s828
          %s830 = sshll.u32 [#allocation20], 4
          %s831 = int_to_ptr.vmem [resolvable:$true] %s830
          %836 = dma.hbm_to_vmem [thread:$0]  %s19, 12288, %s831, [#allocation21], 384, 384, 24
        $region48: #{tpu_custom_call.1} parent=11 // pred_fallthru
          _
        // Predicated region
        $region49: #{tpu_custom_call.1} parent=11 // pred_check
          %p837 = pneg %p301
        $region50: #{tpu_custom_call.1} parent=11 // pred_check_branch
          %839 = sbr.rel (%p837) target = $region52
        $region51: #{tpu_custom_call.1} parent=11 // pred_region
          %s841 = ssub.s32 12288, 12288
          %842 = vsyncadd [#allocation21], %s841
          %s843 = sshll.u32 [#allocation22], 4
          %s844 = int_to_ptr.vmem [resolvable:$true] %s843
          %849 = dma.hbm_to_vmem [thread:$0]  %s21, 12288, %s844, [#allocation21], 384, 384, 24
        $region52: #{tpu_custom_call.1} parent=11 // pred_fallthru
          _
        // Predicated region
        $region53: #{tpu_custom_call.1} parent=11 // pred_check
          %p850 = pneg %p322
        $region54: #{tpu_custom_call.1} parent=11 // pred_check_branch
          %852 = sbr.rel (%p850) target = $region56
        $region55: #{tpu_custom_call.1} parent=11 // pred_region
          %s854 = ssub.s32 96, 96
          %855 = vsyncadd [#allocation24], %s854
          %s857 = sshll.u32 [#allocation23], 4
          %s858 = int_to_ptr.vmem [resolvable:$true] %s857
          %860 = dma.hbm_to_vmem [thread:$0]  %s23, 96, %s858, [#allocation24]
        $region56: #{tpu_custom_call.1} parent=11 // pred_fallthru
          _
        // Predicated region
        $region57: #{tpu_custom_call.1} parent=11 // pred_check
          %p861 = pneg %p343
        $region58: #{tpu_custom_call.1} parent=11 // pred_check_branch
          %863 = sbr.rel (%p861) target = $region60
        $region59: #{tpu_custom_call.1} parent=11 // pred_region
          %s865 = ssub.s32 96, 96
          %866 = vsyncadd [#allocation24], %s865
          %s868 = sshll.u32 [#allocation25], 4
          %s869 = int_to_ptr.vmem [resolvable:$true] %s868
          %871 = dma.hbm_to_vmem [thread:$0]  %s25, 96, %s869, [#allocation24]
        $region60: #{tpu_custom_call.1} parent=11 // pred_fallthru
          _
        // Predicated region
        $region61: #{tpu_custom_call.1} parent=11 // pred_check
          %p872 = pneg %p364
        $region62: #{tpu_custom_call.1} parent=11 // pred_check_branch
          %874 = sbr.rel (%p872) target = $region64
        $region63: #{tpu_custom_call.1} parent=11 // pred_region
          %s876 = ssub.s32 4096, 4096
          %877 = vsyncadd [#allocation27], %s876
          %s878 = sshll.u32 [#allocation26], 4
          %s879 = int_to_ptr.vmem [resolvable:$true] %s878
          %884 = dma.hbm_to_vmem [thread:$0]  %s27, 4096, %s879, [#allocation27], 128, 128, 8
        $region64: #{tpu_custom_call.1} parent=11 // pred_fallthru
          _
        // Predicated region
        $region65: #{tpu_custom_call.1} parent=11 // pred_check
          %p885 = pneg %p385
        $region66: #{tpu_custom_call.1} parent=11 // pred_check_branch
          %887 = sbr.rel (%p885) target = $region68
        $region67: #{tpu_custom_call.1} parent=11 // pred_region
          %s889 = ssub.s32 32, 32
          %890 = vsyncadd [#allocation27], %s889
          %s892 = sshll.u32 [#allocation28], 4
          %s893 = int_to_ptr.vmem [resolvable:$true] %s892
          %895 = dma.hbm_to_vmem [thread:$0]  %s29, 32, %s893, [#allocation27]
        $region68: #{tpu_custom_call.1} parent=11 // pred_fallthru
          _
        // Predicated region
        $region69: #{tpu_custom_call.1} parent=11 // pred_check
          %p896 = pneg %p406
        $region70: #{tpu_custom_call.1} parent=11 // pred_check_branch
          %898 = sbr.rel (%p896) target = $region72
        $region71: #{tpu_custom_call.1} parent=11 // pred_region
          _
        $region72: #{tpu_custom_call.1} parent=11 // pred_fallthru
          _
        // Predicated region
        $region73: #{tpu_custom_call.1} parent=11 // pred_check
          %p899 = pneg %p427
        $region74: #{tpu_custom_call.1} parent=11 // pred_check_branch
          %901 = sbr.rel (%p899) target = $region76
        $region75: #{tpu_custom_call.1} parent=11 // pred_region
          _
        $region76: #{tpu_custom_call.1} parent=11 // pred_fallthru
          _
        // Predicated region
        $region77: #{tpu_custom_call.1} parent=11 // pred_check
          %p902 = pneg %p448
        $region78: #{tpu_custom_call.1} parent=11 // pred_check_branch
          %904 = sbr.rel (%p902) target = $region80
        $region79: #{tpu_custom_call.1} parent=11 // pred_region
          %s906 = ssub.s32 32, 32
          %907 = vsyncadd [#allocation30], %s906
          %s909 = sshll.u32 [#allocation29], 4
          %s910 = int_to_ptr.vmem [resolvable:$true] %s909
          %912 = dma.hbm_to_vmem [thread:$0]  %s35, 32, %s910, [#allocation30]
        $region80: #{tpu_custom_call.1} parent=11 // pred_fallthru
          _
        // Predicated region
        $region81: #{tpu_custom_call.1} parent=11 // pred_check
          %p913 = pneg %p469
        $region82: #{tpu_custom_call.1} parent=11 // pred_check_branch
          %915 = sbr.rel (%p913) target = $region84
        $region83: #{tpu_custom_call.1} parent=11 // pred_region
          _
        $region84: #{tpu_custom_call.1} parent=11 // pred_fallthru
          _
        // Predicated region
        $region85: #{tpu_custom_call.1} parent=11 // pred_check
          %p916 = pneg %p490
        $region86: #{tpu_custom_call.1} parent=11 // pred_check_branch
          %918 = sbr.rel (%p916) target = $region88
        $region87: #{tpu_custom_call.1} parent=11 // pred_region
          %s920 = ssub.s32 36864, 36864
          %921 = vsyncadd [#allocation30], %s920
          %s922 = sshll.u32 [#allocation31], 4
          %s923 = int_to_ptr.vmem [resolvable:$true] %s922
          %928 = dma.hbm_to_vmem [thread:$0]  %s39, 36864, %s923, [#allocation30], 384, 384, 24
        $region88: #{tpu_custom_call.1} parent=11 // pred_fallthru
          _
        // Predicated region
        $region89: #{tpu_custom_call.1} parent=11 // pred_check
          %p929 = pneg %p511
        $region90: #{tpu_custom_call.1} parent=11 // pred_check_branch
          %931 = sbr.rel (%p929) target = $region92
        $region91: #{tpu_custom_call.1} parent=11 // pred_region
          %s933 = ssub.s32 12288, 12288
          %934 = vsyncadd [#allocation33], %s933
          %s935 = sshll.u32 [#allocation32], 4
          %s936 = int_to_ptr.vmem [resolvable:$true] %s935
          %941 = dma.hbm_to_vmem [thread:$0]  %s41, 12288, %s936, [#allocation33], 384, 384, 24
        $region92: #{tpu_custom_call.1} parent=11 // pred_fallthru
          _
        // Predicated region
        $region93: #{tpu_custom_call.1} parent=11 // pred_check
          %p942 = pneg %p532
        $region94: #{tpu_custom_call.1} parent=11 // pred_check_branch
          %944 = sbr.rel (%p942) target = $region96
        $region95: #{tpu_custom_call.1} parent=11 // pred_region
          %s946 = ssub.s32 96, 96
          %947 = vsyncadd [#allocation33], %s946
          %s949 = sshll.u32 [#allocation34], 4
          %s950 = int_to_ptr.vmem [resolvable:$true] %s949
          %952 = dma.hbm_to_vmem [thread:$0]  %s43, 96, %s950, [#allocation33]
        $region96: #{tpu_custom_call.1} parent=11 // pred_fallthru
          _
        // Predicated region
        $region97: #{tpu_custom_call.1} parent=11 // pred_check
          %p953 = pneg %p553
        $region98: #{tpu_custom_call.1} parent=11 // pred_check_branch
          %955 = sbr.rel (%p953) target = $region100
        $region99: #{tpu_custom_call.1} parent=11 // pred_region
          %s957 = ssub.s32 96, 96
          %958 = vsyncadd [#allocation36], %s957
          %s960 = sshll.u32 [#allocation35], 4
          %s961 = int_to_ptr.vmem [resolvable:$true] %s960
          %963 = dma.hbm_to_vmem [thread:$0]  %s45, 96, %s961, [#allocation36]
        $region100: #{tpu_custom_call.1} parent=11 // pred_fallthru
          _
        // Predicated region
        $region101: #{tpu_custom_call.1} parent=11 // pred_check
          %p964 = pneg %p574
        $region102: #{tpu_custom_call.1} parent=11 // pred_check_branch
          %966 = sbr.rel (%p964) target = $region104
        $region103: #{tpu_custom_call.1} parent=11 // pred_region
          %s968 = ssub.s32 10240, 10240
          %969 = vsyncadd [#allocation36], %s968
          %s970 = sshll.u32 [#allocation37], 4
          %s971 = int_to_ptr.vmem [resolvable:$true] %s970
          %976 = dma.hbm_to_vmem [thread:$0]  %s47, 10240, %s971, [#allocation36], 64, 64, 4
        $region104: #{tpu_custom_call.1} parent=11 // pred_fallthru
          _
        // Predicated region
        $region105: #{tpu_custom_call.1} parent=11 // pred_check
          %p977 = pneg %p595
        $region106: #{tpu_custom_call.1} parent=11 // pred_check_branch
          %979 = sbr.rel (%p977) target = $region108
        $region107: #{tpu_custom_call.1} parent=11 // pred_region
          %s981 = ssub.s32 16, 16
          %982 = vsyncadd [#allocation39], %s981
          %s984 = sshll.u32 [#allocation38], 4
          %s985 = int_to_ptr.vmem [resolvable:$true] %s984
          %987 = dma.hbm_to_vmem [thread:$0]  %s49, 16, %s985, [#allocation39]
        $region108: #{tpu_custom_call.1} parent=11 // pred_fallthru
          _
        // Predicated region
        $region109: #{tpu_custom_call.1} parent=11 // pred_check
          %p988 = pneg %p616
        $region110: #{tpu_custom_call.1} parent=11 // pred_check_branch
          %990 = sbr.rel (%p988) target = $region112
        $region111: #{tpu_custom_call.1} parent=11 // pred_region
          %s992 = ssub.s32 1024, 1024
          %993 = vsyncadd [#allocation39], %s992
          %s994 = sshll.u32 [#allocation40], 4
          %s995 = int_to_ptr.vmem [resolvable:$true] %s994
          %1000 = dma.hbm_to_vmem [thread:$0]  %s51, 1024, %s995, [#allocation39], 64, 64, 4
        $region112: #{tpu_custom_call.1} parent=11 // pred_fallthru
          _
        // Predicated region
        $region113: #{tpu_custom_call.1} parent=11 // pred_check
          %p1001 = pneg %p637
        $region114: #{tpu_custom_call.1} parent=11 // pred_check_branch
          %1003 = sbr.rel (%p1001) target = $region116
        $region115: #{tpu_custom_call.1} parent=11 // pred_region
          %s1005 = ssub.s32 16, 16
          %1006 = vsyncadd [#allocation42], %s1005
          %s1008 = sshll.u32 [#allocation41], 4
          %s1009 = int_to_ptr.vmem [resolvable:$true] %s1008
          %1011 = dma.hbm_to_vmem [thread:$0]  %s53, 16, %s1009, [#allocation42]
        $region116: #{tpu_custom_call.1} parent=11 // pred_fallthru
          _
      $region12: #{tpu_custom_call.1} parent=5 // pred_fallthru
        _
      %p1012 = scmp.lt.s32.totalorder %s91, 8
      // Predicated region
      $region117: #{tpu_custom_call.1} parent=5 // pred_check
        %p1013 = pneg %p1012
      $region118: #{tpu_custom_call.1} parent=5 // pred_check_branch
        %1015 = sbr.rel (%p1013) target = $region120
      $region119: #{tpu_custom_call.1} parent=5 // pred_region
        _
      $region120: #{tpu_custom_call.1} parent=5 // pred_fallthru
        _
      %p1016 = scmp.le.s32.totalorder 1, %s91
      %p1017 = scmp.lt.s32.totalorder %s91, 9
      %p1018 = pnand %p1016, %p1017
      %p1019 = pneg %p1018
      // Predicated region
      $region121: #{tpu_custom_call.1} parent=5 // pred_check
        _
      $region122: #{tpu_custom_call.1} parent=5 // pred_check_branch
        %1021 = sbr.rel (%p1018) target = $region124
      $region123: #{tpu_custom_call.1} parent=5 // pred_region
        %s1022 = ssub.s32 %s91, 1
        // Predicated region
        $region125: #{tpu_custom_call.1} parent=123 // pred_check
          %p1023 = pneg %p112
        $region126: #{tpu_custom_call.1} parent=123 // pred_check_branch
          %1025 = sbr.rel (%p1023) target = $region128
        $region127: #{tpu_custom_call.1} parent=123 // pred_region
          %1026 = dma.done [#allocation9], 1024
        $region128: #{tpu_custom_call.1} parent=123 // pred_fallthru
          _
        // Predicated region
        $region129: #{tpu_custom_call.1} parent=123 // pred_check
          %p1027 = pneg %p133
        $region130: #{tpu_custom_call.1} parent=123 // pred_check_branch
          %1029 = sbr.rel (%p1027) target = $region132
        $region131: #{tpu_custom_call.1} parent=123 // pred_region
          %1030 = dma.done [#allocation12], 32
        $region132: #{tpu_custom_call.1} parent=123 // pred_fallthru
          _
        // Predicated region
        $region133: #{tpu_custom_call.1} parent=123 // pred_check
          %p1031 = pneg %p154
        $region134: #{tpu_custom_call.1} parent=123 // pred_check_branch
          %1033 = sbr.rel (%p1031) target = $region136
        $region135: #{tpu_custom_call.1} parent=123 // pred_region
          %1034 = dma.done [#allocation12], 16
        $region136: #{tpu_custom_call.1} parent=123 // pred_fallthru
          _
        // Predicated region
        $region137: #{tpu_custom_call.1} parent=123 // pred_check
          %p1035 = pneg %p175
        $region138: #{tpu_custom_call.1} parent=123 // pred_check_branch
          %1037 = sbr.rel (%p1035) target = $region140
        $region139: #{tpu_custom_call.1} parent=123 // pred_region
          %1038 = dma.done [#allocation15], 128
        $region140: #{tpu_custom_call.1} parent=123 // pred_fallthru
          _
        // Predicated region
        $region141: #{tpu_custom_call.1} parent=123 // pred_check
          %p1039 = pneg %p196
        $region142: #{tpu_custom_call.1} parent=123 // pred_check_branch
          %1041 = sbr.rel (%p1039) target = $region144
        $region143: #{tpu_custom_call.1} parent=123 // pred_region
          %1042 = dma.done [#allocation15], 6144
        $region144: #{tpu_custom_call.1} parent=123 // pred_fallthru
          _
        // Predicated region
        $region145: #{tpu_custom_call.1} parent=123 // pred_check
          %p1043 = pneg %p217
        $region146: #{tpu_custom_call.1} parent=123 // pred_check_branch
          %1045 = sbr.rel (%p1043) target = $region148
        $region147: #{tpu_custom_call.1} parent=123 // pred_region
          %1046 = dma.done [#allocation18], 4096
        $region148: #{tpu_custom_call.1} parent=123 // pred_fallthru
          _
        // Predicated region
        $region149: #{tpu_custom_call.1} parent=123 // pred_check
          %p1047 = pneg %p238
        $region150: #{tpu_custom_call.1} parent=123 // pred_check_branch
          %1049 = sbr.rel (%p1047) target = $region152
        $region151: #{tpu_custom_call.1} parent=123 // pred_region
          %1050 = dma.done [#allocation18], 2048
        $region152: #{tpu_custom_call.1} parent=123 // pred_fallthru
          _
        // Predicated region
        $region153: #{tpu_custom_call.1} parent=123 // pred_check
          %p1051 = pneg %p280
        $region154: #{tpu_custom_call.1} parent=123 // pred_check_branch
          %1053 = sbr.rel (%p1051) target = $region156
        $region155: #{tpu_custom_call.1} parent=123 // pred_region
          %1054 = dma.done [#allocation21], 12288
        $region156: #{tpu_custom_call.1} parent=123 // pred_fallthru
          _
        // Predicated region
        $region157: #{tpu_custom_call.1} parent=123 // pred_check
          %p1055 = pneg %p301
        $region158: #{tpu_custom_call.1} parent=123 // pred_check_branch
          %1057 = sbr.rel (%p1055) target = $region160
        $region159: #{tpu_custom_call.1} parent=123 // pred_region
          %1058 = dma.done [#allocation21], 12288
        $region160: #{tpu_custom_call.1} parent=123 // pred_fallthru
          _
        // Predicated region
        $region161: #{tpu_custom_call.1} parent=123 // pred_check
          %p1059 = pneg %p322
        $region162: #{tpu_custom_call.1} parent=123 // pred_check_branch
          %1061 = sbr.rel (%p1059) target = $region164
        $region163: #{tpu_custom_call.1} parent=123 // pred_region
          %1062 = dma.done [#allocation24], 96
        $region164: #{tpu_custom_call.1} parent=123 // pred_fallthru
          _
        // Predicated region
        $region165: #{tpu_custom_call.1} parent=123 // pred_check
          %p1063 = pneg %p343
        $region166: #{tpu_custom_call.1} parent=123 // pred_check_branch
          %1065 = sbr.rel (%p1063) target = $region168
        $region167: #{tpu_custom_call.1} parent=123 // pred_region
          %1066 = dma.done [#allocation24], 96
        $region168: #{tpu_custom_call.1} parent=123 // pred_fallthru
          _
        // Predicated region
        $region169: #{tpu_custom_call.1} parent=123 // pred_check
          %p1067 = pneg %p364
        $region170: #{tpu_custom_call.1} parent=123 // pred_check_branch
          %1069 = sbr.rel (%p1067) target = $region172
        $region171: #{tpu_custom_call.1} parent=123 // pred_region
          %1070 = dma.done [#allocation27], 4096
        $region172: #{tpu_custom_call.1} parent=123 // pred_fallthru
          _
        // Predicated region
        $region173: #{tpu_custom_call.1} parent=123 // pred_check
          %p1071 = pneg %p385
        $region174: #{tpu_custom_call.1} parent=123 // pred_check_branch
          %1073 = sbr.rel (%p1071) target = $region176
        $region175: #{tpu_custom_call.1} parent=123 // pred_region
          %1074 = dma.done [#allocation27], 32
        $region176: #{tpu_custom_call.1} parent=123 // pred_fallthru
          _
        // Predicated region
        $region177: #{tpu_custom_call.1} parent=123 // pred_check
          %p1075 = pneg %p448
        $region178: #{tpu_custom_call.1} parent=123 // pred_check_branch
          %1077 = sbr.rel (%p1075) target = $region180
        $region179: #{tpu_custom_call.1} parent=123 // pred_region
          %1078 = dma.done [#allocation30], 32
        $region180: #{tpu_custom_call.1} parent=123 // pred_fallthru
          _
        // Predicated region
        $region181: #{tpu_custom_call.1} parent=123 // pred_check
          %p1079 = pneg %p490
        $region182: #{tpu_custom_call.1} parent=123 // pred_check_branch
          %1081 = sbr.rel (%p1079) target = $region184
        $region183: #{tpu_custom_call.1} parent=123 // pred_region
          %1082 = dma.done [#allocation30], 36864
        $region184: #{tpu_custom_call.1} parent=123 // pred_fallthru
          _
        // Predicated region
        $region185: #{tpu_custom_call.1} parent=123 // pred_check
          %p1083 = pneg %p511
        $region186: #{tpu_custom_call.1} parent=123 // pred_check_branch
          %1085 = sbr.rel (%p1083) target = $region188
        $region187: #{tpu_custom_call.1} parent=123 // pred_region
          %1086 = dma.done [#allocation33], 12288
        $region188: #{tpu_custom_call.1} parent=123 // pred_fallthru
          _
        // Predicated region
        $region189: #{tpu_custom_call.1} parent=123 // pred_check
          %p1087 = pneg %p532
        $region190: #{tpu_custom_call.1} parent=123 // pred_check_branch
          %1089 = sbr.rel (%p1087) target = $region192
        $region191: #{tpu_custom_call.1} parent=123 // pred_region
          %1090 = dma.done [#allocation33], 96
        $region192: #{tpu_custom_call.1} parent=123 // pred_fallthru
          _
        // Predicated region
        $region193: #{tpu_custom_call.1} parent=123 // pred_check
          %p1091 = pneg %p553
        $region194: #{tpu_custom_call.1} parent=123 // pred_check_branch
          %1093 = sbr.rel (%p1091) target = $region196
        $region195: #{tpu_custom_call.1} parent=123 // pred_region
          %1094 = dma.done [#allocation36], 96
        $region196: #{tpu_custom_call.1} parent=123 // pred_fallthru
          _
        // Predicated region
        $region197: #{tpu_custom_call.1} parent=123 // pred_check
          %p1095 = pneg %p574
        $region198: #{tpu_custom_call.1} parent=123 // pred_check_branch
          %1097 = sbr.rel (%p1095) target = $region200
        $region199: #{tpu_custom_call.1} parent=123 // pred_region
          %1098 = dma.done [#allocation36], 10240
        $region200: #{tpu_custom_call.1} parent=123 // pred_fallthru
          _
        // Predicated region
        $region201: #{tpu_custom_call.1} parent=123 // pred_check
          %p1099 = pneg %p595
        $region202: #{tpu_custom_call.1} parent=123 // pred_check_branch
          %1101 = sbr.rel (%p1099) target = $region204
        $region203: #{tpu_custom_call.1} parent=123 // pred_region
          %1102 = dma.done [#allocation39], 16
        $region204: #{tpu_custom_call.1} parent=123 // pred_fallthru
          _
        // Predicated region
        $region205: #{tpu_custom_call.1} parent=123 // pred_check
          %p1103 = pneg %p616
        $region206: #{tpu_custom_call.1} parent=123 // pred_check_branch
          %1105 = sbr.rel (%p1103) target = $region208
        $region207: #{tpu_custom_call.1} parent=123 // pred_region
          %1106 = dma.done [#allocation39], 1024
        $region208: #{tpu_custom_call.1} parent=123 // pred_fallthru
          _
        // Predicated region
        $region209: #{tpu_custom_call.1} parent=123 // pred_check
          %p1107 = pneg %p637
        $region210: #{tpu_custom_call.1} parent=123 // pred_check_branch
          %1109 = sbr.rel (%p1107) target = $region212
        $region211: #{tpu_custom_call.1} parent=123 // pred_region
          %1110 = dma.done [#allocation42], 16
        $region212: #{tpu_custom_call.1} parent=123 // pred_fallthru
          _
        %p1111 = pneg %p112
        %p1112 = pneg %p109
        %p1113 = pneg %p133
        %p1114 = pneg %p130
        %p1115 = pneg %p154
        %p1116 = pneg %p151
        %p1117 = pneg %p175
        %p1118 = pneg %p172
        %p1119 = pneg %p196
        %p1120 = pneg %p193
        %p1121 = pneg %p217
        %p1122 = pneg %p214
        %p1123 = pneg %p238
        %p1124 = pneg %p235
        %p1125 = pneg %p259
        %p1126 = pneg %p256
        %p1127 = pneg %p280
        %p1128 = pneg %p277
        %p1129 = pneg %p301
        %p1130 = pneg %p298
        %p1131 = pneg %p322
        %p1132 = pneg %p319
        %p1133 = pneg %p343
        %p1134 = pneg %p340
        %p1135 = pneg %p364
        %p1136 = pneg %p361
        %p1137 = pneg %p385
        %p1138 = pneg %p382
        %p1139 = pneg %p406
        %p1140 = pneg %p403
        %p1141 = pneg %p427
        %p1142 = pneg %p424
        %p1143 = pneg %p448
        %p1144 = pneg %p445
        %p1145 = pneg %p469
        %p1146 = pneg %p466
        %p1147 = pneg %p490
        %p1148 = pneg %p487
        %p1149 = pneg %p511
        %p1150 = pneg %p508
        %p1151 = pneg %p532
        %p1152 = pneg %p529
        %p1153 = pneg %p553
        %p1154 = pneg %p550
        %p1155 = pneg %p574
        %p1156 = pneg %p571
        %p1157 = pneg %p595
        %p1158 = pneg %p592
        %p1159 = pneg %p616
        %p1160 = pneg %p613
        %p1161 = pneg %p637
        %p1162 = pneg %p634
        %p1163 = pneg %p658
        %p1164 = pneg %p655
        %p1165 = pneg %p679
        %p1166 = pneg %p676
        %p1167 = pneg %p700
        %p1168 = pneg %p697
        %p1169 = pneg %p721
        %p1170 = pneg %p718
        %p1172 = scmp.eq.s32.totalorder %s96, 0
        // Predicated region
        $region213: #{tpu_custom_call.1} parent=123 // pred_check
          %p1173 = pneg %p1172
        $region214: #{tpu_custom_call.1} parent=123 // pred_check_branch
          %1175 = sbr.rel (%p1173) target = $region216
        $region215: #{tpu_custom_call.1} parent=123 // pred_region
          %v1176 = vld [vmem:[#allocation11] sm:$0x3]
          %v1177 = vlaneseq
          %vm1178 = vcmp.ge.s32.totalorder %v1177, 0
          %vm1179 = vcmp.lt.s32.totalorder %v1177, 256
          %vm1180 = vmand %vm1178, %vm1179
          %1181 = vst.msk [vmem:[#allocation2] sm:$0x3] %vm1180, %v1176
          %v1182 = vld [vmem:[#allocation13] sm:$0x1]
          %1183 = vst [vmem:[#allocation3] sm:$0x1] %v1182
        $region216: #{tpu_custom_call.1} parent=123 // pred_fallthru
          _
        %s1184 = sld [smem:[#allocation5 + %s96]]
        %s1185 = sshra.s32 %s1184, 3
        %s1186 = sand.u32 %s1184, 7
        %s1187 = sshra.s32 %s1184, 3
        %s1188 = sand.u32 %s1184, 7
        %s1189 = smul.u32 %s1185, 2
        %s1190 = smul.u32 %s1189, 8
        %s1191 = sadd.s32 %s1190, %s1188
        %s1192 = scalar_lea.vmem [#allocation8], %s1191
        %v1193 = vld [vmem:[%s1192] ss:$8 sm:$0x3]
        %v1195 = vlaneseq
        %v1196 = vshrl.u32 %v1195, 7
        %v1197 = vsub.s32 0, %v1196
        %v1198 = vrot.slane %v1193, %v1197
        %v1199 = vlaneseq
        %v1200 = vshrl.u32 %v1199, 7
        %v1201 = vsub.s32 1, %v1200
        %v1202 = vrot.slane %v1193, %v1201
        %v1205 = vpack.c.bf16 %v1198, %v1198
        %v1206 = vpack.c.bf16 %v1202, %v1202
        %v1207 = vld [vmem:[#allocation2] sm:$0x3]
        %v1208 = vld [vmem:[#allocation20] sm:$0xff]
        %v1209 = vld [vmem:[#allocation20 + $0x8] sm:$0xff]
        %v1210 = vld [vmem:[#allocation20 + $0x10] sm:$0xff]
        %v1211 = vld [vmem:[#allocation20 + $0x18] sm:$0xff]
        %v1212 = vld [vmem:[#allocation20 + $0x20] sm:$0xff]
        %v1213 = vld [vmem:[#allocation20 + $0x28] sm:$0xff]
        %v1214 = vld [vmem:[#allocation20 + $0x30] sm:$0xff]
        %v1215 = vld [vmem:[#allocation20 + $0x38] sm:$0xff]
        %v1216 = vld [vmem:[#allocation20 + $0x40] sm:$0xff]
        %v1217 = vld [vmem:[#allocation20 + $0x48] sm:$0xff]
        %v1218 = vld [vmem:[#allocation20 + $0x50] sm:$0xff]
        %v1219 = vld [vmem:[#allocation20 + $0x58] sm:$0xff]
        %v1220 = vld [vmem:[#allocation20 + $0x60] sm:$0xff]
        %v1221 = vld [vmem:[#allocation20 + $0x68] sm:$0xff]
        %v1222 = vld [vmem:[#allocation20 + $0x70] sm:$0xff]
        %v1223 = vld [vmem:[#allocation20 + $0x78] sm:$0xff]
        %v1224 = vld [vmem:[#allocation20 + $0x80] sm:$0xff]
        %v1225 = vld [vmem:[#allocation20 + $0x88] sm:$0xff]
        %v1226 = vld [vmem:[#allocation20 + $0x90] sm:$0xff]
        %v1227 = vld [vmem:[#allocation20 + $0x98] sm:$0xff]
        %v1228 = vld [vmem:[#allocation20 + $0xa0] sm:$0xff]
        %v1229 = vld [vmem:[#allocation20 + $0xa8] sm:$0xff]
        %v1230 = vld [vmem:[#allocation20 + $0xb0] sm:$0xff]
        %v1231 = vld [vmem:[#allocation20 + $0xb8] sm:$0xff]
        %v1232 = vld [vmem:[#allocation20 + $0xc0] sm:$0xff]
        %v1233 = vld [vmem:[#allocation20 + $0xc8] sm:$0xff]
        %v1234 = vld [vmem:[#allocation20 + $0xd0] sm:$0xff]
        %v1235 = vld [vmem:[#allocation20 + $0xd8] sm:$0xff]
        %v1236 = vld [vmem:[#allocation20 + $0xe0] sm:$0xff]
        %v1237 = vld [vmem:[#allocation20 + $0xe8] sm:$0xff]
        %v1238 = vld [vmem:[#allocation20 + $0xf0] sm:$0xff]
        %v1239 = vld [vmem:[#allocation20 + $0xf8] sm:$0xff]
        %v1240 = vld [vmem:[#allocation20 + $0x100] sm:$0xff]
        %v1241 = vld [vmem:[#allocation20 + $0x108] sm:$0xff]
        %v1242 = vld [vmem:[#allocation20 + $0x110] sm:$0xff]
        %v1243 = vld [vmem:[#allocation20 + $0x118] sm:$0xff]
        %v1244 = vld [vmem:[#allocation20 + $0x120] sm:$0xff]
        %v1245 = vld [vmem:[#allocation20 + $0x128] sm:$0xff]
        %v1246 = vld [vmem:[#allocation20 + $0x130] sm:$0xff]
        %v1247 = vld [vmem:[#allocation20 + $0x138] sm:$0xff]
        %v1248 = vld [vmem:[#allocation20 + $0x140] sm:$0xff]
        %v1249 = vld [vmem:[#allocation20 + $0x148] sm:$0xff]
        %v1250 = vld [vmem:[#allocation20 + $0x150] sm:$0xff]
        %v1251 = vld [vmem:[#allocation20 + $0x158] sm:$0xff]
        %v1252 = vld [vmem:[#allocation20 + $0x160] sm:$0xff]
        %v1253 = vld [vmem:[#allocation20 + $0x168] sm:$0xff]
        %v1254 = vld [vmem:[#allocation20 + $0x170] sm:$0xff]
        %v1255 = vld [vmem:[#allocation20 + $0x178] sm:$0xff]
        %v1256 = vld [vmem:[#allocation20 + $0x180] sm:$0xff]
        %v1257 = vld [vmem:[#allocation20 + $0x188] sm:$0xff]
        %v1258 = vld [vmem:[#allocation20 + $0x190] sm:$0xff]
        %v1259 = vld [vmem:[#allocation20 + $0x198] sm:$0xff]
        %v1260 = vld [vmem:[#allocation20 + $0x1a0] sm:$0xff]
        %v1261 = vld [vmem:[#allocation20 + $0x1a8] sm:$0xff]
        %v1262 = vld [vmem:[#allocation20 + $0x1b0] sm:$0xff]
        %v1263 = vld [vmem:[#allocation20 + $0x1b8] sm:$0xff]
        %v1264 = vld [vmem:[#allocation20 + $0x1c0] sm:$0xff]
        %v1265 = vld [vmem:[#allocation20 + $0x1c8] sm:$0xff]
        %v1266 = vld [vmem:[#allocation20 + $0x1d0] sm:$0xff]
        %v1267 = vld [vmem:[#allocation20 + $0x1d8] sm:$0xff]
        %v1268 = vld [vmem:[#allocation20 + $0x1e0] sm:$0xff]
        %v1269 = vld [vmem:[#allocation20 + $0x1e8] sm:$0xff]
        %v1270 = vld [vmem:[#allocation20 + $0x1f0] sm:$0xff]
        %v1271 = vld [vmem:[#allocation20 + $0x1f8] sm:$0xff]
        %v1272 = vld [vmem:[#allocation20 + $0x200] sm:$0xff]
        %v1273 = vld [vmem:[#allocation20 + $0x208] sm:$0xff]
        %v1274 = vld [vmem:[#allocation20 + $0x210] sm:$0xff]
        %v1275 = vld [vmem:[#allocation20 + $0x218] sm:$0xff]
        %v1276 = vld [vmem:[#allocation20 + $0x220] sm:$0xff]
        %v1277 = vld [vmem:[#allocation20 + $0x228] sm:$0xff]
        %v1278 = vld [vmem:[#allocation20 + $0x230] sm:$0xff]
        %v1279 = vld [vmem:[#allocation20 + $0x238] sm:$0xff]
        %v1280 = vld [vmem:[#allocation20 + $0x240] sm:$0xff]
        %v1281 = vld [vmem:[#allocation20 + $0x248] sm:$0xff]
        %v1282 = vld [vmem:[#allocation20 + $0x250] sm:$0xff]
        %v1283 = vld [vmem:[#allocation20 + $0x258] sm:$0xff]
        %v1284 = vld [vmem:[#allocation20 + $0x260] sm:$0xff]
        %v1285 = vld [vmem:[#allocation20 + $0x268] sm:$0xff]
        %v1286 = vld [vmem:[#allocation20 + $0x270] sm:$0xff]
        %v1287 = vld [vmem:[#allocation20 + $0x278] sm:$0xff]
        %v1288 = vld [vmem:[#allocation20 + $0x280] sm:$0xff]
        %v1289 = vld [vmem:[#allocation20 + $0x288] sm:$0xff]
        %v1290 = vld [vmem:[#allocation20 + $0x290] sm:$0xff]
        %v1291 = vld [vmem:[#allocation20 + $0x298] sm:$0xff]
        %v1292 = vld [vmem:[#allocation20 + $0x2a0] sm:$0xff]
        %v1293 = vld [vmem:[#allocation20 + $0x2a8] sm:$0xff]
        %v1294 = vld [vmem:[#allocation20 + $0x2b0] sm:$0xff]
        %v1295 = vld [vmem:[#allocation20 + $0x2b8] sm:$0xff]
        %v1296 = vld [vmem:[#allocation20 + $0x2c0] sm:$0xff]
        %v1297 = vld [vmem:[#allocation20 + $0x2c8] sm:$0xff]
        %v1298 = vld [vmem:[#allocation20 + $0x2d0] sm:$0xff]
        %v1299 = vld [vmem:[#allocation20 + $0x2d8] sm:$0xff]
        %v1300 = vld [vmem:[#allocation20 + $0x2e0] sm:$0xff]
        %v1301 = vld [vmem:[#allocation20 + $0x2e8] sm:$0xff]
        %v1302 = vld [vmem:[#allocation20 + $0x2f0] sm:$0xff]
        %v1303 = vld [vmem:[#allocation20 + $0x2f8] sm:$0xff]
        %v1304 = vld [vmem:[#allocation23] sm:$0x3f]
        %v1401 = vunpack.c.l.b16 %v1208
        %v1402 = vunpack.c.h.b16 %v1208
        %v1403 = vunpack.c.l.b16 %v1209
        %v1404 = vunpack.c.h.b16 %v1209
        %v1405 = vunpack.c.l.b16 %v1210
        %v1406 = vunpack.c.h.b16 %v1210
        %v1407 = vunpack.c.l.b16 %v1211
        %v1408 = vunpack.c.h.b16 %v1211
        %v1409 = vunpack.c.l.b16 %v1212
        %v1410 = vunpack.c.h.b16 %v1212
        %v1411 = vunpack.c.l.b16 %v1213
        %v1412 = vunpack.c.h.b16 %v1213
        %v1413 = vunpack.c.l.b16 %v1214
        %v1414 = vunpack.c.h.b16 %v1214
        %v1415 = vunpack.c.l.b16 %v1215
        %v1416 = vunpack.c.h.b16 %v1215
        %v1417 = vunpack.c.l.b16 %v1216
        %v1418 = vunpack.c.h.b16 %v1216
        %v1419 = vunpack.c.l.b16 %v1217
        %v1420 = vunpack.c.h.b16 %v1217
        %v1421 = vunpack.c.l.b16 %v1218
        %v1422 = vunpack.c.h.b16 %v1218
        %v1423 = vunpack.c.l.b16 %v1219
        %v1424 = vunpack.c.h.b16 %v1219
        %v1425 = vunpack.c.l.b16 %v1220
        %v1426 = vunpack.c.h.b16 %v1220
        %v1427 = vunpack.c.l.b16 %v1221
        %v1428 = vunpack.c.h.b16 %v1221
        %v1429 = vunpack.c.l.b16 %v1222
        %v1430 = vunpack.c.h.b16 %v1222
        %v1431 = vunpack.c.l.b16 %v1223
        %v1432 = vunpack.c.h.b16 %v1223
        %v1433 = vunpack.c.l.b16 %v1224
        %v1434 = vunpack.c.h.b16 %v1224
        %v1435 = vunpack.c.l.b16 %v1225
        %v1436 = vunpack.c.h.b16 %v1225
        %v1437 = vunpack.c.l.b16 %v1226
        %v1438 = vunpack.c.h.b16 %v1226
        %v1439 = vunpack.c.l.b16 %v1227
        %v1440 = vunpack.c.h.b16 %v1227
        %v1441 = vunpack.c.l.b16 %v1228
        %v1442 = vunpack.c.h.b16 %v1228
        %v1443 = vunpack.c.l.b16 %v1229
        %v1444 = vunpack.c.h.b16 %v1229
        %v1445 = vunpack.c.l.b16 %v1230
        %v1446 = vunpack.c.h.b16 %v1230
        %v1447 = vunpack.c.l.b16 %v1231
        %v1448 = vunpack.c.h.b16 %v1231
        %v1449 = vunpack.c.l.b16 %v1232
        %v1450 = vunpack.c.h.b16 %v1232
        %v1451 = vunpack.c.l.b16 %v1233
        %v1452 = vunpack.c.h.b16 %v1233
        %v1453 = vunpack.c.l.b16 %v1234
        %v1454 = vunpack.c.h.b16 %v1234
        %v1455 = vunpack.c.l.b16 %v1235
        %v1456 = vunpack.c.h.b16 %v1235
        %v1457 = vunpack.c.l.b16 %v1236
        %v1458 = vunpack.c.h.b16 %v1236
        %v1459 = vunpack.c.l.b16 %v1237
        %v1460 = vunpack.c.h.b16 %v1237
        %v1461 = vunpack.c.l.b16 %v1238
        %v1462 = vunpack.c.h.b16 %v1238
        %v1463 = vunpack.c.l.b16 %v1239
        %v1464 = vunpack.c.h.b16 %v1239
        %v1465 = vunpack.c.l.b16 %v1240
        %v1466 = vunpack.c.h.b16 %v1240
        %v1467 = vunpack.c.l.b16 %v1241
        %v1468 = vunpack.c.h.b16 %v1241
        %v1469 = vunpack.c.l.b16 %v1242
        %v1470 = vunpack.c.h.b16 %v1242
        %v1471 = vunpack.c.l.b16 %v1243
        %v1472 = vunpack.c.h.b16 %v1243
        %v1473 = vunpack.c.l.b16 %v1244
        %v1474 = vunpack.c.h.b16 %v1244
        %v1475 = vunpack.c.l.b16 %v1245
        %v1476 = vunpack.c.h.b16 %v1245
        %v1477 = vunpack.c.l.b16 %v1246
        %v1478 = vunpack.c.h.b16 %v1246
        %v1479 = vunpack.c.l.b16 %v1247
        %v1480 = vunpack.c.h.b16 %v1247
        %v1481 = vunpack.c.l.b16 %v1248
        %v1482 = vunpack.c.h.b16 %v1248
        %v1483 = vunpack.c.l.b16 %v1249
        %v1484 = vunpack.c.h.b16 %v1249
        %v1485 = vunpack.c.l.b16 %v1250
        %v1486 = vunpack.c.h.b16 %v1250
        %v1487 = vunpack.c.l.b16 %v1251
        %v1488 = vunpack.c.h.b16 %v1251
        %v1489 = vunpack.c.l.b16 %v1252
        %v1490 = vunpack.c.h.b16 %v1252
        %v1491 = vunpack.c.l.b16 %v1253
        %v1492 = vunpack.c.h.b16 %v1253
        %v1493 = vunpack.c.l.b16 %v1254
        %v1494 = vunpack.c.h.b16 %v1254
        %v1495 = vunpack.c.l.b16 %v1255
        %v1496 = vunpack.c.h.b16 %v1255
        %v1497 = vunpack.c.l.b16 %v1256
        %v1498 = vunpack.c.h.b16 %v1256
        %v1499 = vunpack.c.l.b16 %v1257
        %v1500 = vunpack.c.h.b16 %v1257
        %v1501 = vunpack.c.l.b16 %v1258
        %v1502 = vunpack.c.h.b16 %v1258
        %v1503 = vunpack.c.l.b16 %v1259
        %v1504 = vunpack.c.h.b16 %v1259
        %v1505 = vunpack.c.l.b16 %v1260
        %v1506 = vunpack.c.h.b16 %v1260
        %v1507 = vunpack.c.l.b16 %v1261
        %v1508 = vunpack.c.h.b16 %v1261
        %v1509 = vunpack.c.l.b16 %v1262
        %v1510 = vunpack.c.h.b16 %v1262
        %v1511 = vunpack.c.l.b16 %v1263
        %v1512 = vunpack.c.h.b16 %v1263
        %v1513 = vunpack.c.l.b16 %v1264
        %v1514 = vunpack.c.h.b16 %v1264
        %v1515 = vunpack.c.l.b16 %v1265
        %v1516 = vunpack.c.h.b16 %v1265
        %v1517 = vunpack.c.l.b16 %v1266
        %v1518 = vunpack.c.h.b16 %v1266
        %v1519 = vunpack.c.l.b16 %v1267
        %v1520 = vunpack.c.h.b16 %v1267
        %v1521 = vunpack.c.l.b16 %v1268
        %v1522 = vunpack.c.h.b16 %v1268
        %v1523 = vunpack.c.l.b16 %v1269
        %v1524 = vunpack.c.h.b16 %v1269
        %v1525 = vunpack.c.l.b16 %v1270
        %v1526 = vunpack.c.h.b16 %v1270
        %v1527 = vunpack.c.l.b16 %v1271
        %v1528 = vunpack.c.h.b16 %v1271
        %v1529 = vunpack.c.l.b16 %v1272
        %v1530 = vunpack.c.h.b16 %v1272
        %v1531 = vunpack.c.l.b16 %v1273
        %v1532 = vunpack.c.h.b16 %v1273
        %v1533 = vunpack.c.l.b16 %v1274
        %v1534 = vunpack.c.h.b16 %v1274
        %v1535 = vunpack.c.l.b16 %v1275
        %v1536 = vunpack.c.h.b16 %v1275
        %v1537 = vunpack.c.l.b16 %v1276
        %v1538 = vunpack.c.h.b16 %v1276
        %v1539 = vunpack.c.l.b16 %v1277
        %v1540 = vunpack.c.h.b16 %v1277
        %v1541 = vunpack.c.l.b16 %v1278
        %v1542 = vunpack.c.h.b16 %v1278
        %v1543 = vunpack.c.l.b16 %v1279
        %v1544 = vunpack.c.h.b16 %v1279
        %v1545 = vunpack.c.l.b16 %v1280
        %v1546 = vunpack.c.h.b16 %v1280
        %v1547 = vunpack.c.l.b16 %v1281
        %v1548 = vunpack.c.h.b16 %v1281
        %v1549 = vunpack.c.l.b16 %v1282
        %v1550 = vunpack.c.h.b16 %v1282
        %v1551 = vunpack.c.l.b16 %v1283
        %v1552 = vunpack.c.h.b16 %v1283
        %v1553 = vunpack.c.l.b16 %v1284
        %v1554 = vunpack.c.h.b16 %v1284
        %v1555 = vunpack.c.l.b16 %v1285
        %v1556 = vunpack.c.h.b16 %v1285
        %v1557 = vunpack.c.l.b16 %v1286
        %v1558 = vunpack.c.h.b16 %v1286
        %v1559 = vunpack.c.l.b16 %v1287
        %v1560 = vunpack.c.h.b16 %v1287
        %v1561 = vunpack.c.l.b16 %v1288
        %v1562 = vunpack.c.h.b16 %v1288
        %v1563 = vunpack.c.l.b16 %v1289
        %v1564 = vunpack.c.h.b16 %v1289
        %v1565 = vunpack.c.l.b16 %v1290
        %v1566 = vunpack.c.h.b16 %v1290
        %v1567 = vunpack.c.l.b16 %v1291
        %v1568 = vunpack.c.h.b16 %v1291
        %v1569 = vunpack.c.l.b16 %v1292
        %v1570 = vunpack.c.h.b16 %v1292
        %v1571 = vunpack.c.l.b16 %v1293
        %v1572 = vunpack.c.h.b16 %v1293
        %v1573 = vunpack.c.l.b16 %v1294
        %v1574 = vunpack.c.h.b16 %v1294
        %v1575 = vunpack.c.l.b16 %v1295
        %v1576 = vunpack.c.h.b16 %v1295
        %v1577 = vunpack.c.l.b16 %v1296
        %v1578 = vunpack.c.h.b16 %v1296
        %v1579 = vunpack.c.l.b16 %v1297
        %v1580 = vunpack.c.h.b16 %v1297
        %v1581 = vunpack.c.l.b16 %v1298
        %v1582 = vunpack.c.h.b16 %v1298
        %v1583 = vunpack.c.l.b16 %v1299
        %v1584 = vunpack.c.h.b16 %v1299
        %v1585 = vunpack.c.l.b16 %v1300
        %v1586 = vunpack.c.h.b16 %v1300
        %v1587 = vunpack.c.l.b16 %v1301
        %v1588 = vunpack.c.h.b16 %v1301
        %v1589 = vunpack.c.l.b16 %v1302
        %v1590 = vunpack.c.h.b16 %v1302
        %v1591 = vunpack.c.l.b16 %v1303
        %v1592 = vunpack.c.h.b16 %v1303
        %v1593 = vpack.c.b16 %v1407, %v1401
        %v1594 = vpack.c.b16 %v1408, %v1402
        %v1595 = vpack.c.b16 %v1409, %v1403
        %v1596 = vpack.c.b16 %v1410, %v1404
        %v1597 = vpack.c.b16 %v1411, %v1405
        %v1598 = vpack.c.b16 %v1412, %v1406
        %v1599 = vpack.c.b16 %v1419, %v1413
        %v1600 = vpack.c.b16 %v1420, %v1414
        %v1601 = vpack.c.b16 %v1421, %v1415
        %v1602 = vpack.c.b16 %v1422, %v1416
        %v1603 = vpack.c.b16 %v1423, %v1417
        %v1604 = vpack.c.b16 %v1424, %v1418
        %v1605 = vpack.c.b16 %v1431, %v1425
        %v1606 = vpack.c.b16 %v1432, %v1426
        %v1607 = vpack.c.b16 %v1433, %v1427
        %v1608 = vpack.c.b16 %v1434, %v1428
        %v1609 = vpack.c.b16 %v1435, %v1429
        %v1610 = vpack.c.b16 %v1436, %v1430
        %v1611 = vpack.c.b16 %v1443, %v1437
        %v1612 = vpack.c.b16 %v1444, %v1438
        %v1613 = vpack.c.b16 %v1445, %v1439
        %v1614 = vpack.c.b16 %v1446, %v1440
        %v1615 = vpack.c.b16 %v1447, %v1441
        %v1616 = vpack.c.b16 %v1448, %v1442
        %v1617 = vpack.c.b16 %v1455, %v1449
        %v1618 = vpack.c.b16 %v1456, %v1450
        %v1619 = vpack.c.b16 %v1457, %v1451
        %v1620 = vpack.c.b16 %v1458, %v1452
        %v1621 = vpack.c.b16 %v1459, %v1453
        %v1622 = vpack.c.b16 %v1460, %v1454
        %v1623 = vpack.c.b16 %v1467, %v1461
        %v1624 = vpack.c.b16 %v1468, %v1462
        %v1625 = vpack.c.b16 %v1469, %v1463
        %v1626 = vpack.c.b16 %v1470, %v1464
        %v1627 = vpack.c.b16 %v1471, %v1465
        %v1628 = vpack.c.b16 %v1472, %v1466
        %v1629 = vpack.c.b16 %v1479, %v1473
        %v1630 = vpack.c.b16 %v1480, %v1474
        %v1631 = vpack.c.b16 %v1481, %v1475
        %v1632 = vpack.c.b16 %v1482, %v1476
        %v1633 = vpack.c.b16 %v1483, %v1477
        %v1634 = vpack.c.b16 %v1484, %v1478
        %v1635 = vpack.c.b16 %v1491, %v1485
        %v1636 = vpack.c.b16 %v1492, %v1486
        %v1637 = vpack.c.b16 %v1493, %v1487
        %v1638 = vpack.c.b16 %v1494, %v1488
        %v1639 = vpack.c.b16 %v1495, %v1489
        %v1640 = vpack.c.b16 %v1496, %v1490
        %v1641 = vpack.c.b16 %v1503, %v1497
        %v1642 = vpack.c.b16 %v1504, %v1498
        %v1643 = vpack.c.b16 %v1505, %v1499
        %v1644 = vpack.c.b16 %v1506, %v1500
        %v1645 = vpack.c.b16 %v1507, %v1501
        %v1646 = vpack.c.b16 %v1508, %v1502
        %v1647 = vpack.c.b16 %v1515, %v1509
        %v1648 = vpack.c.b16 %v1516, %v1510
        %v1649 = vpack.c.b16 %v1517, %v1511
        %v1650 = vpack.c.b16 %v1518, %v1512
        %v1651 = vpack.c.b16 %v1519, %v1513
        %v1652 = vpack.c.b16 %v1520, %v1514
        %v1653 = vpack.c.b16 %v1527, %v1521
        %v1654 = vpack.c.b16 %v1528, %v1522
        %v1655 = vpack.c.b16 %v1529, %v1523
        %v1656 = vpack.c.b16 %v1530, %v1524
        %v1657 = vpack.c.b16 %v1531, %v1525
        %v1658 = vpack.c.b16 %v1532, %v1526
        %v1659 = vpack.c.b16 %v1539, %v1533
        %v1660 = vpack.c.b16 %v1540, %v1534
        %v1661 = vpack.c.b16 %v1541, %v1535
        %v1662 = vpack.c.b16 %v1542, %v1536
        %v1663 = vpack.c.b16 %v1543, %v1537
        %v1664 = vpack.c.b16 %v1544, %v1538
        %v1665 = vpack.c.b16 %v1551, %v1545
        %v1666 = vpack.c.b16 %v1552, %v1546
        %v1667 = vpack.c.b16 %v1553, %v1547
        %v1668 = vpack.c.b16 %v1554, %v1548
        %v1669 = vpack.c.b16 %v1555, %v1549
        %v1670 = vpack.c.b16 %v1556, %v1550
        %v1671 = vpack.c.b16 %v1563, %v1557
        %v1672 = vpack.c.b16 %v1564, %v1558
        %v1673 = vpack.c.b16 %v1565, %v1559
        %v1674 = vpack.c.b16 %v1566, %v1560
        %v1675 = vpack.c.b16 %v1567, %v1561
        %v1676 = vpack.c.b16 %v1568, %v1562
        %v1677 = vpack.c.b16 %v1575, %v1569
        %v1678 = vpack.c.b16 %v1576, %v1570
        %v1679 = vpack.c.b16 %v1577, %v1571
        %v1680 = vpack.c.b16 %v1578, %v1572
        %v1681 = vpack.c.b16 %v1579, %v1573
        %v1682 = vpack.c.b16 %v1580, %v1574
        %v1683 = vpack.c.b16 %v1587, %v1581
        %v1684 = vpack.c.b16 %v1588, %v1582
        %v1685 = vpack.c.b16 %v1589, %v1583
        %v1686 = vpack.c.b16 %v1590, %v1584
        %v1687 = vpack.c.b16 %v1591, %v1585
        %v1688 = vpack.c.b16 %v1592, %v1586
        %v1786 = vlaneseq
        %v1787 = vshrl.u32 %v1786, 7
        %v1788 = vsub.s32 0, %v1787
        %v1789 = vrot.slane %v1304, %v1788
        %v1790 = vlaneseq
        %v1791 = vshrl.u32 %v1790, 7
        %v1792 = vsub.s32 1, %v1791
        %v1793 = vrot.slane %v1304, %v1792
        %v1794 = vlaneseq
        %v1795 = vshrl.u32 %v1794, 7
        %v1796 = vsub.s32 2, %v1795
        %v1797 = vrot.slane %v1304, %v1796
        %v1798 = vlaneseq
        %v1799 = vshrl.u32 %v1798, 7
        %v1800 = vsub.s32 3, %v1799
        %v1801 = vrot.slane %v1304, %v1800
        %v1802 = vlaneseq
        %v1803 = vshrl.u32 %v1802, 7
        %v1804 = vsub.s32 4, %v1803
        %v1805 = vrot.slane %v1304, %v1804
        %v1806 = vlaneseq
        %v1807 = vshrl.u32 %v1806, 7
        %v1808 = vsub.s32 5, %v1807
        %v1809 = vrot.slane %v1304, %v1808
        %1816 = vmatprep.subr.bf16.mxu0 %v1594
        %1817 = vmatpush1.bf16.msra.mxu0 %v1593
        %1818 = vmatprep.subr.bf16.mxu0 %v1600
        %1819 = vmatpush1.bf16.msra.mxu0 %v1599
        %1820 = vmatprep.subr.bf16.mxu0 %v1606
        %1821 = vmatpush1.bf16.msra.mxu0 %v1605
        %1822 = vmatprep.subr.bf16.mxu0 %v1612
        %1823 = vmatpush1.bf16.msra.mxu0 %v1611
        %1824 = vmatprep.subr.bf16.mxu0 %v1618
        %1825 = vmatpush1.bf16.msra.mxu0 %v1617
        %1826 = vmatprep.subr.bf16.mxu0 %v1624
        %1827 = vmatpush1.bf16.msra.mxu0 %v1623
        %1828 = vmatprep.subr.bf16.mxu0 %v1630
        %1829 = vmatpush1.bf16.msra.mxu0 %v1629
        %1830 = vmatprep.subr.bf16.mxu0 %v1636
        %1831 = vmatpush1.bf16.msra.mxu0 %v1635
        %1832 = vmatprep.subr.bf16.mxu0 %v1642
        %1833 = vmatpush1.bf16.msra.mxu0 %v1641
        %1834 = vmatprep.subr.bf16.mxu0 %v1648
        %1835 = vmatpush1.bf16.msra.mxu0 %v1647
        %1836 = vmatprep.subr.bf16.mxu0 %v1654
        %1837 = vmatpush1.bf16.msra.mxu0 %v1653
        %1838 = vmatprep.subr.bf16.mxu0 %v1660
        %1839 = vmatpush1.bf16.msra.mxu0 %v1659
        %1840 = vmatprep.subr.bf16.mxu0 %v1666
        %1841 = vmatpush1.bf16.msra.mxu0 %v1665
        %1842 = vmatprep.subr.bf16.mxu0 %v1672
        %1843 = vmatpush1.bf16.msra.mxu0 %v1671
        %1844 = vmatprep.subr.bf16.mxu0 %v1678
        %1845 = vmatpush1.bf16.msra.mxu0 %v1677
        %1846 = vmatprep.subr.bf16.mxu0 %v1684
        %1847 = vmatpush1.bf16.msra.mxu0 %v1683
        %1848 = vmatprep.mubr.bf16.mxu0 %v1206
        %1849 = vmatmul.mubr.bf16.gmra.mrb[0].mxu0 %v1205
        %v1850 = vpop.f32.mrb[0].mxu0
        %v1851 = vadd.f32 %v1789, %v1850
        %v1852 = vpop.f32.mrb[0].mxu0
        %v1853 = vadd.f32 %v1793, %v1852
        %v1854 = vpop.f32.mrb[0].mxu0
        %v1855 = vpop.f32.mrb[0].mxu0
        %1856 = vdwg.mxu0
        %1857 = vmatprep.subr.bf16.mxu0 %v1596
        %1858 = vmatpush1.bf16.msra.mxu0 %v1595
        %1859 = vmatprep.subr.bf16.mxu0 %v1602
        %1860 = vmatpush1.bf16.msra.mxu0 %v1601
        %1861 = vmatprep.subr.bf16.mxu0 %v1608
        %1862 = vmatpush1.bf16.msra.mxu0 %v1607
        %1863 = vmatprep.subr.bf16.mxu0 %v1614
        %1864 = vmatpush1.bf16.msra.mxu0 %v1613
        %1865 = vmatprep.subr.bf16.mxu0 %v1620
        %1866 = vmatpush1.bf16.msra.mxu0 %v1619
        %1867 = vmatprep.subr.bf16.mxu0 %v1626
        %1868 = vmatpush1.bf16.msra.mxu0 %v1625
        %1869 = vmatprep.subr.bf16.mxu0 %v1632
        %1870 = vmatpush1.bf16.msra.mxu0 %v1631
        %1871 = vmatprep.subr.bf16.mxu0 %v1638
        %1872 = vmatpush1.bf16.msra.mxu0 %v1637
        %1873 = vmatprep.subr.bf16.mxu0 %v1644
        %1874 = vmatpush1.bf16.msra.mxu0 %v1643
        %1875 = vmatprep.subr.bf16.mxu0 %v1650
        %1876 = vmatpush1.bf16.msra.mxu0 %v1649
        %1877 = vmatprep.subr.bf16.mxu0 %v1656
        %1878 = vmatpush1.bf16.msra.mxu0 %v1655
        %1879 = vmatprep.subr.bf16.mxu0 %v1662
        %1880 = vmatpush1.bf16.msra.mxu0 %v1661
        %1881 = vmatprep.subr.bf16.mxu0 %v1668
        %1882 = vmatpush1.bf16.msra.mxu0 %v1667
        %1883 = vmatprep.subr.bf16.mxu0 %v1674
        %1884 = vmatpush1.bf16.msra.mxu0 %v1673
        %1885 = vmatprep.subr.bf16.mxu0 %v1680
        %1886 = vmatpush1.bf16.msra.mxu0 %v1679
        %1887 = vmatprep.subr.bf16.mxu0 %v1686
        %1888 = vmatpush1.bf16.msra.mxu0 %v1685
        %1889 = vmatprep.mubr.bf16.mxu0 %v1206
        %1890 = vmatmul.mubr.bf16.gmra.mrb[0].mxu0 %v1205
        %v1891 = vpop.f32.mrb[0].mxu0
        %v1892 = vadd.f32 %v1797, %v1891
        %v1893 = vpop.f32.mrb[0].mxu0
        %v1894 = vadd.f32 %v1801, %v1893
        %v1895 = vpop.f32.mrb[0].mxu0
        %v1896 = vpop.f32.mrb[0].mxu0
        %1897 = vdwg.mxu0
        %1898 = vmatprep.subr.bf16.mxu0 %v1598
        %1899 = vmatpush1.bf16.msra.mxu0 %v1597
        %1900 = vmatprep.subr.bf16.mxu0 %v1604
        %1901 = vmatpush1.bf16.msra.mxu0 %v1603
        %1902 = vmatprep.subr.bf16.mxu0 %v1610
        %1903 = vmatpush1.bf16.msra.mxu0 %v1609
        %1904 = vmatprep.subr.bf16.mxu0 %v1616
        %1905 = vmatpush1.bf16.msra.mxu0 %v1615
        %1906 = vmatprep.subr.bf16.mxu0 %v1622
        %1907 = vmatpush1.bf16.msra.mxu0 %v1621
        %1908 = vmatprep.subr.bf16.mxu0 %v1628
        %1909 = vmatpush1.bf16.msra.mxu0 %v1627
        %1910 = vmatprep.subr.bf16.mxu0 %v1634
        %1911 = vmatpush1.bf16.msra.mxu0 %v1633
        %1912 = vmatprep.subr.bf16.mxu0 %v1640
        %1913 = vmatpush1.bf16.msra.mxu0 %v1639
        %1914 = vmatprep.subr.bf16.mxu0 %v1646
        %1915 = vmatpush1.bf16.msra.mxu0 %v1645
        %1916 = vmatprep.subr.bf16.mxu0 %v1652
        %1917 = vmatpush1.bf16.msra.mxu0 %v1651
        %1918 = vmatprep.subr.bf16.mxu0 %v1658
        %1919 = vmatpush1.bf16.msra.mxu0 %v1657
        %1920 = vmatprep.subr.bf16.mxu0 %v1664
        %1921 = vmatpush1.bf16.msra.mxu0 %v1663
        %1922 = vmatprep.subr.bf16.mxu0 %v1670
        %1923 = vmatpush1.bf16.msra.mxu0 %v1669
        %1924 = vmatprep.subr.bf16.mxu0 %v1676
        %1925 = vmatpush1.bf16.msra.mxu0 %v1675
        %1926 = vmatprep.subr.bf16.mxu0 %v1682
        %1927 = vmatpush1.bf16.msra.mxu0 %v1681
        %1928 = vmatprep.subr.bf16.mxu0 %v1688
        %1929 = vmatpush1.bf16.msra.mxu0 %v1687
        %1930 = vmatprep.mubr.bf16.mxu0 %v1206
        %1931 = vmatmul.mubr.bf16.gmra.mrb[0].mxu0 %v1205
        %v1932 = vpop.f32.mrb[0].mxu0
        %v1933 = vadd.f32 %v1805, %v1932
        %v1934 = vpop.f32.mrb[0].mxu0
        %v1935 = vadd.f32 %v1809, %v1934
        %v1936 = vpop.f32.mrb[0].mxu0
        %v1937 = vpop.f32.mrb[0].mxu0
        %1938 = vdwg.mxu0
        %v1940 = vlaneseq
        %v1941 = vshrl.u32 %v1940, 7
        %v1942 = vsub.s32 0, %v1941
        %v1943 = vrot.slane %v1207, %v1942
        %v1944 = vlaneseq
        %v1945 = vshrl.u32 %v1944, 7
        %v1946 = vsub.s32 1, %v1945
        %v1947 = vrot.slane %v1207, %v1946
        %v1950 = vpack.c.bf16 %v1943, %v1943
        %v1951 = vpack.c.bf16 %v1947, %v1947
        %v1952 = vld [vmem:[#allocation22] sm:$0xff]
        %v1953 = vld [vmem:[#allocation22 + $0x8] sm:$0xff]
        %v1954 = vld [vmem:[#allocation22 + $0x10] sm:$0xff]
        %v1955 = vld [vmem:[#allocation22 + $0x18] sm:$0xff]
        %v1956 = vld [vmem:[#allocation22 + $0x20] sm:$0xff]
        %v1957 = vld [vmem:[#allocation22 + $0x28] sm:$0xff]
        %v1958 = vld [vmem:[#allocation22 + $0x30] sm:$0xff]
        %v1959 = vld [vmem:[#allocation22 + $0x38] sm:$0xff]
        %v1960 = vld [vmem:[#allocation22 + $0x40] sm:$0xff]
        %v1961 = vld [vmem:[#allocation22 + $0x48] sm:$0xff]
        %v1962 = vld [vmem:[#allocation22 + $0x50] sm:$0xff]
        %v1963 = vld [vmem:[#allocation22 + $0x58] sm:$0xff]
        %v1964 = vld [vmem:[#allocation22 + $0x60] sm:$0xff]
        %v1965 = vld [vmem:[#allocation22 + $0x68] sm:$0xff]
        %v1966 = vld [vmem:[#allocation22 + $0x70] sm:$0xff]
        %v1967 = vld [vmem:[#allocation22 + $0x78] sm:$0xff]
        %v1968 = vld [vmem:[#allocation22 + $0x80] sm:$0xff]
        %v1969 = vld [vmem:[#allocation22 + $0x88] sm:$0xff]
        %v1970 = vld [vmem:[#allocation22 + $0x90] sm:$0xff]
        %v1971 = vld [vmem:[#allocation22 + $0x98] sm:$0xff]
        %v1972 = vld [vmem:[#allocation22 + $0xa0] sm:$0xff]
        %v1973 = vld [vmem:[#allocation22 + $0xa8] sm:$0xff]
        %v1974 = vld [vmem:[#allocation22 + $0xb0] sm:$0xff]
        %v1975 = vld [vmem:[#allocation22 + $0xb8] sm:$0xff]
        %v1976 = vld [vmem:[#allocation22 + $0xc0] sm:$0xff]
        %v1977 = vld [vmem:[#allocation22 + $0xc8] sm:$0xff]
        %v1978 = vld [vmem:[#allocation22 + $0xd0] sm:$0xff]
        %v1979 = vld [vmem:[#allocation22 + $0xd8] sm:$0xff]
        %v1980 = vld [vmem:[#allocation22 + $0xe0] sm:$0xff]
        %v1981 = vld [vmem:[#allocation22 + $0xe8] sm:$0xff]
        %v1982 = vld [vmem:[#allocation22 + $0xf0] sm:$0xff]
        %v1983 = vld [vmem:[#allocation22 + $0xf8] sm:$0xff]
        %v1984 = vld [vmem:[#allocation22 + $0x100] sm:$0xff]
        %v1985 = vld [vmem:[#allocation22 + $0x108] sm:$0xff]
        %v1986 = vld [vmem:[#allocation22 + $0x110] sm:$0xff]
        %v1987 = vld [vmem:[#allocation22 + $0x118] sm:$0xff]
        %v1988 = vld [vmem:[#allocation22 + $0x120] sm:$0xff]
        %v1989 = vld [vmem:[#allocation22 + $0x128] sm:$0xff]
        %v1990 = vld [vmem:[#allocation22 + $0x130] sm:$0xff]
        %v1991 = vld [vmem:[#allocation22 + $0x138] sm:$0xff]
        %v1992 = vld [vmem:[#allocation22 + $0x140] sm:$0xff]
        %v1993 = vld [vmem:[#allocation22 + $0x148] sm:$0xff]
        %v1994 = vld [vmem:[#allocation22 + $0x150] sm:$0xff]
        %v1995 = vld [vmem:[#allocation22 + $0x158] sm:$0xff]
        %v1996 = vld [vmem:[#allocation22 + $0x160] sm:$0xff]
        %v1997 = vld [vmem:[#allocation22 + $0x168] sm:$0xff]
        %v1998 = vld [vmem:[#allocation22 + $0x170] sm:$0xff]
        %v1999 = vld [vmem:[#allocation22 + $0x178] sm:$0xff]
        %v2000 = vld [vmem:[#allocation22 + $0x180] sm:$0xff]
        %v2001 = vld [vmem:[#allocation22 + $0x188] sm:$0xff]
        %v2002 = vld [vmem:[#allocation22 + $0x190] sm:$0xff]
        %v2003 = vld [vmem:[#allocation22 + $0x198] sm:$0xff]
        %v2004 = vld [vmem:[#allocation22 + $0x1a0] sm:$0xff]
        %v2005 = vld [vmem:[#allocation22 + $0x1a8] sm:$0xff]
        %v2006 = vld [vmem:[#allocation22 + $0x1b0] sm:$0xff]
        %v2007 = vld [vmem:[#allocation22 + $0x1b8] sm:$0xff]
        %v2008 = vld [vmem:[#allocation22 + $0x1c0] sm:$0xff]
        %v2009 = vld [vmem:[#allocation22 + $0x1c8] sm:$0xff]
        %v2010 = vld [vmem:[#allocation22 + $0x1d0] sm:$0xff]
        %v2011 = vld [vmem:[#allocation22 + $0x1d8] sm:$0xff]
        %v2012 = vld [vmem:[#allocation22 + $0x1e0] sm:$0xff]
        %v2013 = vld [vmem:[#allocation22 + $0x1e8] sm:$0xff]
        %v2014 = vld [vmem:[#allocation22 + $0x1f0] sm:$0xff]
        %v2015 = vld [vmem:[#allocation22 + $0x1f8] sm:$0xff]
        %v2016 = vld [vmem:[#allocation22 + $0x200] sm:$0xff]
        %v2017 = vld [vmem:[#allocation22 + $0x208] sm:$0xff]
        %v2018 = vld [vmem:[#allocation22 + $0x210] sm:$0xff]
        %v2019 = vld [vmem:[#allocation22 + $0x218] sm:$0xff]
        %v2020 = vld [vmem:[#allocation22 + $0x220] sm:$0xff]
        %v2021 = vld [vmem:[#allocation22 + $0x228] sm:$0xff]
        %v2022 = vld [vmem:[#allocation22 + $0x230] sm:$0xff]
        %v2023 = vld [vmem:[#allocation22 + $0x238] sm:$0xff]
        %v2024 = vld [vmem:[#allocation22 + $0x240] sm:$0xff]
        %v2025 = vld [vmem:[#allocation22 + $0x248] sm:$0xff]
        %v2026 = vld [vmem:[#allocation22 + $0x250] sm:$0xff]
        %v2027 = vld [vmem:[#allocation22 + $0x258] sm:$0xff]
        %v2028 = vld [vmem:[#allocation22 + $0x260] sm:$0xff]
        %v2029 = vld [vmem:[#allocation22 + $0x268] sm:$0xff]
        %v2030 = vld [vmem:[#allocation22 + $0x270] sm:$0xff]
        %v2031 = vld [vmem:[#allocation22 + $0x278] sm:$0xff]
        %v2032 = vld [vmem:[#allocation22 + $0x280] sm:$0xff]
        %v2033 = vld [vmem:[#allocation22 + $0x288] sm:$0xff]
        %v2034 = vld [vmem:[#allocation22 + $0x290] sm:$0xff]
        %v2035 = vld [vmem:[#allocation22 + $0x298] sm:$0xff]
        %v2036 = vld [vmem:[#allocation22 + $0x2a0] sm:$0xff]
        %v2037 = vld [vmem:[#allocation22 + $0x2a8] sm:$0xff]
        %v2038 = vld [vmem:[#allocation22 + $0x2b0] sm:$0xff]
        %v2039 = vld [vmem:[#allocation22 + $0x2b8] sm:$0xff]
        %v2040 = vld [vmem:[#allocation22 + $0x2c0] sm:$0xff]
        %v2041 = vld [vmem:[#allocation22 + $0x2c8] sm:$0xff]
        %v2042 = vld [vmem:[#allocation22 + $0x2d0] sm:$0xff]
        %v2043 = vld [vmem:[#allocation22 + $0x2d8] sm:$0xff]
        %v2044 = vld [vmem:[#allocation22 + $0x2e0] sm:$0xff]
        %v2045 = vld [vmem:[#allocation22 + $0x2e8] sm:$0xff]
        %v2046 = vld [vmem:[#allocation22 + $0x2f0] sm:$0xff]
        %v2047 = vld [vmem:[#allocation22 + $0x2f8] sm:$0xff]
        %v2048 = vld [vmem:[#allocation25] sm:$0x3f]
        %v2145 = vunpack.c.l.b16 %v1952
        %v2146 = vunpack.c.h.b16 %v1952
        %v2147 = vunpack.c.l.b16 %v1953
        %v2148 = vunpack.c.h.b16 %v1953
        %v2149 = vunpack.c.l.b16 %v1954
        %v2150 = vunpack.c.h.b16 %v1954
        %v2151 = vunpack.c.l.b16 %v1955
        %v2152 = vunpack.c.h.b16 %v1955
        %v2153 = vunpack.c.l.b16 %v1956
        %v2154 = vunpack.c.h.b16 %v1956
        %v2155 = vunpack.c.l.b16 %v1957
        %v2156 = vunpack.c.h.b16 %v1957
        %v2157 = vunpack.c.l.b16 %v1958
        %v2158 = vunpack.c.h.b16 %v1958
        %v2159 = vunpack.c.l.b16 %v1959
        %v2160 = vunpack.c.h.b16 %v1959
        %v2161 = vunpack.c.l.b16 %v1960
        %v2162 = vunpack.c.h.b16 %v1960
        %v2163 = vunpack.c.l.b16 %v1961
        %v2164 = vunpack.c.h.b16 %v1961
        %v2165 = vunpack.c.l.b16 %v1962
        %v2166 = vunpack.c.h.b16 %v1962
        %v2167 = vunpack.c.l.b16 %v1963
        %v2168 = vunpack.c.h.b16 %v1963
        %v2169 = vunpack.c.l.b16 %v1964
        %v2170 = vunpack.c.h.b16 %v1964
        %v2171 = vunpack.c.l.b16 %v1965
        %v2172 = vunpack.c.h.b16 %v1965
        %v2173 = vunpack.c.l.b16 %v1966
        %v2174 = vunpack.c.h.b16 %v1966
        %v2175 = vunpack.c.l.b16 %v1967
        %v2176 = vunpack.c.h.b16 %v1967
        %v2177 = vunpack.c.l.b16 %v1968
        %v2178 = vunpack.c.h.b16 %v1968
        %v2179 = vunpack.c.l.b16 %v1969
        %v2180 = vunpack.c.h.b16 %v1969
        %v2181 = vunpack.c.l.b16 %v1970
        %v2182 = vunpack.c.h.b16 %v1970
        %v2183 = vunpack.c.l.b16 %v1971
        %v2184 = vunpack.c.h.b16 %v1971
        %v2185 = vunpack.c.l.b16 %v1972
        %v2186 = vunpack.c.h.b16 %v1972
        %v2187 = vunpack.c.l.b16 %v1973
        %v2188 = vunpack.c.h.b16 %v1973
        %v2189 = vunpack.c.l.b16 %v1974
        %v2190 = vunpack.c.h.b16 %v1974
        %v2191 = vunpack.c.l.b16 %v1975
        %v2192 = vunpack.c.h.b16 %v1975
        %v2193 = vunpack.c.l.b16 %v1976
        %v2194 = vunpack.c.h.b16 %v1976
        %v2195 = vunpack.c.l.b16 %v1977
        %v2196 = vunpack.c.h.b16 %v1977
        %v2197 = vunpack.c.l.b16 %v1978
        %v2198 = vunpack.c.h.b16 %v1978
        %v2199 = vunpack.c.l.b16 %v1979
        %v2200 = vunpack.c.h.b16 %v1979
        %v2201 = vunpack.c.l.b16 %v1980
        %v2202 = vunpack.c.h.b16 %v1980
        %v2203 = vunpack.c.l.b16 %v1981
        %v2204 = vunpack.c.h.b16 %v1981
        %v2205 = vunpack.c.l.b16 %v1982
        %v2206 = vunpack.c.h.b16 %v1982
        %v2207 = vunpack.c.l.b16 %v1983
        %v2208 = vunpack.c.h.b16 %v1983
        %v2209 = vunpack.c.l.b16 %v1984
        %v2210 = vunpack.c.h.b16 %v1984
        %v2211 = vunpack.c.l.b16 %v1985
        %v2212 = vunpack.c.h.b16 %v1985
        %v2213 = vunpack.c.l.b16 %v1986
        %v2214 = vunpack.c.h.b16 %v1986
        %v2215 = vunpack.c.l.b16 %v1987
        %v2216 = vunpack.c.h.b16 %v1987
        %v2217 = vunpack.c.l.b16 %v1988
        %v2218 = vunpack.c.h.b16 %v1988
        %v2219 = vunpack.c.l.b16 %v1989
        %v2220 = vunpack.c.h.b16 %v1989
        %v2221 = vunpack.c.l.b16 %v1990
        %v2222 = vunpack.c.h.b16 %v1990
        %v2223 = vunpack.c.l.b16 %v1991
        %v2224 = vunpack.c.h.b16 %v1991
        %v2225 = vunpack.c.l.b16 %v1992
        %v2226 = vunpack.c.h.b16 %v1992
        %v2227 = vunpack.c.l.b16 %v1993
        %v2228 = vunpack.c.h.b16 %v1993
        %v2229 = vunpack.c.l.b16 %v1994
        %v2230 = vunpack.c.h.b16 %v1994
        %v2231 = vunpack.c.l.b16 %v1995
        %v2232 = vunpack.c.h.b16 %v1995
        %v2233 = vunpack.c.l.b16 %v1996
        %v2234 = vunpack.c.h.b16 %v1996
        %v2235 = vunpack.c.l.b16 %v1997
        %v2236 = vunpack.c.h.b16 %v1997
        %v2237 = vunpack.c.l.b16 %v1998
        %v2238 = vunpack.c.h.b16 %v1998
        %v2239 = vunpack.c.l.b16 %v1999
        %v2240 = vunpack.c.h.b16 %v1999
        %v2241 = vunpack.c.l.b16 %v2000
        %v2242 = vunpack.c.h.b16 %v2000
        %v2243 = vunpack.c.l.b16 %v2001
        %v2244 = vunpack.c.h.b16 %v2001
        %v2245 = vunpack.c.l.b16 %v2002
        %v2246 = vunpack.c.h.b16 %v2002
        %v2247 = vunpack.c.l.b16 %v2003
        %v2248 = vunpack.c.h.b16 %v2003
        %v2249 = vunpack.c.l.b16 %v2004
        %v2250 = vunpack.c.h.b16 %v2004
        %v2251 = vunpack.c.l.b16 %v2005
        %v2252 = vunpack.c.h.b16 %v2005
        %v2253 = vunpack.c.l.b16 %v2006
        %v2254 = vunpack.c.h.b16 %v2006
        %v2255 = vunpack.c.l.b16 %v2007
        %v2256 = vunpack.c.h.b16 %v2007
        %v2257 = vunpack.c.l.b16 %v2008
        %v2258 = vunpack.c.h.b16 %v2008
        %v2259 = vunpack.c.l.b16 %v2009
        %v2260 = vunpack.c.h.b16 %v2009
        %v2261 = vunpack.c.l.b16 %v2010
        %v2262 = vunpack.c.h.b16 %v2010
        %v2263 = vunpack.c.l.b16 %v2011
        %v2264 = vunpack.c.h.b16 %v2011
        %v2265 = vunpack.c.l.b16 %v2012
        %v2266 = vunpack.c.h.b16 %v2012
        %v2267 = vunpack.c.l.b16 %v2013
        %v2268 = vunpack.c.h.b16 %v2013
        %v2269 = vunpack.c.l.b16 %v2014
        %v2270 = vunpack.c.h.b16 %v2014
        %v2271 = vunpack.c.l.b16 %v2015
        %v2272 = vunpack.c.h.b16 %v2015
        %v2273 = vunpack.c.l.b16 %v2016
        %v2274 = vunpack.c.h.b16 %v2016
        %v2275 = vunpack.c.l.b16 %v2017
        %v2276 = vunpack.c.h.b16 %v2017
        %v2277 = vunpack.c.l.b16 %v2018
        %v2278 = vunpack.c.h.b16 %v2018
        %v2279 = vunpack.c.l.b16 %v2019
        %v2280 = vunpack.c.h.b16 %v2019
        %v2281 = vunpack.c.l.b16 %v2020
        %v2282 = vunpack.c.h.b16 %v2020
        %v2283 = vunpack.c.l.b16 %v2021
        %v2284 = vunpack.c.h.b16 %v2021
        %v2285 = vunpack.c.l.b16 %v2022
        %v2286 = vunpack.c.h.b16 %v2022
        %v2287 = vunpack.c.l.b16 %v2023
        %v2288 = vunpack.c.h.b16 %v2023
        %v2289 = vunpack.c.l.b16 %v2024
        %v2290 = vunpack.c.h.b16 %v2024
        %v2291 = vunpack.c.l.b16 %v2025
        %v2292 = vunpack.c.h.b16 %v2025
        %v2293 = vunpack.c.l.b16 %v2026
        %v2294 = vunpack.c.h.b16 %v2026
        %v2295 = vunpack.c.l.b16 %v2027
        %v2296 = vunpack.c.h.b16 %v2027
        %v2297 = vunpack.c.l.b16 %v2028
        %v2298 = vunpack.c.h.b16 %v2028
        %v2299 = vunpack.c.l.b16 %v2029
        %v2300 = vunpack.c.h.b16 %v2029
        %v2301 = vunpack.c.l.b16 %v2030
        %v2302 = vunpack.c.h.b16 %v2030
        %v2303 = vunpack.c.l.b16 %v2031
        %v2304 = vunpack.c.h.b16 %v2031
        %v2305 = vunpack.c.l.b16 %v2032
        %v2306 = vunpack.c.h.b16 %v2032
        %v2307 = vunpack.c.l.b16 %v2033
        %v2308 = vunpack.c.h.b16 %v2033
        %v2309 = vunpack.c.l.b16 %v2034
        %v2310 = vunpack.c.h.b16 %v2034
        %v2311 = vunpack.c.l.b16 %v2035
        %v2312 = vunpack.c.h.b16 %v2035
        %v2313 = vunpack.c.l.b16 %v2036
        %v2314 = vunpack.c.h.b16 %v2036
        %v2315 = vunpack.c.l.b16 %v2037
        %v2316 = vunpack.c.h.b16 %v2037
        %v2317 = vunpack.c.l.b16 %v2038
        %v2318 = vunpack.c.h.b16 %v2038
        %v2319 = vunpack.c.l.b16 %v2039
        %v2320 = vunpack.c.h.b16 %v2039
        %v2321 = vunpack.c.l.b16 %v2040
        %v2322 = vunpack.c.h.b16 %v2040
        %v2323 = vunpack.c.l.b16 %v2041
        %v2324 = vunpack.c.h.b16 %v2041
        %v2325 = vunpack.c.l.b16 %v2042
        %v2326 = vunpack.c.h.b16 %v2042
        %v2327 = vunpack.c.l.b16 %v2043
        %v2328 = vunpack.c.h.b16 %v2043
        %v2329 = vunpack.c.l.b16 %v2044
        %v2330 = vunpack.c.h.b16 %v2044
        %v2331 = vunpack.c.l.b16 %v2045
        %v2332 = vunpack.c.h.b16 %v2045
        %v2333 = vunpack.c.l.b16 %v2046
        %v2334 = vunpack.c.h.b16 %v2046
        %v2335 = vunpack.c.l.b16 %v2047
        %v2336 = vunpack.c.h.b16 %v2047
        %v2337 = vpack.c.b16 %v2151, %v2145
        %v2338 = vpack.c.b16 %v2152, %v2146
        %v2339 = vpack.c.b16 %v2153, %v2147
        %v2340 = vpack.c.b16 %v2154, %v2148
        %v2341 = vpack.c.b16 %v2155, %v2149
        %v2342 = vpack.c.b16 %v2156, %v2150
        %v2343 = vpack.c.b16 %v2163, %v2157
        %v2344 = vpack.c.b16 %v2164, %v2158
        %v2345 = vpack.c.b16 %v2165, %v2159
        %v2346 = vpack.c.b16 %v2166, %v2160
        %v2347 = vpack.c.b16 %v2167, %v2161
        %v2348 = vpack.c.b16 %v2168, %v2162
        %v2349 = vpack.c.b16 %v2175, %v2169
        %v2350 = vpack.c.b16 %v2176, %v2170
        %v2351 = vpack.c.b16 %v2177, %v2171
        %v2352 = vpack.c.b16 %v2178, %v2172
        %v2353 = vpack.c.b16 %v2179, %v2173
        %v2354 = vpack.c.b16 %v2180, %v2174
        %v2355 = vpack.c.b16 %v2187, %v2181
        %v2356 = vpack.c.b16 %v2188, %v2182
        %v2357 = vpack.c.b16 %v2189, %v2183
        %v2358 = vpack.c.b16 %v2190, %v2184
        %v2359 = vpack.c.b16 %v2191, %v2185
        %v2360 = vpack.c.b16 %v2192, %v2186
        %v2361 = vpack.c.b16 %v2199, %v2193
        %v2362 = vpack.c.b16 %v2200, %v2194
        %v2363 = vpack.c.b16 %v2201, %v2195
        %v2364 = vpack.c.b16 %v2202, %v2196
        %v2365 = vpack.c.b16 %v2203, %v2197
        %v2366 = vpack.c.b16 %v2204, %v2198
        %v2367 = vpack.c.b16 %v2211, %v2205
        %v2368 = vpack.c.b16 %v2212, %v2206
        %v2369 = vpack.c.b16 %v2213, %v2207
        %v2370 = vpack.c.b16 %v2214, %v2208
        %v2371 = vpack.c.b16 %v2215, %v2209
        %v2372 = vpack.c.b16 %v2216, %v2210
        %v2373 = vpack.c.b16 %v2223, %v2217
        %v2374 = vpack.c.b16 %v2224, %v2218
        %v2375 = vpack.c.b16 %v2225, %v2219
        %v2376 = vpack.c.b16 %v2226, %v2220
        %v2377 = vpack.c.b16 %v2227, %v2221
        %v2378 = vpack.c.b16 %v2228, %v2222
        %v2379 = vpack.c.b16 %v2235, %v2229
        %v2380 = vpack.c.b16 %v2236, %v2230
        %v2381 = vpack.c.b16 %v2237, %v2231
        %v2382 = vpack.c.b16 %v2238, %v2232
        %v2383 = vpack.c.b16 %v2239, %v2233
        %v2384 = vpack.c.b16 %v2240, %v2234
        %v2385 = vpack.c.b16 %v2247, %v2241
        %v2386 = vpack.c.b16 %v2248, %v2242
        %v2387 = vpack.c.b16 %v2249, %v2243
        %v2388 = vpack.c.b16 %v2250, %v2244
        %v2389 = vpack.c.b16 %v2251, %v2245
        %v2390 = vpack.c.b16 %v2252, %v2246
        %v2391 = vpack.c.b16 %v2259, %v2253
        %v2392 = vpack.c.b16 %v2260, %v2254
        %v2393 = vpack.c.b16 %v2261, %v2255
        %v2394 = vpack.c.b16 %v2262, %v2256
        %v2395 = vpack.c.b16 %v2263, %v2257
        %v2396 = vpack.c.b16 %v2264, %v2258
        %v2397 = vpack.c.b16 %v2271, %v2265
        %v2398 = vpack.c.b16 %v2272, %v2266
        %v2399 = vpack.c.b16 %v2273, %v2267
        %v2400 = vpack.c.b16 %v2274, %v2268
        %v2401 = vpack.c.b16 %v2275, %v2269
        %v2402 = vpack.c.b16 %v2276, %v2270
        %v2403 = vpack.c.b16 %v2283, %v2277
        %v2404 = vpack.c.b16 %v2284, %v2278
        %v2405 = vpack.c.b16 %v2285, %v2279
        %v2406 = vpack.c.b16 %v2286, %v2280
        %v2407 = vpack.c.b16 %v2287, %v2281
        %v2408 = vpack.c.b16 %v2288, %v2282
        %v2409 = vpack.c.b16 %v2295, %v2289
        %v2410 = vpack.c.b16 %v2296, %v2290
        %v2411 = vpack.c.b16 %v2297, %v2291
        %v2412 = vpack.c.b16 %v2298, %v2292
        %v2413 = vpack.c.b16 %v2299, %v2293
        %v2414 = vpack.c.b16 %v2300, %v2294
        %v2415 = vpack.c.b16 %v2307, %v2301
        %v2416 = vpack.c.b16 %v2308, %v2302
        %v2417 = vpack.c.b16 %v2309, %v2303
        %v2418 = vpack.c.b16 %v2310, %v2304
        %v2419 = vpack.c.b16 %v2311, %v2305
        %v2420 = vpack.c.b16 %v2312, %v2306
        %v2421 = vpack.c.b16 %v2319, %v2313
        %v2422 = vpack.c.b16 %v2320, %v2314
        %v2423 = vpack.c.b16 %v2321, %v2315
        %v2424 = vpack.c.b16 %v2322, %v2316
        %v2425 = vpack.c.b16 %v2323, %v2317
        %v2426 = vpack.c.b16 %v2324, %v2318
        %v2427 = vpack.c.b16 %v2331, %v2325
        %v2428 = vpack.c.b16 %v2332, %v2326
        %v2429 = vpack.c.b16 %v2333, %v2327
        %v2430 = vpack.c.b16 %v2334, %v2328
        %v2431 = vpack.c.b16 %v2335, %v2329
        %v2432 = vpack.c.b16 %v2336, %v2330
        %v2530 = vlaneseq
        %v2531 = vshrl.u32 %v2530, 7
        %v2532 = vsub.s32 0, %v2531
        %v2533 = vrot.slane %v2048, %v2532
        %v2534 = vlaneseq
        %v2535 = vshrl.u32 %v2534, 7
        %v2536 = vsub.s32 1, %v2535
        %v2537 = vrot.slane %v2048, %v2536
        %v2538 = vlaneseq
        %v2539 = vshrl.u32 %v2538, 7
        %v2540 = vsub.s32 2, %v2539
        %v2541 = vrot.slane %v2048, %v2540
        %v2542 = vlaneseq
        %v2543 = vshrl.u32 %v2542, 7
        %v2544 = vsub.s32 3, %v2543
        %v2545 = vrot.slane %v2048, %v2544
        %v2546 = vlaneseq
        %v2547 = vshrl.u32 %v2546, 7
        %v2548 = vsub.s32 4, %v2547
        %v2549 = vrot.slane %v2048, %v2548
        %v2550 = vlaneseq
        %v2551 = vshrl.u32 %v2550, 7
        %v2552 = vsub.s32 5, %v2551
        %v2553 = vrot.slane %v2048, %v2552
        %2560 = vmatprep.subr.bf16.mxu0 %v2338
        %2561 = vmatpush1.bf16.msra.mxu0 %v2337
        %2562 = vmatprep.subr.bf16.mxu0 %v2344
        %2563 = vmatpush1.bf16.msra.mxu0 %v2343
        %2564 = vmatprep.subr.bf16.mxu0 %v2350
        %2565 = vmatpush1.bf16.msra.mxu0 %v2349
        %2566 = vmatprep.subr.bf16.mxu0 %v2356
        %2567 = vmatpush1.bf16.msra.mxu0 %v2355
        %2568 = vmatprep.subr.bf16.mxu0 %v2362
        %2569 = vmatpush1.bf16.msra.mxu0 %v2361
        %2570 = vmatprep.subr.bf16.mxu0 %v2368
        %2571 = vmatpush1.bf16.msra.mxu0 %v2367
        %2572 = vmatprep.subr.bf16.mxu0 %v2374
        %2573 = vmatpush1.bf16.msra.mxu0 %v2373
        %2574 = vmatprep.subr.bf16.mxu0 %v2380
        %2575 = vmatpush1.bf16.msra.mxu0 %v2379
        %2576 = vmatprep.subr.bf16.mxu0 %v2386
        %2577 = vmatpush1.bf16.msra.mxu0 %v2385
        %2578 = vmatprep.subr.bf16.mxu0 %v2392
        %2579 = vmatpush1.bf16.msra.mxu0 %v2391
        %2580 = vmatprep.subr.bf16.mxu0 %v2398
        %2581 = vmatpush1.bf16.msra.mxu0 %v2397
        %2582 = vmatprep.subr.bf16.mxu0 %v2404
        %2583 = vmatpush1.bf16.msra.mxu0 %v2403
        %2584 = vmatprep.subr.bf16.mxu0 %v2410
        %2585 = vmatpush1.bf16.msra.mxu0 %v2409
        %2586 = vmatprep.subr.bf16.mxu0 %v2416
        %2587 = vmatpush1.bf16.msra.mxu0 %v2415
        %2588 = vmatprep.subr.bf16.mxu0 %v2422
        %2589 = vmatpush1.bf16.msra.mxu0 %v2421
        %2590 = vmatprep.subr.bf16.mxu0 %v2428
        %2591 = vmatpush1.bf16.msra.mxu0 %v2427
        %2592 = vmatprep.mubr.bf16.mxu0 %v1951
        %2593 = vmatmul.mubr.bf16.gmra.mrb[0].mxu0 %v1950
        %v2594 = vpop.f32.mrb[0].mxu0
        %v2595 = vadd.f32 %v2533, %v2594
        %v2596 = vpop.f32.mrb[0].mxu0
        %v2597 = vadd.f32 %v2537, %v2596
        %v2598 = vpop.f32.mrb[0].mxu0
        %v2599 = vpop.f32.mrb[0].mxu0
        %2600 = vdwg.mxu0
        %2601 = vmatprep.subr.bf16.mxu0 %v2340
        %2602 = vmatpush1.bf16.msra.mxu0 %v2339
        %2603 = vmatprep.subr.bf16.mxu0 %v2346
        %2604 = vmatpush1.bf16.msra.mxu0 %v2345
        %2605 = vmatprep.subr.bf16.mxu0 %v2352
        %2606 = vmatpush1.bf16.msra.mxu0 %v2351
        %2607 = vmatprep.subr.bf16.mxu0 %v2358
        %2608 = vmatpush1.bf16.msra.mxu0 %v2357
        %2609 = vmatprep.subr.bf16.mxu0 %v2364
        %2610 = vmatpush1.bf16.msra.mxu0 %v2363
        %2611 = vmatprep.subr.bf16.mxu0 %v2370
        %2612 = vmatpush1.bf16.msra.mxu0 %v2369
        %2613 = vmatprep.subr.bf16.mxu0 %v2376
        %2614 = vmatpush1.bf16.msra.mxu0 %v2375
        %2615 = vmatprep.subr.bf16.mxu0 %v2382
        %2616 = vmatpush1.bf16.msra.mxu0 %v2381
        %2617 = vmatprep.subr.bf16.mxu0 %v2388
        %2618 = vmatpush1.bf16.msra.mxu0 %v2387
        %2619 = vmatprep.subr.bf16.mxu0 %v2394
        %2620 = vmatpush1.bf16.msra.mxu0 %v2393
        %2621 = vmatprep.subr.bf16.mxu0 %v2400
        %2622 = vmatpush1.bf16.msra.mxu0 %v2399
        %2623 = vmatprep.subr.bf16.mxu0 %v2406
        %2624 = vmatpush1.bf16.msra.mxu0 %v2405
        %2625 = vmatprep.subr.bf16.mxu0 %v2412
        %2626 = vmatpush1.bf16.msra.mxu0 %v2411
        %2627 = vmatprep.subr.bf16.mxu0 %v2418
        %2628 = vmatpush1.bf16.msra.mxu0 %v2417
        %2629 = vmatprep.subr.bf16.mxu0 %v2424
        %2630 = vmatpush1.bf16.msra.mxu0 %v2423
        %2631 = vmatprep.subr.bf16.mxu0 %v2430
        %2632 = vmatpush1.bf16.msra.mxu0 %v2429
        %2633 = vmatprep.mubr.bf16.mxu0 %v1951
        %2634 = vmatmul.mubr.bf16.gmra.mrb[0].mxu0 %v1950
        %v2635 = vpop.f32.mrb[0].mxu0
        %v2636 = vadd.f32 %v2541, %v2635
        %v2637 = vpop.f32.mrb[0].mxu0
        %v2638 = vadd.f32 %v2545, %v2637
        %v2639 = vpop.f32.mrb[0].mxu0
        %v2640 = vpop.f32.mrb[0].mxu0
        %2641 = vdwg.mxu0
        %2642 = vmatprep.subr.bf16.mxu0 %v2342
        %2643 = vmatpush1.bf16.msra.mxu0 %v2341
        %2644 = vmatprep.subr.bf16.mxu0 %v2348
        %2645 = vmatpush1.bf16.msra.mxu0 %v2347
        %2646 = vmatprep.subr.bf16.mxu0 %v2354
        %2647 = vmatpush1.bf16.msra.mxu0 %v2353
        %2648 = vmatprep.subr.bf16.mxu0 %v2360
        %2649 = vmatpush1.bf16.msra.mxu0 %v2359
        %2650 = vmatprep.subr.bf16.mxu0 %v2366
        %2651 = vmatpush1.bf16.msra.mxu0 %v2365
        %2652 = vmatprep.subr.bf16.mxu0 %v2372
        %2653 = vmatpush1.bf16.msra.mxu0 %v2371
        %2654 = vmatprep.subr.bf16.mxu0 %v2378
        %2655 = vmatpush1.bf16.msra.mxu0 %v2377
        %2656 = vmatprep.subr.bf16.mxu0 %v2384
        %2657 = vmatpush1.bf16.msra.mxu0 %v2383
        %2658 = vmatprep.subr.bf16.mxu0 %v2390
        %2659 = vmatpush1.bf16.msra.mxu0 %v2389
        %2660 = vmatprep.subr.bf16.mxu0 %v2396
        %2661 = vmatpush1.bf16.msra.mxu0 %v2395
        %2662 = vmatprep.subr.bf16.mxu0 %v2402
        %2663 = vmatpush1.bf16.msra.mxu0 %v2401
        %2664 = vmatprep.subr.bf16.mxu0 %v2408
        %2665 = vmatpush1.bf16.msra.mxu0 %v2407
        %2666 = vmatprep.subr.bf16.mxu0 %v2414
        %2667 = vmatpush1.bf16.msra.mxu0 %v2413
        %2668 = vmatprep.subr.bf16.mxu0 %v2420
        %2669 = vmatpush1.bf16.msra.mxu0 %v2419
        %2670 = vmatprep.subr.bf16.mxu0 %v2426
        %2671 = vmatpush1.bf16.msra.mxu0 %v2425
        %2672 = vmatprep.subr.bf16.mxu0 %v2432
        %2673 = vmatpush1.bf16.msra.mxu0 %v2431
        %2674 = vmatprep.mubr.bf16.mxu0 %v1951
        %2675 = vmatmul.mubr.bf16.gmra.mrb[0].mxu0 %v1950
        %v2676 = vpop.f32.mrb[0].mxu0
        %v2677 = vadd.f32 %v2549, %v2676
        %v2678 = vpop.f32.mrb[0].mxu0
        %v2679 = vadd.f32 %v2553, %v2678
        %v2680 = vpop.f32.mrb[0].mxu0
        %v2681 = vpop.f32.mrb[0].mxu0
        %2682 = vdwg.mxu0
        %v2683 = vadd.f32 %v1851, %v2595
        %v2684 = vadd.f32 %v1853, %v2597
        %v2685 = vsub.f32 0.0, %v2683
        %v2686 = vsub.f32 0.0, %v2684
        %v2687 = vmul.f32 %v2685, 1.442695
        %v2688 = vpow.pop %v2687
        %v2689 = vmul.f32 %v2686, 1.442695
        %v2690 = vpow.pop %v2689
        %v2691 = vadd.f32 %v2688, 1.0
        %v2692 = vadd.f32 %v2690, 1.0
        %v2693 = vrcp.pop %v2691
        %v2694 = vmul.f32 1.0, %v2693
        %v2695 = vrcp.pop %v2692
        %v2696 = vmul.f32 1.0, %v2695
        %v2697 = vadd.f32 %v1892, %v2636
        %v2698 = vadd.f32 %v1894, %v2638
        %v2699 = vsub.f32 0.0, %v2697
        %v2700 = vsub.f32 0.0, %v2698
        %v2701 = vmul.f32 %v2699, 1.442695
        %v2702 = vpow.pop %v2701
        %v2703 = vmul.f32 %v2700, 1.442695
        %v2704 = vpow.pop %v2703
        %v2705 = vadd.f32 %v2702, 1.0
        %v2706 = vadd.f32 %v2704, 1.0
        %v2707 = vrcp.pop %v2705
        %v2708 = vmul.f32 1.0, %v2707
        %v2709 = vrcp.pop %v2706
        %v2710 = vmul.f32 1.0, %v2709
        %v2711 = vmul.f32 %v2694, %v2677
        %v2712 = vmul.f32 %v2696, %v2679
        %v2713 = vadd.f32 %v1933, %v2711
        %v2714 = vadd.f32 %v1935, %v2712
        %v2715 = vtanh.pop %v2713
        %v2716 = vtanh.pop %v2714
        %v2717 = vsub.f32 1.0, %v2708
        %v2718 = vsub.f32 1.0, %v2710
        %v2719 = vmul.f32 %v2717, %v2715
        %v2720 = vmul.f32 %v2718, %v2716
        %v2721 = vmul.f32 %v2708, %v1943
        %v2722 = vmul.f32 %v2710, %v1947
        %v2723 = vadd.f32 %v2719, %v2721
        %v2724 = vadd.f32 %v2720, %v2722
        %v2725 = vpack.c.bf16 %v2723, %v2723
        %v2726 = vpack.c.bf16 %v2724, %v2724
        %s2727 = scalar_lea.vmem [#allocation14], %s96
        %v2728 = vld [vmem:[%s2727] sm:$0x1]
        %v2729 = vld [vmem:[#allocation3] sm:$0x1]
        %v2730 = vld [vmem:[#allocation19] sm:$0xff]
        %v2731 = vld [vmem:[#allocation19 + $0x8] sm:$0xff]
        %v2732 = vld [vmem:[#allocation19 + $0x10] sm:$0xff]
        %v2733 = vld [vmem:[#allocation19 + $0x18] sm:$0xff]
        %v2734 = vld [vmem:[#allocation19 + $0x20] sm:$0xff]
        %v2735 = vld [vmem:[#allocation19 + $0x28] sm:$0xff]
        %v2736 = vld [vmem:[#allocation19 + $0x30] sm:$0xff]
        %v2737 = vld [vmem:[#allocation19 + $0x38] sm:$0xff]
        %v2738 = vld [vmem:[#allocation19 + $0x40] sm:$0xff]
        %v2739 = vld [vmem:[#allocation19 + $0x48] sm:$0xff]
        %v2740 = vld [vmem:[#allocation19 + $0x50] sm:$0xff]
        %v2741 = vld [vmem:[#allocation19 + $0x58] sm:$0xff]
        %v2742 = vld [vmem:[#allocation19 + $0x60] sm:$0xff]
        %v2743 = vld [vmem:[#allocation19 + $0x68] sm:$0xff]
        %v2744 = vld [vmem:[#allocation19 + $0x70] sm:$0xff]
        %v2745 = vld [vmem:[#allocation19 + $0x78] sm:$0xff]
        %2746 = vmatprep.subr.mxu0 0.0
        %2747 = vmatpush1.msra.mxu0 %v2730
        %2748 = vmatprep.subr.mxu0 0.0
        %2749 = vmatpush1.msra.mxu0 %v2731
        %2750 = vmatprep.subr.mxu0 0.0
        %2751 = vmatpush1.msra.mxu0 %v2732
        %2752 = vmatprep.subr.mxu0 0.0
        %2753 = vmatpush1.msra.mxu0 %v2733
        %2754 = vmatprep.subr.mxu0 0.0
        %2755 = vmatpush1.msra.mxu0 %v2734
        %2756 = vmatprep.subr.mxu0 0.0
        %2757 = vmatpush1.msra.mxu0 %v2735
        %2758 = vmatprep.subr.mxu0 0.0
        %2759 = vmatpush1.msra.mxu0 %v2736
        %2760 = vmatprep.subr.mxu0 0.0
        %2761 = vmatpush1.msra.mxu0 %v2737
        %2762 = vmatprep.subr.mxu0 0.0
        %2763 = vmatpush1.msra.mxu0 %v2738
        %2764 = vmatprep.subr.mxu0 0.0
        %2765 = vmatpush1.msra.mxu0 %v2739
        %2766 = vmatprep.subr.mxu0 0.0
        %2767 = vmatpush1.msra.mxu0 %v2740
        %2768 = vmatprep.subr.mxu0 0.0
        %2769 = vmatpush1.msra.mxu0 %v2741
        %2770 = vmatprep.subr.mxu0 0.0
        %2771 = vmatpush1.msra.mxu0 %v2742
        %2772 = vmatprep.subr.mxu0 0.0
        %2773 = vmatpush1.msra.mxu0 %v2743
        %2774 = vmatprep.subr.mxu0 0.0
        %2775 = vmatpush1.msra.mxu0 %v2744
        %2776 = vmatprep.subr.mxu0 0.0
        %2777 = vmatpush1.msra.mxu0 %v2745
        %2778 = vmatprep.subr.mxu0 0.0
        %2779 = vmatpush1.msra.mxu0 0.0
        %2780 = vmatprep.subr.mxu0 0.0
        %2781 = vmatpush1.msra.mxu0 0.0
        %2782 = vmatprep.subr.mxu0 0.0
        %2783 = vmatpush1.msra.mxu0 0.0
        %2784 = vmatprep.subr.mxu0 0.0
        %2785 = vmatpush1.msra.mxu0 0.0
        %2786 = vmatprep.subr.mxu0 0.0
        %2787 = vmatpush1.msra.mxu0 0.0
        %2788 = vmatprep.subr.mxu0 0.0
        %2789 = vmatpush1.msra.mxu0 0.0
        %2790 = vmatprep.subr.mxu0 0.0
        %2791 = vmatpush1.msra.mxu0 0.0
        %2792 = vmatprep.subr.mxu0 0.0
        %2793 = vmatpush1.msra.mxu0 0.0
        %2794 = vmatprep.subr.mxu0 0.0
        %2795 = vmatpush1.msra.mxu0 0.0
        %2796 = vmatprep.subr.mxu0 0.0
        %2797 = vmatpush1.msra.mxu0 0.0
        %2798 = vmatprep.subr.mxu0 0.0
        %2799 = vmatpush1.msra.mxu0 0.0
        %2800 = vmatprep.subr.mxu0 0.0
        %2801 = vmatpush1.msra.mxu0 0.0
        %2802 = vmatprep.subr.mxu0 0.0
        %2803 = vmatpush1.msra.mxu0 0.0
        %2804 = vmatprep.subr.mxu0 0.0
        %2805 = vmatpush1.msra.mxu0 0.0
        %2806 = vmatprep.subr.mxu0 0.0
        %2807 = vmatpush1.msra.mxu0 0.0
        %2808 = vmatprep.subr.mxu0 0.0
        %2809 = vmatpush1.msra.mxu0 0.0
        %2810 = vmatprep.mubr.f32.mxu0 0.0
        %2811 = vmatmul.mubr.f32.gmra.mrb[0].mxu0 %v2728
        %v2812 = vpop.f32.mrb[0].mxu0
        %v2813 = vadd.f32 0.0, %v2812
        %v2814 = vpop.f32.mrb[0].mxu0
        %2815 = vdwg.mxu0
        %v2816 = vadd.f32 %v2729, %v2813
        %v2817 = vld [vmem:[#allocation6] sm:$0x1]
        %2819 = vset.pattern.permute.xlu0 0
        %2820 = vperm.xlu0 %2819, %v2817
        %v2821 = vpop.permute.xlu0 %2820
        %v2823 = vlaneseq
        %v2824 = vshrl.u32 %v2823, 7
        %v2825 = vsub.s32 0, %v2824
        %v2826 = vrot.slane %v2821, %v2825
        %v2827 = vadd.f32 %v2816, %v2826
        %2828 = vst [vmem:[#allocation3] sm:$0x1] %v2827
        %s2829 = scalar_lea.vmem [#allocation47], %s96
        %2830 = vst [vmem:[%s2829] sm:$0x1] %v2827
        %v2831 = vld [vmem:[#allocation26] sm:$0xff]
        %v2832 = vld [vmem:[#allocation26 + $0x8] sm:$0xff]
        %v2833 = vld [vmem:[#allocation26 + $0x10] sm:$0xff]
        %v2834 = vld [vmem:[#allocation26 + $0x18] sm:$0xff]
        %v2835 = vld [vmem:[#allocation26 + $0x20] sm:$0xff]
        %v2836 = vld [vmem:[#allocation26 + $0x28] sm:$0xff]
        %v2837 = vld [vmem:[#allocation26 + $0x30] sm:$0xff]
        %v2838 = vld [vmem:[#allocation26 + $0x38] sm:$0xff]
        %v2839 = vld [vmem:[#allocation26 + $0x40] sm:$0xff]
        %v2840 = vld [vmem:[#allocation26 + $0x48] sm:$0xff]
        %v2841 = vld [vmem:[#allocation26 + $0x50] sm:$0xff]
        %v2842 = vld [vmem:[#allocation26 + $0x58] sm:$0xff]
        %v2843 = vld [vmem:[#allocation26 + $0x60] sm:$0xff]
        %v2844 = vld [vmem:[#allocation26 + $0x68] sm:$0xff]
        %v2845 = vld [vmem:[#allocation26 + $0x70] sm:$0xff]
        %v2846 = vld [vmem:[#allocation26 + $0x78] sm:$0xff]
        %v2847 = vld [vmem:[#allocation26 + $0x80] sm:$0xff]
        %v2848 = vld [vmem:[#allocation26 + $0x88] sm:$0xff]
        %v2849 = vld [vmem:[#allocation26 + $0x90] sm:$0xff]
        %v2850 = vld [vmem:[#allocation26 + $0x98] sm:$0xff]
        %v2851 = vld [vmem:[#allocation26 + $0xa0] sm:$0xff]
        %v2852 = vld [vmem:[#allocation26 + $0xa8] sm:$0xff]
        %v2853 = vld [vmem:[#allocation26 + $0xb0] sm:$0xff]
        %v2854 = vld [vmem:[#allocation26 + $0xb8] sm:$0xff]
        %v2855 = vld [vmem:[#allocation26 + $0xc0] sm:$0xff]
        %v2856 = vld [vmem:[#allocation26 + $0xc8] sm:$0xff]
        %v2857 = vld [vmem:[#allocation26 + $0xd0] sm:$0xff]
        %v2858 = vld [vmem:[#allocation26 + $0xd8] sm:$0xff]
        %v2859 = vld [vmem:[#allocation26 + $0xe0] sm:$0xff]
        %v2860 = vld [vmem:[#allocation26 + $0xe8] sm:$0xff]
        %v2861 = vld [vmem:[#allocation26 + $0xf0] sm:$0xff]
        %v2862 = vld [vmem:[#allocation26 + $0xf8] sm:$0xff]
        %v2863 = vld [vmem:[#allocation28] sm:$0x3]
        %v2896 = vunpack.c.l.b16 %v2831
        %v2897 = vunpack.c.h.b16 %v2831
        %v2898 = vunpack.c.l.b16 %v2832
        %v2899 = vunpack.c.h.b16 %v2832
        %v2900 = vunpack.c.l.b16 %v2833
        %v2901 = vunpack.c.h.b16 %v2833
        %v2902 = vunpack.c.l.b16 %v2834
        %v2903 = vunpack.c.h.b16 %v2834
        %v2904 = vunpack.c.l.b16 %v2835
        %v2905 = vunpack.c.h.b16 %v2835
        %v2906 = vunpack.c.l.b16 %v2836
        %v2907 = vunpack.c.h.b16 %v2836
        %v2908 = vunpack.c.l.b16 %v2837
        %v2909 = vunpack.c.h.b16 %v2837
        %v2910 = vunpack.c.l.b16 %v2838
        %v2911 = vunpack.c.h.b16 %v2838
        %v2912 = vunpack.c.l.b16 %v2839
        %v2913 = vunpack.c.h.b16 %v2839
        %v2914 = vunpack.c.l.b16 %v2840
        %v2915 = vunpack.c.h.b16 %v2840
        %v2916 = vunpack.c.l.b16 %v2841
        %v2917 = vunpack.c.h.b16 %v2841
        %v2918 = vunpack.c.l.b16 %v2842
        %v2919 = vunpack.c.h.b16 %v2842
        %v2920 = vunpack.c.l.b16 %v2843
        %v2921 = vunpack.c.h.b16 %v2843
        %v2922 = vunpack.c.l.b16 %v2844
        %v2923 = vunpack.c.h.b16 %v2844
        %v2924 = vunpack.c.l.b16 %v2845
        %v2925 = vunpack.c.h.b16 %v2845
        %v2926 = vunpack.c.l.b16 %v2846
        %v2927 = vunpack.c.h.b16 %v2846
        %v2928 = vunpack.c.l.b16 %v2847
        %v2929 = vunpack.c.h.b16 %v2847
        %v2930 = vunpack.c.l.b16 %v2848
        %v2931 = vunpack.c.h.b16 %v2848
        %v2932 = vunpack.c.l.b16 %v2849
        %v2933 = vunpack.c.h.b16 %v2849
        %v2934 = vunpack.c.l.b16 %v2850
        %v2935 = vunpack.c.h.b16 %v2850
        %v2936 = vunpack.c.l.b16 %v2851
        %v2937 = vunpack.c.h.b16 %v2851
        %v2938 = vunpack.c.l.b16 %v2852
        %v2939 = vunpack.c.h.b16 %v2852
        %v2940 = vunpack.c.l.b16 %v2853
        %v2941 = vunpack.c.h.b16 %v2853
        %v2942 = vunpack.c.l.b16 %v2854
        %v2943 = vunpack.c.h.b16 %v2854
        %v2944 = vunpack.c.l.b16 %v2855
        %v2945 = vunpack.c.h.b16 %v2855
        %v2946 = vunpack.c.l.b16 %v2856
        %v2947 = vunpack.c.h.b16 %v2856
        %v2948 = vunpack.c.l.b16 %v2857
        %v2949 = vunpack.c.h.b16 %v2857
        %v2950 = vunpack.c.l.b16 %v2858
        %v2951 = vunpack.c.h.b16 %v2858
        %v2952 = vunpack.c.l.b16 %v2859
        %v2953 = vunpack.c.h.b16 %v2859
        %v2954 = vunpack.c.l.b16 %v2860
        %v2955 = vunpack.c.h.b16 %v2860
        %v2956 = vunpack.c.l.b16 %v2861
        %v2957 = vunpack.c.h.b16 %v2861
        %v2958 = vunpack.c.l.b16 %v2862
        %v2959 = vunpack.c.h.b16 %v2862
        %v2960 = vpack.c.b16 %v2898, %v2896
        %v2961 = vpack.c.b16 %v2899, %v2897
        %v2962 = vpack.c.b16 %v2902, %v2900
        %v2963 = vpack.c.b16 %v2903, %v2901
        %v2964 = vpack.c.b16 %v2906, %v2904
        %v2965 = vpack.c.b16 %v2907, %v2905
        %v2966 = vpack.c.b16 %v2910, %v2908
        %v2967 = vpack.c.b16 %v2911, %v2909
        %v2968 = vpack.c.b16 %v2914, %v2912
        %v2969 = vpack.c.b16 %v2915, %v2913
        %v2970 = vpack.c.b16 %v2918, %v2916
        %v2971 = vpack.c.b16 %v2919, %v2917
        %v2972 = vpack.c.b16 %v2922, %v2920
        %v2973 = vpack.c.b16 %v2923, %v2921
        %v2974 = vpack.c.b16 %v2926, %v2924
        %v2975 = vpack.c.b16 %v2927, %v2925
        %v2976 = vpack.c.b16 %v2930, %v2928
        %v2977 = vpack.c.b16 %v2931, %v2929
        %v2978 = vpack.c.b16 %v2934, %v2932
        %v2979 = vpack.c.b16 %v2935, %v2933
        %v2980 = vpack.c.b16 %v2938, %v2936
        %v2981 = vpack.c.b16 %v2939, %v2937
        %v2982 = vpack.c.b16 %v2942, %v2940
        %v2983 = vpack.c.b16 %v2943, %v2941
        %v2984 = vpack.c.b16 %v2946, %v2944
        %v2985 = vpack.c.b16 %v2947, %v2945
        %v2986 = vpack.c.b16 %v2950, %v2948
        %v2987 = vpack.c.b16 %v2951, %v2949
        %v2988 = vpack.c.b16 %v2954, %v2952
        %v2989 = vpack.c.b16 %v2955, %v2953
        %v2990 = vpack.c.b16 %v2958, %v2956
        %v2991 = vpack.c.b16 %v2959, %v2957
        %v3025 = vlaneseq
        %v3026 = vshrl.u32 %v3025, 7
        %v3027 = vsub.s32 0, %v3026
        %v3028 = vrot.slane %v2863, %v3027
        %v3029 = vlaneseq
        %v3030 = vshrl.u32 %v3029, 7
        %v3031 = vsub.s32 1, %v3030
        %v3032 = vrot.slane %v2863, %v3031
        %3035 = vmatprep.subr.bf16.mxu0 %v2961
        %3036 = vmatpush1.bf16.msra.mxu0 %v2960
        %3037 = vmatprep.subr.bf16.mxu0 %v2963
        %3038 = vmatpush1.bf16.msra.mxu0 %v2962
        %3039 = vmatprep.subr.bf16.mxu0 %v2965
        %3040 = vmatpush1.bf16.msra.mxu0 %v2964
        %3041 = vmatprep.subr.bf16.mxu0 %v2967
        %3042 = vmatpush1.bf16.msra.mxu0 %v2966
        %3043 = vmatprep.subr.bf16.mxu0 %v2969
        %3044 = vmatpush1.bf16.msra.mxu0 %v2968
        %3045 = vmatprep.subr.bf16.mxu0 %v2971
        %3046 = vmatpush1.bf16.msra.mxu0 %v2970
        %3047 = vmatprep.subr.bf16.mxu0 %v2973
        %3048 = vmatpush1.bf16.msra.mxu0 %v2972
        %3049 = vmatprep.subr.bf16.mxu0 %v2975
        %3050 = vmatpush1.bf16.msra.mxu0 %v2974
        %3051 = vmatprep.subr.bf16.mxu0 %v2977
        %3052 = vmatpush1.bf16.msra.mxu0 %v2976
        %3053 = vmatprep.subr.bf16.mxu0 %v2979
        %3054 = vmatpush1.bf16.msra.mxu0 %v2978
        %3055 = vmatprep.subr.bf16.mxu0 %v2981
        %3056 = vmatpush1.bf16.msra.mxu0 %v2980
        %3057 = vmatprep.subr.bf16.mxu0 %v2983
        %3058 = vmatpush1.bf16.msra.mxu0 %v2982
        %3059 = vmatprep.subr.bf16.mxu0 %v2985
        %3060 = vmatpush1.bf16.msra.mxu0 %v2984
        %3061 = vmatprep.subr.bf16.mxu0 %v2987
        %3062 = vmatpush1.bf16.msra.mxu0 %v2986
        %3063 = vmatprep.subr.bf16.mxu0 %v2989
        %3064 = vmatpush1.bf16.msra.mxu0 %v2988
        %3065 = vmatprep.subr.bf16.mxu0 %v2991
        %3066 = vmatpush1.bf16.msra.mxu0 %v2990
        %3067 = vmatprep.mubr.bf16.mxu0 %v2726
        %3068 = vmatmul.mubr.bf16.gmra.mrb[0].mxu0 %v2725
        %v3069 = vpop.f32.mrb[0].mxu0
        %v3070 = vadd.f32 %v3028, %v3069
        %v3071 = vpop.f32.mrb[0].mxu0
        %v3072 = vadd.f32 %v3032, %v3071
        %v3073 = vpop.f32.mrb[0].mxu0
        %v3074 = vpop.f32.mrb[0].mxu0
        %3075 = vdwg.mxu0
        %v3076 = vlaneseq
        %v3077 = vshrl.u32 %v3076, 7
        %v3078 = vadd.s32 %v3077, 8
        %v3079 = vadd.s32 %v3077, 16
        %v3080 = vadd.s32 %v3077, 24
        %v3081 = vadd.s32 %v3077, 32
        %v3082 = vadd.s32 %v3077, 40
        %v3083 = vadd.s32 %v3077, 48
        %v3084 = vadd.s32 %v3077, 56
        %v3085 = vadd.s32 %v3077, 64
        %v3086 = vadd.s32 %v3077, 72
        %v3087 = vadd.s32 %v3077, 80
        %v3088 = vadd.s32 %v3077, 88
        %v3089 = vadd.s32 %v3077, 96
        %v3090 = vadd.s32 %v3077, 104
        %v3091 = vadd.s32 %v3077, 112
        %v3092 = vadd.s32 %v3077, 120
        %v3093 = vadd.s32 %v3077, 128
        %v3094 = vadd.s32 %v3077, 136
        %v3095 = vadd.s32 %v3077, 144
        %v3096 = vadd.s32 %v3077, 152
        %v3097 = vadd.s32 %v3077, 160
        %v3098 = vadd.s32 %v3077, 168
        %v3099 = vadd.s32 %v3077, 176
        %v3100 = vadd.s32 %v3077, 184
        %v3101 = vadd.s32 %v3077, 192
        %v3102 = vadd.s32 %v3077, 200
        %v3103 = vadd.s32 %v3077, 208
        %v3104 = vadd.s32 %v3077, 216
        %v3105 = vadd.s32 %v3077, 224
        %v3106 = vadd.s32 %v3077, 232
        %v3107 = vadd.s32 %v3077, 240
        %v3108 = vadd.s32 %v3077, 248
        %v3109 = vlaneseq
        %v3110 = vand.u32 %v3109, 127
        %v3111 = vadd.s32 %v3110, 128
        %vm3112 = vcmp.eq.s32.totalorder %v3077, %v3110
        %vm3113 = vcmp.eq.s32.totalorder %v3077, %v3111
        %vm3114 = vcmp.eq.s32.totalorder %v3078, %v3110
        %vm3115 = vcmp.eq.s32.totalorder %v3078, %v3111
        %vm3116 = vcmp.eq.s32.totalorder %v3079, %v3110
        %vm3117 = vcmp.eq.s32.totalorder %v3079, %v3111
        %vm3118 = vcmp.eq.s32.totalorder %v3080, %v3110
        %vm3119 = vcmp.eq.s32.totalorder %v3080, %v3111
        %vm3120 = vcmp.eq.s32.totalorder %v3081, %v3110
        %vm3121 = vcmp.eq.s32.totalorder %v3081, %v3111
        %vm3122 = vcmp.eq.s32.totalorder %v3082, %v3110
        %vm3123 = vcmp.eq.s32.totalorder %v3082, %v3111
        %vm3124 = vcmp.eq.s32.totalorder %v3083, %v3110
        %vm3125 = vcmp.eq.s32.totalorder %v3083, %v3111
        %vm3126 = vcmp.eq.s32.totalorder %v3084, %v3110
        %vm3127 = vcmp.eq.s32.totalorder %v3084, %v3111
        %vm3128 = vcmp.eq.s32.totalorder %v3085, %v3110
        %vm3129 = vcmp.eq.s32.totalorder %v3085, %v3111
        %vm3130 = vcmp.eq.s32.totalorder %v3086, %v3110
        %vm3131 = vcmp.eq.s32.totalorder %v3086, %v3111
        %vm3132 = vcmp.eq.s32.totalorder %v3087, %v3110
        %vm3133 = vcmp.eq.s32.totalorder %v3087, %v3111
        %vm3134 = vcmp.eq.s32.totalorder %v3088, %v3110
        %vm3135 = vcmp.eq.s32.totalorder %v3088, %v3111
        %vm3136 = vcmp.eq.s32.totalorder %v3089, %v3110
        %vm3137 = vcmp.eq.s32.totalorder %v3089, %v3111
        %vm3138 = vcmp.eq.s32.totalorder %v3090, %v3110
        %vm3139 = vcmp.eq.s32.totalorder %v3090, %v3111
        %vm3140 = vcmp.eq.s32.totalorder %v3091, %v3110
        %vm3141 = vcmp.eq.s32.totalorder %v3091, %v3111
        %vm3142 = vcmp.eq.s32.totalorder %v3092, %v3110
        %vm3143 = vcmp.eq.s32.totalorder %v3092, %v3111
        %vm3144 = vcmp.eq.s32.totalorder %v3093, %v3110
        %vm3145 = vcmp.eq.s32.totalorder %v3093, %v3111
        %vm3146 = vcmp.eq.s32.totalorder %v3094, %v3110
        %vm3147 = vcmp.eq.s32.totalorder %v3094, %v3111
        %vm3148 = vcmp.eq.s32.totalorder %v3095, %v3110
        %vm3149 = vcmp.eq.s32.totalorder %v3095, %v3111
        %vm3150 = vcmp.eq.s32.totalorder %v3096, %v3110
        %vm3151 = vcmp.eq.s32.totalorder %v3096, %v3111
        %vm3152 = vcmp.eq.s32.totalorder %v3097, %v3110
        %vm3153 = vcmp.eq.s32.totalorder %v3097, %v3111
        %vm3154 = vcmp.eq.s32.totalorder %v3098, %v3110
        %vm3155 = vcmp.eq.s32.totalorder %v3098, %v3111
        %vm3156 = vcmp.eq.s32.totalorder %v3099, %v3110
        %vm3157 = vcmp.eq.s32.totalorder %v3099, %v3111
        %vm3158 = vcmp.eq.s32.totalorder %v3100, %v3110
        %vm3159 = vcmp.eq.s32.totalorder %v3100, %v3111
        %vm3160 = vcmp.eq.s32.totalorder %v3101, %v3110
        %vm3161 = vcmp.eq.s32.totalorder %v3101, %v3111
        %vm3162 = vcmp.eq.s32.totalorder %v3102, %v3110
        %vm3163 = vcmp.eq.s32.totalorder %v3102, %v3111
        %vm3164 = vcmp.eq.s32.totalorder %v3103, %v3110
        %vm3165 = vcmp.eq.s32.totalorder %v3103, %v3111
        %vm3166 = vcmp.eq.s32.totalorder %v3104, %v3110
        %vm3167 = vcmp.eq.s32.totalorder %v3104, %v3111
        %vm3168 = vcmp.eq.s32.totalorder %v3105, %v3110
        %vm3169 = vcmp.eq.s32.totalorder %v3105, %v3111
        %vm3170 = vcmp.eq.s32.totalorder %v3106, %v3110
        %vm3171 = vcmp.eq.s32.totalorder %v3106, %v3111
        %vm3172 = vcmp.eq.s32.totalorder %v3107, %v3110
        %vm3173 = vcmp.eq.s32.totalorder %v3107, %v3111
        %vm3174 = vcmp.eq.s32.totalorder %v3108, %v3110
        %vm3175 = vcmp.eq.s32.totalorder %v3108, %v3111
        %v3176 = vlaneseq
        %v3177 = vshrl.u32 %v3176, 7
        %v3178 = vsub.s32 0, %v3177
        %v3179 = vrot.slane %v3070, %v3178
        %v3180 = vlaneseq
        %v3181 = vshrl.u32 %v3180, 7
        %v3182 = vsub.s32 0, %v3181
        %v3183 = vrot.slane %v3072, %v3182
        %v3184 = vsel %vm3112, %v3179, 0.0
        %v3185 = vsel %vm3113, %v3183, 0.0
        %v3186 = vsel %vm3114, %v3179, 0.0
        %v3187 = vsel %vm3115, %v3183, 0.0
        %v3188 = vsel %vm3116, %v3179, 0.0
        %v3189 = vsel %vm3117, %v3183, 0.0
        %v3190 = vsel %vm3118, %v3179, 0.0
        %v3191 = vsel %vm3119, %v3183, 0.0
        %v3192 = vsel %vm3120, %v3179, 0.0
        %v3193 = vsel %vm3121, %v3183, 0.0
        %v3194 = vsel %vm3122, %v3179, 0.0
        %v3195 = vsel %vm3123, %v3183, 0.0
        %v3196 = vsel %vm3124, %v3179, 0.0
        %v3197 = vsel %vm3125, %v3183, 0.0
        %v3198 = vsel %vm3126, %v3179, 0.0
        %v3199 = vsel %vm3127, %v3183, 0.0
        %v3200 = vsel %vm3128, %v3179, 0.0
        %v3201 = vsel %vm3129, %v3183, 0.0
        %v3202 = vsel %vm3130, %v3179, 0.0
        %v3203 = vsel %vm3131, %v3183, 0.0
        %v3204 = vsel %vm3132, %v3179, 0.0
        %v3205 = vsel %vm3133, %v3183, 0.0
        %v3206 = vsel %vm3134, %v3179, 0.0
        %v3207 = vsel %vm3135, %v3183, 0.0
        %v3208 = vsel %vm3136, %v3179, 0.0
        %v3209 = vsel %vm3137, %v3183, 0.0
        %v3210 = vsel %vm3138, %v3179, 0.0
        %v3211 = vsel %vm3139, %v3183, 0.0
        %v3212 = vsel %vm3140, %v3179, 0.0
        %v3213 = vsel %vm3141, %v3183, 0.0
        %v3214 = vsel %vm3142, %v3179, 0.0
        %v3215 = vsel %vm3143, %v3183, 0.0
        %v3216 = vsel %vm3144, %v3179, 0.0
        %v3217 = vsel %vm3145, %v3183, 0.0
        %v3218 = vsel %vm3146, %v3179, 0.0
        %v3219 = vsel %vm3147, %v3183, 0.0
        %v3220 = vsel %vm3148, %v3179, 0.0
        %v3221 = vsel %vm3149, %v3183, 0.0
        %v3222 = vsel %vm3150, %v3179, 0.0
        %v3223 = vsel %vm3151, %v3183, 0.0
        %v3224 = vsel %vm3152, %v3179, 0.0
        %v3225 = vsel %vm3153, %v3183, 0.0
        %v3226 = vsel %vm3154, %v3179, 0.0
        %v3227 = vsel %vm3155, %v3183, 0.0
        %v3228 = vsel %vm3156, %v3179, 0.0
        %v3229 = vsel %vm3157, %v3183, 0.0
        %v3230 = vsel %vm3158, %v3179, 0.0
        %v3231 = vsel %vm3159, %v3183, 0.0
        %v3232 = vsel %vm3160, %v3179, 0.0
        %v3233 = vsel %vm3161, %v3183, 0.0
        %v3234 = vsel %vm3162, %v3179, 0.0
        %v3235 = vsel %vm3163, %v3183, 0.0
        %v3236 = vsel %vm3164, %v3179, 0.0
        %v3237 = vsel %vm3165, %v3183, 0.0
        %v3238 = vsel %vm3166, %v3179, 0.0
        %v3239 = vsel %vm3167, %v3183, 0.0
        %v3240 = vsel %vm3168, %v3179, 0.0
        %v3241 = vsel %vm3169, %v3183, 0.0
        %v3242 = vsel %vm3170, %v3179, 0.0
        %v3243 = vsel %vm3171, %v3183, 0.0
        %v3244 = vsel %vm3172, %v3179, 0.0
        %v3245 = vsel %vm3173, %v3183, 0.0
        %v3246 = vsel %vm3174, %v3179, 0.0
        %v3247 = vsel %vm3175, %v3183, 0.0
        %v3248 = vadd.f32 %v3184, %v3185
        %3249 = vadd.xlane.f32.xlu0 %v3248
        %v3250 = vpop.xlane.xlu0 %3249
        %v3251 = vadd.f32 %v3186, %v3187
        %3252 = vadd.xlane.f32.xlu0 %v3251
        %v3253 = vpop.xlane.xlu0 %3252
        %v3254 = vadd.f32 %v3188, %v3189
        %3255 = vadd.xlane.f32.xlu0 %v3254
        %v3256 = vpop.xlane.xlu0 %3255
        %v3257 = vadd.f32 %v3190, %v3191
        %3258 = vadd.xlane.f32.xlu0 %v3257
        %v3259 = vpop.xlane.xlu0 %3258
        %v3260 = vadd.f32 %v3192, %v3193
        %3261 = vadd.xlane.f32.xlu0 %v3260
        %v3262 = vpop.xlane.xlu0 %3261
        %v3263 = vadd.f32 %v3194, %v3195
        %3264 = vadd.xlane.f32.xlu0 %v3263
        %v3265 = vpop.xlane.xlu0 %3264
        %v3266 = vadd.f32 %v3196, %v3197
        %3267 = vadd.xlane.f32.xlu0 %v3266
        %v3268 = vpop.xlane.xlu0 %3267
        %v3269 = vadd.f32 %v3198, %v3199
        %3270 = vadd.xlane.f32.xlu0 %v3269
        %v3271 = vpop.xlane.xlu0 %3270
        %v3272 = vadd.f32 %v3200, %v3201
        %3273 = vadd.xlane.f32.xlu0 %v3272
        %v3274 = vpop.xlane.xlu0 %3273
        %v3275 = vadd.f32 %v3202, %v3203
        %3276 = vadd.xlane.f32.xlu0 %v3275
        %v3277 = vpop.xlane.xlu0 %3276
        %v3278 = vadd.f32 %v3204, %v3205
        %3279 = vadd.xlane.f32.xlu0 %v3278
        %v3280 = vpop.xlane.xlu0 %3279
        %v3281 = vadd.f32 %v3206, %v3207
        %3282 = vadd.xlane.f32.xlu0 %v3281
        %v3283 = vpop.xlane.xlu0 %3282
        %v3284 = vadd.f32 %v3208, %v3209
        %3285 = vadd.xlane.f32.xlu0 %v3284
        %v3286 = vpop.xlane.xlu0 %3285
        %v3287 = vadd.f32 %v3210, %v3211
        %3288 = vadd.xlane.f32.xlu0 %v3287
        %v3289 = vpop.xlane.xlu0 %3288
        %v3290 = vadd.f32 %v3212, %v3213
        %3291 = vadd.xlane.f32.xlu0 %v3290
        %v3292 = vpop.xlane.xlu0 %3291
        %v3293 = vadd.f32 %v3214, %v3215
        %3294 = vadd.xlane.f32.xlu0 %v3293
        %v3295 = vpop.xlane.xlu0 %3294
        %v3296 = vadd.f32 %v3216, %v3217
        %3297 = vadd.xlane.f32.xlu0 %v3296
        %v3298 = vpop.xlane.xlu0 %3297
        %v3299 = vadd.f32 %v3218, %v3219
        %3300 = vadd.xlane.f32.xlu0 %v3299
        %v3301 = vpop.xlane.xlu0 %3300
        %v3302 = vadd.f32 %v3220, %v3221
        %3303 = vadd.xlane.f32.xlu0 %v3302
        %v3304 = vpop.xlane.xlu0 %3303
        %v3305 = vadd.f32 %v3222, %v3223
        %3306 = vadd.xlane.f32.xlu0 %v3305
        %v3307 = vpop.xlane.xlu0 %3306
        %v3308 = vadd.f32 %v3224, %v3225
        %3309 = vadd.xlane.f32.xlu0 %v3308
        %v3310 = vpop.xlane.xlu0 %3309
        %v3311 = vadd.f32 %v3226, %v3227
        %3312 = vadd.xlane.f32.xlu0 %v3311
        %v3313 = vpop.xlane.xlu0 %3312
        %v3314 = vadd.f32 %v3228, %v3229
        %3315 = vadd.xlane.f32.xlu0 %v3314
        %v3316 = vpop.xlane.xlu0 %3315
        %v3317 = vadd.f32 %v3230, %v3231
        %3318 = vadd.xlane.f32.xlu0 %v3317
        %v3319 = vpop.xlane.xlu0 %3318
        %v3320 = vadd.f32 %v3232, %v3233
        %3321 = vadd.xlane.f32.xlu0 %v3320
        %v3322 = vpop.xlane.xlu0 %3321
        %v3323 = vadd.f32 %v3234, %v3235
        %3324 = vadd.xlane.f32.xlu0 %v3323
        %v3325 = vpop.xlane.xlu0 %3324
        %v3326 = vadd.f32 %v3236, %v3237
        %3327 = vadd.xlane.f32.xlu0 %v3326
        %v3328 = vpop.xlane.xlu0 %3327
        %v3329 = vadd.f32 %v3238, %v3239
        %3330 = vadd.xlane.f32.xlu0 %v3329
        %v3331 = vpop.xlane.xlu0 %3330
        %v3332 = vadd.f32 %v3240, %v3241
        %3333 = vadd.xlane.f32.xlu0 %v3332
        %v3334 = vpop.xlane.xlu0 %3333
        %v3335 = vadd.f32 %v3242, %v3243
        %3336 = vadd.xlane.f32.xlu0 %v3335
        %v3337 = vpop.xlane.xlu0 %3336
        %v3338 = vadd.f32 %v3244, %v3245
        %3339 = vadd.xlane.f32.xlu0 %v3338
        %v3340 = vpop.xlane.xlu0 %3339
        %v3341 = vadd.f32 %v3246, %v3247
        %3342 = vadd.xlane.f32.xlu0 %v3341
        %v3343 = vpop.xlane.xlu0 %3342
        %v3344 = vld [vmem:[#allocation17] sm:$0xff]
        %v3345 = vld [vmem:[#allocation17 + $0x8] sm:$0xff]
        %v3346 = vld [vmem:[#allocation17 + $0x10] sm:$0xff]
        %v3347 = vld [vmem:[#allocation17 + $0x18] sm:$0xff]
        %v3348 = vld [vmem:[#allocation17 + $0x20] sm:$0xff]
        %v3349 = vld [vmem:[#allocation17 + $0x28] sm:$0xff]
        %v3350 = vld [vmem:[#allocation17 + $0x30] sm:$0xff]
        %v3351 = vld [vmem:[#allocation17 + $0x38] sm:$0xff]
        %v3352 = vld [vmem:[#allocation17 + $0x40] sm:$0xff]
        %v3353 = vld [vmem:[#allocation17 + $0x48] sm:$0xff]
        %v3354 = vld [vmem:[#allocation17 + $0x50] sm:$0xff]
        %v3355 = vld [vmem:[#allocation17 + $0x58] sm:$0xff]
        %v3356 = vld [vmem:[#allocation17 + $0x60] sm:$0xff]
        %v3357 = vld [vmem:[#allocation17 + $0x68] sm:$0xff]
        %v3358 = vld [vmem:[#allocation17 + $0x70] sm:$0xff]
        %v3359 = vld [vmem:[#allocation17 + $0x78] sm:$0xff]
        %v3360 = vld [vmem:[#allocation17 + $0x80] sm:$0xff]
        %v3361 = vld [vmem:[#allocation17 + $0x88] sm:$0xff]
        %v3362 = vld [vmem:[#allocation17 + $0x90] sm:$0xff]
        %v3363 = vld [vmem:[#allocation17 + $0x98] sm:$0xff]
        %v3364 = vld [vmem:[#allocation17 + $0xa0] sm:$0xff]
        %v3365 = vld [vmem:[#allocation17 + $0xa8] sm:$0xff]
        %v3366 = vld [vmem:[#allocation17 + $0xb0] sm:$0xff]
        %v3367 = vld [vmem:[#allocation17 + $0xb8] sm:$0xff]
        %v3368 = vld [vmem:[#allocation17 + $0xc0] sm:$0xff]
        %v3369 = vld [vmem:[#allocation17 + $0xc8] sm:$0xff]
        %v3370 = vld [vmem:[#allocation17 + $0xd0] sm:$0xff]
        %v3371 = vld [vmem:[#allocation17 + $0xd8] sm:$0xff]
        %v3372 = vld [vmem:[#allocation17 + $0xe0] sm:$0xff]
        %v3373 = vld [vmem:[#allocation17 + $0xe8] sm:$0xff]
        %v3374 = vld [vmem:[#allocation17 + $0xf0] sm:$0xff]
        %v3375 = vld [vmem:[#allocation17 + $0xf8] sm:$0xff]
        %v3376 = vadd.f32 %v3250, %v3344
        %v3377 = vadd.f32 %v3253, %v3345
        %v3378 = vadd.f32 %v3256, %v3346
        %v3379 = vadd.f32 %v3259, %v3347
        %v3380 = vadd.f32 %v3262, %v3348
        %v3381 = vadd.f32 %v3265, %v3349
        %v3382 = vadd.f32 %v3268, %v3350
        %v3383 = vadd.f32 %v3271, %v3351
        %v3384 = vadd.f32 %v3274, %v3352
        %v3385 = vadd.f32 %v3277, %v3353
        %v3386 = vadd.f32 %v3280, %v3354
        %v3387 = vadd.f32 %v3283, %v3355
        %v3388 = vadd.f32 %v3286, %v3356
        %v3389 = vadd.f32 %v3289, %v3357
        %v3390 = vadd.f32 %v3292, %v3358
        %v3391 = vadd.f32 %v3295, %v3359
        %v3392 = vadd.f32 %v3298, %v3360
        %v3393 = vadd.f32 %v3301, %v3361
        %v3394 = vadd.f32 %v3304, %v3362
        %v3395 = vadd.f32 %v3307, %v3363
        %v3396 = vadd.f32 %v3310, %v3364
        %v3397 = vadd.f32 %v3313, %v3365
        %v3398 = vadd.f32 %v3316, %v3366
        %v3399 = vadd.f32 %v3319, %v3367
        %v3400 = vadd.f32 %v3322, %v3368
        %v3401 = vadd.f32 %v3325, %v3369
        %v3402 = vadd.f32 %v3328, %v3370
        %v3403 = vadd.f32 %v3331, %v3371
        %v3404 = vadd.f32 %v3334, %v3372
        %v3405 = vadd.f32 %v3337, %v3373
        %v3406 = vadd.f32 %v3340, %v3374
        %v3407 = vadd.f32 %v3343, %v3375
        %v3408 = vld [vmem:[%s31] sm:$0xff]
        %v3409 = vld [vmem:[%s31 + $0x8] sm:$0xff]
        %v3410 = vld [vmem:[%s31 + $0x10] sm:$0xff]
        %v3411 = vld [vmem:[%s31 + $0x18] sm:$0xff]
        %v3412 = vld [vmem:[%s31 + $0x20] sm:$0xff]
        %v3413 = vld [vmem:[%s31 + $0x28] sm:$0xff]
        %v3414 = vld [vmem:[%s31 + $0x30] sm:$0xff]
        %v3415 = vld [vmem:[%s31 + $0x38] sm:$0xff]
        %v3416 = vld [vmem:[%s31 + $0x40] sm:$0xff]
        %v3417 = vld [vmem:[%s31 + $0x48] sm:$0xff]
        %v3418 = vld [vmem:[%s31 + $0x50] sm:$0xff]
        %v3419 = vld [vmem:[%s31 + $0x58] sm:$0xff]
        %v3420 = vld [vmem:[%s31 + $0x60] sm:$0xff]
        %v3421 = vld [vmem:[%s31 + $0x68] sm:$0xff]
        %v3422 = vld [vmem:[%s31 + $0x70] sm:$0xff]
        %v3423 = vld [vmem:[%s31 + $0x78] sm:$0xff]
        %v3424 = vld [vmem:[%s31 + $0x80] sm:$0xff]
        %v3425 = vld [vmem:[%s31 + $0x88] sm:$0xff]
        %v3426 = vld [vmem:[%s31 + $0x90] sm:$0xff]
        %v3427 = vld [vmem:[%s31 + $0x98] sm:$0xff]
        %v3428 = vld [vmem:[%s31 + $0xa0] sm:$0xff]
        %v3429 = vld [vmem:[%s31 + $0xa8] sm:$0xff]
        %v3430 = vld [vmem:[%s31 + $0xb0] sm:$0xff]
        %v3431 = vld [vmem:[%s31 + $0xb8] sm:$0xff]
        %v3432 = vld [vmem:[%s31 + $0xc0] sm:$0xff]
        %v3433 = vld [vmem:[%s31 + $0xc8] sm:$0xff]
        %v3434 = vld [vmem:[%s31 + $0xd0] sm:$0xff]
        %v3435 = vld [vmem:[%s31 + $0xd8] sm:$0xff]
        %v3436 = vld [vmem:[%s31 + $0xe0] sm:$0xff]
        %v3437 = vld [vmem:[%s31 + $0xe8] sm:$0xff]
        %v3438 = vld [vmem:[%s31 + $0xf0] sm:$0xff]
        %v3439 = vld [vmem:[%s31 + $0xf8] sm:$0xff]
        %3441 = vset.pattern.permute.xlu0 0
        %3442 = vperm.xlu0 %3441, %v3408
        %v3443 = vpop.permute.xlu0 %3442
        %3446 = vset.pattern.permute.xlu0 0
        %3447 = vperm.xlu0 %3446, %v3409
        %v3448 = vpop.permute.xlu0 %3447
        %3451 = vset.pattern.permute.xlu0 0
        %3452 = vperm.xlu0 %3451, %v3410
        %v3453 = vpop.permute.xlu0 %3452
        %3456 = vset.pattern.permute.xlu0 0
        %3457 = vperm.xlu0 %3456, %v3411
        %v3458 = vpop.permute.xlu0 %3457
        %3461 = vset.pattern.permute.xlu0 0
        %3462 = vperm.xlu0 %3461, %v3412
        %v3463 = vpop.permute.xlu0 %3462
        %3466 = vset.pattern.permute.xlu0 0
        %3467 = vperm.xlu0 %3466, %v3413
        %v3468 = vpop.permute.xlu0 %3467
        %3471 = vset.pattern.permute.xlu0 0
        %3472 = vperm.xlu0 %3471, %v3414
        %v3473 = vpop.permute.xlu0 %3472
        %3476 = vset.pattern.permute.xlu0 0
        %3477 = vperm.xlu0 %3476, %v3415
        %v3478 = vpop.permute.xlu0 %3477
        %3481 = vset.pattern.permute.xlu0 0
        %3482 = vperm.xlu0 %3481, %v3416
        %v3483 = vpop.permute.xlu0 %3482
        %3486 = vset.pattern.permute.xlu0 0
        %3487 = vperm.xlu0 %3486, %v3417
        %v3488 = vpop.permute.xlu0 %3487
        %3491 = vset.pattern.permute.xlu0 0
        %3492 = vperm.xlu0 %3491, %v3418
        %v3493 = vpop.permute.xlu0 %3492
        %3496 = vset.pattern.permute.xlu0 0
        %3497 = vperm.xlu0 %3496, %v3419
        %v3498 = vpop.permute.xlu0 %3497
        %3501 = vset.pattern.permute.xlu0 0
        %3502 = vperm.xlu0 %3501, %v3420
        %v3503 = vpop.permute.xlu0 %3502
        %3506 = vset.pattern.permute.xlu0 0
        %3507 = vperm.xlu0 %3506, %v3421
        %v3508 = vpop.permute.xlu0 %3507
        %3511 = vset.pattern.permute.xlu0 0
        %3512 = vperm.xlu0 %3511, %v3422
        %v3513 = vpop.permute.xlu0 %3512
        %3516 = vset.pattern.permute.xlu0 0
        %3517 = vperm.xlu0 %3516, %v3423
        %v3518 = vpop.permute.xlu0 %3517
        %3521 = vset.pattern.permute.xlu0 0
        %3522 = vperm.xlu0 %3521, %v3424
        %v3523 = vpop.permute.xlu0 %3522
        %3526 = vset.pattern.permute.xlu0 0
        %3527 = vperm.xlu0 %3526, %v3425
        %v3528 = vpop.permute.xlu0 %3527
        %3531 = vset.pattern.permute.xlu0 0
        %3532 = vperm.xlu0 %3531, %v3426
        %v3533 = vpop.permute.xlu0 %3532
        %3536 = vset.pattern.permute.xlu0 0
        %3537 = vperm.xlu0 %3536, %v3427
        %v3538 = vpop.permute.xlu0 %3537
        %3541 = vset.pattern.permute.xlu0 0
        %3542 = vperm.xlu0 %3541, %v3428
        %v3543 = vpop.permute.xlu0 %3542
        %3546 = vset.pattern.permute.xlu0 0
        %3547 = vperm.xlu0 %3546, %v3429
        %v3548 = vpop.permute.xlu0 %3547
        %3551 = vset.pattern.permute.xlu0 0
        %3552 = vperm.xlu0 %3551, %v3430
        %v3553 = vpop.permute.xlu0 %3552
        %3556 = vset.pattern.permute.xlu0 0
        %3557 = vperm.xlu0 %3556, %v3431
        %v3558 = vpop.permute.xlu0 %3557
        %3561 = vset.pattern.permute.xlu0 0
        %3562 = vperm.xlu0 %3561, %v3432
        %v3563 = vpop.permute.xlu0 %3562
        %3566 = vset.pattern.permute.xlu0 0
        %3567 = vperm.xlu0 %3566, %v3433
        %v3568 = vpop.permute.xlu0 %3567
        %3571 = vset.pattern.permute.xlu0 0
        %3572 = vperm.xlu0 %3571, %v3434
        %v3573 = vpop.permute.xlu0 %3572
        %3576 = vset.pattern.permute.xlu0 0
        %3577 = vperm.xlu0 %3576, %v3435
        %v3578 = vpop.permute.xlu0 %3577
        %3581 = vset.pattern.permute.xlu0 0
        %3582 = vperm.xlu0 %3581, %v3436
        %v3583 = vpop.permute.xlu0 %3582
        %3586 = vset.pattern.permute.xlu0 0
        %3587 = vperm.xlu0 %3586, %v3437
        %v3588 = vpop.permute.xlu0 %3587
        %3591 = vset.pattern.permute.xlu0 0
        %3592 = vperm.xlu0 %3591, %v3438
        %v3593 = vpop.permute.xlu0 %3592
        %3596 = vset.pattern.permute.xlu0 0
        %3597 = vperm.xlu0 %3596, %v3439
        %v3598 = vpop.permute.xlu0 %3597
        %v3601 = vlaneseq
        %v3602 = vshrl.u32 %v3601, 7
        %v3603 = vsub.s32 0, %v3602
        %v3604 = vrot.slane %v2827, %v3603
        %v3606 = vmul.f32 %v3443, %v3604
        %v3607 = vmul.f32 %v3448, %v3604
        %v3608 = vmul.f32 %v3453, %v3604
        %v3609 = vmul.f32 %v3458, %v3604
        %v3610 = vmul.f32 %v3463, %v3604
        %v3611 = vmul.f32 %v3468, %v3604
        %v3612 = vmul.f32 %v3473, %v3604
        %v3613 = vmul.f32 %v3478, %v3604
        %v3614 = vmul.f32 %v3483, %v3604
        %v3615 = vmul.f32 %v3488, %v3604
        %v3616 = vmul.f32 %v3493, %v3604
        %v3617 = vmul.f32 %v3498, %v3604
        %v3618 = vmul.f32 %v3503, %v3604
        %v3619 = vmul.f32 %v3508, %v3604
        %v3620 = vmul.f32 %v3513, %v3604
        %v3621 = vmul.f32 %v3518, %v3604
        %v3622 = vmul.f32 %v3523, %v3604
        %v3623 = vmul.f32 %v3528, %v3604
        %v3624 = vmul.f32 %v3533, %v3604
        %v3625 = vmul.f32 %v3538, %v3604
        %v3626 = vmul.f32 %v3543, %v3604
        %v3627 = vmul.f32 %v3548, %v3604
        %v3628 = vmul.f32 %v3553, %v3604
        %v3629 = vmul.f32 %v3558, %v3604
        %v3630 = vmul.f32 %v3563, %v3604
        %v3631 = vmul.f32 %v3568, %v3604
        %v3632 = vmul.f32 %v3573, %v3604
        %v3633 = vmul.f32 %v3578, %v3604
        %v3634 = vmul.f32 %v3583, %v3604
        %v3635 = vmul.f32 %v3588, %v3604
        %v3636 = vmul.f32 %v3593, %v3604
        %v3637 = vmul.f32 %v3598, %v3604
        %v3638 = vadd.f32 %v3376, %v3606
        %v3639 = vadd.f32 %v3377, %v3607
        %v3640 = vadd.f32 %v3378, %v3608
        %v3641 = vadd.f32 %v3379, %v3609
        %v3642 = vadd.f32 %v3380, %v3610
        %v3643 = vadd.f32 %v3381, %v3611
        %v3644 = vadd.f32 %v3382, %v3612
        %v3645 = vadd.f32 %v3383, %v3613
        %v3646 = vadd.f32 %v3384, %v3614
        %v3647 = vadd.f32 %v3385, %v3615
        %v3648 = vadd.f32 %v3386, %v3616
        %v3649 = vadd.f32 %v3387, %v3617
        %v3650 = vadd.f32 %v3388, %v3618
        %v3651 = vadd.f32 %v3389, %v3619
        %v3652 = vadd.f32 %v3390, %v3620
        %v3653 = vadd.f32 %v3391, %v3621
        %v3654 = vadd.f32 %v3392, %v3622
        %v3655 = vadd.f32 %v3393, %v3623
        %v3656 = vadd.f32 %v3394, %v3624
        %v3657 = vadd.f32 %v3395, %v3625
        %v3658 = vadd.f32 %v3396, %v3626
        %v3659 = vadd.f32 %v3397, %v3627
        %v3660 = vadd.f32 %v3398, %v3628
        %v3661 = vadd.f32 %v3399, %v3629
        %v3662 = vadd.f32 %v3400, %v3630
        %v3663 = vadd.f32 %v3401, %v3631
        %v3664 = vadd.f32 %v3402, %v3632
        %v3665 = vadd.f32 %v3403, %v3633
        %v3666 = vadd.f32 %v3404, %v3634
        %v3667 = vadd.f32 %v3405, %v3635
        %v3668 = vadd.f32 %v3406, %v3636
        %v3669 = vadd.f32 %v3407, %v3637
        %v3670 = vld [vmem:[%s33] sm:$0xff]
        %v3671 = vld [vmem:[%s33 + $0x8] sm:$0xff]
        %v3672 = vld [vmem:[%s33 + $0x10] sm:$0xff]
        %v3673 = vld [vmem:[%s33 + $0x18] sm:$0xff]
        %v3674 = vld [vmem:[%s33 + $0x20] sm:$0xff]
        %v3675 = vld [vmem:[%s33 + $0x28] sm:$0xff]
        %v3676 = vld [vmem:[%s33 + $0x30] sm:$0xff]
        %v3677 = vld [vmem:[%s33 + $0x38] sm:$0xff]
        %v3678 = vld [vmem:[%s33 + $0x40] sm:$0xff]
        %v3679 = vld [vmem:[%s33 + $0x48] sm:$0xff]
        %v3680 = vld [vmem:[%s33 + $0x50] sm:$0xff]
        %v3681 = vld [vmem:[%s33 + $0x58] sm:$0xff]
        %v3682 = vld [vmem:[%s33 + $0x60] sm:$0xff]
        %v3683 = vld [vmem:[%s33 + $0x68] sm:$0xff]
        %v3684 = vld [vmem:[%s33 + $0x70] sm:$0xff]
        %v3685 = vld [vmem:[%s33 + $0x78] sm:$0xff]
        %v3686 = vld [vmem:[%s33 + $0x80] sm:$0xff]
        %v3687 = vld [vmem:[%s33 + $0x88] sm:$0xff]
        %v3688 = vld [vmem:[%s33 + $0x90] sm:$0xff]
        %v3689 = vld [vmem:[%s33 + $0x98] sm:$0xff]
        %v3690 = vld [vmem:[%s33 + $0xa0] sm:$0xff]
        %v3691 = vld [vmem:[%s33 + $0xa8] sm:$0xff]
        %v3692 = vld [vmem:[%s33 + $0xb0] sm:$0xff]
        %v3693 = vld [vmem:[%s33 + $0xb8] sm:$0xff]
        %v3694 = vld [vmem:[%s33 + $0xc0] sm:$0xff]
        %v3695 = vld [vmem:[%s33 + $0xc8] sm:$0xff]
        %v3696 = vld [vmem:[%s33 + $0xd0] sm:$0xff]
        %v3697 = vld [vmem:[%s33 + $0xd8] sm:$0xff]
        %v3698 = vld [vmem:[%s33 + $0xe0] sm:$0xff]
        %v3699 = vld [vmem:[%s33 + $0xe8] sm:$0xff]
        %v3700 = vld [vmem:[%s33 + $0xf0] sm:$0xff]
        %v3701 = vld [vmem:[%s33 + $0xf8] sm:$0xff]
        %3703 = vset.pattern.permute.xlu0 0
        %3704 = vperm.xlu0 %3703, %v3670
        %v3705 = vpop.permute.xlu0 %3704
        %3708 = vset.pattern.permute.xlu0 0
        %3709 = vperm.xlu0 %3708, %v3671
        %v3710 = vpop.permute.xlu0 %3709
        %3713 = vset.pattern.permute.xlu0 0
        %3714 = vperm.xlu0 %3713, %v3672
        %v3715 = vpop.permute.xlu0 %3714
        %3718 = vset.pattern.permute.xlu0 0
        %3719 = vperm.xlu0 %3718, %v3673
        %v3720 = vpop.permute.xlu0 %3719
        %3723 = vset.pattern.permute.xlu0 0
        %3724 = vperm.xlu0 %3723, %v3674
        %v3725 = vpop.permute.xlu0 %3724
        %3728 = vset.pattern.permute.xlu0 0
        %3729 = vperm.xlu0 %3728, %v3675
        %v3730 = vpop.permute.xlu0 %3729
        %3733 = vset.pattern.permute.xlu0 0
        %3734 = vperm.xlu0 %3733, %v3676
        %v3735 = vpop.permute.xlu0 %3734
        %3738 = vset.pattern.permute.xlu0 0
        %3739 = vperm.xlu0 %3738, %v3677
        %v3740 = vpop.permute.xlu0 %3739
        %3743 = vset.pattern.permute.xlu0 0
        %3744 = vperm.xlu0 %3743, %v3678
        %v3745 = vpop.permute.xlu0 %3744
        %3748 = vset.pattern.permute.xlu0 0
        %3749 = vperm.xlu0 %3748, %v3679
        %v3750 = vpop.permute.xlu0 %3749
        %3753 = vset.pattern.permute.xlu0 0
        %3754 = vperm.xlu0 %3753, %v3680
        %v3755 = vpop.permute.xlu0 %3754
        %3758 = vset.pattern.permute.xlu0 0
        %3759 = vperm.xlu0 %3758, %v3681
        %v3760 = vpop.permute.xlu0 %3759
        %3763 = vset.pattern.permute.xlu0 0
        %3764 = vperm.xlu0 %3763, %v3682
        %v3765 = vpop.permute.xlu0 %3764
        %3768 = vset.pattern.permute.xlu0 0
        %3769 = vperm.xlu0 %3768, %v3683
        %v3770 = vpop.permute.xlu0 %3769
        %3773 = vset.pattern.permute.xlu0 0
        %3774 = vperm.xlu0 %3773, %v3684
        %v3775 = vpop.permute.xlu0 %3774
        %3778 = vset.pattern.permute.xlu0 0
        %3779 = vperm.xlu0 %3778, %v3685
        %v3780 = vpop.permute.xlu0 %3779
        %3783 = vset.pattern.permute.xlu0 0
        %3784 = vperm.xlu0 %3783, %v3686
        %v3785 = vpop.permute.xlu0 %3784
        %3788 = vset.pattern.permute.xlu0 0
        %3789 = vperm.xlu0 %3788, %v3687
        %v3790 = vpop.permute.xlu0 %3789
        %3793 = vset.pattern.permute.xlu0 0
        %3794 = vperm.xlu0 %3793, %v3688
        %v3795 = vpop.permute.xlu0 %3794
        %3798 = vset.pattern.permute.xlu0 0
        %3799 = vperm.xlu0 %3798, %v3689
        %v3800 = vpop.permute.xlu0 %3799
        %3803 = vset.pattern.permute.xlu0 0
        %3804 = vperm.xlu0 %3803, %v3690
        %v3805 = vpop.permute.xlu0 %3804
        %3808 = vset.pattern.permute.xlu0 0
        %3809 = vperm.xlu0 %3808, %v3691
        %v3810 = vpop.permute.xlu0 %3809
        %3813 = vset.pattern.permute.xlu0 0
        %3814 = vperm.xlu0 %3813, %v3692
        %v3815 = vpop.permute.xlu0 %3814
        %3818 = vset.pattern.permute.xlu0 0
        %3819 = vperm.xlu0 %3818, %v3693
        %v3820 = vpop.permute.xlu0 %3819
        %3823 = vset.pattern.permute.xlu0 0
        %3824 = vperm.xlu0 %3823, %v3694
        %v3825 = vpop.permute.xlu0 %3824
        %3828 = vset.pattern.permute.xlu0 0
        %3829 = vperm.xlu0 %3828, %v3695
        %v3830 = vpop.permute.xlu0 %3829
        %3833 = vset.pattern.permute.xlu0 0
        %3834 = vperm.xlu0 %3833, %v3696
        %v3835 = vpop.permute.xlu0 %3834
        %3838 = vset.pattern.permute.xlu0 0
        %3839 = vperm.xlu0 %3838, %v3697
        %v3840 = vpop.permute.xlu0 %3839
        %3843 = vset.pattern.permute.xlu0 0
        %3844 = vperm.xlu0 %3843, %v3698
        %v3845 = vpop.permute.xlu0 %3844
        %3848 = vset.pattern.permute.xlu0 0
        %3849 = vperm.xlu0 %3848, %v3699
        %v3850 = vpop.permute.xlu0 %3849
        %3853 = vset.pattern.permute.xlu0 0
        %3854 = vperm.xlu0 %3853, %v3700
        %v3855 = vpop.permute.xlu0 %3854
        %3858 = vset.pattern.permute.xlu0 0
        %3859 = vperm.xlu0 %3858, %v3701
        %v3860 = vpop.permute.xlu0 %3859
        %v3862 = vadd.f32 %v3638, %v3705
        %v3863 = vadd.f32 %v3639, %v3710
        %v3864 = vadd.f32 %v3640, %v3715
        %v3865 = vadd.f32 %v3641, %v3720
        %v3866 = vadd.f32 %v3642, %v3725
        %v3867 = vadd.f32 %v3643, %v3730
        %v3868 = vadd.f32 %v3644, %v3735
        %v3869 = vadd.f32 %v3645, %v3740
        %v3870 = vadd.f32 %v3646, %v3745
        %v3871 = vadd.f32 %v3647, %v3750
        %v3872 = vadd.f32 %v3648, %v3755
        %v3873 = vadd.f32 %v3649, %v3760
        %v3874 = vadd.f32 %v3650, %v3765
        %v3875 = vadd.f32 %v3651, %v3770
        %v3876 = vadd.f32 %v3652, %v3775
        %v3877 = vadd.f32 %v3653, %v3780
        %v3878 = vadd.f32 %v3654, %v3785
        %v3879 = vadd.f32 %v3655, %v3790
        %v3880 = vadd.f32 %v3656, %v3795
        %v3881 = vadd.f32 %v3657, %v3800
        %v3882 = vadd.f32 %v3658, %v3805
        %v3883 = vadd.f32 %v3659, %v3810
        %v3884 = vadd.f32 %v3660, %v3815
        %v3885 = vadd.f32 %v3661, %v3820
        %v3886 = vadd.f32 %v3662, %v3825
        %v3887 = vadd.f32 %v3663, %v3830
        %v3888 = vadd.f32 %v3664, %v3835
        %v3889 = vadd.f32 %v3665, %v3840
        %v3890 = vadd.f32 %v3666, %v3845
        %v3891 = vadd.f32 %v3667, %v3850
        %v3892 = vadd.f32 %v3668, %v3855
        %v3893 = vadd.f32 %v3669, %v3860
        %v3894 = vtanh.pop %v3862
        %v3895 = vtanh.pop %v3863
        %v3896 = vtanh.pop %v3864
        %v3897 = vtanh.pop %v3865
        %v3898 = vtanh.pop %v3866
        %v3899 = vtanh.pop %v3867
        %v3900 = vtanh.pop %v3868
        %v3901 = vtanh.pop %v3869
        %v3902 = vtanh.pop %v3870
        %v3903 = vtanh.pop %v3871
        %v3904 = vtanh.pop %v3872
        %v3905 = vtanh.pop %v3873
        %v3906 = vtanh.pop %v3874
        %v3907 = vtanh.pop %v3875
        %v3908 = vtanh.pop %v3876
        %v3909 = vtanh.pop %v3877
        %v3910 = vtanh.pop %v3878
        %v3911 = vtanh.pop %v3879
        %v3912 = vtanh.pop %v3880
        %v3913 = vtanh.pop %v3881
        %v3914 = vtanh.pop %v3882
        %v3915 = vtanh.pop %v3883
        %v3916 = vtanh.pop %v3884
        %v3917 = vtanh.pop %v3885
        %v3918 = vtanh.pop %v3886
        %v3919 = vtanh.pop %v3887
        %v3920 = vtanh.pop %v3888
        %v3921 = vtanh.pop %v3889
        %v3922 = vtanh.pop %v3890
        %v3923 = vtanh.pop %v3891
        %v3924 = vtanh.pop %v3892
        %v3925 = vtanh.pop %v3893
        %v3926 = vld [vmem:[#allocation29] sm:$0x3]
        %v3927 = vpack.c.bf16 %v3895, %v3894
        %v3928 = vpack.c.bf16 %v3897, %v3896
        %v3929 = vpack.c.bf16 %v3899, %v3898
        %v3930 = vpack.c.bf16 %v3901, %v3900
        %v3931 = vpack.c.bf16 %v3903, %v3902
        %v3932 = vpack.c.bf16 %v3905, %v3904
        %v3933 = vpack.c.bf16 %v3907, %v3906
        %v3934 = vpack.c.bf16 %v3909, %v3908
        %v3935 = vpack.c.bf16 %v3911, %v3910
        %v3936 = vpack.c.bf16 %v3913, %v3912
        %v3937 = vpack.c.bf16 %v3915, %v3914
        %v3938 = vpack.c.bf16 %v3917, %v3916
        %v3939 = vpack.c.bf16 %v3919, %v3918
        %v3940 = vpack.c.bf16 %v3921, %v3920
        %v3941 = vpack.c.bf16 %v3923, %v3922
        %v3942 = vpack.c.bf16 %v3925, %v3924
        %v3943 = vld [vmem:[#allocation7] sm:$0x1]
        %3945 = vset.pattern.permute.xlu0 0
        %3946 = vperm.xlu0 %3945, %v3943
        %v3947 = vpop.permute.xlu0 %3946
        %v3949 = vlaneseq
        %v3950 = vshrl.u32 %v3949, 7
        %v3951 = vsub.s32 0, %v3950
        %v3952 = vrot.slane %v3947, %v3951
        %v3955 = vunpack.c.l.s4 1966171168
        %v3956 = vunpack.c.0.s8 %v3955
        %v3957 = vlaneseq
        %v3958 = vshrl.u32 %v3957, 7
        %v3959 = vsub.s32 %v3956, %v3958
        %v3960 = vrot.slane %v3926, %v3959
        %v3961 = vcombine.high %v3960, %v3960
        %v3963 = vunpack.c.l.s4 1966171168
        %v3964 = vunpack.c.0.s8 %v3963
        %v3965 = vlaneseq
        %v3966 = vshrl.u32 %v3965, 7
        %v3967 = vsub.s32 %v3964, %v3966
        %v3968 = vrot.slane %v3960, %v3967
        %v3970 = vunpack.c.l.s4 1966171168
        %v3971 = vunpack.c.0.s8 %v3970
        %v3972 = vlaneseq
        %v3973 = vshrl.u32 %v3972, 7
        %v3974 = vsub.s32 %v3971, %v3973
        %v3975 = vrot.slane %v3961, %v3974
        %3978 = vmatprep.subr.bf16.mxu0 0
        %3979 = vmatpush1.bf16.msra.mxu0 %v3927
        %3980 = vmatprep.subr.bf16.mxu0 0
        %3981 = vmatpush1.bf16.msra.mxu0 %v3928
        %3982 = vmatprep.subr.bf16.mxu0 0
        %3983 = vmatpush1.bf16.msra.mxu0 %v3929
        %3984 = vmatprep.subr.bf16.mxu0 0
        %3985 = vmatpush1.bf16.msra.mxu0 %v3930
        %3986 = vmatprep.subr.bf16.mxu0 0
        %3987 = vmatpush1.bf16.msra.mxu0 %v3931
        %3988 = vmatprep.subr.bf16.mxu0 0
        %3989 = vmatpush1.bf16.msra.mxu0 %v3932
        %3990 = vmatprep.subr.bf16.mxu0 0
        %3991 = vmatpush1.bf16.msra.mxu0 %v3933
        %3992 = vmatprep.subr.bf16.mxu0 0
        %3993 = vmatpush1.bf16.msra.mxu0 %v3934
        %3994 = vmatprep.subr.bf16.mxu0 0
        %3995 = vmatpush1.bf16.msra.mxu0 %v3935
        %3996 = vmatprep.subr.bf16.mxu0 0
        %3997 = vmatpush1.bf16.msra.mxu0 %v3936
        %3998 = vmatprep.subr.bf16.mxu0 0
        %3999 = vmatpush1.bf16.msra.mxu0 %v3937
        %4000 = vmatprep.subr.bf16.mxu0 0
        %4001 = vmatpush1.bf16.msra.mxu0 %v3938
        %4002 = vmatprep.subr.bf16.mxu0 0
        %4003 = vmatpush1.bf16.msra.mxu0 %v3939
        %4004 = vmatprep.subr.bf16.mxu0 0
        %4005 = vmatpush1.bf16.msra.mxu0 %v3940
        %4006 = vmatprep.subr.bf16.mxu0 0
        %4007 = vmatpush1.bf16.msra.mxu0 %v3941
        %4008 = vmatprep.subr.bf16.mxu0 0
        %4009 = vmatpush1.bf16.msra.mxu0 %v3942
        %4010 = vmatprep.mubr.bf16.mxu0 %v3975
        %4011 = vmatmul.mubr.bf16.gmra.mrb[0].mxu0 %v3968
        %v4012 = vpop.f32.mrb[0].mxu0
        %v4013 = vadd.f32 %v3952, %v4012
        %v4014 = vpop.f32.mrb[0].mxu0
        %v4015 = vpop.f32.mrb[0].mxu0
        %v4016 = vpop.f32.mrb[0].mxu0
        %4017 = vdwg.mxu0
        %v4018 = vmul.f32 %v4013, 1.442695
        %v4019 = vpow.pop %v4018
        %vm4020 = vcmask 1040384
        %v4021 = vsel %vm4020, %v4019, 0.0
        %4022 = vadd.xlane.f32.xlu0 %v4021
        %v4023 = vpop.xlane.xlu0 %4022
        %v4024 = vrcp.pop %v4023
        %v4025 = vmul.f32 %v4019, %v4024
        %s4026 = scalar_lea.vmem [#allocation46], %s96
        %4027 = vst [vmem:[%s4026] sm:$0x1] %v4025
        %v4028 = vpack.c.bf16 %v4025, %v4025
        %v4029 = vld [vmem:[#allocation16] sm:$0xff]
        %v4030 = vld [vmem:[#allocation16 + $0x8] sm:$0xff]
        %v4031 = vld [vmem:[#allocation16 + $0x10] sm:$0xff]
        %v4032 = vld [vmem:[#allocation16 + $0x18] sm:$0xff]
        %v4033 = vld [vmem:[#allocation16 + $0x20] sm:$0xff]
        %v4034 = vld [vmem:[#allocation16 + $0x28] sm:$0xff]
        %v4035 = vld [vmem:[#allocation16 + $0x30] sm:$0xff]
        %v4036 = vld [vmem:[#allocation16 + $0x38] sm:$0xff]
        %v4037 = vld [vmem:[#allocation16 + $0x40] sm:$0xff]
        %v4038 = vld [vmem:[#allocation16 + $0x48] sm:$0xff]
        %v4039 = vld [vmem:[#allocation16 + $0x50] sm:$0xff]
        %v4040 = vld [vmem:[#allocation16 + $0x58] sm:$0xff]
        %v4041 = vld [vmem:[#allocation16 + $0x60] sm:$0xff]
        %v4042 = vld [vmem:[#allocation16 + $0x68] sm:$0xff]
        %v4043 = vld [vmem:[#allocation16 + $0x70] sm:$0xff]
        %v4044 = vld [vmem:[#allocation16 + $0x78] sm:$0xff]
        %v4045 = vld [vmem:[#allocation16 + $0x80] sm:$0xff]
        %v4046 = vld [vmem:[#allocation16 + $0x88] sm:$0xff]
        %v4047 = vld [vmem:[#allocation16 + $0x90] sm:$0xff]
        %v4048 = vld [vmem:[#allocation16 + $0x98] sm:$0xff]
        %v4049 = vld [vmem:[#allocation16 + $0xa0] sm:$0xff]
        %v4050 = vld [vmem:[#allocation16 + $0xa8] sm:$0xff]
        %v4051 = vld [vmem:[#allocation16 + $0xb0] sm:$0xff]
        %v4052 = vld [vmem:[#allocation16 + $0xb8] sm:$0xff]
        %v4053 = vld [vmem:[#allocation16 + $0xc0] sm:$0xff]
        %v4054 = vld [vmem:[#allocation16 + $0xc8] sm:$0xff]
        %v4055 = vld [vmem:[#allocation16 + $0xd0] sm:$0xff]
        %v4056 = vld [vmem:[#allocation16 + $0xd8] sm:$0xff]
        %v4057 = vld [vmem:[#allocation16 + $0xe0] sm:$0xff]
        %v4058 = vld [vmem:[#allocation16 + $0xe8] sm:$0xff]
        %v4059 = vld [vmem:[#allocation16 + $0xf0] sm:$0xff]
        %v4060 = vld [vmem:[#allocation16 + $0xf8] sm:$0xff]
        %v4061 = vld [vmem:[#allocation16 + $0x100] sm:$0xff]
        %v4062 = vld [vmem:[#allocation16 + $0x108] sm:$0xff]
        %v4063 = vld [vmem:[#allocation16 + $0x110] sm:$0xff]
        %v4064 = vld [vmem:[#allocation16 + $0x118] sm:$0xff]
        %v4065 = vld [vmem:[#allocation16 + $0x120] sm:$0xff]
        %v4066 = vld [vmem:[#allocation16 + $0x128] sm:$0xff]
        %v4067 = vld [vmem:[#allocation16 + $0x130] sm:$0xff]
        %v4068 = vld [vmem:[#allocation16 + $0x138] sm:$0xff]
        %v4069 = vld [vmem:[#allocation16 + $0x140] sm:$0xff]
        %v4070 = vld [vmem:[#allocation16 + $0x148] sm:$0xff]
        %v4071 = vld [vmem:[#allocation16 + $0x150] sm:$0xff]
        %v4072 = vld [vmem:[#allocation16 + $0x158] sm:$0xff]
        %v4073 = vld [vmem:[#allocation16 + $0x160] sm:$0xff]
        %v4074 = vld [vmem:[#allocation16 + $0x168] sm:$0xff]
        %v4075 = vld [vmem:[#allocation16 + $0x170] sm:$0xff]
        %v4076 = vld [vmem:[#allocation16 + $0x178] sm:$0xff]
        %v4125 = vunpack.c.l.b16 %v4029
        %v4126 = vunpack.c.h.b16 %v4029
        %v4127 = vunpack.c.l.b16 %v4030
        %v4128 = vunpack.c.h.b16 %v4030
        %v4129 = vunpack.c.l.b16 %v4031
        %v4130 = vunpack.c.h.b16 %v4031
        %v4131 = vunpack.c.l.b16 %v4032
        %v4132 = vunpack.c.h.b16 %v4032
        %v4133 = vunpack.c.l.b16 %v4033
        %v4134 = vunpack.c.h.b16 %v4033
        %v4135 = vunpack.c.l.b16 %v4034
        %v4136 = vunpack.c.h.b16 %v4034
        %v4137 = vunpack.c.l.b16 %v4035
        %v4138 = vunpack.c.h.b16 %v4035
        %v4139 = vunpack.c.l.b16 %v4036
        %v4140 = vunpack.c.h.b16 %v4036
        %v4141 = vunpack.c.l.b16 %v4037
        %v4142 = vunpack.c.h.b16 %v4037
        %v4143 = vunpack.c.l.b16 %v4038
        %v4144 = vunpack.c.h.b16 %v4038
        %v4145 = vunpack.c.l.b16 %v4039
        %v4146 = vunpack.c.h.b16 %v4039
        %v4147 = vunpack.c.l.b16 %v4040
        %v4148 = vunpack.c.h.b16 %v4040
        %v4149 = vunpack.c.l.b16 %v4041
        %v4150 = vunpack.c.h.b16 %v4041
        %v4151 = vunpack.c.l.b16 %v4042
        %v4152 = vunpack.c.h.b16 %v4042
        %v4153 = vunpack.c.l.b16 %v4043
        %v4154 = vunpack.c.h.b16 %v4043
        %v4155 = vunpack.c.l.b16 %v4044
        %v4156 = vunpack.c.h.b16 %v4044
        %v4157 = vunpack.c.l.b16 %v4045
        %v4158 = vunpack.c.h.b16 %v4045
        %v4159 = vunpack.c.l.b16 %v4046
        %v4160 = vunpack.c.h.b16 %v4046
        %v4161 = vunpack.c.l.b16 %v4047
        %v4162 = vunpack.c.h.b16 %v4047
        %v4163 = vunpack.c.l.b16 %v4048
        %v4164 = vunpack.c.h.b16 %v4048
        %v4165 = vunpack.c.l.b16 %v4049
        %v4166 = vunpack.c.h.b16 %v4049
        %v4167 = vunpack.c.l.b16 %v4050
        %v4168 = vunpack.c.h.b16 %v4050
        %v4169 = vunpack.c.l.b16 %v4051
        %v4170 = vunpack.c.h.b16 %v4051
        %v4171 = vunpack.c.l.b16 %v4052
        %v4172 = vunpack.c.h.b16 %v4052
        %v4173 = vunpack.c.l.b16 %v4053
        %v4174 = vunpack.c.h.b16 %v4053
        %v4175 = vunpack.c.l.b16 %v4054
        %v4176 = vunpack.c.h.b16 %v4054
        %v4177 = vunpack.c.l.b16 %v4055
        %v4178 = vunpack.c.h.b16 %v4055
        %v4179 = vunpack.c.l.b16 %v4056
        %v4180 = vunpack.c.h.b16 %v4056
        %v4181 = vunpack.c.l.b16 %v4057
        %v4182 = vunpack.c.h.b16 %v4057
        %v4183 = vunpack.c.l.b16 %v4058
        %v4184 = vunpack.c.h.b16 %v4058
        %v4185 = vunpack.c.l.b16 %v4059
        %v4186 = vunpack.c.h.b16 %v4059
        %v4187 = vunpack.c.l.b16 %v4060
        %v4188 = vunpack.c.h.b16 %v4060
        %v4189 = vunpack.c.l.b16 %v4061
        %v4190 = vunpack.c.h.b16 %v4061
        %v4191 = vunpack.c.l.b16 %v4062
        %v4192 = vunpack.c.h.b16 %v4062
        %v4193 = vunpack.c.l.b16 %v4063
        %v4194 = vunpack.c.h.b16 %v4063
        %v4195 = vunpack.c.l.b16 %v4064
        %v4196 = vunpack.c.h.b16 %v4064
        %v4197 = vunpack.c.l.b16 %v4065
        %v4198 = vunpack.c.h.b16 %v4065
        %v4199 = vunpack.c.l.b16 %v4066
        %v4200 = vunpack.c.h.b16 %v4066
        %v4201 = vunpack.c.l.b16 %v4067
        %v4202 = vunpack.c.h.b16 %v4067
        %v4203 = vunpack.c.l.b16 %v4068
        %v4204 = vunpack.c.h.b16 %v4068
        %v4205 = vunpack.c.l.b16 %v4069
        %v4206 = vunpack.c.h.b16 %v4069
        %v4207 = vunpack.c.l.b16 %v4070
        %v4208 = vunpack.c.h.b16 %v4070
        %v4209 = vunpack.c.l.b16 %v4071
        %v4210 = vunpack.c.h.b16 %v4071
        %v4211 = vunpack.c.l.b16 %v4072
        %v4212 = vunpack.c.h.b16 %v4072
        %v4213 = vunpack.c.l.b16 %v4073
        %v4214 = vunpack.c.h.b16 %v4073
        %v4215 = vunpack.c.l.b16 %v4074
        %v4216 = vunpack.c.h.b16 %v4074
        %v4217 = vunpack.c.l.b16 %v4075
        %v4218 = vunpack.c.h.b16 %v4075
        %v4219 = vunpack.c.l.b16 %v4076
        %v4220 = vunpack.c.h.b16 %v4076
        %v4221 = vpack.c.b16 %v4131, %v4125
        %v4222 = vpack.c.b16 %v4132, %v4126
        %v4223 = vpack.c.b16 %v4133, %v4127
        %v4224 = vpack.c.b16 %v4134, %v4128
        %v4225 = vpack.c.b16 %v4135, %v4129
        %v4226 = vpack.c.b16 %v4136, %v4130
        %v4227 = vpack.c.b16 %v4143, %v4137
        %v4228 = vpack.c.b16 %v4144, %v4138
        %v4229 = vpack.c.b16 %v4145, %v4139
        %v4230 = vpack.c.b16 %v4146, %v4140
        %v4231 = vpack.c.b16 %v4147, %v4141
        %v4232 = vpack.c.b16 %v4148, %v4142
        %v4233 = vpack.c.b16 %v4155, %v4149
        %v4234 = vpack.c.b16 %v4156, %v4150
        %v4235 = vpack.c.b16 %v4157, %v4151
        %v4236 = vpack.c.b16 %v4158, %v4152
        %v4237 = vpack.c.b16 %v4159, %v4153
        %v4238 = vpack.c.b16 %v4160, %v4154
        %v4239 = vpack.c.b16 %v4167, %v4161
        %v4240 = vpack.c.b16 %v4168, %v4162
        %v4241 = vpack.c.b16 %v4169, %v4163
        %v4242 = vpack.c.b16 %v4170, %v4164
        %v4243 = vpack.c.b16 %v4171, %v4165
        %v4244 = vpack.c.b16 %v4172, %v4166
        %v4245 = vpack.c.b16 %v4179, %v4173
        %v4246 = vpack.c.b16 %v4180, %v4174
        %v4247 = vpack.c.b16 %v4181, %v4175
        %v4248 = vpack.c.b16 %v4182, %v4176
        %v4249 = vpack.c.b16 %v4183, %v4177
        %v4250 = vpack.c.b16 %v4184, %v4178
        %v4251 = vpack.c.b16 %v4191, %v4185
        %v4252 = vpack.c.b16 %v4192, %v4186
        %v4253 = vpack.c.b16 %v4193, %v4187
        %v4254 = vpack.c.b16 %v4194, %v4188
        %v4255 = vpack.c.b16 %v4195, %v4189
        %v4256 = vpack.c.b16 %v4196, %v4190
        %v4257 = vpack.c.b16 %v4203, %v4197
        %v4258 = vpack.c.b16 %v4204, %v4198
        %v4259 = vpack.c.b16 %v4205, %v4199
        %v4260 = vpack.c.b16 %v4206, %v4200
        %v4261 = vpack.c.b16 %v4207, %v4201
        %v4262 = vpack.c.b16 %v4208, %v4202
        %v4263 = vpack.c.b16 %v4215, %v4209
        %v4264 = vpack.c.b16 %v4216, %v4210
        %v4265 = vpack.c.b16 %v4217, %v4211
        %v4266 = vpack.c.b16 %v4218, %v4212
        %v4267 = vpack.c.b16 %v4219, %v4213
        %v4268 = vpack.c.b16 %v4220, %v4214
        %4317 = vmatprep.subr.bf16.mxu0 %v4222
        %4318 = vmatpush1.bf16.msra.mxu0 %v4221
        %4319 = vmatprep.subr.bf16.mxu0 %v4228
        %4320 = vmatpush1.bf16.msra.mxu0 %v4227
        %4321 = vmatprep.subr.bf16.mxu0 %v4234
        %4322 = vmatpush1.bf16.msra.mxu0 %v4233
        %4323 = vmatprep.subr.bf16.mxu0 %v4240
        %4324 = vmatpush1.bf16.msra.mxu0 %v4239
        %4325 = vmatprep.subr.bf16.mxu0 %v4246
        %4326 = vmatpush1.bf16.msra.mxu0 %v4245
        %4327 = vmatprep.subr.bf16.mxu0 %v4252
        %4328 = vmatpush1.bf16.msra.mxu0 %v4251
        %4329 = vmatprep.subr.bf16.mxu0 %v4258
        %4330 = vmatpush1.bf16.msra.mxu0 %v4257
        %4331 = vmatprep.subr.bf16.mxu0 %v4264
        %4332 = vmatpush1.bf16.msra.mxu0 %v4263
        %4333 = vmatprep.subr.bf16.mxu0 0
        %4334 = vmatpush1.bf16.msra.mxu0 0
        %4335 = vmatprep.subr.bf16.mxu0 0
        %4336 = vmatpush1.bf16.msra.mxu0 0
        %4337 = vmatprep.subr.bf16.mxu0 0
        %4338 = vmatpush1.bf16.msra.mxu0 0
        %4339 = vmatprep.subr.bf16.mxu0 0
        %4340 = vmatpush1.bf16.msra.mxu0 0
        %4341 = vmatprep.subr.bf16.mxu0 0
        %4342 = vmatpush1.bf16.msra.mxu0 0
        %4343 = vmatprep.subr.bf16.mxu0 0
        %4344 = vmatpush1.bf16.msra.mxu0 0
        %4345 = vmatprep.subr.bf16.mxu0 0
        %4346 = vmatpush1.bf16.msra.mxu0 0
        %4347 = vmatprep.subr.bf16.mxu0 0
        %4348 = vmatpush1.bf16.msra.mxu0 0
        %4349 = vmatprep.mubr.bf16.mxu0 0
        %4350 = vmatmul.mubr.bf16.gmra.mrb[0].mxu0 %v4028
        %v4351 = vpop.f32.mrb[0].mxu0
        %v4352 = vadd.f32 0.0, %v4351
        %v4353 = vpop.f32.mrb[0].mxu0
        %v4354 = vadd.f32 0.0, %v4353
        %v4355 = vpop.f32.mrb[0].mxu0
        %v4356 = vpop.f32.mrb[0].mxu0
        %4357 = vdwg.mxu0
        %4358 = vmatprep.subr.bf16.mxu0 %v4224
        %4359 = vmatpush1.bf16.msra.mxu0 %v4223
        %4360 = vmatprep.subr.bf16.mxu0 %v4230
        %4361 = vmatpush1.bf16.msra.mxu0 %v4229
        %4362 = vmatprep.subr.bf16.mxu0 %v4236
        %4363 = vmatpush1.bf16.msra.mxu0 %v4235
        %4364 = vmatprep.subr.bf16.mxu0 %v4242
        %4365 = vmatpush1.bf16.msra.mxu0 %v4241
        %4366 = vmatprep.subr.bf16.mxu0 %v4248
        %4367 = vmatpush1.bf16.msra.mxu0 %v4247
        %4368 = vmatprep.subr.bf16.mxu0 %v4254
        %4369 = vmatpush1.bf16.msra.mxu0 %v4253
        %4370 = vmatprep.subr.bf16.mxu0 %v4260
        %4371 = vmatpush1.bf16.msra.mxu0 %v4259
        %4372 = vmatprep.subr.bf16.mxu0 %v4266
        %4373 = vmatpush1.bf16.msra.mxu0 %v4265
        %4374 = vmatprep.subr.bf16.mxu0 0
        %4375 = vmatpush1.bf16.msra.mxu0 0
        %4376 = vmatprep.subr.bf16.mxu0 0
        %4377 = vmatpush1.bf16.msra.mxu0 0
        %4378 = vmatprep.subr.bf16.mxu0 0
        %4379 = vmatpush1.bf16.msra.mxu0 0
        %4380 = vmatprep.subr.bf16.mxu0 0
        %4381 = vmatpush1.bf16.msra.mxu0 0
        %4382 = vmatprep.subr.bf16.mxu0 0
        %4383 = vmatpush1.bf16.msra.mxu0 0
        %4384 = vmatprep.subr.bf16.mxu0 0
        %4385 = vmatpush1.bf16.msra.mxu0 0
        %4386 = vmatprep.subr.bf16.mxu0 0
        %4387 = vmatpush1.bf16.msra.mxu0 0
        %4388 = vmatprep.subr.bf16.mxu0 0
        %4389 = vmatpush1.bf16.msra.mxu0 0
        %4390 = vmatprep.mubr.bf16.mxu0 0
        %4391 = vmatmul.mubr.bf16.gmra.mrb[0].mxu0 %v4028
        %v4392 = vpop.f32.mrb[0].mxu0
        %v4393 = vadd.f32 0.0, %v4392
        %v4394 = vpop.f32.mrb[0].mxu0
        %v4395 = vadd.f32 0.0, %v4394
        %v4396 = vpop.f32.mrb[0].mxu0
        %v4397 = vpop.f32.mrb[0].mxu0
        %4398 = vdwg.mxu0
        %4399 = vmatprep.subr.bf16.mxu0 %v4226
        %4400 = vmatpush1.bf16.msra.mxu0 %v4225
        %4401 = vmatprep.subr.bf16.mxu0 %v4232
        %4402 = vmatpush1.bf16.msra.mxu0 %v4231
        %4403 = vmatprep.subr.bf16.mxu0 %v4238
        %4404 = vmatpush1.bf16.msra.mxu0 %v4237
        %4405 = vmatprep.subr.bf16.mxu0 %v4244
        %4406 = vmatpush1.bf16.msra.mxu0 %v4243
        %4407 = vmatprep.subr.bf16.mxu0 %v4250
        %4408 = vmatpush1.bf16.msra.mxu0 %v4249
        %4409 = vmatprep.subr.bf16.mxu0 %v4256
        %4410 = vmatpush1.bf16.msra.mxu0 %v4255
        %4411 = vmatprep.subr.bf16.mxu0 %v4262
        %4412 = vmatpush1.bf16.msra.mxu0 %v4261
        %4413 = vmatprep.subr.bf16.mxu0 %v4268
        %4414 = vmatpush1.bf16.msra.mxu0 %v4267
        %4415 = vmatprep.subr.bf16.mxu0 0
        %4416 = vmatpush1.bf16.msra.mxu0 0
        %4417 = vmatprep.subr.bf16.mxu0 0
        %4418 = vmatpush1.bf16.msra.mxu0 0
        %4419 = vmatprep.subr.bf16.mxu0 0
        %4420 = vmatpush1.bf16.msra.mxu0 0
        %4421 = vmatprep.subr.bf16.mxu0 0
        %4422 = vmatpush1.bf16.msra.mxu0 0
        %4423 = vmatprep.subr.bf16.mxu0 0
        %4424 = vmatpush1.bf16.msra.mxu0 0
        %4425 = vmatprep.subr.bf16.mxu0 0
        %4426 = vmatpush1.bf16.msra.mxu0 0
        %4427 = vmatprep.subr.bf16.mxu0 0
        %4428 = vmatpush1.bf16.msra.mxu0 0
        %4429 = vmatprep.subr.bf16.mxu0 0
        %4430 = vmatpush1.bf16.msra.mxu0 0
        %4431 = vmatprep.mubr.bf16.mxu0 0
        %4432 = vmatmul.mubr.bf16.gmra.mrb[0].mxu0 %v4028
        %v4433 = vpop.f32.mrb[0].mxu0
        %v4434 = vadd.f32 0.0, %v4433
        %v4435 = vpop.f32.mrb[0].mxu0
        %v4436 = vadd.f32 0.0, %v4435
        %v4437 = vpop.f32.mrb[0].mxu0
        %v4438 = vpop.f32.mrb[0].mxu0
        %4439 = vdwg.mxu0
        %v4440 = vpack.c.bf16 %v4352, %v4352
        %v4441 = vpack.c.bf16 %v4354, %v4354
        %v4442 = vpack.c.bf16 %v4393, %v4393
        %v4443 = vpack.c.bf16 %v4395, %v4395
        %v4444 = vpack.c.bf16 %v4434, %v4434
        %v4445 = vpack.c.bf16 %v4436, %v4436
        %v4446 = vld [vmem:[#allocation31] sm:$0xff]
        %v4447 = vld [vmem:[#allocation31 + $0x8] sm:$0xff]
        %v4448 = vld [vmem:[#allocation31 + $0x10] sm:$0xff]
        %v4449 = vld [vmem:[#allocation31 + $0x18] sm:$0xff]
        %v4450 = vld [vmem:[#allocation31 + $0x20] sm:$0xff]
        %v4451 = vld [vmem:[#allocation31 + $0x28] sm:$0xff]
        %v4452 = vld [vmem:[#allocation31 + $0x30] sm:$0xff]
        %v4453 = vld [vmem:[#allocation31 + $0x38] sm:$0xff]
        %v4454 = vld [vmem:[#allocation31 + $0x40] sm:$0xff]
        %v4455 = vld [vmem:[#allocation31 + $0x48] sm:$0xff]
        %v4456 = vld [vmem:[#allocation31 + $0x50] sm:$0xff]
        %v4457 = vld [vmem:[#allocation31 + $0x58] sm:$0xff]
        %v4458 = vld [vmem:[#allocation31 + $0x60] sm:$0xff]
        %v4459 = vld [vmem:[#allocation31 + $0x68] sm:$0xff]
        %v4460 = vld [vmem:[#allocation31 + $0x70] sm:$0xff]
        %v4461 = vld [vmem:[#allocation31 + $0x78] sm:$0xff]
        %v4462 = vld [vmem:[#allocation31 + $0x80] sm:$0xff]
        %v4463 = vld [vmem:[#allocation31 + $0x88] sm:$0xff]
        %v4464 = vld [vmem:[#allocation31 + $0x90] sm:$0xff]
        %v4465 = vld [vmem:[#allocation31 + $0x98] sm:$0xff]
        %v4466 = vld [vmem:[#allocation31 + $0xa0] sm:$0xff]
        %v4467 = vld [vmem:[#allocation31 + $0xa8] sm:$0xff]
        %v4468 = vld [vmem:[#allocation31 + $0xb0] sm:$0xff]
        %v4469 = vld [vmem:[#allocation31 + $0xb8] sm:$0xff]
        %v4470 = vld [vmem:[#allocation31 + $0xc0] sm:$0xff]
        %v4471 = vld [vmem:[#allocation31 + $0xc8] sm:$0xff]
        %v4472 = vld [vmem:[#allocation31 + $0xd0] sm:$0xff]
        %v4473 = vld [vmem:[#allocation31 + $0xd8] sm:$0xff]
        %v4474 = vld [vmem:[#allocation31 + $0xe0] sm:$0xff]
        %v4475 = vld [vmem:[#allocation31 + $0xe8] sm:$0xff]
        %v4476 = vld [vmem:[#allocation31 + $0xf0] sm:$0xff]
        %v4477 = vld [vmem:[#allocation31 + $0xf8] sm:$0xff]
        %v4478 = vld [vmem:[#allocation31 + $0x100] sm:$0xff]
        %v4479 = vld [vmem:[#allocation31 + $0x108] sm:$0xff]
        %v4480 = vld [vmem:[#allocation31 + $0x110] sm:$0xff]
        %v4481 = vld [vmem:[#allocation31 + $0x118] sm:$0xff]
        %v4482 = vld [vmem:[#allocation31 + $0x120] sm:$0xff]
        %v4483 = vld [vmem:[#allocation31 + $0x128] sm:$0xff]
        %v4484 = vld [vmem:[#allocation31 + $0x130] sm:$0xff]
        %v4485 = vld [vmem:[#allocation31 + $0x138] sm:$0xff]
        %v4486 = vld [vmem:[#allocation31 + $0x140] sm:$0xff]
        %v4487 = vld [vmem:[#allocation31 + $0x148] sm:$0xff]
        %v4488 = vld [vmem:[#allocation31 + $0x150] sm:$0xff]
        %v4489 = vld [vmem:[#allocation31 + $0x158] sm:$0xff]
        %v4490 = vld [vmem:[#allocation31 + $0x160] sm:$0xff]
        %v4491 = vld [vmem:[#allocation31 + $0x168] sm:$0xff]
        %v4492 = vld [vmem:[#allocation31 + $0x170] sm:$0xff]
        %v4493 = vld [vmem:[#allocation31 + $0x178] sm:$0xff]
        %v4494 = vld [vmem:[#allocation31 + $0x180] sm:$0xff]
        %v4495 = vld [vmem:[#allocation31 + $0x188] sm:$0xff]
        %v4496 = vld [vmem:[#allocation31 + $0x190] sm:$0xff]
        %v4497 = vld [vmem:[#allocation31 + $0x198] sm:$0xff]
        %v4498 = vld [vmem:[#allocation31 + $0x1a0] sm:$0xff]
        %v4499 = vld [vmem:[#allocation31 + $0x1a8] sm:$0xff]
        %v4500 = vld [vmem:[#allocation31 + $0x1b0] sm:$0xff]
        %v4501 = vld [vmem:[#allocation31 + $0x1b8] sm:$0xff]
        %v4502 = vld [vmem:[#allocation31 + $0x1c0] sm:$0xff]
        %v4503 = vld [vmem:[#allocation31 + $0x1c8] sm:$0xff]
        %v4504 = vld [vmem:[#allocation31 + $0x1d0] sm:$0xff]
        %v4505 = vld [vmem:[#allocation31 + $0x1d8] sm:$0xff]
        %v4506 = vld [vmem:[#allocation31 + $0x1e0] sm:$0xff]
        %v4507 = vld [vmem:[#allocation31 + $0x1e8] sm:$0xff]
        %v4508 = vld [vmem:[#allocation31 + $0x1f0] sm:$0xff]
        %v4509 = vld [vmem:[#allocation31 + $0x1f8] sm:$0xff]
        %v4510 = vld [vmem:[#allocation31 + $0x200] sm:$0xff]
        %v4511 = vld [vmem:[#allocation31 + $0x208] sm:$0xff]
        %v4512 = vld [vmem:[#allocation31 + $0x210] sm:$0xff]
        %v4513 = vld [vmem:[#allocation31 + $0x218] sm:$0xff]
        %v4514 = vld [vmem:[#allocation31 + $0x220] sm:$0xff]
        %v4515 = vld [vmem:[#allocation31 + $0x228] sm:$0xff]
        %v4516 = vld [vmem:[#allocation31 + $0x230] sm:$0xff]
        %v4517 = vld [vmem:[#allocation31 + $0x238] sm:$0xff]
        %v4518 = vld [vmem:[#allocation31 + $0x240] sm:$0xff]
        %v4519 = vld [vmem:[#allocation31 + $0x248] sm:$0xff]
        %v4520 = vld [vmem:[#allocation31 + $0x250] sm:$0xff]
        %v4521 = vld [vmem:[#allocation31 + $0x258] sm:$0xff]
        %v4522 = vld [vmem:[#allocation31 + $0x260] sm:$0xff]
        %v4523 = vld [vmem:[#allocation31 + $0x268] sm:$0xff]
        %v4524 = vld [vmem:[#allocation31 + $0x270] sm:$0xff]
        %v4525 = vld [vmem:[#allocation31 + $0x278] sm:$0xff]
        %v4526 = vld [vmem:[#allocation31 + $0x280] sm:$0xff]
        %v4527 = vld [vmem:[#allocation31 + $0x288] sm:$0xff]
        %v4528 = vld [vmem:[#allocation31 + $0x290] sm:$0xff]
        %v4529 = vld [vmem:[#allocation31 + $0x298] sm:$0xff]
        %v4530 = vld [vmem:[#allocation31 + $0x2a0] sm:$0xff]
        %v4531 = vld [vmem:[#allocation31 + $0x2a8] sm:$0xff]
        %v4532 = vld [vmem:[#allocation31 + $0x2b0] sm:$0xff]
        %v4533 = vld [vmem:[#allocation31 + $0x2b8] sm:$0xff]
        %v4534 = vld [vmem:[#allocation31 + $0x2c0] sm:$0xff]
        %v4535 = vld [vmem:[#allocation31 + $0x2c8] sm:$0xff]
        %v4536 = vld [vmem:[#allocation31 + $0x2d0] sm:$0xff]
        %v4537 = vld [vmem:[#allocation31 + $0x2d8] sm:$0xff]
        %v4538 = vld [vmem:[#allocation31 + $0x2e0] sm:$0xff]
        %v4539 = vld [vmem:[#allocation31 + $0x2e8] sm:$0xff]
        %v4540 = vld [vmem:[#allocation31 + $0x2f0] sm:$0xff]
        %v4541 = vld [vmem:[#allocation31 + $0x2f8] sm:$0xff]
        %v4542 = vld [vmem:[#allocation31 + $0x300] sm:$0xff]
        %v4543 = vld [vmem:[#allocation31 + $0x308] sm:$0xff]
        %v4544 = vld [vmem:[#allocation31 + $0x310] sm:$0xff]
        %v4545 = vld [vmem:[#allocation31 + $0x318] sm:$0xff]
        %v4546 = vld [vmem:[#allocation31 + $0x320] sm:$0xff]
        %v4547 = vld [vmem:[#allocation31 + $0x328] sm:$0xff]
        %v4548 = vld [vmem:[#allocation31 + $0x330] sm:$0xff]
        %v4549 = vld [vmem:[#allocation31 + $0x338] sm:$0xff]
        %v4550 = vld [vmem:[#allocation31 + $0x340] sm:$0xff]
        %v4551 = vld [vmem:[#allocation31 + $0x348] sm:$0xff]
        %v4552 = vld [vmem:[#allocation31 + $0x350] sm:$0xff]
        %v4553 = vld [vmem:[#allocation31 + $0x358] sm:$0xff]
        %v4554 = vld [vmem:[#allocation31 + $0x360] sm:$0xff]
        %v4555 = vld [vmem:[#allocation31 + $0x368] sm:$0xff]
        %v4556 = vld [vmem:[#allocation31 + $0x370] sm:$0xff]
        %v4557 = vld [vmem:[#allocation31 + $0x378] sm:$0xff]
        %v4558 = vld [vmem:[#allocation31 + $0x380] sm:$0xff]
        %v4559 = vld [vmem:[#allocation31 + $0x388] sm:$0xff]
        %v4560 = vld [vmem:[#allocation31 + $0x390] sm:$0xff]
        %v4561 = vld [vmem:[#allocation31 + $0x398] sm:$0xff]
        %v4562 = vld [vmem:[#allocation31 + $0x3a0] sm:$0xff]
        %v4563 = vld [vmem:[#allocation31 + $0x3a8] sm:$0xff]
        %v4564 = vld [vmem:[#allocation31 + $0x3b0] sm:$0xff]
        %v4565 = vld [vmem:[#allocation31 + $0x3b8] sm:$0xff]
        %v4566 = vld [vmem:[#allocation31 + $0x3c0] sm:$0xff]
        %v4567 = vld [vmem:[#allocation31 + $0x3c8] sm:$0xff]
        %v4568 = vld [vmem:[#allocation31 + $0x3d0] sm:$0xff]
        %v4569 = vld [vmem:[#allocation31 + $0x3d8] sm:$0xff]
        %v4570 = vld [vmem:[#allocation31 + $0x3e0] sm:$0xff]
        %v4571 = vld [vmem:[#allocation31 + $0x3e8] sm:$0xff]
        %v4572 = vld [vmem:[#allocation31 + $0x3f0] sm:$0xff]
        %v4573 = vld [vmem:[#allocation31 + $0x3f8] sm:$0xff]
        %v4574 = vld [vmem:[#allocation31 + $0x400] sm:$0xff]
        %v4575 = vld [vmem:[#allocation31 + $0x408] sm:$0xff]
        %v4576 = vld [vmem:[#allocation31 + $0x410] sm:$0xff]
        %v4577 = vld [vmem:[#allocation31 + $0x418] sm:$0xff]
        %v4578 = vld [vmem:[#allocation31 + $0x420] sm:$0xff]
        %v4579 = vld [vmem:[#allocation31 + $0x428] sm:$0xff]
        %v4580 = vld [vmem:[#allocation31 + $0x430] sm:$0xff]
        %v4581 = vld [vmem:[#allocation31 + $0x438] sm:$0xff]
        %v4582 = vld [vmem:[#allocation31 + $0x440] sm:$0xff]
        %v4583 = vld [vmem:[#allocation31 + $0x448] sm:$0xff]
        %v4584 = vld [vmem:[#allocation31 + $0x450] sm:$0xff]
        %v4585 = vld [vmem:[#allocation31 + $0x458] sm:$0xff]
        %v4586 = vld [vmem:[#allocation31 + $0x460] sm:$0xff]
        %v4587 = vld [vmem:[#allocation31 + $0x468] sm:$0xff]
        %v4588 = vld [vmem:[#allocation31 + $0x470] sm:$0xff]
        %v4589 = vld [vmem:[#allocation31 + $0x478] sm:$0xff]
        %v4590 = vld [vmem:[#allocation31 + $0x480] sm:$0xff]
        %v4591 = vld [vmem:[#allocation31 + $0x488] sm:$0xff]
        %v4592 = vld [vmem:[#allocation31 + $0x490] sm:$0xff]
        %v4593 = vld [vmem:[#allocation31 + $0x498] sm:$0xff]
        %v4594 = vld [vmem:[#allocation31 + $0x4a0] sm:$0xff]
        %v4595 = vld [vmem:[#allocation31 + $0x4a8] sm:$0xff]
        %v4596 = vld [vmem:[#allocation31 + $0x4b0] sm:$0xff]
        %v4597 = vld [vmem:[#allocation31 + $0x4b8] sm:$0xff]
        %v4598 = vld [vmem:[#allocation31 + $0x4c0] sm:$0xff]
        %v4599 = vld [vmem:[#allocation31 + $0x4c8] sm:$0xff]
        %v4600 = vld [vmem:[#allocation31 + $0x4d0] sm:$0xff]
        %v4601 = vld [vmem:[#allocation31 + $0x4d8] sm:$0xff]
        %v4602 = vld [vmem:[#allocation31 + $0x4e0] sm:$0xff]
        %v4603 = vld [vmem:[#allocation31 + $0x4e8] sm:$0xff]
        %v4604 = vld [vmem:[#allocation31 + $0x4f0] sm:$0xff]
        %v4605 = vld [vmem:[#allocation31 + $0x4f8] sm:$0xff]
        %v4606 = vld [vmem:[#allocation31 + $0x500] sm:$0xff]
        %v4607 = vld [vmem:[#allocation31 + $0x508] sm:$0xff]
        %v4608 = vld [vmem:[#allocation31 + $0x510] sm:$0xff]
        %v4609 = vld [vmem:[#allocation31 + $0x518] sm:$0xff]
        %v4610 = vld [vmem:[#allocation31 + $0x520] sm:$0xff]
        %v4611 = vld [vmem:[#allocation31 + $0x528] sm:$0xff]
        %v4612 = vld [vmem:[#allocation31 + $0x530] sm:$0xff]
        %v4613 = vld [vmem:[#allocation31 + $0x538] sm:$0xff]
        %v4614 = vld [vmem:[#allocation31 + $0x540] sm:$0xff]
        %v4615 = vld [vmem:[#allocation31 + $0x548] sm:$0xff]
        %v4616 = vld [vmem:[#allocation31 + $0x550] sm:$0xff]
        %v4617 = vld [vmem:[#allocation31 + $0x558] sm:$0xff]
        %v4618 = vld [vmem:[#allocation31 + $0x560] sm:$0xff]
        %v4619 = vld [vmem:[#allocation31 + $0x568] sm:$0xff]
        %v4620 = vld [vmem:[#allocation31 + $0x570] sm:$0xff]
        %v4621 = vld [vmem:[#allocation31 + $0x578] sm:$0xff]
        %v4622 = vld [vmem:[#allocation31 + $0x580] sm:$0xff]
        %v4623 = vld [vmem:[#allocation31 + $0x588] sm:$0xff]
        %v4624 = vld [vmem:[#allocation31 + $0x590] sm:$0xff]
        %v4625 = vld [vmem:[#allocation31 + $0x598] sm:$0xff]
        %v4626 = vld [vmem:[#allocation31 + $0x5a0] sm:$0xff]
        %v4627 = vld [vmem:[#allocation31 + $0x5a8] sm:$0xff]
        %v4628 = vld [vmem:[#allocation31 + $0x5b0] sm:$0xff]
        %v4629 = vld [vmem:[#allocation31 + $0x5b8] sm:$0xff]
        %v4630 = vld [vmem:[#allocation31 + $0x5c0] sm:$0xff]
        %v4631 = vld [vmem:[#allocation31 + $0x5c8] sm:$0xff]
        %v4632 = vld [vmem:[#allocation31 + $0x5d0] sm:$0xff]
        %v4633 = vld [vmem:[#allocation31 + $0x5d8] sm:$0xff]
        %v4634 = vld [vmem:[#allocation31 + $0x5e0] sm:$0xff]
        %v4635 = vld [vmem:[#allocation31 + $0x5e8] sm:$0xff]
        %v4636 = vld [vmem:[#allocation31 + $0x5f0] sm:$0xff]
        %v4637 = vld [vmem:[#allocation31 + $0x5f8] sm:$0xff]
        %v4638 = vld [vmem:[#allocation31 + $0x600] sm:$0xff]
        %v4639 = vld [vmem:[#allocation31 + $0x608] sm:$0xff]
        %v4640 = vld [vmem:[#allocation31 + $0x610] sm:$0xff]
        %v4641 = vld [vmem:[#allocation31 + $0x618] sm:$0xff]
        %v4642 = vld [vmem:[#allocation31 + $0x620] sm:$0xff]
        %v4643 = vld [vmem:[#allocation31 + $0x628] sm:$0xff]
        %v4644 = vld [vmem:[#allocation31 + $0x630] sm:$0xff]
        %v4645 = vld [vmem:[#allocation31 + $0x638] sm:$0xff]
        %v4646 = vld [vmem:[#allocation31 + $0x640] sm:$0xff]
        %v4647 = vld [vmem:[#allocation31 + $0x648] sm:$0xff]
        %v4648 = vld [vmem:[#allocation31 + $0x650] sm:$0xff]
        %v4649 = vld [vmem:[#allocation31 + $0x658] sm:$0xff]
        %v4650 = vld [vmem:[#allocation31 + $0x660] sm:$0xff]
        %v4651 = vld [vmem:[#allocation31 + $0x668] sm:$0xff]
        %v4652 = vld [vmem:[#allocation31 + $0x670] sm:$0xff]
        %v4653 = vld [vmem:[#allocation31 + $0x678] sm:$0xff]
        %v4654 = vld [vmem:[#allocation31 + $0x680] sm:$0xff]
        %v4655 = vld [vmem:[#allocation31 + $0x688] sm:$0xff]
        %v4656 = vld [vmem:[#allocation31 + $0x690] sm:$0xff]
        %v4657 = vld [vmem:[#allocation31 + $0x698] sm:$0xff]
        %v4658 = vld [vmem:[#allocation31 + $0x6a0] sm:$0xff]
        %v4659 = vld [vmem:[#allocation31 + $0x6a8] sm:$0xff]
        %v4660 = vld [vmem:[#allocation31 + $0x6b0] sm:$0xff]
        %v4661 = vld [vmem:[#allocation31 + $0x6b8] sm:$0xff]
        %v4662 = vld [vmem:[#allocation31 + $0x6c0] sm:$0xff]
        %v4663 = vld [vmem:[#allocation31 + $0x6c8] sm:$0xff]
        %v4664 = vld [vmem:[#allocation31 + $0x6d0] sm:$0xff]
        %v4665 = vld [vmem:[#allocation31 + $0x6d8] sm:$0xff]
        %v4666 = vld [vmem:[#allocation31 + $0x6e0] sm:$0xff]
        %v4667 = vld [vmem:[#allocation31 + $0x6e8] sm:$0xff]
        %v4668 = vld [vmem:[#allocation31 + $0x6f0] sm:$0xff]
        %v4669 = vld [vmem:[#allocation31 + $0x6f8] sm:$0xff]
        %v4670 = vld [vmem:[#allocation31 + $0x700] sm:$0xff]
        %v4671 = vld [vmem:[#allocation31 + $0x708] sm:$0xff]
        %v4672 = vld [vmem:[#allocation31 + $0x710] sm:$0xff]
        %v4673 = vld [vmem:[#allocation31 + $0x718] sm:$0xff]
        %v4674 = vld [vmem:[#allocation31 + $0x720] sm:$0xff]
        %v4675 = vld [vmem:[#allocation31 + $0x728] sm:$0xff]
        %v4676 = vld [vmem:[#allocation31 + $0x730] sm:$0xff]
        %v4677 = vld [vmem:[#allocation31 + $0x738] sm:$0xff]
        %v4678 = vld [vmem:[#allocation31 + $0x740] sm:$0xff]
        %v4679 = vld [vmem:[#allocation31 + $0x748] sm:$0xff]
        %v4680 = vld [vmem:[#allocation31 + $0x750] sm:$0xff]
        %v4681 = vld [vmem:[#allocation31 + $0x758] sm:$0xff]
        %v4682 = vld [vmem:[#allocation31 + $0x760] sm:$0xff]
        %v4683 = vld [vmem:[#allocation31 + $0x768] sm:$0xff]
        %v4684 = vld [vmem:[#allocation31 + $0x770] sm:$0xff]
        %v4685 = vld [vmem:[#allocation31 + $0x778] sm:$0xff]
        %v4686 = vld [vmem:[#allocation31 + $0x780] sm:$0xff]
        %v4687 = vld [vmem:[#allocation31 + $0x788] sm:$0xff]
        %v4688 = vld [vmem:[#allocation31 + $0x790] sm:$0xff]
        %v4689 = vld [vmem:[#allocation31 + $0x798] sm:$0xff]
        %v4690 = vld [vmem:[#allocation31 + $0x7a0] sm:$0xff]
        %v4691 = vld [vmem:[#allocation31 + $0x7a8] sm:$0xff]
        %v4692 = vld [vmem:[#allocation31 + $0x7b0] sm:$0xff]
        %v4693 = vld [vmem:[#allocation31 + $0x7b8] sm:$0xff]
        %v4694 = vld [vmem:[#allocation31 + $0x7c0] sm:$0xff]
        %v4695 = vld [vmem:[#allocation31 + $0x7c8] sm:$0xff]
        %v4696 = vld [vmem:[#allocation31 + $0x7d0] sm:$0xff]
        %v4697 = vld [vmem:[#allocation31 + $0x7d8] sm:$0xff]
        %v4698 = vld [vmem:[#allocation31 + $0x7e0] sm:$0xff]
        %v4699 = vld [vmem:[#allocation31 + $0x7e8] sm:$0xff]
        %v4700 = vld [vmem:[#allocation31 + $0x7f0] sm:$0xff]
        %v4701 = vld [vmem:[#allocation31 + $0x7f8] sm:$0xff]
        %v4702 = vld [vmem:[#allocation31 + $0x800] sm:$0xff]
        %v4703 = vld [vmem:[#allocation31 + $0x808] sm:$0xff]
        %v4704 = vld [vmem:[#allocation31 + $0x810] sm:$0xff]
        %v4705 = vld [vmem:[#allocation31 + $0x818] sm:$0xff]
        %v4706 = vld [vmem:[#allocation31 + $0x820] sm:$0xff]
        %v4707 = vld [vmem:[#allocation31 + $0x828] sm:$0xff]
        %v4708 = vld [vmem:[#allocation31 + $0x830] sm:$0xff]
        %v4709 = vld [vmem:[#allocation31 + $0x838] sm:$0xff]
        %v4710 = vld [vmem:[#allocation31 + $0x840] sm:$0xff]
        %v4711 = vld [vmem:[#allocation31 + $0x848] sm:$0xff]
        %v4712 = vld [vmem:[#allocation31 + $0x850] sm:$0xff]
        %v4713 = vld [vmem:[#allocation31 + $0x858] sm:$0xff]
        %v4714 = vld [vmem:[#allocation31 + $0x860] sm:$0xff]
        %v4715 = vld [vmem:[#allocation31 + $0x868] sm:$0xff]
        %v4716 = vld [vmem:[#allocation31 + $0x870] sm:$0xff]
        %v4717 = vld [vmem:[#allocation31 + $0x878] sm:$0xff]
        %v4718 = vld [vmem:[#allocation31 + $0x880] sm:$0xff]
        %v4719 = vld [vmem:[#allocation31 + $0x888] sm:$0xff]
        %v4720 = vld [vmem:[#allocation31 + $0x890] sm:$0xff]
        %v4721 = vld [vmem:[#allocation31 + $0x898] sm:$0xff]
        %v4722 = vld [vmem:[#allocation31 + $0x8a0] sm:$0xff]
        %v4723 = vld [vmem:[#allocation31 + $0x8a8] sm:$0xff]
        %v4724 = vld [vmem:[#allocation31 + $0x8b0] sm:$0xff]
        %v4725 = vld [vmem:[#allocation31 + $0x8b8] sm:$0xff]
        %v4726 = vld [vmem:[#allocation31 + $0x8c0] sm:$0xff]
        %v4727 = vld [vmem:[#allocation31 + $0x8c8] sm:$0xff]
        %v4728 = vld [vmem:[#allocation31 + $0x8d0] sm:$0xff]
        %v4729 = vld [vmem:[#allocation31 + $0x8d8] sm:$0xff]
        %v4730 = vld [vmem:[#allocation31 + $0x8e0] sm:$0xff]
        %v4731 = vld [vmem:[#allocation31 + $0x8e8] sm:$0xff]
        %v4732 = vld [vmem:[#allocation31 + $0x8f0] sm:$0xff]
        %v4733 = vld [vmem:[#allocation31 + $0x8f8] sm:$0xff]
        %v4734 = vld [vmem:[#allocation34] sm:$0x3f]
        %v5023 = vunpack.c.l.b16 %v4446
        %v5024 = vunpack.c.h.b16 %v4446
        %v5025 = vunpack.c.l.b16 %v4447
        %v5026 = vunpack.c.h.b16 %v4447
        %v5027 = vunpack.c.l.b16 %v4448
        %v5028 = vunpack.c.h.b16 %v4448
        %v5029 = vunpack.c.l.b16 %v4449
        %v5030 = vunpack.c.h.b16 %v4449
        %v5031 = vunpack.c.l.b16 %v4450
        %v5032 = vunpack.c.h.b16 %v4450
        %v5033 = vunpack.c.l.b16 %v4451
        %v5034 = vunpack.c.h.b16 %v4451
        %v5035 = vunpack.c.l.b16 %v4452
        %v5036 = vunpack.c.h.b16 %v4452
        %v5037 = vunpack.c.l.b16 %v4453
        %v5038 = vunpack.c.h.b16 %v4453
        %v5039 = vunpack.c.l.b16 %v4454
        %v5040 = vunpack.c.h.b16 %v4454
        %v5041 = vunpack.c.l.b16 %v4455
        %v5042 = vunpack.c.h.b16 %v4455
        %v5043 = vunpack.c.l.b16 %v4456
        %v5044 = vunpack.c.h.b16 %v4456
        %v5045 = vunpack.c.l.b16 %v4457
        %v5046 = vunpack.c.h.b16 %v4457
        %v5047 = vunpack.c.l.b16 %v4458
        %v5048 = vunpack.c.h.b16 %v4458
        %v5049 = vunpack.c.l.b16 %v4459
        %v5050 = vunpack.c.h.b16 %v4459
        %v5051 = vunpack.c.l.b16 %v4460
        %v5052 = vunpack.c.h.b16 %v4460
        %v5053 = vunpack.c.l.b16 %v4461
        %v5054 = vunpack.c.h.b16 %v4461
        %v5055 = vunpack.c.l.b16 %v4462
        %v5056 = vunpack.c.h.b16 %v4462
        %v5057 = vunpack.c.l.b16 %v4463
        %v5058 = vunpack.c.h.b16 %v4463
        %v5059 = vunpack.c.l.b16 %v4464
        %v5060 = vunpack.c.h.b16 %v4464
        %v5061 = vunpack.c.l.b16 %v4465
        %v5062 = vunpack.c.h.b16 %v4465
        %v5063 = vunpack.c.l.b16 %v4466
        %v5064 = vunpack.c.h.b16 %v4466
        %v5065 = vunpack.c.l.b16 %v4467
        %v5066 = vunpack.c.h.b16 %v4467
        %v5067 = vunpack.c.l.b16 %v4468
        %v5068 = vunpack.c.h.b16 %v4468
        %v5069 = vunpack.c.l.b16 %v4469
        %v5070 = vunpack.c.h.b16 %v4469
        %v5071 = vunpack.c.l.b16 %v4470
        %v5072 = vunpack.c.h.b16 %v4470
        %v5073 = vunpack.c.l.b16 %v4471
        %v5074 = vunpack.c.h.b16 %v4471
        %v5075 = vunpack.c.l.b16 %v4472
        %v5076 = vunpack.c.h.b16 %v4472
        %v5077 = vunpack.c.l.b16 %v4473
        %v5078 = vunpack.c.h.b16 %v4473
        %v5079 = vunpack.c.l.b16 %v4474
        %v5080 = vunpack.c.h.b16 %v4474
        %v5081 = vunpack.c.l.b16 %v4475
        %v5082 = vunpack.c.h.b16 %v4475
        %v5083 = vunpack.c.l.b16 %v4476
        %v5084 = vunpack.c.h.b16 %v4476
        %v5085 = vunpack.c.l.b16 %v4477
        %v5086 = vunpack.c.h.b16 %v4477
        %v5087 = vunpack.c.l.b16 %v4478
        %v5088 = vunpack.c.h.b16 %v4478
        %v5089 = vunpack.c.l.b16 %v4479
        %v5090 = vunpack.c.h.b16 %v4479
        %v5091 = vunpack.c.l.b16 %v4480
        %v5092 = vunpack.c.h.b16 %v4480
        %v5093 = vunpack.c.l.b16 %v4481
        %v5094 = vunpack.c.h.b16 %v4481
        %v5095 = vunpack.c.l.b16 %v4482
        %v5096 = vunpack.c.h.b16 %v4482
        %v5097 = vunpack.c.l.b16 %v4483
        %v5098 = vunpack.c.h.b16 %v4483
        %v5099 = vunpack.c.l.b16 %v4484
        %v5100 = vunpack.c.h.b16 %v4484
        %v5101 = vunpack.c.l.b16 %v4485
        %v5102 = vunpack.c.h.b16 %v4485
        %v5103 = vunpack.c.l.b16 %v4486
        %v5104 = vunpack.c.h.b16 %v4486
        %v5105 = vunpack.c.l.b16 %v4487
        %v5106 = vunpack.c.h.b16 %v4487
        %v5107 = vunpack.c.l.b16 %v4488
        %v5108 = vunpack.c.h.b16 %v4488
        %v5109 = vunpack.c.l.b16 %v4489
        %v5110 = vunpack.c.h.b16 %v4489
        %v5111 = vunpack.c.l.b16 %v4490
        %v5112 = vunpack.c.h.b16 %v4490
        %v5113 = vunpack.c.l.b16 %v4491
        %v5114 = vunpack.c.h.b16 %v4491
        %v5115 = vunpack.c.l.b16 %v4492
        %v5116 = vunpack.c.h.b16 %v4492
        %v5117 = vunpack.c.l.b16 %v4493
        %v5118 = vunpack.c.h.b16 %v4493
        %v5119 = vunpack.c.l.b16 %v4494
        %v5120 = vunpack.c.h.b16 %v4494
        %v5121 = vunpack.c.l.b16 %v4495
        %v5122 = vunpack.c.h.b16 %v4495
        %v5123 = vunpack.c.l.b16 %v4496
        %v5124 = vunpack.c.h.b16 %v4496
        %v5125 = vunpack.c.l.b16 %v4497
        %v5126 = vunpack.c.h.b16 %v4497
        %v5127 = vunpack.c.l.b16 %v4498
        %v5128 = vunpack.c.h.b16 %v4498
        %v5129 = vunpack.c.l.b16 %v4499
        %v5130 = vunpack.c.h.b16 %v4499
        %v5131 = vunpack.c.l.b16 %v4500
        %v5132 = vunpack.c.h.b16 %v4500
        %v5133 = vunpack.c.l.b16 %v4501
        %v5134 = vunpack.c.h.b16 %v4501
        %v5135 = vunpack.c.l.b16 %v4502
        %v5136 = vunpack.c.h.b16 %v4502
        %v5137 = vunpack.c.l.b16 %v4503
        %v5138 = vunpack.c.h.b16 %v4503
        %v5139 = vunpack.c.l.b16 %v4504
        %v5140 = vunpack.c.h.b16 %v4504
        %v5141 = vunpack.c.l.b16 %v4505
        %v5142 = vunpack.c.h.b16 %v4505
        %v5143 = vunpack.c.l.b16 %v4506
        %v5144 = vunpack.c.h.b16 %v4506
        %v5145 = vunpack.c.l.b16 %v4507
        %v5146 = vunpack.c.h.b16 %v4507
        %v5147 = vunpack.c.l.b16 %v4508
        %v5148 = vunpack.c.h.b16 %v4508
        %v5149 = vunpack.c.l.b16 %v4509
        %v5150 = vunpack.c.h.b16 %v4509
        %v5151 = vunpack.c.l.b16 %v4510
        %v5152 = vunpack.c.h.b16 %v4510
        %v5153 = vunpack.c.l.b16 %v4511
        %v5154 = vunpack.c.h.b16 %v4511
        %v5155 = vunpack.c.l.b16 %v4512
        %v5156 = vunpack.c.h.b16 %v4512
        %v5157 = vunpack.c.l.b16 %v4513
        %v5158 = vunpack.c.h.b16 %v4513
        %v5159 = vunpack.c.l.b16 %v4514
        %v5160 = vunpack.c.h.b16 %v4514
        %v5161 = vunpack.c.l.b16 %v4515
        %v5162 = vunpack.c.h.b16 %v4515
        %v5163 = vunpack.c.l.b16 %v4516
        %v5164 = vunpack.c.h.b16 %v4516
        %v5165 = vunpack.c.l.b16 %v4517
        %v5166 = vunpack.c.h.b16 %v4517
        %v5167 = vunpack.c.l.b16 %v4518
        %v5168 = vunpack.c.h.b16 %v4518
        %v5169 = vunpack.c.l.b16 %v4519
        %v5170 = vunpack.c.h.b16 %v4519
        %v5171 = vunpack.c.l.b16 %v4520
        %v5172 = vunpack.c.h.b16 %v4520
        %v5173 = vunpack.c.l.b16 %v4521
        %v5174 = vunpack.c.h.b16 %v4521
        %v5175 = vunpack.c.l.b16 %v4522
        %v5176 = vunpack.c.h.b16 %v4522
        %v5177 = vunpack.c.l.b16 %v4523
        %v5178 = vunpack.c.h.b16 %v4523
        %v5179 = vunpack.c.l.b16 %v4524
        %v5180 = vunpack.c.h.b16 %v4524
        %v5181 = vunpack.c.l.b16 %v4525
        %v5182 = vunpack.c.h.b16 %v4525
        %v5183 = vunpack.c.l.b16 %v4526
        %v5184 = vunpack.c.h.b16 %v4526
        %v5185 = vunpack.c.l.b16 %v4527
        %v5186 = vunpack.c.h.b16 %v4527
        %v5187 = vunpack.c.l.b16 %v4528
        %v5188 = vunpack.c.h.b16 %v4528
        %v5189 = vunpack.c.l.b16 %v4529
        %v5190 = vunpack.c.h.b16 %v4529
        %v5191 = vunpack.c.l.b16 %v4530
        %v5192 = vunpack.c.h.b16 %v4530
        %v5193 = vunpack.c.l.b16 %v4531
        %v5194 = vunpack.c.h.b16 %v4531
        %v5195 = vunpack.c.l.b16 %v4532
        %v5196 = vunpack.c.h.b16 %v4532
        %v5197 = vunpack.c.l.b16 %v4533
        %v5198 = vunpack.c.h.b16 %v4533
        %v5199 = vunpack.c.l.b16 %v4534
        %v5200 = vunpack.c.h.b16 %v4534
        %v5201 = vunpack.c.l.b16 %v4535
        %v5202 = vunpack.c.h.b16 %v4535
        %v5203 = vunpack.c.l.b16 %v4536
        %v5204 = vunpack.c.h.b16 %v4536
        %v5205 = vunpack.c.l.b16 %v4537
        %v5206 = vunpack.c.h.b16 %v4537
        %v5207 = vunpack.c.l.b16 %v4538
        %v5208 = vunpack.c.h.b16 %v4538
        %v5209 = vunpack.c.l.b16 %v4539
        %v5210 = vunpack.c.h.b16 %v4539
        %v5211 = vunpack.c.l.b16 %v4540
        %v5212 = vunpack.c.h.b16 %v4540
        %v5213 = vunpack.c.l.b16 %v4541
        %v5214 = vunpack.c.h.b16 %v4541
        %v5215 = vunpack.c.l.b16 %v4542
        %v5216 = vunpack.c.h.b16 %v4542
        %v5217 = vunpack.c.l.b16 %v4543
        %v5218 = vunpack.c.h.b16 %v4543
        %v5219 = vunpack.c.l.b16 %v4544
        %v5220 = vunpack.c.h.b16 %v4544
        %v5221 = vunpack.c.l.b16 %v4545
        %v5222 = vunpack.c.h.b16 %v4545
        %v5223 = vunpack.c.l.b16 %v4546
        %v5224 = vunpack.c.h.b16 %v4546
        %v5225 = vunpack.c.l.b16 %v4547
        %v5226 = vunpack.c.h.b16 %v4547
        %v5227 = vunpack.c.l.b16 %v4548
        %v5228 = vunpack.c.h.b16 %v4548
        %v5229 = vunpack.c.l.b16 %v4549
        %v5230 = vunpack.c.h.b16 %v4549
        %v5231 = vunpack.c.l.b16 %v4550
        %v5232 = vunpack.c.h.b16 %v4550
        %v5233 = vunpack.c.l.b16 %v4551
        %v5234 = vunpack.c.h.b16 %v4551
        %v5235 = vunpack.c.l.b16 %v4552
        %v5236 = vunpack.c.h.b16 %v4552
        %v5237 = vunpack.c.l.b16 %v4553
        %v5238 = vunpack.c.h.b16 %v4553
        %v5239 = vunpack.c.l.b16 %v4554
        %v5240 = vunpack.c.h.b16 %v4554
        %v5241 = vunpack.c.l.b16 %v4555
        %v5242 = vunpack.c.h.b16 %v4555
        %v5243 = vunpack.c.l.b16 %v4556
        %v5244 = vunpack.c.h.b16 %v4556
        %v5245 = vunpack.c.l.b16 %v4557
        %v5246 = vunpack.c.h.b16 %v4557
        %v5247 = vunpack.c.l.b16 %v4558
        %v5248 = vunpack.c.h.b16 %v4558
        %v5249 = vunpack.c.l.b16 %v4559
        %v5250 = vunpack.c.h.b16 %v4559
        %v5251 = vunpack.c.l.b16 %v4560
        %v5252 = vunpack.c.h.b16 %v4560
        %v5253 = vunpack.c.l.b16 %v4561
        %v5254 = vunpack.c.h.b16 %v4561
        %v5255 = vunpack.c.l.b16 %v4562
        %v5256 = vunpack.c.h.b16 %v4562
        %v5257 = vunpack.c.l.b16 %v4563
        %v5258 = vunpack.c.h.b16 %v4563
        %v5259 = vunpack.c.l.b16 %v4564
        %v5260 = vunpack.c.h.b16 %v4564
        %v5261 = vunpack.c.l.b16 %v4565
        %v5262 = vunpack.c.h.b16 %v4565
        %v5263 = vunpack.c.l.b16 %v4566
        %v5264 = vunpack.c.h.b16 %v4566
        %v5265 = vunpack.c.l.b16 %v4567
        %v5266 = vunpack.c.h.b16 %v4567
        %v5267 = vunpack.c.l.b16 %v4568
        %v5268 = vunpack.c.h.b16 %v4568
        %v5269 = vunpack.c.l.b16 %v4569
        %v5270 = vunpack.c.h.b16 %v4569
        %v5271 = vunpack.c.l.b16 %v4570
        %v5272 = vunpack.c.h.b16 %v4570
        %v5273 = vunpack.c.l.b16 %v4571
        %v5274 = vunpack.c.h.b16 %v4571
        %v5275 = vunpack.c.l.b16 %v4572
        %v5276 = vunpack.c.h.b16 %v4572
        %v5277 = vunpack.c.l.b16 %v4573
        %v5278 = vunpack.c.h.b16 %v4573
        %v5279 = vunpack.c.l.b16 %v4574
        %v5280 = vunpack.c.h.b16 %v4574
        %v5281 = vunpack.c.l.b16 %v4575
        %v5282 = vunpack.c.h.b16 %v4575
        %v5283 = vunpack.c.l.b16 %v4576
        %v5284 = vunpack.c.h.b16 %v4576
        %v5285 = vunpack.c.l.b16 %v4577
        %v5286 = vunpack.c.h.b16 %v4577
        %v5287 = vunpack.c.l.b16 %v4578
        %v5288 = vunpack.c.h.b16 %v4578
        %v5289 = vunpack.c.l.b16 %v4579
        %v5290 = vunpack.c.h.b16 %v4579
        %v5291 = vunpack.c.l.b16 %v4580
        %v5292 = vunpack.c.h.b16 %v4580
        %v5293 = vunpack.c.l.b16 %v4581
        %v5294 = vunpack.c.h.b16 %v4581
        %v5295 = vunpack.c.l.b16 %v4582
        %v5296 = vunpack.c.h.b16 %v4582
        %v5297 = vunpack.c.l.b16 %v4583
        %v5298 = vunpack.c.h.b16 %v4583
        %v5299 = vunpack.c.l.b16 %v4584
        %v5300 = vunpack.c.h.b16 %v4584
        %v5301 = vunpack.c.l.b16 %v4585
        %v5302 = vunpack.c.h.b16 %v4585
        %v5303 = vunpack.c.l.b16 %v4586
        %v5304 = vunpack.c.h.b16 %v4586
        %v5305 = vunpack.c.l.b16 %v4587
        %v5306 = vunpack.c.h.b16 %v4587
        %v5307 = vunpack.c.l.b16 %v4588
        %v5308 = vunpack.c.h.b16 %v4588
        %v5309 = vunpack.c.l.b16 %v4589
        %v5310 = vunpack.c.h.b16 %v4589
        %v5311 = vunpack.c.l.b16 %v4590
        %v5312 = vunpack.c.h.b16 %v4590
        %v5313 = vunpack.c.l.b16 %v4591
        %v5314 = vunpack.c.h.b16 %v4591
        %v5315 = vunpack.c.l.b16 %v4592
        %v5316 = vunpack.c.h.b16 %v4592
        %v5317 = vunpack.c.l.b16 %v4593
        %v5318 = vunpack.c.h.b16 %v4593
        %v5319 = vunpack.c.l.b16 %v4594
        %v5320 = vunpack.c.h.b16 %v4594
        %v5321 = vunpack.c.l.b16 %v4595
        %v5322 = vunpack.c.h.b16 %v4595
        %v5323 = vunpack.c.l.b16 %v4596
        %v5324 = vunpack.c.h.b16 %v4596
        %v5325 = vunpack.c.l.b16 %v4597
        %v5326 = vunpack.c.h.b16 %v4597
        %v5327 = vunpack.c.l.b16 %v4598
        %v5328 = vunpack.c.h.b16 %v4598
        %v5329 = vunpack.c.l.b16 %v4599
        %v5330 = vunpack.c.h.b16 %v4599
        %v5331 = vunpack.c.l.b16 %v4600
        %v5332 = vunpack.c.h.b16 %v4600
        %v5333 = vunpack.c.l.b16 %v4601
        %v5334 = vunpack.c.h.b16 %v4601
        %v5335 = vunpack.c.l.b16 %v4602
        %v5336 = vunpack.c.h.b16 %v4602
        %v5337 = vunpack.c.l.b16 %v4603
        %v5338 = vunpack.c.h.b16 %v4603
        %v5339 = vunpack.c.l.b16 %v4604
        %v5340 = vunpack.c.h.b16 %v4604
        %v5341 = vunpack.c.l.b16 %v4605
        %v5342 = vunpack.c.h.b16 %v4605
        %v5343 = vunpack.c.l.b16 %v4606
        %v5344 = vunpack.c.h.b16 %v4606
        %v5345 = vunpack.c.l.b16 %v4607
        %v5346 = vunpack.c.h.b16 %v4607
        %v5347 = vunpack.c.l.b16 %v4608
        %v5348 = vunpack.c.h.b16 %v4608
        %v5349 = vunpack.c.l.b16 %v4609
        %v5350 = vunpack.c.h.b16 %v4609
        %v5351 = vunpack.c.l.b16 %v4610
        %v5352 = vunpack.c.h.b16 %v4610
        %v5353 = vunpack.c.l.b16 %v4611
        %v5354 = vunpack.c.h.b16 %v4611
        %v5355 = vunpack.c.l.b16 %v4612
        %v5356 = vunpack.c.h.b16 %v4612
        %v5357 = vunpack.c.l.b16 %v4613
        %v5358 = vunpack.c.h.b16 %v4613
        %v5359 = vunpack.c.l.b16 %v4614
        %v5360 = vunpack.c.h.b16 %v4614
        %v5361 = vunpack.c.l.b16 %v4615
        %v5362 = vunpack.c.h.b16 %v4615
        %v5363 = vunpack.c.l.b16 %v4616
        %v5364 = vunpack.c.h.b16 %v4616
        %v5365 = vunpack.c.l.b16 %v4617
        %v5366 = vunpack.c.h.b16 %v4617
        %v5367 = vunpack.c.l.b16 %v4618
        %v5368 = vunpack.c.h.b16 %v4618
        %v5369 = vunpack.c.l.b16 %v4619
        %v5370 = vunpack.c.h.b16 %v4619
        %v5371 = vunpack.c.l.b16 %v4620
        %v5372 = vunpack.c.h.b16 %v4620
        %v5373 = vunpack.c.l.b16 %v4621
        %v5374 = vunpack.c.h.b16 %v4621
        %v5375 = vunpack.c.l.b16 %v4622
        %v5376 = vunpack.c.h.b16 %v4622
        %v5377 = vunpack.c.l.b16 %v4623
        %v5378 = vunpack.c.h.b16 %v4623
        %v5379 = vunpack.c.l.b16 %v4624
        %v5380 = vunpack.c.h.b16 %v4624
        %v5381 = vunpack.c.l.b16 %v4625
        %v5382 = vunpack.c.h.b16 %v4625
        %v5383 = vunpack.c.l.b16 %v4626
        %v5384 = vunpack.c.h.b16 %v4626
        %v5385 = vunpack.c.l.b16 %v4627
        %v5386 = vunpack.c.h.b16 %v4627
        %v5387 = vunpack.c.l.b16 %v4628
        %v5388 = vunpack.c.h.b16 %v4628
        %v5389 = vunpack.c.l.b16 %v4629
        %v5390 = vunpack.c.h.b16 %v4629
        %v5391 = vunpack.c.l.b16 %v4630
        %v5392 = vunpack.c.h.b16 %v4630
        %v5393 = vunpack.c.l.b16 %v4631
        %v5394 = vunpack.c.h.b16 %v4631
        %v5395 = vunpack.c.l.b16 %v4632
        %v5396 = vunpack.c.h.b16 %v4632
        %v5397 = vunpack.c.l.b16 %v4633
        %v5398 = vunpack.c.h.b16 %v4633
        %v5399 = vunpack.c.l.b16 %v4634
        %v5400 = vunpack.c.h.b16 %v4634
        %v5401 = vunpack.c.l.b16 %v4635
        %v5402 = vunpack.c.h.b16 %v4635
        %v5403 = vunpack.c.l.b16 %v4636
        %v5404 = vunpack.c.h.b16 %v4636
        %v5405 = vunpack.c.l.b16 %v4637
        %v5406 = vunpack.c.h.b16 %v4637
        %v5407 = vunpack.c.l.b16 %v4638
        %v5408 = vunpack.c.h.b16 %v4638
        %v5409 = vunpack.c.l.b16 %v4639
        %v5410 = vunpack.c.h.b16 %v4639
        %v5411 = vunpack.c.l.b16 %v4640
        %v5412 = vunpack.c.h.b16 %v4640
        %v5413 = vunpack.c.l.b16 %v4641
        %v5414 = vunpack.c.h.b16 %v4641
        %v5415 = vunpack.c.l.b16 %v4642
        %v5416 = vunpack.c.h.b16 %v4642
        %v5417 = vunpack.c.l.b16 %v4643
        %v5418 = vunpack.c.h.b16 %v4643
        %v5419 = vunpack.c.l.b16 %v4644
        %v5420 = vunpack.c.h.b16 %v4644
        %v5421 = vunpack.c.l.b16 %v4645
        %v5422 = vunpack.c.h.b16 %v4645
        %v5423 = vunpack.c.l.b16 %v4646
        %v5424 = vunpack.c.h.b16 %v4646
        %v5425 = vunpack.c.l.b16 %v4647
        %v5426 = vunpack.c.h.b16 %v4647
        %v5427 = vunpack.c.l.b16 %v4648
        %v5428 = vunpack.c.h.b16 %v4648
        %v5429 = vunpack.c.l.b16 %v4649
        %v5430 = vunpack.c.h.b16 %v4649
        %v5431 = vunpack.c.l.b16 %v4650
        %v5432 = vunpack.c.h.b16 %v4650
        %v5433 = vunpack.c.l.b16 %v4651
        %v5434 = vunpack.c.h.b16 %v4651
        %v5435 = vunpack.c.l.b16 %v4652
        %v5436 = vunpack.c.h.b16 %v4652
        %v5437 = vunpack.c.l.b16 %v4653
        %v5438 = vunpack.c.h.b16 %v4653
        %v5439 = vunpack.c.l.b16 %v4654
        %v5440 = vunpack.c.h.b16 %v4654
        %v5441 = vunpack.c.l.b16 %v4655
        %v5442 = vunpack.c.h.b16 %v4655
        %v5443 = vunpack.c.l.b16 %v4656
        %v5444 = vunpack.c.h.b16 %v4656
        %v5445 = vunpack.c.l.b16 %v4657
        %v5446 = vunpack.c.h.b16 %v4657
        %v5447 = vunpack.c.l.b16 %v4658
        %v5448 = vunpack.c.h.b16 %v4658
        %v5449 = vunpack.c.l.b16 %v4659
        %v5450 = vunpack.c.h.b16 %v4659
        %v5451 = vunpack.c.l.b16 %v4660
        %v5452 = vunpack.c.h.b16 %v4660
        %v5453 = vunpack.c.l.b16 %v4661
        %v5454 = vunpack.c.h.b16 %v4661
        %v5455 = vunpack.c.l.b16 %v4662
        %v5456 = vunpack.c.h.b16 %v4662
        %v5457 = vunpack.c.l.b16 %v4663
        %v5458 = vunpack.c.h.b16 %v4663
        %v5459 = vunpack.c.l.b16 %v4664
        %v5460 = vunpack.c.h.b16 %v4664
        %v5461 = vunpack.c.l.b16 %v4665
        %v5462 = vunpack.c.h.b16 %v4665
        %v5463 = vunpack.c.l.b16 %v4666
        %v5464 = vunpack.c.h.b16 %v4666
        %v5465 = vunpack.c.l.b16 %v4667
        %v5466 = vunpack.c.h.b16 %v4667
        %v5467 = vunpack.c.l.b16 %v4668
        %v5468 = vunpack.c.h.b16 %v4668
        %v5469 = vunpack.c.l.b16 %v4669
        %v5470 = vunpack.c.h.b16 %v4669
        %v5471 = vunpack.c.l.b16 %v4670
        %v5472 = vunpack.c.h.b16 %v4670
        %v5473 = vunpack.c.l.b16 %v4671
        %v5474 = vunpack.c.h.b16 %v4671
        %v5475 = vunpack.c.l.b16 %v4672
        %v5476 = vunpack.c.h.b16 %v4672
        %v5477 = vunpack.c.l.b16 %v4673
        %v5478 = vunpack.c.h.b16 %v4673
        %v5479 = vunpack.c.l.b16 %v4674
        %v5480 = vunpack.c.h.b16 %v4674
        %v5481 = vunpack.c.l.b16 %v4675
        %v5482 = vunpack.c.h.b16 %v4675
        %v5483 = vunpack.c.l.b16 %v4676
        %v5484 = vunpack.c.h.b16 %v4676
        %v5485 = vunpack.c.l.b16 %v4677
        %v5486 = vunpack.c.h.b16 %v4677
        %v5487 = vunpack.c.l.b16 %v4678
        %v5488 = vunpack.c.h.b16 %v4678
        %v5489 = vunpack.c.l.b16 %v4679
        %v5490 = vunpack.c.h.b16 %v4679
        %v5491 = vunpack.c.l.b16 %v4680
        %v5492 = vunpack.c.h.b16 %v4680
        %v5493 = vunpack.c.l.b16 %v4681
        %v5494 = vunpack.c.h.b16 %v4681
        %v5495 = vunpack.c.l.b16 %v4682
        %v5496 = vunpack.c.h.b16 %v4682
        %v5497 = vunpack.c.l.b16 %v4683
        %v5498 = vunpack.c.h.b16 %v4683
        %v5499 = vunpack.c.l.b16 %v4684
        %v5500 = vunpack.c.h.b16 %v4684
        %v5501 = vunpack.c.l.b16 %v4685
        %v5502 = vunpack.c.h.b16 %v4685
        %v5503 = vunpack.c.l.b16 %v4686
        %v5504 = vunpack.c.h.b16 %v4686
        %v5505 = vunpack.c.l.b16 %v4687
        %v5506 = vunpack.c.h.b16 %v4687
        %v5507 = vunpack.c.l.b16 %v4688
        %v5508 = vunpack.c.h.b16 %v4688
        %v5509 = vunpack.c.l.b16 %v4689
        %v5510 = vunpack.c.h.b16 %v4689
        %v5511 = vunpack.c.l.b16 %v4690
        %v5512 = vunpack.c.h.b16 %v4690
        %v5513 = vunpack.c.l.b16 %v4691
        %v5514 = vunpack.c.h.b16 %v4691
        %v5515 = vunpack.c.l.b16 %v4692
        %v5516 = vunpack.c.h.b16 %v4692
        %v5517 = vunpack.c.l.b16 %v4693
        %v5518 = vunpack.c.h.b16 %v4693
        %v5519 = vunpack.c.l.b16 %v4694
        %v5520 = vunpack.c.h.b16 %v4694
        %v5521 = vunpack.c.l.b16 %v4695
        %v5522 = vunpack.c.h.b16 %v4695
        %v5523 = vunpack.c.l.b16 %v4696
        %v5524 = vunpack.c.h.b16 %v4696
        %v5525 = vunpack.c.l.b16 %v4697
        %v5526 = vunpack.c.h.b16 %v4697
        %v5527 = vunpack.c.l.b16 %v4698
        %v5528 = vunpack.c.h.b16 %v4698
        %v5529 = vunpack.c.l.b16 %v4699
        %v5530 = vunpack.c.h.b16 %v4699
        %v5531 = vunpack.c.l.b16 %v4700
        %v5532 = vunpack.c.h.b16 %v4700
        %v5533 = vunpack.c.l.b16 %v4701
        %v5534 = vunpack.c.h.b16 %v4701
        %v5535 = vunpack.c.l.b16 %v4702
        %v5536 = vunpack.c.h.b16 %v4702
        %v5537 = vunpack.c.l.b16 %v4703
        %v5538 = vunpack.c.h.b16 %v4703
        %v5539 = vunpack.c.l.b16 %v4704
        %v5540 = vunpack.c.h.b16 %v4704
        %v5541 = vunpack.c.l.b16 %v4705
        %v5542 = vunpack.c.h.b16 %v4705
        %v5543 = vunpack.c.l.b16 %v4706
        %v5544 = vunpack.c.h.b16 %v4706
        %v5545 = vunpack.c.l.b16 %v4707
        %v5546 = vunpack.c.h.b16 %v4707
        %v5547 = vunpack.c.l.b16 %v4708
        %v5548 = vunpack.c.h.b16 %v4708
        %v5549 = vunpack.c.l.b16 %v4709
        %v5550 = vunpack.c.h.b16 %v4709
        %v5551 = vunpack.c.l.b16 %v4710
        %v5552 = vunpack.c.h.b16 %v4710
        %v5553 = vunpack.c.l.b16 %v4711
        %v5554 = vunpack.c.h.b16 %v4711
        %v5555 = vunpack.c.l.b16 %v4712
        %v5556 = vunpack.c.h.b16 %v4712
        %v5557 = vunpack.c.l.b16 %v4713
        %v5558 = vunpack.c.h.b16 %v4713
        %v5559 = vunpack.c.l.b16 %v4714
        %v5560 = vunpack.c.h.b16 %v4714
        %v5561 = vunpack.c.l.b16 %v4715
        %v5562 = vunpack.c.h.b16 %v4715
        %v5563 = vunpack.c.l.b16 %v4716
        %v5564 = vunpack.c.h.b16 %v4716
        %v5565 = vunpack.c.l.b16 %v4717
        %v5566 = vunpack.c.h.b16 %v4717
        %v5567 = vunpack.c.l.b16 %v4718
        %v5568 = vunpack.c.h.b16 %v4718
        %v5569 = vunpack.c.l.b16 %v4719
        %v5570 = vunpack.c.h.b16 %v4719
        %v5571 = vunpack.c.l.b16 %v4720
        %v5572 = vunpack.c.h.b16 %v4720
        %v5573 = vunpack.c.l.b16 %v4721
        %v5574 = vunpack.c.h.b16 %v4721
        %v5575 = vunpack.c.l.b16 %v4722
        %v5576 = vunpack.c.h.b16 %v4722
        %v5577 = vunpack.c.l.b16 %v4723
        %v5578 = vunpack.c.h.b16 %v4723
        %v5579 = vunpack.c.l.b16 %v4724
        %v5580 = vunpack.c.h.b16 %v4724
        %v5581 = vunpack.c.l.b16 %v4725
        %v5582 = vunpack.c.h.b16 %v4725
        %v5583 = vunpack.c.l.b16 %v4726
        %v5584 = vunpack.c.h.b16 %v4726
        %v5585 = vunpack.c.l.b16 %v4727
        %v5586 = vunpack.c.h.b16 %v4727
        %v5587 = vunpack.c.l.b16 %v4728
        %v5588 = vunpack.c.h.b16 %v4728
        %v5589 = vunpack.c.l.b16 %v4729
        %v5590 = vunpack.c.h.b16 %v4729
        %v5591 = vunpack.c.l.b16 %v4730
        %v5592 = vunpack.c.h.b16 %v4730
        %v5593 = vunpack.c.l.b16 %v4731
        %v5594 = vunpack.c.h.b16 %v4731
        %v5595 = vunpack.c.l.b16 %v4732
        %v5596 = vunpack.c.h.b16 %v4732
        %v5597 = vunpack.c.l.b16 %v4733
        %v5598 = vunpack.c.h.b16 %v4733
        %v5599 = vpack.c.b16 %v5029, %v5023
        %v5600 = vpack.c.b16 %v5030, %v5024
        %v5601 = vpack.c.b16 %v5031, %v5025
        %v5602 = vpack.c.b16 %v5032, %v5026
        %v5603 = vpack.c.b16 %v5033, %v5027
        %v5604 = vpack.c.b16 %v5034, %v5028
        %v5605 = vpack.c.b16 %v5041, %v5035
        %v5606 = vpack.c.b16 %v5042, %v5036
        %v5607 = vpack.c.b16 %v5043, %v5037
        %v5608 = vpack.c.b16 %v5044, %v5038
        %v5609 = vpack.c.b16 %v5045, %v5039
        %v5610 = vpack.c.b16 %v5046, %v5040
        %v5611 = vpack.c.b16 %v5053, %v5047
        %v5612 = vpack.c.b16 %v5054, %v5048
        %v5613 = vpack.c.b16 %v5055, %v5049
        %v5614 = vpack.c.b16 %v5056, %v5050
        %v5615 = vpack.c.b16 %v5057, %v5051
        %v5616 = vpack.c.b16 %v5058, %v5052
        %v5617 = vpack.c.b16 %v5065, %v5059
        %v5618 = vpack.c.b16 %v5066, %v5060
        %v5619 = vpack.c.b16 %v5067, %v5061
        %v5620 = vpack.c.b16 %v5068, %v5062
        %v5621 = vpack.c.b16 %v5069, %v5063
        %v5622 = vpack.c.b16 %v5070, %v5064
        %v5623 = vpack.c.b16 %v5077, %v5071
        %v5624 = vpack.c.b16 %v5078, %v5072
        %v5625 = vpack.c.b16 %v5079, %v5073
        %v5626 = vpack.c.b16 %v5080, %v5074
        %v5627 = vpack.c.b16 %v5081, %v5075
        %v5628 = vpack.c.b16 %v5082, %v5076
        %v5629 = vpack.c.b16 %v5089, %v5083
        %v5630 = vpack.c.b16 %v5090, %v5084
        %v5631 = vpack.c.b16 %v5091, %v5085
        %v5632 = vpack.c.b16 %v5092, %v5086
        %v5633 = vpack.c.b16 %v5093, %v5087
        %v5634 = vpack.c.b16 %v5094, %v5088
        %v5635 = vpack.c.b16 %v5101, %v5095
        %v5636 = vpack.c.b16 %v5102, %v5096
        %v5637 = vpack.c.b16 %v5103, %v5097
        %v5638 = vpack.c.b16 %v5104, %v5098
        %v5639 = vpack.c.b16 %v5105, %v5099
        %v5640 = vpack.c.b16 %v5106, %v5100
        %v5641 = vpack.c.b16 %v5113, %v5107
        %v5642 = vpack.c.b16 %v5114, %v5108
        %v5643 = vpack.c.b16 %v5115, %v5109
        %v5644 = vpack.c.b16 %v5116, %v5110
        %v5645 = vpack.c.b16 %v5117, %v5111
        %v5646 = vpack.c.b16 %v5118, %v5112
        %v5647 = vpack.c.b16 %v5125, %v5119
        %v5648 = vpack.c.b16 %v5126, %v5120
        %v5649 = vpack.c.b16 %v5127, %v5121
        %v5650 = vpack.c.b16 %v5128, %v5122
        %v5651 = vpack.c.b16 %v5129, %v5123
        %v5652 = vpack.c.b16 %v5130, %v5124
        %v5653 = vpack.c.b16 %v5137, %v5131
        %v5654 = vpack.c.b16 %v5138, %v5132
        %v5655 = vpack.c.b16 %v5139, %v5133
        %v5656 = vpack.c.b16 %v5140, %v5134
        %v5657 = vpack.c.b16 %v5141, %v5135
        %v5658 = vpack.c.b16 %v5142, %v5136
        %v5659 = vpack.c.b16 %v5149, %v5143
        %v5660 = vpack.c.b16 %v5150, %v5144
        %v5661 = vpack.c.b16 %v5151, %v5145
        %v5662 = vpack.c.b16 %v5152, %v5146
        %v5663 = vpack.c.b16 %v5153, %v5147
        %v5664 = vpack.c.b16 %v5154, %v5148
        %v5665 = vpack.c.b16 %v5161, %v5155
        %v5666 = vpack.c.b16 %v5162, %v5156
        %v5667 = vpack.c.b16 %v5163, %v5157
        %v5668 = vpack.c.b16 %v5164, %v5158
        %v5669 = vpack.c.b16 %v5165, %v5159
        %v5670 = vpack.c.b16 %v5166, %v5160
        %v5671 = vpack.c.b16 %v5173, %v5167
        %v5672 = vpack.c.b16 %v5174, %v5168
        %v5673 = vpack.c.b16 %v5175, %v5169
        %v5674 = vpack.c.b16 %v5176, %v5170
        %v5675 = vpack.c.b16 %v5177, %v5171
        %v5676 = vpack.c.b16 %v5178, %v5172
        %v5677 = vpack.c.b16 %v5185, %v5179
        %v5678 = vpack.c.b16 %v5186, %v5180
        %v5679 = vpack.c.b16 %v5187, %v5181
        %v5680 = vpack.c.b16 %v5188, %v5182
        %v5681 = vpack.c.b16 %v5189, %v5183
        %v5682 = vpack.c.b16 %v5190, %v5184
        %v5683 = vpack.c.b16 %v5197, %v5191
        %v5684 = vpack.c.b16 %v5198, %v5192
        %v5685 = vpack.c.b16 %v5199, %v5193
        %v5686 = vpack.c.b16 %v5200, %v5194
        %v5687 = vpack.c.b16 %v5201, %v5195
        %v5688 = vpack.c.b16 %v5202, %v5196
        %v5689 = vpack.c.b16 %v5209, %v5203
        %v5690 = vpack.c.b16 %v5210, %v5204
        %v5691 = vpack.c.b16 %v5211, %v5205
        %v5692 = vpack.c.b16 %v5212, %v5206
        %v5693 = vpack.c.b16 %v5213, %v5207
        %v5694 = vpack.c.b16 %v5214, %v5208
        %v5695 = vpack.c.b16 %v5221, %v5215
        %v5696 = vpack.c.b16 %v5222, %v5216
        %v5697 = vpack.c.b16 %v5223, %v5217
        %v5698 = vpack.c.b16 %v5224, %v5218
        %v5699 = vpack.c.b16 %v5225, %v5219
        %v5700 = vpack.c.b16 %v5226, %v5220
        %v5701 = vpack.c.b16 %v5233, %v5227
        %v5702 = vpack.c.b16 %v5234, %v5228
        %v5703 = vpack.c.b16 %v5235, %v5229
        %v5704 = vpack.c.b16 %v5236, %v5230
        %v5705 = vpack.c.b16 %v5237, %v5231
        %v5706 = vpack.c.b16 %v5238, %v5232
        %v5707 = vpack.c.b16 %v5245, %v5239
        %v5708 = vpack.c.b16 %v5246, %v5240
        %v5709 = vpack.c.b16 %v5247, %v5241
        %v5710 = vpack.c.b16 %v5248, %v5242
        %v5711 = vpack.c.b16 %v5249, %v5243
        %v5712 = vpack.c.b16 %v5250, %v5244
        %v5713 = vpack.c.b16 %v5257, %v5251
        %v5714 = vpack.c.b16 %v5258, %v5252
        %v5715 = vpack.c.b16 %v5259, %v5253
        %v5716 = vpack.c.b16 %v5260, %v5254
        %v5717 = vpack.c.b16 %v5261, %v5255
        %v5718 = vpack.c.b16 %v5262, %v5256
        %v5719 = vpack.c.b16 %v5269, %v5263
        %v5720 = vpack.c.b16 %v5270, %v5264
        %v5721 = vpack.c.b16 %v5271, %v5265
        %v5722 = vpack.c.b16 %v5272, %v5266
        %v5723 = vpack.c.b16 %v5273, %v5267
        %v5724 = vpack.c.b16 %v5274, %v5268
        %v5725 = vpack.c.b16 %v5281, %v5275
        %v5726 = vpack.c.b16 %v5282, %v5276
        %v5727 = vpack.c.b16 %v5283, %v5277
        %v5728 = vpack.c.b16 %v5284, %v5278
        %v5729 = vpack.c.b16 %v5285, %v5279
        %v5730 = vpack.c.b16 %v5286, %v5280
        %v5731 = vpack.c.b16 %v5293, %v5287
        %v5732 = vpack.c.b16 %v5294, %v5288
        %v5733 = vpack.c.b16 %v5295, %v5289
        %v5734 = vpack.c.b16 %v5296, %v5290
        %v5735 = vpack.c.b16 %v5297, %v5291
        %v5736 = vpack.c.b16 %v5298, %v5292
        %v5737 = vpack.c.b16 %v5305, %v5299
        %v5738 = vpack.c.b16 %v5306, %v5300
        %v5739 = vpack.c.b16 %v5307, %v5301
        %v5740 = vpack.c.b16 %v5308, %v5302
        %v5741 = vpack.c.b16 %v5309, %v5303
        %v5742 = vpack.c.b16 %v5310, %v5304
        %v5743 = vpack.c.b16 %v5317, %v5311
        %v5744 = vpack.c.b16 %v5318, %v5312
        %v5745 = vpack.c.b16 %v5319, %v5313
        %v5746 = vpack.c.b16 %v5320, %v5314
        %v5747 = vpack.c.b16 %v5321, %v5315
        %v5748 = vpack.c.b16 %v5322, %v5316
        %v5749 = vpack.c.b16 %v5329, %v5323
        %v5750 = vpack.c.b16 %v5330, %v5324
        %v5751 = vpack.c.b16 %v5331, %v5325
        %v5752 = vpack.c.b16 %v5332, %v5326
        %v5753 = vpack.c.b16 %v5333, %v5327
        %v5754 = vpack.c.b16 %v5334, %v5328
        %v5755 = vpack.c.b16 %v5341, %v5335
        %v5756 = vpack.c.b16 %v5342, %v5336
        %v5757 = vpack.c.b16 %v5343, %v5337
        %v5758 = vpack.c.b16 %v5344, %v5338
        %v5759 = vpack.c.b16 %v5345, %v5339
        %v5760 = vpack.c.b16 %v5346, %v5340
        %v5761 = vpack.c.b16 %v5353, %v5347
        %v5762 = vpack.c.b16 %v5354, %v5348
        %v5763 = vpack.c.b16 %v5355, %v5349
        %v5764 = vpack.c.b16 %v5356, %v5350
        %v5765 = vpack.c.b16 %v5357, %v5351
        %v5766 = vpack.c.b16 %v5358, %v5352
        %v5767 = vpack.c.b16 %v5365, %v5359
        %v5768 = vpack.c.b16 %v5366, %v5360
        %v5769 = vpack.c.b16 %v5367, %v5361
        %v5770 = vpack.c.b16 %v5368, %v5362
        %v5771 = vpack.c.b16 %v5369, %v5363
        %v5772 = vpack.c.b16 %v5370, %v5364
        %v5773 = vpack.c.b16 %v5377, %v5371
        %v5774 = vpack.c.b16 %v5378, %v5372
        %v5775 = vpack.c.b16 %v5379, %v5373
        %v5776 = vpack.c.b16 %v5380, %v5374
        %v5777 = vpack.c.b16 %v5381, %v5375
        %v5778 = vpack.c.b16 %v5382, %v5376
        %v5779 = vpack.c.b16 %v5389, %v5383
        %v5780 = vpack.c.b16 %v5390, %v5384
        %v5781 = vpack.c.b16 %v5391, %v5385
        %v5782 = vpack.c.b16 %v5392, %v5386
        %v5783 = vpack.c.b16 %v5393, %v5387
        %v5784 = vpack.c.b16 %v5394, %v5388
        %v5785 = vpack.c.b16 %v5401, %v5395
        %v5786 = vpack.c.b16 %v5402, %v5396
        %v5787 = vpack.c.b16 %v5403, %v5397
        %v5788 = vpack.c.b16 %v5404, %v5398
        %v5789 = vpack.c.b16 %v5405, %v5399
        %v5790 = vpack.c.b16 %v5406, %v5400
        %v5791 = vpack.c.b16 %v5413, %v5407
        %v5792 = vpack.c.b16 %v5414, %v5408
        %v5793 = vpack.c.b16 %v5415, %v5409
        %v5794 = vpack.c.b16 %v5416, %v5410
        %v5795 = vpack.c.b16 %v5417, %v5411
        %v5796 = vpack.c.b16 %v5418, %v5412
        %v5797 = vpack.c.b16 %v5425, %v5419
        %v5798 = vpack.c.b16 %v5426, %v5420
        %v5799 = vpack.c.b16 %v5427, %v5421
        %v5800 = vpack.c.b16 %v5428, %v5422
        %v5801 = vpack.c.b16 %v5429, %v5423
        %v5802 = vpack.c.b16 %v5430, %v5424
        %v5803 = vpack.c.b16 %v5437, %v5431
        %v5804 = vpack.c.b16 %v5438, %v5432
        %v5805 = vpack.c.b16 %v5439, %v5433
        %v5806 = vpack.c.b16 %v5440, %v5434
        %v5807 = vpack.c.b16 %v5441, %v5435
        %v5808 = vpack.c.b16 %v5442, %v5436
        %v5809 = vpack.c.b16 %v5449, %v5443
        %v5810 = vpack.c.b16 %v5450, %v5444
        %v5811 = vpack.c.b16 %v5451, %v5445
        %v5812 = vpack.c.b16 %v5452, %v5446
        %v5813 = vpack.c.b16 %v5453, %v5447
        %v5814 = vpack.c.b16 %v5454, %v5448
        %v5815 = vpack.c.b16 %v5461, %v5455
        %v5816 = vpack.c.b16 %v5462, %v5456
        %v5817 = vpack.c.b16 %v5463, %v5457
        %v5818 = vpack.c.b16 %v5464, %v5458
        %v5819 = vpack.c.b16 %v5465, %v5459
        %v5820 = vpack.c.b16 %v5466, %v5460
        %v5821 = vpack.c.b16 %v5473, %v5467
        %v5822 = vpack.c.b16 %v5474, %v5468
        %v5823 = vpack.c.b16 %v5475, %v5469
        %v5824 = vpack.c.b16 %v5476, %v5470
        %v5825 = vpack.c.b16 %v5477, %v5471
        %v5826 = vpack.c.b16 %v5478, %v5472
        %v5827 = vpack.c.b16 %v5485, %v5479
        %v5828 = vpack.c.b16 %v5486, %v5480
        %v5829 = vpack.c.b16 %v5487, %v5481
        %v5830 = vpack.c.b16 %v5488, %v5482
        %v5831 = vpack.c.b16 %v5489, %v5483
        %v5832 = vpack.c.b16 %v5490, %v5484
        %v5833 = vpack.c.b16 %v5497, %v5491
        %v5834 = vpack.c.b16 %v5498, %v5492
        %v5835 = vpack.c.b16 %v5499, %v5493
        %v5836 = vpack.c.b16 %v5500, %v5494
        %v5837 = vpack.c.b16 %v5501, %v5495
        %v5838 = vpack.c.b16 %v5502, %v5496
        %v5839 = vpack.c.b16 %v5509, %v5503
        %v5840 = vpack.c.b16 %v5510, %v5504
        %v5841 = vpack.c.b16 %v5511, %v5505
        %v5842 = vpack.c.b16 %v5512, %v5506
        %v5843 = vpack.c.b16 %v5513, %v5507
        %v5844 = vpack.c.b16 %v5514, %v5508
        %v5845 = vpack.c.b16 %v5521, %v5515
        %v5846 = vpack.c.b16 %v5522, %v5516
        %v5847 = vpack.c.b16 %v5523, %v5517
        %v5848 = vpack.c.b16 %v5524, %v5518
        %v5849 = vpack.c.b16 %v5525, %v5519
        %v5850 = vpack.c.b16 %v5526, %v5520
        %v5851 = vpack.c.b16 %v5533, %v5527
        %v5852 = vpack.c.b16 %v5534, %v5528
        %v5853 = vpack.c.b16 %v5535, %v5529
        %v5854 = vpack.c.b16 %v5536, %v5530
        %v5855 = vpack.c.b16 %v5537, %v5531
        %v5856 = vpack.c.b16 %v5538, %v5532
        %v5857 = vpack.c.b16 %v5545, %v5539
        %v5858 = vpack.c.b16 %v5546, %v5540
        %v5859 = vpack.c.b16 %v5547, %v5541
        %v5860 = vpack.c.b16 %v5548, %v5542
        %v5861 = vpack.c.b16 %v5549, %v5543
        %v5862 = vpack.c.b16 %v5550, %v5544
        %v5863 = vpack.c.b16 %v5557, %v5551
        %v5864 = vpack.c.b16 %v5558, %v5552
        %v5865 = vpack.c.b16 %v5559, %v5553
        %v5866 = vpack.c.b16 %v5560, %v5554
        %v5867 = vpack.c.b16 %v5561, %v5555
        %v5868 = vpack.c.b16 %v5562, %v5556
        %v5869 = vpack.c.b16 %v5569, %v5563
        %v5870 = vpack.c.b16 %v5570, %v5564
        %v5871 = vpack.c.b16 %v5571, %v5565
        %v5872 = vpack.c.b16 %v5572, %v5566
        %v5873 = vpack.c.b16 %v5573, %v5567
        %v5874 = vpack.c.b16 %v5574, %v5568
        %v5875 = vpack.c.b16 %v5581, %v5575
        %v5876 = vpack.c.b16 %v5582, %v5576
        %v5877 = vpack.c.b16 %v5583, %v5577
        %v5878 = vpack.c.b16 %v5584, %v5578
        %v5879 = vpack.c.b16 %v5585, %v5579
        %v5880 = vpack.c.b16 %v5586, %v5580
        %v5881 = vpack.c.b16 %v5593, %v5587
        %v5882 = vpack.c.b16 %v5594, %v5588
        %v5883 = vpack.c.b16 %v5595, %v5589
        %v5884 = vpack.c.b16 %v5596, %v5590
        %v5885 = vpack.c.b16 %v5597, %v5591
        %v5886 = vpack.c.b16 %v5598, %v5592
        %v6176 = vlaneseq
        %v6177 = vshrl.u32 %v6176, 7
        %v6178 = vsub.s32 0, %v6177
        %v6179 = vrot.slane %v4734, %v6178
        %v6180 = vlaneseq
        %v6181 = vshrl.u32 %v6180, 7
        %v6182 = vsub.s32 1, %v6181
        %v6183 = vrot.slane %v4734, %v6182
        %v6184 = vlaneseq
        %v6185 = vshrl.u32 %v6184, 7
        %v6186 = vsub.s32 2, %v6185
        %v6187 = vrot.slane %v4734, %v6186
        %v6188 = vlaneseq
        %v6189 = vshrl.u32 %v6188, 7
        %v6190 = vsub.s32 3, %v6189
        %v6191 = vrot.slane %v4734, %v6190
        %v6192 = vlaneseq
        %v6193 = vshrl.u32 %v6192, 7
        %v6194 = vsub.s32 4, %v6193
        %v6195 = vrot.slane %v4734, %v6194
        %v6196 = vlaneseq
        %v6197 = vshrl.u32 %v6196, 7
        %v6198 = vsub.s32 5, %v6197
        %v6199 = vrot.slane %v4734, %v6198
        %6206 = vmatprep.subr.bf16.mxu0 %v5600
        %6207 = vmatpush1.bf16.msra.mxu0 %v5599
        %6208 = vmatprep.subr.bf16.mxu0 %v5606
        %6209 = vmatpush1.bf16.msra.mxu0 %v5605
        %6210 = vmatprep.subr.bf16.mxu0 %v5612
        %6211 = vmatpush1.bf16.msra.mxu0 %v5611
        %6212 = vmatprep.subr.bf16.mxu0 %v5618
        %6213 = vmatpush1.bf16.msra.mxu0 %v5617
        %6214 = vmatprep.subr.bf16.mxu0 %v5624
        %6215 = vmatpush1.bf16.msra.mxu0 %v5623
        %6216 = vmatprep.subr.bf16.mxu0 %v5630
        %6217 = vmatpush1.bf16.msra.mxu0 %v5629
        %6218 = vmatprep.subr.bf16.mxu0 %v5636
        %6219 = vmatpush1.bf16.msra.mxu0 %v5635
        %6220 = vmatprep.subr.bf16.mxu0 %v5642
        %6221 = vmatpush1.bf16.msra.mxu0 %v5641
        %6222 = vmatprep.subr.bf16.mxu0 %v5648
        %6223 = vmatpush1.bf16.msra.mxu0 %v5647
        %6224 = vmatprep.subr.bf16.mxu0 %v5654
        %6225 = vmatpush1.bf16.msra.mxu0 %v5653
        %6226 = vmatprep.subr.bf16.mxu0 %v5660
        %6227 = vmatpush1.bf16.msra.mxu0 %v5659
        %6228 = vmatprep.subr.bf16.mxu0 %v5666
        %6229 = vmatpush1.bf16.msra.mxu0 %v5665
        %6230 = vmatprep.subr.bf16.mxu0 %v5672
        %6231 = vmatpush1.bf16.msra.mxu0 %v5671
        %6232 = vmatprep.subr.bf16.mxu0 %v5678
        %6233 = vmatpush1.bf16.msra.mxu0 %v5677
        %6234 = vmatprep.subr.bf16.mxu0 %v5684
        %6235 = vmatpush1.bf16.msra.mxu0 %v5683
        %6236 = vmatprep.subr.bf16.mxu0 %v5690
        %6237 = vmatpush1.bf16.msra.mxu0 %v5689
        %6238 = vmatprep.mubr.bf16.mxu0 %v4441
        %6239 = vmatmul.mubr.bf16.gmra.mrb[0].mxu0 %v4440
        %v6240 = vpop.f32.mrb[0].mxu0
        %v6241 = vadd.f32 %v6179, %v6240
        %v6242 = vpop.f32.mrb[0].mxu0
        %v6243 = vadd.f32 %v6183, %v6242
        %v6244 = vpop.f32.mrb[0].mxu0
        %v6245 = vpop.f32.mrb[0].mxu0
        %6246 = vdwg.mxu0
        %6247 = vmatprep.subr.bf16.mxu0 %v5696
        %6248 = vmatpush1.bf16.msra.mxu0 %v5695
        %6249 = vmatprep.subr.bf16.mxu0 %v5702
        %6250 = vmatpush1.bf16.msra.mxu0 %v5701
        %6251 = vmatprep.subr.bf16.mxu0 %v5708
        %6252 = vmatpush1.bf16.msra.mxu0 %v5707
        %6253 = vmatprep.subr.bf16.mxu0 %v5714
        %6254 = vmatpush1.bf16.msra.mxu0 %v5713
        %6255 = vmatprep.subr.bf16.mxu0 %v5720
        %6256 = vmatpush1.bf16.msra.mxu0 %v5719
        %6257 = vmatprep.subr.bf16.mxu0 %v5726
        %6258 = vmatpush1.bf16.msra.mxu0 %v5725
        %6259 = vmatprep.subr.bf16.mxu0 %v5732
        %6260 = vmatpush1.bf16.msra.mxu0 %v5731
        %6261 = vmatprep.subr.bf16.mxu0 %v5738
        %6262 = vmatpush1.bf16.msra.mxu0 %v5737
        %6263 = vmatprep.subr.bf16.mxu0 %v5744
        %6264 = vmatpush1.bf16.msra.mxu0 %v5743
        %6265 = vmatprep.subr.bf16.mxu0 %v5750
        %6266 = vmatpush1.bf16.msra.mxu0 %v5749
        %6267 = vmatprep.subr.bf16.mxu0 %v5756
        %6268 = vmatpush1.bf16.msra.mxu0 %v5755
        %6269 = vmatprep.subr.bf16.mxu0 %v5762
        %6270 = vmatpush1.bf16.msra.mxu0 %v5761
        %6271 = vmatprep.subr.bf16.mxu0 %v5768
        %6272 = vmatpush1.bf16.msra.mxu0 %v5767
        %6273 = vmatprep.subr.bf16.mxu0 %v5774
        %6274 = vmatpush1.bf16.msra.mxu0 %v5773
        %6275 = vmatprep.subr.bf16.mxu0 %v5780
        %6276 = vmatpush1.bf16.msra.mxu0 %v5779
        %6277 = vmatprep.subr.bf16.mxu0 %v5786
        %6278 = vmatpush1.bf16.msra.mxu0 %v5785
        %6279 = vmatprep.mubr.bf16.mxu0 %v4443
        %6280 = vmatmul.mubr.bf16.gmra.mrb[0].mxu0 %v4442
        %v6281 = vpop.f32.mrb[0].mxu0
        %v6282 = vadd.f32 %v6241, %v6281
        %v6283 = vpop.f32.mrb[0].mxu0
        %v6284 = vadd.f32 %v6243, %v6283
        %v6285 = vpop.f32.mrb[0].mxu0
        %v6286 = vpop.f32.mrb[0].mxu0
        %6287 = vdwg.mxu0
        %6288 = vmatprep.subr.bf16.mxu0 %v5792
        %6289 = vmatpush1.bf16.msra.mxu0 %v5791
        %6290 = vmatprep.subr.bf16.mxu0 %v5798
        %6291 = vmatpush1.bf16.msra.mxu0 %v5797
        %6292 = vmatprep.subr.bf16.mxu0 %v5804
        %6293 = vmatpush1.bf16.msra.mxu0 %v5803
        %6294 = vmatprep.subr.bf16.mxu0 %v5810
        %6295 = vmatpush1.bf16.msra.mxu0 %v5809
        %6296 = vmatprep.subr.bf16.mxu0 %v5816
        %6297 = vmatpush1.bf16.msra.mxu0 %v5815
        %6298 = vmatprep.subr.bf16.mxu0 %v5822
        %6299 = vmatpush1.bf16.msra.mxu0 %v5821
        %6300 = vmatprep.subr.bf16.mxu0 %v5828
        %6301 = vmatpush1.bf16.msra.mxu0 %v5827
        %6302 = vmatprep.subr.bf16.mxu0 %v5834
        %6303 = vmatpush1.bf16.msra.mxu0 %v5833
        %6304 = vmatprep.subr.bf16.mxu0 %v5840
        %6305 = vmatpush1.bf16.msra.mxu0 %v5839
        %6306 = vmatprep.subr.bf16.mxu0 %v5846
        %6307 = vmatpush1.bf16.msra.mxu0 %v5845
        %6308 = vmatprep.subr.bf16.mxu0 %v5852
        %6309 = vmatpush1.bf16.msra.mxu0 %v5851
        %6310 = vmatprep.subr.bf16.mxu0 %v5858
        %6311 = vmatpush1.bf16.msra.mxu0 %v5857
        %6312 = vmatprep.subr.bf16.mxu0 %v5864
        %6313 = vmatpush1.bf16.msra.mxu0 %v5863
        %6314 = vmatprep.subr.bf16.mxu0 %v5870
        %6315 = vmatpush1.bf16.msra.mxu0 %v5869
        %6316 = vmatprep.subr.bf16.mxu0 %v5876
        %6317 = vmatpush1.bf16.msra.mxu0 %v5875
        %6318 = vmatprep.subr.bf16.mxu0 %v5882
        %6319 = vmatpush1.bf16.msra.mxu0 %v5881
        %6320 = vmatprep.mubr.bf16.mxu0 %v4445
        %6321 = vmatmul.mubr.bf16.gmra.mrb[0].mxu0 %v4444
        %v6322 = vpop.f32.mrb[0].mxu0
        %v6323 = vadd.f32 %v6282, %v6322
        %v6324 = vpop.f32.mrb[0].mxu0
        %v6325 = vadd.f32 %v6284, %v6324
        %v6326 = vpop.f32.mrb[0].mxu0
        %v6327 = vpop.f32.mrb[0].mxu0
        %6328 = vdwg.mxu0
        %6329 = vmatprep.subr.bf16.mxu0 %v5602
        %6330 = vmatpush1.bf16.msra.mxu0 %v5601
        %6331 = vmatprep.subr.bf16.mxu0 %v5608
        %6332 = vmatpush1.bf16.msra.mxu0 %v5607
        %6333 = vmatprep.subr.bf16.mxu0 %v5614
        %6334 = vmatpush1.bf16.msra.mxu0 %v5613
        %6335 = vmatprep.subr.bf16.mxu0 %v5620
        %6336 = vmatpush1.bf16.msra.mxu0 %v5619
        %6337 = vmatprep.subr.bf16.mxu0 %v5626
        %6338 = vmatpush1.bf16.msra.mxu0 %v5625
        %6339 = vmatprep.subr.bf16.mxu0 %v5632
        %6340 = vmatpush1.bf16.msra.mxu0 %v5631
        %6341 = vmatprep.subr.bf16.mxu0 %v5638
        %6342 = vmatpush1.bf16.msra.mxu0 %v5637
        %6343 = vmatprep.subr.bf16.mxu0 %v5644
        %6344 = vmatpush1.bf16.msra.mxu0 %v5643
        %6345 = vmatprep.subr.bf16.mxu0 %v5650
        %6346 = vmatpush1.bf16.msra.mxu0 %v5649
        %6347 = vmatprep.subr.bf16.mxu0 %v5656
        %6348 = vmatpush1.bf16.msra.mxu0 %v5655
        %6349 = vmatprep.subr.bf16.mxu0 %v5662
        %6350 = vmatpush1.bf16.msra.mxu0 %v5661
        %6351 = vmatprep.subr.bf16.mxu0 %v5668
        %6352 = vmatpush1.bf16.msra.mxu0 %v5667
        %6353 = vmatprep.subr.bf16.mxu0 %v5674
        %6354 = vmatpush1.bf16.msra.mxu0 %v5673
        %6355 = vmatprep.subr.bf16.mxu0 %v5680
        %6356 = vmatpush1.bf16.msra.mxu0 %v5679
        %6357 = vmatprep.subr.bf16.mxu0 %v5686
        %6358 = vmatpush1.bf16.msra.mxu0 %v5685
        %6359 = vmatprep.subr.bf16.mxu0 %v5692
        %6360 = vmatpush1.bf16.msra.mxu0 %v5691
        %6361 = vmatprep.mubr.bf16.mxu0 %v4441
        %6362 = vmatmul.mubr.bf16.gmra.mrb[0].mxu0 %v4440
        %v6363 = vpop.f32.mrb[0].mxu0
        %v6364 = vadd.f32 %v6187, %v6363
        %v6365 = vpop.f32.mrb[0].mxu0
        %v6366 = vadd.f32 %v6191, %v6365
        %v6367 = vpop.f32.mrb[0].mxu0
        %v6368 = vpop.f32.mrb[0].mxu0
        %6369 = vdwg.mxu0
        %6370 = vmatprep.subr.bf16.mxu0 %v5698
        %6371 = vmatpush1.bf16.msra.mxu0 %v5697
        %6372 = vmatprep.subr.bf16.mxu0 %v5704
        %6373 = vmatpush1.bf16.msra.mxu0 %v5703
        %6374 = vmatprep.subr.bf16.mxu0 %v5710
        %6375 = vmatpush1.bf16.msra.mxu0 %v5709
        %6376 = vmatprep.subr.bf16.mxu0 %v5716
        %6377 = vmatpush1.bf16.msra.mxu0 %v5715
        %6378 = vmatprep.subr.bf16.mxu0 %v5722
        %6379 = vmatpush1.bf16.msra.mxu0 %v5721
        %6380 = vmatprep.subr.bf16.mxu0 %v5728
        %6381 = vmatpush1.bf16.msra.mxu0 %v5727
        %6382 = vmatprep.subr.bf16.mxu0 %v5734
        %6383 = vmatpush1.bf16.msra.mxu0 %v5733
        %6384 = vmatprep.subr.bf16.mxu0 %v5740
        %6385 = vmatpush1.bf16.msra.mxu0 %v5739
        %6386 = vmatprep.subr.bf16.mxu0 %v5746
        %6387 = vmatpush1.bf16.msra.mxu0 %v5745
        %6388 = vmatprep.subr.bf16.mxu0 %v5752
        %6389 = vmatpush1.bf16.msra.mxu0 %v5751
        %6390 = vmatprep.subr.bf16.mxu0 %v5758
        %6391 = vmatpush1.bf16.msra.mxu0 %v5757
        %6392 = vmatprep.subr.bf16.mxu0 %v5764
        %6393 = vmatpush1.bf16.msra.mxu0 %v5763
        %6394 = vmatprep.subr.bf16.mxu0 %v5770
        %6395 = vmatpush1.bf16.msra.mxu0 %v5769
        %6396 = vmatprep.subr.bf16.mxu0 %v5776
        %6397 = vmatpush1.bf16.msra.mxu0 %v5775
        %6398 = vmatprep.subr.bf16.mxu0 %v5782
        %6399 = vmatpush1.bf16.msra.mxu0 %v5781
        %6400 = vmatprep.subr.bf16.mxu0 %v5788
        %6401 = vmatpush1.bf16.msra.mxu0 %v5787
        %6402 = vmatprep.mubr.bf16.mxu0 %v4443
        %6403 = vmatmul.mubr.bf16.gmra.mrb[0].mxu0 %v4442
        %v6404 = vpop.f32.mrb[0].mxu0
        %v6405 = vadd.f32 %v6364, %v6404
        %v6406 = vpop.f32.mrb[0].mxu0
        %v6407 = vadd.f32 %v6366, %v6406
        %v6408 = vpop.f32.mrb[0].mxu0
        %v6409 = vpop.f32.mrb[0].mxu0
        %6410 = vdwg.mxu0
        %6411 = vmatprep.subr.bf16.mxu0 %v5794
        %6412 = vmatpush1.bf16.msra.mxu0 %v5793
        %6413 = vmatprep.subr.bf16.mxu0 %v5800
        %6414 = vmatpush1.bf16.msra.mxu0 %v5799
        %6415 = vmatprep.subr.bf16.mxu0 %v5806
        %6416 = vmatpush1.bf16.msra.mxu0 %v5805
        %6417 = vmatprep.subr.bf16.mxu0 %v5812
        %6418 = vmatpush1.bf16.msra.mxu0 %v5811
        %6419 = vmatprep.subr.bf16.mxu0 %v5818
        %6420 = vmatpush1.bf16.msra.mxu0 %v5817
        %6421 = vmatprep.subr.bf16.mxu0 %v5824
        %6422 = vmatpush1.bf16.msra.mxu0 %v5823
        %6423 = vmatprep.subr.bf16.mxu0 %v5830
        %6424 = vmatpush1.bf16.msra.mxu0 %v5829
        %6425 = vmatprep.subr.bf16.mxu0 %v5836
        %6426 = vmatpush1.bf16.msra.mxu0 %v5835
        %6427 = vmatprep.subr.bf16.mxu0 %v5842
        %6428 = vmatpush1.bf16.msra.mxu0 %v5841
        %6429 = vmatprep.subr.bf16.mxu0 %v5848
        %6430 = vmatpush1.bf16.msra.mxu0 %v5847
        %6431 = vmatprep.subr.bf16.mxu0 %v5854
        %6432 = vmatpush1.bf16.msra.mxu0 %v5853
        %6433 = vmatprep.subr.bf16.mxu0 %v5860
        %6434 = vmatpush1.bf16.msra.mxu0 %v5859
        %6435 = vmatprep.subr.bf16.mxu0 %v5866
        %6436 = vmatpush1.bf16.msra.mxu0 %v5865
        %6437 = vmatprep.subr.bf16.mxu0 %v5872
        %6438 = vmatpush1.bf16.msra.mxu0 %v5871
        %6439 = vmatprep.subr.bf16.mxu0 %v5878
        %6440 = vmatpush1.bf16.msra.mxu0 %v5877
        %6441 = vmatprep.subr.bf16.mxu0 %v5884
        %6442 = vmatpush1.bf16.msra.mxu0 %v5883
        %6443 = vmatprep.mubr.bf16.mxu0 %v4445
        %6444 = vmatmul.mubr.bf16.gmra.mrb[0].mxu0 %v4444
        %v6445 = vpop.f32.mrb[0].mxu0
        %v6446 = vadd.f32 %v6405, %v6445
        %v6447 = vpop.f32.mrb[0].mxu0
        %v6448 = vadd.f32 %v6407, %v6447
        %v6449 = vpop.f32.mrb[0].mxu0
        %v6450 = vpop.f32.mrb[0].mxu0
        %6451 = vdwg.mxu0
        %6452 = vmatprep.subr.bf16.mxu0 %v5604
        %6453 = vmatpush1.bf16.msra.mxu0 %v5603
        %6454 = vmatprep.subr.bf16.mxu0 %v5610
        %6455 = vmatpush1.bf16.msra.mxu0 %v5609
        %6456 = vmatprep.subr.bf16.mxu0 %v5616
        %6457 = vmatpush1.bf16.msra.mxu0 %v5615
        %6458 = vmatprep.subr.bf16.mxu0 %v5622
        %6459 = vmatpush1.bf16.msra.mxu0 %v5621
        %6460 = vmatprep.subr.bf16.mxu0 %v5628
        %6461 = vmatpush1.bf16.msra.mxu0 %v5627
        %6462 = vmatprep.subr.bf16.mxu0 %v5634
        %6463 = vmatpush1.bf16.msra.mxu0 %v5633
        %6464 = vmatprep.subr.bf16.mxu0 %v5640
        %6465 = vmatpush1.bf16.msra.mxu0 %v5639
        %6466 = vmatprep.subr.bf16.mxu0 %v5646
        %6467 = vmatpush1.bf16.msra.mxu0 %v5645
        %6468 = vmatprep.subr.bf16.mxu0 %v5652
        %6469 = vmatpush1.bf16.msra.mxu0 %v5651
        %6470 = vmatprep.subr.bf16.mxu0 %v5658
        %6471 = vmatpush1.bf16.msra.mxu0 %v5657
        %6472 = vmatprep.subr.bf16.mxu0 %v5664
        %6473 = vmatpush1.bf16.msra.mxu0 %v5663
        %6474 = vmatprep.subr.bf16.mxu0 %v5670
        %6475 = vmatpush1.bf16.msra.mxu0 %v5669
        %6476 = vmatprep.subr.bf16.mxu0 %v5676
        %6477 = vmatpush1.bf16.msra.mxu0 %v5675
        %6478 = vmatprep.subr.bf16.mxu0 %v5682
        %6479 = vmatpush1.bf16.msra.mxu0 %v5681
        %6480 = vmatprep.subr.bf16.mxu0 %v5688
        %6481 = vmatpush1.bf16.msra.mxu0 %v5687
        %6482 = vmatprep.subr.bf16.mxu0 %v5694
        %6483 = vmatpush1.bf16.msra.mxu0 %v5693
        %6484 = vmatprep.mubr.bf16.mxu0 %v4441
        %6485 = vmatmul.mubr.bf16.gmra.mrb[0].mxu0 %v4440
        %v6486 = vpop.f32.mrb[0].mxu0
        %v6487 = vadd.f32 %v6195, %v6486
        %v6488 = vpop.f32.mrb[0].mxu0
        %v6489 = vadd.f32 %v6199, %v6488
        %v6490 = vpop.f32.mrb[0].mxu0
        %v6491 = vpop.f32.mrb[0].mxu0
        %6492 = vdwg.mxu0
        %6493 = vmatprep.subr.bf16.mxu0 %v5700
        %6494 = vmatpush1.bf16.msra.mxu0 %v5699
        %6495 = vmatprep.subr.bf16.mxu0 %v5706
        %6496 = vmatpush1.bf16.msra.mxu0 %v5705
        %6497 = vmatprep.subr.bf16.mxu0 %v5712
        %6498 = vmatpush1.bf16.msra.mxu0 %v5711
        %6499 = vmatprep.subr.bf16.mxu0 %v5718
        %6500 = vmatpush1.bf16.msra.mxu0 %v5717
        %6501 = vmatprep.subr.bf16.mxu0 %v5724
        %6502 = vmatpush1.bf16.msra.mxu0 %v5723
        %6503 = vmatprep.subr.bf16.mxu0 %v5730
        %6504 = vmatpush1.bf16.msra.mxu0 %v5729
        %6505 = vmatprep.subr.bf16.mxu0 %v5736
        %6506 = vmatpush1.bf16.msra.mxu0 %v5735
        %6507 = vmatprep.subr.bf16.mxu0 %v5742
        %6508 = vmatpush1.bf16.msra.mxu0 %v5741
        %6509 = vmatprep.subr.bf16.mxu0 %v5748
        %6510 = vmatpush1.bf16.msra.mxu0 %v5747
        %6511 = vmatprep.subr.bf16.mxu0 %v5754
        %6512 = vmatpush1.bf16.msra.mxu0 %v5753
        %6513 = vmatprep.subr.bf16.mxu0 %v5760
        %6514 = vmatpush1.bf16.msra.mxu0 %v5759
        %6515 = vmatprep.subr.bf16.mxu0 %v5766
        %6516 = vmatpush1.bf16.msra.mxu0 %v5765
        %6517 = vmatprep.subr.bf16.mxu0 %v5772
        %6518 = vmatpush1.bf16.msra.mxu0 %v5771
        %6519 = vmatprep.subr.bf16.mxu0 %v5778
        %6520 = vmatpush1.bf16.msra.mxu0 %v5777
        %6521 = vmatprep.subr.bf16.mxu0 %v5784
        %6522 = vmatpush1.bf16.msra.mxu0 %v5783
        %6523 = vmatprep.subr.bf16.mxu0 %v5790
        %6524 = vmatpush1.bf16.msra.mxu0 %v5789
        %6525 = vmatprep.mubr.bf16.mxu0 %v4443
        %6526 = vmatmul.mubr.bf16.gmra.mrb[0].mxu0 %v4442
        %v6527 = vpop.f32.mrb[0].mxu0
        %v6528 = vadd.f32 %v6487, %v6527
        %v6529 = vpop.f32.mrb[0].mxu0
        %v6530 = vadd.f32 %v6489, %v6529
        %v6531 = vpop.f32.mrb[0].mxu0
        %v6532 = vpop.f32.mrb[0].mxu0
        %6533 = vdwg.mxu0
        %6534 = vmatprep.subr.bf16.mxu0 %v5796
        %6535 = vmatpush1.bf16.msra.mxu0 %v5795
        %6536 = vmatprep.subr.bf16.mxu0 %v5802
        %6537 = vmatpush1.bf16.msra.mxu0 %v5801
        %6538 = vmatprep.subr.bf16.mxu0 %v5808
        %6539 = vmatpush1.bf16.msra.mxu0 %v5807
        %6540 = vmatprep.subr.bf16.mxu0 %v5814
        %6541 = vmatpush1.bf16.msra.mxu0 %v5813
        %6542 = vmatprep.subr.bf16.mxu0 %v5820
        %6543 = vmatpush1.bf16.msra.mxu0 %v5819
        %6544 = vmatprep.subr.bf16.mxu0 %v5826
        %6545 = vmatpush1.bf16.msra.mxu0 %v5825
        %6546 = vmatprep.subr.bf16.mxu0 %v5832
        %6547 = vmatpush1.bf16.msra.mxu0 %v5831
        %6548 = vmatprep.subr.bf16.mxu0 %v5838
        %6549 = vmatpush1.bf16.msra.mxu0 %v5837
        %6550 = vmatprep.subr.bf16.mxu0 %v5844
        %6551 = vmatpush1.bf16.msra.mxu0 %v5843
        %6552 = vmatprep.subr.bf16.mxu0 %v5850
        %6553 = vmatpush1.bf16.msra.mxu0 %v5849
        %6554 = vmatprep.subr.bf16.mxu0 %v5856
        %6555 = vmatpush1.bf16.msra.mxu0 %v5855
        %6556 = vmatprep.subr.bf16.mxu0 %v5862
        %6557 = vmatpush1.bf16.msra.mxu0 %v5861
        %6558 = vmatprep.subr.bf16.mxu0 %v5868
        %6559 = vmatpush1.bf16.msra.mxu0 %v5867
        %6560 = vmatprep.subr.bf16.mxu0 %v5874
        %6561 = vmatpush1.bf16.msra.mxu0 %v5873
        %6562 = vmatprep.subr.bf16.mxu0 %v5880
        %6563 = vmatpush1.bf16.msra.mxu0 %v5879
        %6564 = vmatprep.subr.bf16.mxu0 %v5886
        %6565 = vmatpush1.bf16.msra.mxu0 %v5885
        %6566 = vmatprep.mubr.bf16.mxu0 %v4445
        %6567 = vmatmul.mubr.bf16.gmra.mrb[0].mxu0 %v4444
        %v6568 = vpop.f32.mrb[0].mxu0
        %v6569 = vadd.f32 %v6528, %v6568
        %v6570 = vpop.f32.mrb[0].mxu0
        %v6571 = vadd.f32 %v6530, %v6570
        %v6572 = vpop.f32.mrb[0].mxu0
        %v6573 = vpop.f32.mrb[0].mxu0
        %6574 = vdwg.mxu0
        %v6575 = vld [vmem:[#allocation32] sm:$0xff]
        %v6576 = vld [vmem:[#allocation32 + $0x8] sm:$0xff]
        %v6577 = vld [vmem:[#allocation32 + $0x10] sm:$0xff]
        %v6578 = vld [vmem:[#allocation32 + $0x18] sm:$0xff]
        %v6579 = vld [vmem:[#allocation32 + $0x20] sm:$0xff]
        %v6580 = vld [vmem:[#allocation32 + $0x28] sm:$0xff]
        %v6581 = vld [vmem:[#allocation32 + $0x30] sm:$0xff]
        %v6582 = vld [vmem:[#allocation32 + $0x38] sm:$0xff]
        %v6583 = vld [vmem:[#allocation32 + $0x40] sm:$0xff]
        %v6584 = vld [vmem:[#allocation32 + $0x48] sm:$0xff]
        %v6585 = vld [vmem:[#allocation32 + $0x50] sm:$0xff]
        %v6586 = vld [vmem:[#allocation32 + $0x58] sm:$0xff]
        %v6587 = vld [vmem:[#allocation32 + $0x60] sm:$0xff]
        %v6588 = vld [vmem:[#allocation32 + $0x68] sm:$0xff]
        %v6589 = vld [vmem:[#allocation32 + $0x70] sm:$0xff]
        %v6590 = vld [vmem:[#allocation32 + $0x78] sm:$0xff]
        %v6591 = vld [vmem:[#allocation32 + $0x80] sm:$0xff]
        %v6592 = vld [vmem:[#allocation32 + $0x88] sm:$0xff]
        %v6593 = vld [vmem:[#allocation32 + $0x90] sm:$0xff]
        %v6594 = vld [vmem:[#allocation32 + $0x98] sm:$0xff]
        %v6595 = vld [vmem:[#allocation32 + $0xa0] sm:$0xff]
        %v6596 = vld [vmem:[#allocation32 + $0xa8] sm:$0xff]
        %v6597 = vld [vmem:[#allocation32 + $0xb0] sm:$0xff]
        %v6598 = vld [vmem:[#allocation32 + $0xb8] sm:$0xff]
        %v6599 = vld [vmem:[#allocation32 + $0xc0] sm:$0xff]
        %v6600 = vld [vmem:[#allocation32 + $0xc8] sm:$0xff]
        %v6601 = vld [vmem:[#allocation32 + $0xd0] sm:$0xff]
        %v6602 = vld [vmem:[#allocation32 + $0xd8] sm:$0xff]
        %v6603 = vld [vmem:[#allocation32 + $0xe0] sm:$0xff]
        %v6604 = vld [vmem:[#allocation32 + $0xe8] sm:$0xff]
        %v6605 = vld [vmem:[#allocation32 + $0xf0] sm:$0xff]
        %v6606 = vld [vmem:[#allocation32 + $0xf8] sm:$0xff]
        %v6607 = vld [vmem:[#allocation32 + $0x100] sm:$0xff]
        %v6608 = vld [vmem:[#allocation32 + $0x108] sm:$0xff]
        %v6609 = vld [vmem:[#allocation32 + $0x110] sm:$0xff]
        %v6610 = vld [vmem:[#allocation32 + $0x118] sm:$0xff]
        %v6611 = vld [vmem:[#allocation32 + $0x120] sm:$0xff]
        %v6612 = vld [vmem:[#allocation32 + $0x128] sm:$0xff]
        %v6613 = vld [vmem:[#allocation32 + $0x130] sm:$0xff]
        %v6614 = vld [vmem:[#allocation32 + $0x138] sm:$0xff]
        %v6615 = vld [vmem:[#allocation32 + $0x140] sm:$0xff]
        %v6616 = vld [vmem:[#allocation32 + $0x148] sm:$0xff]
        %v6617 = vld [vmem:[#allocation32 + $0x150] sm:$0xff]
        %v6618 = vld [vmem:[#allocation32 + $0x158] sm:$0xff]
        %v6619 = vld [vmem:[#allocation32 + $0x160] sm:$0xff]
        %v6620 = vld [vmem:[#allocation32 + $0x168] sm:$0xff]
        %v6621 = vld [vmem:[#allocation32 + $0x170] sm:$0xff]
        %v6622 = vld [vmem:[#allocation32 + $0x178] sm:$0xff]
        %v6623 = vld [vmem:[#allocation32 + $0x180] sm:$0xff]
        %v6624 = vld [vmem:[#allocation32 + $0x188] sm:$0xff]
        %v6625 = vld [vmem:[#allocation32 + $0x190] sm:$0xff]
        %v6626 = vld [vmem:[#allocation32 + $0x198] sm:$0xff]
        %v6627 = vld [vmem:[#allocation32 + $0x1a0] sm:$0xff]
        %v6628 = vld [vmem:[#allocation32 + $0x1a8] sm:$0xff]
        %v6629 = vld [vmem:[#allocation32 + $0x1b0] sm:$0xff]
        %v6630 = vld [vmem:[#allocation32 + $0x1b8] sm:$0xff]
        %v6631 = vld [vmem:[#allocation32 + $0x1c0] sm:$0xff]
        %v6632 = vld [vmem:[#allocation32 + $0x1c8] sm:$0xff]
        %v6633 = vld [vmem:[#allocation32 + $0x1d0] sm:$0xff]
        %v6634 = vld [vmem:[#allocation32 + $0x1d8] sm:$0xff]
        %v6635 = vld [vmem:[#allocation32 + $0x1e0] sm:$0xff]
        %v6636 = vld [vmem:[#allocation32 + $0x1e8] sm:$0xff]
        %v6637 = vld [vmem:[#allocation32 + $0x1f0] sm:$0xff]
        %v6638 = vld [vmem:[#allocation32 + $0x1f8] sm:$0xff]
        %v6639 = vld [vmem:[#allocation32 + $0x200] sm:$0xff]
        %v6640 = vld [vmem:[#allocation32 + $0x208] sm:$0xff]
        %v6641 = vld [vmem:[#allocation32 + $0x210] sm:$0xff]
        %v6642 = vld [vmem:[#allocation32 + $0x218] sm:$0xff]
        %v6643 = vld [vmem:[#allocation32 + $0x220] sm:$0xff]
        %v6644 = vld [vmem:[#allocation32 + $0x228] sm:$0xff]
        %v6645 = vld [vmem:[#allocation32 + $0x230] sm:$0xff]
        %v6646 = vld [vmem:[#allocation32 + $0x238] sm:$0xff]
        %v6647 = vld [vmem:[#allocation32 + $0x240] sm:$0xff]
        %v6648 = vld [vmem:[#allocation32 + $0x248] sm:$0xff]
        %v6649 = vld [vmem:[#allocation32 + $0x250] sm:$0xff]
        %v6650 = vld [vmem:[#allocation32 + $0x258] sm:$0xff]
        %v6651 = vld [vmem:[#allocation32 + $0x260] sm:$0xff]
        %v6652 = vld [vmem:[#allocation32 + $0x268] sm:$0xff]
        %v6653 = vld [vmem:[#allocation32 + $0x270] sm:$0xff]
        %v6654 = vld [vmem:[#allocation32 + $0x278] sm:$0xff]
        %v6655 = vld [vmem:[#allocation32 + $0x280] sm:$0xff]
        %v6656 = vld [vmem:[#allocation32 + $0x288] sm:$0xff]
        %v6657 = vld [vmem:[#allocation32 + $0x290] sm:$0xff]
        %v6658 = vld [vmem:[#allocation32 + $0x298] sm:$0xff]
        %v6659 = vld [vmem:[#allocation32 + $0x2a0] sm:$0xff]
        %v6660 = vld [vmem:[#allocation32 + $0x2a8] sm:$0xff]
        %v6661 = vld [vmem:[#allocation32 + $0x2b0] sm:$0xff]
        %v6662 = vld [vmem:[#allocation32 + $0x2b8] sm:$0xff]
        %v6663 = vld [vmem:[#allocation32 + $0x2c0] sm:$0xff]
        %v6664 = vld [vmem:[#allocation32 + $0x2c8] sm:$0xff]
        %v6665 = vld [vmem:[#allocation32 + $0x2d0] sm:$0xff]
        %v6666 = vld [vmem:[#allocation32 + $0x2d8] sm:$0xff]
        %v6667 = vld [vmem:[#allocation32 + $0x2e0] sm:$0xff]
        %v6668 = vld [vmem:[#allocation32 + $0x2e8] sm:$0xff]
        %v6669 = vld [vmem:[#allocation32 + $0x2f0] sm:$0xff]
        %v6670 = vld [vmem:[#allocation32 + $0x2f8] sm:$0xff]
        %v6671 = vld [vmem:[#allocation35] sm:$0x3f]
        %v6768 = vunpack.c.l.b16 %v6575
        %v6769 = vunpack.c.h.b16 %v6575
        %v6770 = vunpack.c.l.b16 %v6576
        %v6771 = vunpack.c.h.b16 %v6576
        %v6772 = vunpack.c.l.b16 %v6577
        %v6773 = vunpack.c.h.b16 %v6577
        %v6774 = vunpack.c.l.b16 %v6578
        %v6775 = vunpack.c.h.b16 %v6578
        %v6776 = vunpack.c.l.b16 %v6579
        %v6777 = vunpack.c.h.b16 %v6579
        %v6778 = vunpack.c.l.b16 %v6580
        %v6779 = vunpack.c.h.b16 %v6580
        %v6780 = vunpack.c.l.b16 %v6581
        %v6781 = vunpack.c.h.b16 %v6581
        %v6782 = vunpack.c.l.b16 %v6582
        %v6783 = vunpack.c.h.b16 %v6582
        %v6784 = vunpack.c.l.b16 %v6583
        %v6785 = vunpack.c.h.b16 %v6583
        %v6786 = vunpack.c.l.b16 %v6584
        %v6787 = vunpack.c.h.b16 %v6584
        %v6788 = vunpack.c.l.b16 %v6585
        %v6789 = vunpack.c.h.b16 %v6585
        %v6790 = vunpack.c.l.b16 %v6586
        %v6791 = vunpack.c.h.b16 %v6586
        %v6792 = vunpack.c.l.b16 %v6587
        %v6793 = vunpack.c.h.b16 %v6587
        %v6794 = vunpack.c.l.b16 %v6588
        %v6795 = vunpack.c.h.b16 %v6588
        %v6796 = vunpack.c.l.b16 %v6589
        %v6797 = vunpack.c.h.b16 %v6589
        %v6798 = vunpack.c.l.b16 %v6590
        %v6799 = vunpack.c.h.b16 %v6590
        %v6800 = vunpack.c.l.b16 %v6591
        %v6801 = vunpack.c.h.b16 %v6591
        %v6802 = vunpack.c.l.b16 %v6592
        %v6803 = vunpack.c.h.b16 %v6592
        %v6804 = vunpack.c.l.b16 %v6593
        %v6805 = vunpack.c.h.b16 %v6593
        %v6806 = vunpack.c.l.b16 %v6594
        %v6807 = vunpack.c.h.b16 %v6594
        %v6808 = vunpack.c.l.b16 %v6595
        %v6809 = vunpack.c.h.b16 %v6595
        %v6810 = vunpack.c.l.b16 %v6596
        %v6811 = vunpack.c.h.b16 %v6596
        %v6812 = vunpack.c.l.b16 %v6597
        %v6813 = vunpack.c.h.b16 %v6597
        %v6814 = vunpack.c.l.b16 %v6598
        %v6815 = vunpack.c.h.b16 %v6598
        %v6816 = vunpack.c.l.b16 %v6599
        %v6817 = vunpack.c.h.b16 %v6599
        %v6818 = vunpack.c.l.b16 %v6600
        %v6819 = vunpack.c.h.b16 %v6600
        %v6820 = vunpack.c.l.b16 %v6601
        %v6821 = vunpack.c.h.b16 %v6601
        %v6822 = vunpack.c.l.b16 %v6602
        %v6823 = vunpack.c.h.b16 %v6602
        %v6824 = vunpack.c.l.b16 %v6603
        %v6825 = vunpack.c.h.b16 %v6603
        %v6826 = vunpack.c.l.b16 %v6604
        %v6827 = vunpack.c.h.b16 %v6604
        %v6828 = vunpack.c.l.b16 %v6605
        %v6829 = vunpack.c.h.b16 %v6605
        %v6830 = vunpack.c.l.b16 %v6606
        %v6831 = vunpack.c.h.b16 %v6606
        %v6832 = vunpack.c.l.b16 %v6607
        %v6833 = vunpack.c.h.b16 %v6607
        %v6834 = vunpack.c.l.b16 %v6608
        %v6835 = vunpack.c.h.b16 %v6608
        %v6836 = vunpack.c.l.b16 %v6609
        %v6837 = vunpack.c.h.b16 %v6609
        %v6838 = vunpack.c.l.b16 %v6610
        %v6839 = vunpack.c.h.b16 %v6610
        %v6840 = vunpack.c.l.b16 %v6611
        %v6841 = vunpack.c.h.b16 %v6611
        %v6842 = vunpack.c.l.b16 %v6612
        %v6843 = vunpack.c.h.b16 %v6612
        %v6844 = vunpack.c.l.b16 %v6613
        %v6845 = vunpack.c.h.b16 %v6613
        %v6846 = vunpack.c.l.b16 %v6614
        %v6847 = vunpack.c.h.b16 %v6614
        %v6848 = vunpack.c.l.b16 %v6615
        %v6849 = vunpack.c.h.b16 %v6615
        %v6850 = vunpack.c.l.b16 %v6616
        %v6851 = vunpack.c.h.b16 %v6616
        %v6852 = vunpack.c.l.b16 %v6617
        %v6853 = vunpack.c.h.b16 %v6617
        %v6854 = vunpack.c.l.b16 %v6618
        %v6855 = vunpack.c.h.b16 %v6618
        %v6856 = vunpack.c.l.b16 %v6619
        %v6857 = vunpack.c.h.b16 %v6619
        %v6858 = vunpack.c.l.b16 %v6620
        %v6859 = vunpack.c.h.b16 %v6620
        %v6860 = vunpack.c.l.b16 %v6621
        %v6861 = vunpack.c.h.b16 %v6621
        %v6862 = vunpack.c.l.b16 %v6622
        %v6863 = vunpack.c.h.b16 %v6622
        %v6864 = vunpack.c.l.b16 %v6623
        %v6865 = vunpack.c.h.b16 %v6623
        %v6866 = vunpack.c.l.b16 %v6624
        %v6867 = vunpack.c.h.b16 %v6624
        %v6868 = vunpack.c.l.b16 %v6625
        %v6869 = vunpack.c.h.b16 %v6625
        %v6870 = vunpack.c.l.b16 %v6626
        %v6871 = vunpack.c.h.b16 %v6626
        %v6872 = vunpack.c.l.b16 %v6627
        %v6873 = vunpack.c.h.b16 %v6627
        %v6874 = vunpack.c.l.b16 %v6628
        %v6875 = vunpack.c.h.b16 %v6628
        %v6876 = vunpack.c.l.b16 %v6629
        %v6877 = vunpack.c.h.b16 %v6629
        %v6878 = vunpack.c.l.b16 %v6630
        %v6879 = vunpack.c.h.b16 %v6630
        %v6880 = vunpack.c.l.b16 %v6631
        %v6881 = vunpack.c.h.b16 %v6631
        %v6882 = vunpack.c.l.b16 %v6632
        %v6883 = vunpack.c.h.b16 %v6632
        %v6884 = vunpack.c.l.b16 %v6633
        %v6885 = vunpack.c.h.b16 %v6633
        %v6886 = vunpack.c.l.b16 %v6634
        %v6887 = vunpack.c.h.b16 %v6634
        %v6888 = vunpack.c.l.b16 %v6635
        %v6889 = vunpack.c.h.b16 %v6635
        %v6890 = vunpack.c.l.b16 %v6636
        %v6891 = vunpack.c.h.b16 %v6636
        %v6892 = vunpack.c.l.b16 %v6637
        %v6893 = vunpack.c.h.b16 %v6637
        %v6894 = vunpack.c.l.b16 %v6638
        %v6895 = vunpack.c.h.b16 %v6638
        %v6896 = vunpack.c.l.b16 %v6639
        %v6897 = vunpack.c.h.b16 %v6639
        %v6898 = vunpack.c.l.b16 %v6640
        %v6899 = vunpack.c.h.b16 %v6640
        %v6900 = vunpack.c.l.b16 %v6641
        %v6901 = vunpack.c.h.b16 %v6641
        %v6902 = vunpack.c.l.b16 %v6642
        %v6903 = vunpack.c.h.b16 %v6642
        %v6904 = vunpack.c.l.b16 %v6643
        %v6905 = vunpack.c.h.b16 %v6643
        %v6906 = vunpack.c.l.b16 %v6644
        %v6907 = vunpack.c.h.b16 %v6644
        %v6908 = vunpack.c.l.b16 %v6645
        %v6909 = vunpack.c.h.b16 %v6645
        %v6910 = vunpack.c.l.b16 %v6646
        %v6911 = vunpack.c.h.b16 %v6646
        %v6912 = vunpack.c.l.b16 %v6647
        %v6913 = vunpack.c.h.b16 %v6647
        %v6914 = vunpack.c.l.b16 %v6648
        %v6915 = vunpack.c.h.b16 %v6648
        %v6916 = vunpack.c.l.b16 %v6649
        %v6917 = vunpack.c.h.b16 %v6649
        %v6918 = vunpack.c.l.b16 %v6650
        %v6919 = vunpack.c.h.b16 %v6650
        %v6920 = vunpack.c.l.b16 %v6651
        %v6921 = vunpack.c.h.b16 %v6651
        %v6922 = vunpack.c.l.b16 %v6652
        %v6923 = vunpack.c.h.b16 %v6652
        %v6924 = vunpack.c.l.b16 %v6653
        %v6925 = vunpack.c.h.b16 %v6653
        %v6926 = vunpack.c.l.b16 %v6654
        %v6927 = vunpack.c.h.b16 %v6654
        %v6928 = vunpack.c.l.b16 %v6655
        %v6929 = vunpack.c.h.b16 %v6655
        %v6930 = vunpack.c.l.b16 %v6656
        %v6931 = vunpack.c.h.b16 %v6656
        %v6932 = vunpack.c.l.b16 %v6657
        %v6933 = vunpack.c.h.b16 %v6657
        %v6934 = vunpack.c.l.b16 %v6658
        %v6935 = vunpack.c.h.b16 %v6658
        %v6936 = vunpack.c.l.b16 %v6659
        %v6937 = vunpack.c.h.b16 %v6659
        %v6938 = vunpack.c.l.b16 %v6660
        %v6939 = vunpack.c.h.b16 %v6660
        %v6940 = vunpack.c.l.b16 %v6661
        %v6941 = vunpack.c.h.b16 %v6661
        %v6942 = vunpack.c.l.b16 %v6662
        %v6943 = vunpack.c.h.b16 %v6662
        %v6944 = vunpack.c.l.b16 %v6663
        %v6945 = vunpack.c.h.b16 %v6663
        %v6946 = vunpack.c.l.b16 %v6664
        %v6947 = vunpack.c.h.b16 %v6664
        %v6948 = vunpack.c.l.b16 %v6665
        %v6949 = vunpack.c.h.b16 %v6665
        %v6950 = vunpack.c.l.b16 %v6666
        %v6951 = vunpack.c.h.b16 %v6666
        %v6952 = vunpack.c.l.b16 %v6667
        %v6953 = vunpack.c.h.b16 %v6667
        %v6954 = vunpack.c.l.b16 %v6668
        %v6955 = vunpack.c.h.b16 %v6668
        %v6956 = vunpack.c.l.b16 %v6669
        %v6957 = vunpack.c.h.b16 %v6669
        %v6958 = vunpack.c.l.b16 %v6670
        %v6959 = vunpack.c.h.b16 %v6670
        %v6960 = vpack.c.b16 %v6774, %v6768
        %v6961 = vpack.c.b16 %v6775, %v6769
        %v6962 = vpack.c.b16 %v6776, %v6770
        %v6963 = vpack.c.b16 %v6777, %v6771
        %v6964 = vpack.c.b16 %v6778, %v6772
        %v6965 = vpack.c.b16 %v6779, %v6773
        %v6966 = vpack.c.b16 %v6786, %v6780
        %v6967 = vpack.c.b16 %v6787, %v6781
        %v6968 = vpack.c.b16 %v6788, %v6782
        %v6969 = vpack.c.b16 %v6789, %v6783
        %v6970 = vpack.c.b16 %v6790, %v6784
        %v6971 = vpack.c.b16 %v6791, %v6785
        %v6972 = vpack.c.b16 %v6798, %v6792
        %v6973 = vpack.c.b16 %v6799, %v6793
        %v6974 = vpack.c.b16 %v6800, %v6794
        %v6975 = vpack.c.b16 %v6801, %v6795
        %v6976 = vpack.c.b16 %v6802, %v6796
        %v6977 = vpack.c.b16 %v6803, %v6797
        %v6978 = vpack.c.b16 %v6810, %v6804
        %v6979 = vpack.c.b16 %v6811, %v6805
        %v6980 = vpack.c.b16 %v6812, %v6806
        %v6981 = vpack.c.b16 %v6813, %v6807
        %v6982 = vpack.c.b16 %v6814, %v6808
        %v6983 = vpack.c.b16 %v6815, %v6809
        %v6984 = vpack.c.b16 %v6822, %v6816
        %v6985 = vpack.c.b16 %v6823, %v6817
        %v6986 = vpack.c.b16 %v6824, %v6818
        %v6987 = vpack.c.b16 %v6825, %v6819
        %v6988 = vpack.c.b16 %v6826, %v6820
        %v6989 = vpack.c.b16 %v6827, %v6821
        %v6990 = vpack.c.b16 %v6834, %v6828
        %v6991 = vpack.c.b16 %v6835, %v6829
        %v6992 = vpack.c.b16 %v6836, %v6830
        %v6993 = vpack.c.b16 %v6837, %v6831
        %v6994 = vpack.c.b16 %v6838, %v6832
        %v6995 = vpack.c.b16 %v6839, %v6833
        %v6996 = vpack.c.b16 %v6846, %v6840
        %v6997 = vpack.c.b16 %v6847, %v6841
        %v6998 = vpack.c.b16 %v6848, %v6842
        %v6999 = vpack.c.b16 %v6849, %v6843
        %v7000 = vpack.c.b16 %v6850, %v6844
        %v7001 = vpack.c.b16 %v6851, %v6845
        %v7002 = vpack.c.b16 %v6858, %v6852
        %v7003 = vpack.c.b16 %v6859, %v6853
        %v7004 = vpack.c.b16 %v6860, %v6854
        %v7005 = vpack.c.b16 %v6861, %v6855
        %v7006 = vpack.c.b16 %v6862, %v6856
        %v7007 = vpack.c.b16 %v6863, %v6857
        %v7008 = vpack.c.b16 %v6870, %v6864
        %v7009 = vpack.c.b16 %v6871, %v6865
        %v7010 = vpack.c.b16 %v6872, %v6866
        %v7011 = vpack.c.b16 %v6873, %v6867
        %v7012 = vpack.c.b16 %v6874, %v6868
        %v7013 = vpack.c.b16 %v6875, %v6869
        %v7014 = vpack.c.b16 %v6882, %v6876
        %v7015 = vpack.c.b16 %v6883, %v6877
        %v7016 = vpack.c.b16 %v6884, %v6878
        %v7017 = vpack.c.b16 %v6885, %v6879
        %v7018 = vpack.c.b16 %v6886, %v6880
        %v7019 = vpack.c.b16 %v6887, %v6881
        %v7020 = vpack.c.b16 %v6894, %v6888
        %v7021 = vpack.c.b16 %v6895, %v6889
        %v7022 = vpack.c.b16 %v6896, %v6890
        %v7023 = vpack.c.b16 %v6897, %v6891
        %v7024 = vpack.c.b16 %v6898, %v6892
        %v7025 = vpack.c.b16 %v6899, %v6893
        %v7026 = vpack.c.b16 %v6906, %v6900
        %v7027 = vpack.c.b16 %v6907, %v6901
        %v7028 = vpack.c.b16 %v6908, %v6902
        %v7029 = vpack.c.b16 %v6909, %v6903
        %v7030 = vpack.c.b16 %v6910, %v6904
        %v7031 = vpack.c.b16 %v6911, %v6905
        %v7032 = vpack.c.b16 %v6918, %v6912
        %v7033 = vpack.c.b16 %v6919, %v6913
        %v7034 = vpack.c.b16 %v6920, %v6914
        %v7035 = vpack.c.b16 %v6921, %v6915
        %v7036 = vpack.c.b16 %v6922, %v6916
        %v7037 = vpack.c.b16 %v6923, %v6917
        %v7038 = vpack.c.b16 %v6930, %v6924
        %v7039 = vpack.c.b16 %v6931, %v6925
        %v7040 = vpack.c.b16 %v6932, %v6926
        %v7041 = vpack.c.b16 %v6933, %v6927
        %v7042 = vpack.c.b16 %v6934, %v6928
        %v7043 = vpack.c.b16 %v6935, %v6929
        %v7044 = vpack.c.b16 %v6942, %v6936
        %v7045 = vpack.c.b16 %v6943, %v6937
        %v7046 = vpack.c.b16 %v6944, %v6938
        %v7047 = vpack.c.b16 %v6945, %v6939
        %v7048 = vpack.c.b16 %v6946, %v6940
        %v7049 = vpack.c.b16 %v6947, %v6941
        %v7050 = vpack.c.b16 %v6954, %v6948
        %v7051 = vpack.c.b16 %v6955, %v6949
        %v7052 = vpack.c.b16 %v6956, %v6950
        %v7053 = vpack.c.b16 %v6957, %v6951
        %v7054 = vpack.c.b16 %v6958, %v6952
        %v7055 = vpack.c.b16 %v6959, %v6953
        %v7153 = vlaneseq
        %v7154 = vshrl.u32 %v7153, 7
        %v7155 = vsub.s32 0, %v7154
        %v7156 = vrot.slane %v6671, %v7155
        %v7157 = vlaneseq
        %v7158 = vshrl.u32 %v7157, 7
        %v7159 = vsub.s32 1, %v7158
        %v7160 = vrot.slane %v6671, %v7159
        %v7161 = vlaneseq
        %v7162 = vshrl.u32 %v7161, 7
        %v7163 = vsub.s32 2, %v7162
        %v7164 = vrot.slane %v6671, %v7163
        %v7165 = vlaneseq
        %v7166 = vshrl.u32 %v7165, 7
        %v7167 = vsub.s32 3, %v7166
        %v7168 = vrot.slane %v6671, %v7167
        %v7169 = vlaneseq
        %v7170 = vshrl.u32 %v7169, 7
        %v7171 = vsub.s32 4, %v7170
        %v7172 = vrot.slane %v6671, %v7171
        %v7173 = vlaneseq
        %v7174 = vshrl.u32 %v7173, 7
        %v7175 = vsub.s32 5, %v7174
        %v7176 = vrot.slane %v6671, %v7175
        %7183 = vmatprep.subr.bf16.mxu0 %v6961
        %7184 = vmatpush1.bf16.msra.mxu0 %v6960
        %7185 = vmatprep.subr.bf16.mxu0 %v6967
        %7186 = vmatpush1.bf16.msra.mxu0 %v6966
        %7187 = vmatprep.subr.bf16.mxu0 %v6973
        %7188 = vmatpush1.bf16.msra.mxu0 %v6972
        %7189 = vmatprep.subr.bf16.mxu0 %v6979
        %7190 = vmatpush1.bf16.msra.mxu0 %v6978
        %7191 = vmatprep.subr.bf16.mxu0 %v6985
        %7192 = vmatpush1.bf16.msra.mxu0 %v6984
        %7193 = vmatprep.subr.bf16.mxu0 %v6991
        %7194 = vmatpush1.bf16.msra.mxu0 %v6990
        %7195 = vmatprep.subr.bf16.mxu0 %v6997
        %7196 = vmatpush1.bf16.msra.mxu0 %v6996
        %7197 = vmatprep.subr.bf16.mxu0 %v7003
        %7198 = vmatpush1.bf16.msra.mxu0 %v7002
        %7199 = vmatprep.subr.bf16.mxu0 %v7009
        %7200 = vmatpush1.bf16.msra.mxu0 %v7008
        %7201 = vmatprep.subr.bf16.mxu0 %v7015
        %7202 = vmatpush1.bf16.msra.mxu0 %v7014
        %7203 = vmatprep.subr.bf16.mxu0 %v7021
        %7204 = vmatpush1.bf16.msra.mxu0 %v7020
        %7205 = vmatprep.subr.bf16.mxu0 %v7027
        %7206 = vmatpush1.bf16.msra.mxu0 %v7026
        %7207 = vmatprep.subr.bf16.mxu0 %v7033
        %7208 = vmatpush1.bf16.msra.mxu0 %v7032
        %7209 = vmatprep.subr.bf16.mxu0 %v7039
        %7210 = vmatpush1.bf16.msra.mxu0 %v7038
        %7211 = vmatprep.subr.bf16.mxu0 %v7045
        %7212 = vmatpush1.bf16.msra.mxu0 %v7044
        %7213 = vmatprep.subr.bf16.mxu0 %v7051
        %7214 = vmatpush1.bf16.msra.mxu0 %v7050
        %7215 = vmatprep.mubr.bf16.mxu0 %v2726
        %7216 = vmatmul.mubr.bf16.gmra.mrb[0].mxu0 %v2725
        %v7217 = vpop.f32.mrb[0].mxu0
        %v7218 = vadd.f32 %v7156, %v7217
        %v7219 = vpop.f32.mrb[0].mxu0
        %v7220 = vadd.f32 %v7160, %v7219
        %v7221 = vpop.f32.mrb[0].mxu0
        %v7222 = vpop.f32.mrb[0].mxu0
        %7223 = vdwg.mxu0
        %7224 = vmatprep.subr.bf16.mxu0 %v6963
        %7225 = vmatpush1.bf16.msra.mxu0 %v6962
        %7226 = vmatprep.subr.bf16.mxu0 %v6969
        %7227 = vmatpush1.bf16.msra.mxu0 %v6968
        %7228 = vmatprep.subr.bf16.mxu0 %v6975
        %7229 = vmatpush1.bf16.msra.mxu0 %v6974
        %7230 = vmatprep.subr.bf16.mxu0 %v6981
        %7231 = vmatpush1.bf16.msra.mxu0 %v6980
        %7232 = vmatprep.subr.bf16.mxu0 %v6987
        %7233 = vmatpush1.bf16.msra.mxu0 %v6986
        %7234 = vmatprep.subr.bf16.mxu0 %v6993
        %7235 = vmatpush1.bf16.msra.mxu0 %v6992
        %7236 = vmatprep.subr.bf16.mxu0 %v6999
        %7237 = vmatpush1.bf16.msra.mxu0 %v6998
        %7238 = vmatprep.subr.bf16.mxu0 %v7005
        %7239 = vmatpush1.bf16.msra.mxu0 %v7004
        %7240 = vmatprep.subr.bf16.mxu0 %v7011
        %7241 = vmatpush1.bf16.msra.mxu0 %v7010
        %7242 = vmatprep.subr.bf16.mxu0 %v7017
        %7243 = vmatpush1.bf16.msra.mxu0 %v7016
        %7244 = vmatprep.subr.bf16.mxu0 %v7023
        %7245 = vmatpush1.bf16.msra.mxu0 %v7022
        %7246 = vmatprep.subr.bf16.mxu0 %v7029
        %7247 = vmatpush1.bf16.msra.mxu0 %v7028
        %7248 = vmatprep.subr.bf16.mxu0 %v7035
        %7249 = vmatpush1.bf16.msra.mxu0 %v7034
        %7250 = vmatprep.subr.bf16.mxu0 %v7041
        %7251 = vmatpush1.bf16.msra.mxu0 %v7040
        %7252 = vmatprep.subr.bf16.mxu0 %v7047
        %7253 = vmatpush1.bf16.msra.mxu0 %v7046
        %7254 = vmatprep.subr.bf16.mxu0 %v7053
        %7255 = vmatpush1.bf16.msra.mxu0 %v7052
        %7256 = vmatprep.mubr.bf16.mxu0 %v2726
        %7257 = vmatmul.mubr.bf16.gmra.mrb[0].mxu0 %v2725
        %v7258 = vpop.f32.mrb[0].mxu0
        %v7259 = vadd.f32 %v7164, %v7258
        %v7260 = vpop.f32.mrb[0].mxu0
        %v7261 = vadd.f32 %v7168, %v7260
        %v7262 = vpop.f32.mrb[0].mxu0
        %v7263 = vpop.f32.mrb[0].mxu0
        %7264 = vdwg.mxu0
        %7265 = vmatprep.subr.bf16.mxu0 %v6965
        %7266 = vmatpush1.bf16.msra.mxu0 %v6964
        %7267 = vmatprep.subr.bf16.mxu0 %v6971
        %7268 = vmatpush1.bf16.msra.mxu0 %v6970
        %7269 = vmatprep.subr.bf16.mxu0 %v6977
        %7270 = vmatpush1.bf16.msra.mxu0 %v6976
        %7271 = vmatprep.subr.bf16.mxu0 %v6983
        %7272 = vmatpush1.bf16.msra.mxu0 %v6982
        %7273 = vmatprep.subr.bf16.mxu0 %v6989
        %7274 = vmatpush1.bf16.msra.mxu0 %v6988
        %7275 = vmatprep.subr.bf16.mxu0 %v6995
        %7276 = vmatpush1.bf16.msra.mxu0 %v6994
        %7277 = vmatprep.subr.bf16.mxu0 %v7001
        %7278 = vmatpush1.bf16.msra.mxu0 %v7000
        %7279 = vmatprep.subr.bf16.mxu0 %v7007
        %7280 = vmatpush1.bf16.msra.mxu0 %v7006
        %7281 = vmatprep.subr.bf16.mxu0 %v7013
        %7282 = vmatpush1.bf16.msra.mxu0 %v7012
        %7283 = vmatprep.subr.bf16.mxu0 %v7019
        %7284 = vmatpush1.bf16.msra.mxu0 %v7018
        %7285 = vmatprep.subr.bf16.mxu0 %v7025
        %7286 = vmatpush1.bf16.msra.mxu0 %v7024
        %7287 = vmatprep.subr.bf16.mxu0 %v7031
        %7288 = vmatpush1.bf16.msra.mxu0 %v7030
        %7289 = vmatprep.subr.bf16.mxu0 %v7037
        %7290 = vmatpush1.bf16.msra.mxu0 %v7036
        %7291 = vmatprep.subr.bf16.mxu0 %v7043
        %7292 = vmatpush1.bf16.msra.mxu0 %v7042
        %7293 = vmatprep.subr.bf16.mxu0 %v7049
        %7294 = vmatpush1.bf16.msra.mxu0 %v7048
        %7295 = vmatprep.subr.bf16.mxu0 %v7055
        %7296 = vmatpush1.bf16.msra.mxu0 %v7054
        %7297 = vmatprep.mubr.bf16.mxu0 %v2726
        %7298 = vmatmul.mubr.bf16.gmra.mrb[0].mxu0 %v2725
        %v7299 = vpop.f32.mrb[0].mxu0
        %v7300 = vadd.f32 %v7172, %v7299
        %v7301 = vpop.f32.mrb[0].mxu0
        %v7302 = vadd.f32 %v7176, %v7301
        %v7303 = vpop.f32.mrb[0].mxu0
        %v7304 = vpop.f32.mrb[0].mxu0
        %7305 = vdwg.mxu0
        %v7306 = vadd.f32 %v6323, %v7218
        %v7307 = vadd.f32 %v6325, %v7220
        %v7308 = vsub.f32 0.0, %v7306
        %v7309 = vsub.f32 0.0, %v7307
        %v7310 = vmul.f32 %v7308, 1.442695
        %v7311 = vpow.pop %v7310
        %v7312 = vmul.f32 %v7309, 1.442695
        %v7313 = vpow.pop %v7312
        %v7314 = vadd.f32 %v7311, 1.0
        %v7315 = vadd.f32 %v7313, 1.0
        %v7316 = vrcp.pop %v7314
        %v7317 = vmul.f32 1.0, %v7316
        %v7318 = vrcp.pop %v7315
        %v7319 = vmul.f32 1.0, %v7318
        %v7320 = vadd.f32 %v6446, %v7259
        %v7321 = vadd.f32 %v6448, %v7261
        %v7322 = vsub.f32 0.0, %v7320
        %v7323 = vsub.f32 0.0, %v7321
        %v7324 = vmul.f32 %v7322, 1.442695
        %v7325 = vpow.pop %v7324
        %v7326 = vmul.f32 %v7323, 1.442695
        %v7327 = vpow.pop %v7326
        %v7328 = vadd.f32 %v7325, 1.0
        %v7329 = vadd.f32 %v7327, 1.0
        %v7330 = vrcp.pop %v7328
        %v7331 = vmul.f32 1.0, %v7330
        %v7332 = vrcp.pop %v7329
        %v7333 = vmul.f32 1.0, %v7332
        %v7334 = vmul.f32 %v7317, %v7300
        %v7335 = vmul.f32 %v7319, %v7302
        %v7336 = vadd.f32 %v6569, %v7334
        %v7337 = vadd.f32 %v6571, %v7335
        %v7338 = vtanh.pop %v7336
        %v7339 = vtanh.pop %v7337
        %v7340 = vsub.f32 1.0, %v7331
        %v7341 = vsub.f32 1.0, %v7333
        %v7342 = vmul.f32 %v7340, %v7338
        %v7343 = vmul.f32 %v7341, %v7339
        %v7344 = vmul.f32 %v7331, %v2723
        %v7345 = vmul.f32 %v7333, %v2724
        %v7346 = vadd.f32 %v7342, %v7344
        %v7347 = vadd.f32 %v7343, %v7345
        %v7350 = vcombine.low %v7346, %v7347
        %v7352 = vunpack.c.l.s4 1966171168
        %v7353 = vunpack.c.0.s8 %v7352
        %v7354 = vlaneseq
        %v7355 = vshrl.u32 %v7354, 7
        %v7356 = vsub.s32 %v7353, %v7355
        %v7357 = vrot.slane %v7350, %v7356
        %v7359 = vunpack.c.l.s4 1966171168
        %v7360 = vunpack.c.0.s8 %v7359
        %v7361 = vlaneseq
        %v7362 = vshrl.u32 %v7361, 7
        %v7363 = vsub.s32 %v7360, %v7362
        %v7364 = vrot.slane %v7357, %v7363
        %v7366 = vlaneseq
        %vm7367 = vcmp.ge.s32.totalorder %v7366, 0
        %vm7368 = vcmp.lt.s32.totalorder %v7366, 256
        %vm7369 = vmand %vm7367, %vm7368
        %7370 = vst.msk [vmem:[#allocation2] sm:$0x3] %vm7369, %v7364
        %s7371 = sshra.s32 %s96, 3
        %s7372 = sand.u32 %s96, 7
        %s7373 = sshra.s32 %s96, 3
        %s7374 = sand.u32 %s96, 7
        %s7375 = smul.u32 %s7371, 2
        %s7376 = smul.u32 %s7375, 8
        %s7377 = sadd.s32 %s7376, %s7374
        %s7378 = scalar_lea.vmem [#allocation44], %s7377
        %7379 = vst.msk [vmem:[%s7378] ss:$8 sm:$0x3] %vm7369, %v7364
        %7380 = vst.msk [vmem:[%s7378] ss:$8 sm:$0x0] %vm7369, %v7364
        %v7381 = vpack.c.bf16 %v7346, %v7346
        %v7382 = vpack.c.bf16 %v7347, %v7347
        %v7383 = vld [vmem:[#allocation37] sm:$0xf]
        %v7384 = vld [vmem:[#allocation37 + $0x4] sm:$0xf]
        %v7385 = vld [vmem:[#allocation37 + $0x8] sm:$0xf]
        %v7386 = vld [vmem:[#allocation37 + $0xc] sm:$0xf]
        %v7387 = vld [vmem:[#allocation37 + $0x10] sm:$0xf]
        %v7388 = vld [vmem:[#allocation37 + $0x14] sm:$0xf]
        %v7389 = vld [vmem:[#allocation37 + $0x18] sm:$0xf]
        %v7390 = vld [vmem:[#allocation37 + $0x1c] sm:$0xf]
        %v7391 = vld [vmem:[#allocation37 + $0x20] sm:$0xf]
        %v7392 = vld [vmem:[#allocation37 + $0x24] sm:$0xf]
        %v7393 = vld [vmem:[#allocation37 + $0x28] sm:$0xf]
        %v7394 = vld [vmem:[#allocation37 + $0x2c] sm:$0xf]
        %v7395 = vld [vmem:[#allocation37 + $0x30] sm:$0xf]
        %v7396 = vld [vmem:[#allocation37 + $0x34] sm:$0xf]
        %v7397 = vld [vmem:[#allocation37 + $0x38] sm:$0xf]
        %v7398 = vld [vmem:[#allocation37 + $0x3c] sm:$0xf]
        %v7399 = vld [vmem:[#allocation37 + $0x40] sm:$0xf]
        %v7400 = vld [vmem:[#allocation37 + $0x44] sm:$0xf]
        %v7401 = vld [vmem:[#allocation37 + $0x48] sm:$0xf]
        %v7402 = vld [vmem:[#allocation37 + $0x4c] sm:$0xf]
        %v7403 = vld [vmem:[#allocation37 + $0x50] sm:$0xf]
        %v7404 = vld [vmem:[#allocation37 + $0x54] sm:$0xf]
        %v7405 = vld [vmem:[#allocation37 + $0x58] sm:$0xf]
        %v7406 = vld [vmem:[#allocation37 + $0x5c] sm:$0xf]
        %v7407 = vld [vmem:[#allocation37 + $0x60] sm:$0xf]
        %v7408 = vld [vmem:[#allocation37 + $0x64] sm:$0xf]
        %v7409 = vld [vmem:[#allocation37 + $0x68] sm:$0xf]
        %v7410 = vld [vmem:[#allocation37 + $0x6c] sm:$0xf]
        %v7411 = vld [vmem:[#allocation37 + $0x70] sm:$0xf]
        %v7412 = vld [vmem:[#allocation37 + $0x74] sm:$0xf]
        %v7413 = vld [vmem:[#allocation37 + $0x78] sm:$0xf]
        %v7414 = vld [vmem:[#allocation37 + $0x7c] sm:$0xf]
        %v7415 = vld [vmem:[#allocation37 + $0x80] sm:$0xf]
        %v7416 = vld [vmem:[#allocation37 + $0x84] sm:$0xf]
        %v7417 = vld [vmem:[#allocation37 + $0x88] sm:$0xf]
        %v7418 = vld [vmem:[#allocation37 + $0x8c] sm:$0xf]
        %v7419 = vld [vmem:[#allocation37 + $0x90] sm:$0xf]
        %v7420 = vld [vmem:[#allocation37 + $0x94] sm:$0xf]
        %v7421 = vld [vmem:[#allocation37 + $0x98] sm:$0xf]
        %v7422 = vld [vmem:[#allocation37 + $0x9c] sm:$0xf]
        %v7423 = vld [vmem:[#allocation37 + $0xa0] sm:$0xf]
        %v7424 = vld [vmem:[#allocation37 + $0xa4] sm:$0xf]
        %v7425 = vld [vmem:[#allocation37 + $0xa8] sm:$0xf]
        %v7426 = vld [vmem:[#allocation37 + $0xac] sm:$0xf]
        %v7427 = vld [vmem:[#allocation37 + $0xb0] sm:$0xf]
        %v7428 = vld [vmem:[#allocation37 + $0xb4] sm:$0xf]
        %v7429 = vld [vmem:[#allocation37 + $0xb8] sm:$0xf]
        %v7430 = vld [vmem:[#allocation37 + $0xbc] sm:$0xf]
        %v7431 = vld [vmem:[#allocation37 + $0xc0] sm:$0xf]
        %v7432 = vld [vmem:[#allocation37 + $0xc4] sm:$0xf]
        %v7433 = vld [vmem:[#allocation37 + $0xc8] sm:$0xf]
        %v7434 = vld [vmem:[#allocation37 + $0xcc] sm:$0xf]
        %v7435 = vld [vmem:[#allocation37 + $0xd0] sm:$0xf]
        %v7436 = vld [vmem:[#allocation37 + $0xd4] sm:$0xf]
        %v7437 = vld [vmem:[#allocation37 + $0xd8] sm:$0xf]
        %v7438 = vld [vmem:[#allocation37 + $0xdc] sm:$0xf]
        %v7439 = vld [vmem:[#allocation37 + $0xe0] sm:$0xf]
        %v7440 = vld [vmem:[#allocation37 + $0xe4] sm:$0xf]
        %v7441 = vld [vmem:[#allocation37 + $0xe8] sm:$0xf]
        %v7442 = vld [vmem:[#allocation37 + $0xec] sm:$0xf]
        %v7443 = vld [vmem:[#allocation37 + $0xf0] sm:$0xf]
        %v7444 = vld [vmem:[#allocation37 + $0xf4] sm:$0xf]
        %v7445 = vld [vmem:[#allocation37 + $0xf8] sm:$0xf]
        %v7446 = vld [vmem:[#allocation37 + $0xfc] sm:$0xf]
        %v7447 = vld [vmem:[#allocation37 + $0x100] sm:$0xf]
        %v7448 = vld [vmem:[#allocation37 + $0x104] sm:$0xf]
        %v7449 = vld [vmem:[#allocation37 + $0x108] sm:$0xf]
        %v7450 = vld [vmem:[#allocation37 + $0x10c] sm:$0xf]
        %v7451 = vld [vmem:[#allocation37 + $0x110] sm:$0xf]
        %v7452 = vld [vmem:[#allocation37 + $0x114] sm:$0xf]
        %v7453 = vld [vmem:[#allocation37 + $0x118] sm:$0xf]
        %v7454 = vld [vmem:[#allocation37 + $0x11c] sm:$0xf]
        %v7455 = vld [vmem:[#allocation37 + $0x120] sm:$0xf]
        %v7456 = vld [vmem:[#allocation37 + $0x124] sm:$0xf]
        %v7457 = vld [vmem:[#allocation37 + $0x128] sm:$0xf]
        %v7458 = vld [vmem:[#allocation37 + $0x12c] sm:$0xf]
        %v7459 = vld [vmem:[#allocation37 + $0x130] sm:$0xf]
        %v7460 = vld [vmem:[#allocation37 + $0x134] sm:$0xf]
        %v7461 = vld [vmem:[#allocation37 + $0x138] sm:$0xf]
        %v7462 = vld [vmem:[#allocation37 + $0x13c] sm:$0xf]
        %v7463 = vld [vmem:[#allocation37 + $0x140] sm:$0xf]
        %v7464 = vld [vmem:[#allocation37 + $0x144] sm:$0xf]
        %v7465 = vld [vmem:[#allocation37 + $0x148] sm:$0xf]
        %v7466 = vld [vmem:[#allocation37 + $0x14c] sm:$0xf]
        %v7467 = vld [vmem:[#allocation37 + $0x150] sm:$0xf]
        %v7468 = vld [vmem:[#allocation37 + $0x154] sm:$0xf]
        %v7469 = vld [vmem:[#allocation37 + $0x158] sm:$0xf]
        %v7470 = vld [vmem:[#allocation37 + $0x15c] sm:$0xf]
        %v7471 = vld [vmem:[#allocation37 + $0x160] sm:$0xf]
        %v7472 = vld [vmem:[#allocation37 + $0x164] sm:$0xf]
        %v7473 = vld [vmem:[#allocation37 + $0x168] sm:$0xf]
        %v7474 = vld [vmem:[#allocation37 + $0x16c] sm:$0xf]
        %v7475 = vld [vmem:[#allocation37 + $0x170] sm:$0xf]
        %v7476 = vld [vmem:[#allocation37 + $0x174] sm:$0xf]
        %v7477 = vld [vmem:[#allocation37 + $0x178] sm:$0xf]
        %v7478 = vld [vmem:[#allocation37 + $0x17c] sm:$0xf]
        %v7479 = vld [vmem:[#allocation37 + $0x180] sm:$0xf]
        %v7480 = vld [vmem:[#allocation37 + $0x184] sm:$0xf]
        %v7481 = vld [vmem:[#allocation37 + $0x188] sm:$0xf]
        %v7482 = vld [vmem:[#allocation37 + $0x18c] sm:$0xf]
        %v7483 = vld [vmem:[#allocation37 + $0x190] sm:$0xf]
        %v7484 = vld [vmem:[#allocation37 + $0x194] sm:$0xf]
        %v7485 = vld [vmem:[#allocation37 + $0x198] sm:$0xf]
        %v7486 = vld [vmem:[#allocation37 + $0x19c] sm:$0xf]
        %v7487 = vld [vmem:[#allocation37 + $0x1a0] sm:$0xf]
        %v7488 = vld [vmem:[#allocation37 + $0x1a4] sm:$0xf]
        %v7489 = vld [vmem:[#allocation37 + $0x1a8] sm:$0xf]
        %v7490 = vld [vmem:[#allocation37 + $0x1ac] sm:$0xf]
        %v7491 = vld [vmem:[#allocation37 + $0x1b0] sm:$0xf]
        %v7492 = vld [vmem:[#allocation37 + $0x1b4] sm:$0xf]
        %v7493 = vld [vmem:[#allocation37 + $0x1b8] sm:$0xf]
        %v7494 = vld [vmem:[#allocation37 + $0x1bc] sm:$0xf]
        %v7495 = vld [vmem:[#allocation37 + $0x1c0] sm:$0xf]
        %v7496 = vld [vmem:[#allocation37 + $0x1c4] sm:$0xf]
        %v7497 = vld [vmem:[#allocation37 + $0x1c8] sm:$0xf]
        %v7498 = vld [vmem:[#allocation37 + $0x1cc] sm:$0xf]
        %v7499 = vld [vmem:[#allocation37 + $0x1d0] sm:$0xf]
        %v7500 = vld [vmem:[#allocation37 + $0x1d4] sm:$0xf]
        %v7501 = vld [vmem:[#allocation37 + $0x1d8] sm:$0xf]
        %v7502 = vld [vmem:[#allocation37 + $0x1dc] sm:$0xf]
        %v7503 = vld [vmem:[#allocation37 + $0x1e0] sm:$0xf]
        %v7504 = vld [vmem:[#allocation37 + $0x1e4] sm:$0xf]
        %v7505 = vld [vmem:[#allocation37 + $0x1e8] sm:$0xf]
        %v7506 = vld [vmem:[#allocation37 + $0x1ec] sm:$0xf]
        %v7507 = vld [vmem:[#allocation37 + $0x1f0] sm:$0xf]
        %v7508 = vld [vmem:[#allocation37 + $0x1f4] sm:$0xf]
        %v7509 = vld [vmem:[#allocation37 + $0x1f8] sm:$0xf]
        %v7510 = vld [vmem:[#allocation37 + $0x1fc] sm:$0xf]
        %v7511 = vld [vmem:[#allocation37 + $0x200] sm:$0xf]
        %v7512 = vld [vmem:[#allocation37 + $0x204] sm:$0xf]
        %v7513 = vld [vmem:[#allocation37 + $0x208] sm:$0xf]
        %v7514 = vld [vmem:[#allocation37 + $0x20c] sm:$0xf]
        %v7515 = vld [vmem:[#allocation37 + $0x210] sm:$0xf]
        %v7516 = vld [vmem:[#allocation37 + $0x214] sm:$0xf]
        %v7517 = vld [vmem:[#allocation37 + $0x218] sm:$0xf]
        %v7518 = vld [vmem:[#allocation37 + $0x21c] sm:$0xf]
        %v7519 = vld [vmem:[#allocation37 + $0x220] sm:$0xf]
        %v7520 = vld [vmem:[#allocation37 + $0x224] sm:$0xf]
        %v7521 = vld [vmem:[#allocation37 + $0x228] sm:$0xf]
        %v7522 = vld [vmem:[#allocation37 + $0x22c] sm:$0xf]
        %v7523 = vld [vmem:[#allocation37 + $0x230] sm:$0xf]
        %v7524 = vld [vmem:[#allocation37 + $0x234] sm:$0xf]
        %v7525 = vld [vmem:[#allocation37 + $0x238] sm:$0xf]
        %v7526 = vld [vmem:[#allocation37 + $0x23c] sm:$0xf]
        %v7527 = vld [vmem:[#allocation37 + $0x240] sm:$0xf]
        %v7528 = vld [vmem:[#allocation37 + $0x244] sm:$0xf]
        %v7529 = vld [vmem:[#allocation37 + $0x248] sm:$0xf]
        %v7530 = vld [vmem:[#allocation37 + $0x24c] sm:$0xf]
        %v7531 = vld [vmem:[#allocation37 + $0x250] sm:$0xf]
        %v7532 = vld [vmem:[#allocation37 + $0x254] sm:$0xf]
        %v7533 = vld [vmem:[#allocation37 + $0x258] sm:$0xf]
        %v7534 = vld [vmem:[#allocation37 + $0x25c] sm:$0xf]
        %v7535 = vld [vmem:[#allocation37 + $0x260] sm:$0xf]
        %v7536 = vld [vmem:[#allocation37 + $0x264] sm:$0xf]
        %v7537 = vld [vmem:[#allocation37 + $0x268] sm:$0xf]
        %v7538 = vld [vmem:[#allocation37 + $0x26c] sm:$0xf]
        %v7539 = vld [vmem:[#allocation37 + $0x270] sm:$0xf]
        %v7540 = vld [vmem:[#allocation37 + $0x274] sm:$0xf]
        %v7541 = vld [vmem:[#allocation37 + $0x278] sm:$0xf]
        %v7542 = vld [vmem:[#allocation37 + $0x27c] sm:$0xf]
        %v7543 = vld [vmem:[#allocation38] sm:$0x1]
        %v7704 = vunpack.c.l.b16 %v7383
        %v7705 = vunpack.c.l.b16 %v7384
        %v7706 = vunpack.c.l.b16 %v7385
        %v7707 = vunpack.c.l.b16 %v7386
        %v7708 = vunpack.c.l.b16 %v7387
        %v7709 = vunpack.c.l.b16 %v7388
        %v7710 = vunpack.c.l.b16 %v7389
        %v7711 = vunpack.c.l.b16 %v7390
        %v7712 = vunpack.c.l.b16 %v7391
        %v7713 = vunpack.c.l.b16 %v7392
        %v7714 = vunpack.c.l.b16 %v7393
        %v7715 = vunpack.c.l.b16 %v7394
        %v7716 = vunpack.c.l.b16 %v7395
        %v7717 = vunpack.c.l.b16 %v7396
        %v7718 = vunpack.c.l.b16 %v7397
        %v7719 = vunpack.c.l.b16 %v7398
        %v7720 = vunpack.c.l.b16 %v7399
        %v7721 = vunpack.c.l.b16 %v7400
        %v7722 = vunpack.c.l.b16 %v7401
        %v7723 = vunpack.c.l.b16 %v7402
        %v7724 = vunpack.c.l.b16 %v7403
        %v7725 = vunpack.c.l.b16 %v7404
        %v7726 = vunpack.c.l.b16 %v7405
        %v7727 = vunpack.c.l.b16 %v7406
        %v7728 = vunpack.c.l.b16 %v7407
        %v7729 = vunpack.c.l.b16 %v7408
        %v7730 = vunpack.c.l.b16 %v7409
        %v7731 = vunpack.c.l.b16 %v7410
        %v7732 = vunpack.c.l.b16 %v7411
        %v7733 = vunpack.c.l.b16 %v7412
        %v7734 = vunpack.c.l.b16 %v7413
        %v7735 = vunpack.c.l.b16 %v7414
        %v7736 = vunpack.c.l.b16 %v7415
        %v7737 = vunpack.c.l.b16 %v7416
        %v7738 = vunpack.c.l.b16 %v7417
        %v7739 = vunpack.c.l.b16 %v7418
        %v7740 = vunpack.c.l.b16 %v7419
        %v7741 = vunpack.c.l.b16 %v7420
        %v7742 = vunpack.c.l.b16 %v7421
        %v7743 = vunpack.c.l.b16 %v7422
        %v7744 = vunpack.c.l.b16 %v7423
        %v7745 = vunpack.c.l.b16 %v7424
        %v7746 = vunpack.c.l.b16 %v7425
        %v7747 = vunpack.c.l.b16 %v7426
        %v7748 = vunpack.c.l.b16 %v7427
        %v7749 = vunpack.c.l.b16 %v7428
        %v7750 = vunpack.c.l.b16 %v7429
        %v7751 = vunpack.c.l.b16 %v7430
        %v7752 = vunpack.c.l.b16 %v7431
        %v7753 = vunpack.c.l.b16 %v7432
        %v7754 = vunpack.c.l.b16 %v7433
        %v7755 = vunpack.c.l.b16 %v7434
        %v7756 = vunpack.c.l.b16 %v7435
        %v7757 = vunpack.c.l.b16 %v7436
        %v7758 = vunpack.c.l.b16 %v7437
        %v7759 = vunpack.c.l.b16 %v7438
        %v7760 = vunpack.c.l.b16 %v7439
        %v7761 = vunpack.c.l.b16 %v7440
        %v7762 = vunpack.c.l.b16 %v7441
        %v7763 = vunpack.c.l.b16 %v7442
        %v7764 = vunpack.c.l.b16 %v7443
        %v7765 = vunpack.c.l.b16 %v7444
        %v7766 = vunpack.c.l.b16 %v7445
        %v7767 = vunpack.c.l.b16 %v7446
        %v7768 = vunpack.c.l.b16 %v7447
        %v7769 = vunpack.c.l.b16 %v7448
        %v7770 = vunpack.c.l.b16 %v7449
        %v7771 = vunpack.c.l.b16 %v7450
        %v7772 = vunpack.c.l.b16 %v7451
        %v7773 = vunpack.c.l.b16 %v7452
        %v7774 = vunpack.c.l.b16 %v7453
        %v7775 = vunpack.c.l.b16 %v7454
        %v7776 = vunpack.c.l.b16 %v7455
        %v7777 = vunpack.c.l.b16 %v7456
        %v7778 = vunpack.c.l.b16 %v7457
        %v7779 = vunpack.c.l.b16 %v7458
        %v7780 = vunpack.c.l.b16 %v7459
        %v7781 = vunpack.c.l.b16 %v7460
        %v7782 = vunpack.c.l.b16 %v7461
        %v7783 = vunpack.c.l.b16 %v7462
        %v7784 = vunpack.c.l.b16 %v7463
        %v7785 = vunpack.c.l.b16 %v7464
        %v7786 = vunpack.c.l.b16 %v7465
        %v7787 = vunpack.c.l.b16 %v7466
        %v7788 = vunpack.c.l.b16 %v7467
        %v7789 = vunpack.c.l.b16 %v7468
        %v7790 = vunpack.c.l.b16 %v7469
        %v7791 = vunpack.c.l.b16 %v7470
        %v7792 = vunpack.c.l.b16 %v7471
        %v7793 = vunpack.c.l.b16 %v7472
        %v7794 = vunpack.c.l.b16 %v7473
        %v7795 = vunpack.c.l.b16 %v7474
        %v7796 = vunpack.c.l.b16 %v7475
        %v7797 = vunpack.c.l.b16 %v7476
        %v7798 = vunpack.c.l.b16 %v7477
        %v7799 = vunpack.c.l.b16 %v7478
        %v7800 = vunpack.c.l.b16 %v7479
        %v7801 = vunpack.c.l.b16 %v7480
        %v7802 = vunpack.c.l.b16 %v7481
        %v7803 = vunpack.c.l.b16 %v7482
        %v7804 = vunpack.c.l.b16 %v7483
        %v7805 = vunpack.c.l.b16 %v7484
        %v7806 = vunpack.c.l.b16 %v7485
        %v7807 = vunpack.c.l.b16 %v7486
        %v7808 = vunpack.c.l.b16 %v7487
        %v7809 = vunpack.c.l.b16 %v7488
        %v7810 = vunpack.c.l.b16 %v7489
        %v7811 = vunpack.c.l.b16 %v7490
        %v7812 = vunpack.c.l.b16 %v7491
        %v7813 = vunpack.c.l.b16 %v7492
        %v7814 = vunpack.c.l.b16 %v7493
        %v7815 = vunpack.c.l.b16 %v7494
        %v7816 = vunpack.c.l.b16 %v7495
        %v7817 = vunpack.c.l.b16 %v7496
        %v7818 = vunpack.c.l.b16 %v7497
        %v7819 = vunpack.c.l.b16 %v7498
        %v7820 = vunpack.c.l.b16 %v7499
        %v7821 = vunpack.c.l.b16 %v7500
        %v7822 = vunpack.c.l.b16 %v7501
        %v7823 = vunpack.c.l.b16 %v7502
        %v7824 = vunpack.c.l.b16 %v7503
        %v7825 = vunpack.c.l.b16 %v7504
        %v7826 = vunpack.c.l.b16 %v7505
        %v7827 = vunpack.c.l.b16 %v7506
        %v7828 = vunpack.c.l.b16 %v7507
        %v7829 = vunpack.c.l.b16 %v7508
        %v7830 = vunpack.c.l.b16 %v7509
        %v7831 = vunpack.c.l.b16 %v7510
        %v7832 = vunpack.c.l.b16 %v7511
        %v7833 = vunpack.c.l.b16 %v7512
        %v7834 = vunpack.c.l.b16 %v7513
        %v7835 = vunpack.c.l.b16 %v7514
        %v7836 = vunpack.c.l.b16 %v7515
        %v7837 = vunpack.c.l.b16 %v7516
        %v7838 = vunpack.c.l.b16 %v7517
        %v7839 = vunpack.c.l.b16 %v7518
        %v7840 = vunpack.c.l.b16 %v7519
        %v7841 = vunpack.c.l.b16 %v7520
        %v7842 = vunpack.c.l.b16 %v7521
        %v7843 = vunpack.c.l.b16 %v7522
        %v7844 = vunpack.c.l.b16 %v7523
        %v7845 = vunpack.c.l.b16 %v7524
        %v7846 = vunpack.c.l.b16 %v7525
        %v7847 = vunpack.c.l.b16 %v7526
        %v7848 = vunpack.c.l.b16 %v7527
        %v7849 = vunpack.c.l.b16 %v7528
        %v7850 = vunpack.c.l.b16 %v7529
        %v7851 = vunpack.c.l.b16 %v7530
        %v7852 = vunpack.c.l.b16 %v7531
        %v7853 = vunpack.c.l.b16 %v7532
        %v7854 = vunpack.c.l.b16 %v7533
        %v7855 = vunpack.c.l.b16 %v7534
        %v7856 = vunpack.c.l.b16 %v7535
        %v7857 = vunpack.c.l.b16 %v7536
        %v7858 = vunpack.c.l.b16 %v7537
        %v7859 = vunpack.c.l.b16 %v7538
        %v7860 = vunpack.c.l.b16 %v7539
        %v7861 = vunpack.c.l.b16 %v7540
        %v7862 = vunpack.c.l.b16 %v7541
        %v7863 = vunpack.c.l.b16 %v7542
        %v7864 = vpack.c.b16 %v7705, %v7704
        %v7865 = vpack.c.b16 %v7707, %v7706
        %v7866 = vpack.c.b16 %v7709, %v7708
        %v7867 = vpack.c.b16 %v7711, %v7710
        %v7868 = vpack.c.b16 %v7713, %v7712
        %v7869 = vpack.c.b16 %v7715, %v7714
        %v7870 = vpack.c.b16 %v7717, %v7716
        %v7871 = vpack.c.b16 %v7719, %v7718
        %v7872 = vpack.c.b16 %v7721, %v7720
        %v7873 = vpack.c.b16 %v7723, %v7722
        %v7874 = vpack.c.b16 %v7725, %v7724
        %v7875 = vpack.c.b16 %v7727, %v7726
        %v7876 = vpack.c.b16 %v7729, %v7728
        %v7877 = vpack.c.b16 %v7731, %v7730
        %v7878 = vpack.c.b16 %v7733, %v7732
        %v7879 = vpack.c.b16 %v7735, %v7734
        %v7880 = vpack.c.b16 %v7737, %v7736
        %v7881 = vpack.c.b16 %v7739, %v7738
        %v7882 = vpack.c.b16 %v7741, %v7740
        %v7883 = vpack.c.b16 %v7743, %v7742
        %v7884 = vpack.c.b16 %v7745, %v7744
        %v7885 = vpack.c.b16 %v7747, %v7746
        %v7886 = vpack.c.b16 %v7749, %v7748
        %v7887 = vpack.c.b16 %v7751, %v7750
        %v7888 = vpack.c.b16 %v7753, %v7752
        %v7889 = vpack.c.b16 %v7755, %v7754
        %v7890 = vpack.c.b16 %v7757, %v7756
        %v7891 = vpack.c.b16 %v7759, %v7758
        %v7892 = vpack.c.b16 %v7761, %v7760
        %v7893 = vpack.c.b16 %v7763, %v7762
        %v7894 = vpack.c.b16 %v7765, %v7764
        %v7895 = vpack.c.b16 %v7767, %v7766
        %v7896 = vpack.c.b16 %v7769, %v7768
        %v7897 = vpack.c.b16 %v7771, %v7770
        %v7898 = vpack.c.b16 %v7773, %v7772
        %v7899 = vpack.c.b16 %v7775, %v7774
        %v7900 = vpack.c.b16 %v7777, %v7776
        %v7901 = vpack.c.b16 %v7779, %v7778
        %v7902 = vpack.c.b16 %v7781, %v7780
        %v7903 = vpack.c.b16 %v7783, %v7782
        %v7904 = vpack.c.b16 %v7785, %v7784
        %v7905 = vpack.c.b16 %v7787, %v7786
        %v7906 = vpack.c.b16 %v7789, %v7788
        %v7907 = vpack.c.b16 %v7791, %v7790
        %v7908 = vpack.c.b16 %v7793, %v7792
        %v7909 = vpack.c.b16 %v7795, %v7794
        %v7910 = vpack.c.b16 %v7797, %v7796
        %v7911 = vpack.c.b16 %v7799, %v7798
        %v7912 = vpack.c.b16 %v7801, %v7800
        %v7913 = vpack.c.b16 %v7803, %v7802
        %v7914 = vpack.c.b16 %v7805, %v7804
        %v7915 = vpack.c.b16 %v7807, %v7806
        %v7916 = vpack.c.b16 %v7809, %v7808
        %v7917 = vpack.c.b16 %v7811, %v7810
        %v7918 = vpack.c.b16 %v7813, %v7812
        %v7919 = vpack.c.b16 %v7815, %v7814
        %v7920 = vpack.c.b16 %v7817, %v7816
        %v7921 = vpack.c.b16 %v7819, %v7818
        %v7922 = vpack.c.b16 %v7821, %v7820
        %v7923 = vpack.c.b16 %v7823, %v7822
        %v7924 = vpack.c.b16 %v7825, %v7824
        %v7925 = vpack.c.b16 %v7827, %v7826
        %v7926 = vpack.c.b16 %v7829, %v7828
        %v7927 = vpack.c.b16 %v7831, %v7830
        %v7928 = vpack.c.b16 %v7833, %v7832
        %v7929 = vpack.c.b16 %v7835, %v7834
        %v7930 = vpack.c.b16 %v7837, %v7836
        %v7931 = vpack.c.b16 %v7839, %v7838
        %v7932 = vpack.c.b16 %v7841, %v7840
        %v7933 = vpack.c.b16 %v7843, %v7842
        %v7934 = vpack.c.b16 %v7845, %v7844
        %v7935 = vpack.c.b16 %v7847, %v7846
        %v7936 = vpack.c.b16 %v7849, %v7848
        %v7937 = vpack.c.b16 %v7851, %v7850
        %v7938 = vpack.c.b16 %v7853, %v7852
        %v7939 = vpack.c.b16 %v7855, %v7854
        %v7940 = vpack.c.b16 %v7857, %v7856
        %v7941 = vpack.c.b16 %v7859, %v7858
        %v7942 = vpack.c.b16 %v7861, %v7860
        %v7943 = vpack.c.b16 %v7863, %v7862
        %8024 = vmatprep.subr.bf16.mxu0 0
        %8025 = vmatpush1.bf16.msra.mxu0 %v7864
        %8026 = vmatprep.subr.bf16.mxu0 0
        %8027 = vmatpush1.bf16.msra.mxu0 %v7865
        %8028 = vmatprep.subr.bf16.mxu0 0
        %8029 = vmatpush1.bf16.msra.mxu0 %v7866
        %8030 = vmatprep.subr.bf16.mxu0 0
        %8031 = vmatpush1.bf16.msra.mxu0 %v7867
        %8032 = vmatprep.subr.bf16.mxu0 0
        %8033 = vmatpush1.bf16.msra.mxu0 %v7868
        %8034 = vmatprep.subr.bf16.mxu0 0
        %8035 = vmatpush1.bf16.msra.mxu0 %v7869
        %8036 = vmatprep.subr.bf16.mxu0 0
        %8037 = vmatpush1.bf16.msra.mxu0 %v7870
        %8038 = vmatprep.subr.bf16.mxu0 0
        %8039 = vmatpush1.bf16.msra.mxu0 %v7871
        %8040 = vmatprep.subr.bf16.mxu0 0
        %8041 = vmatpush1.bf16.msra.mxu0 %v7872
        %8042 = vmatprep.subr.bf16.mxu0 0
        %8043 = vmatpush1.bf16.msra.mxu0 %v7873
        %8044 = vmatprep.subr.bf16.mxu0 0
        %8045 = vmatpush1.bf16.msra.mxu0 %v7874
        %8046 = vmatprep.subr.bf16.mxu0 0
        %8047 = vmatpush1.bf16.msra.mxu0 %v7875
        %8048 = vmatprep.subr.bf16.mxu0 0
        %8049 = vmatpush1.bf16.msra.mxu0 %v7876
        %8050 = vmatprep.subr.bf16.mxu0 0
        %8051 = vmatpush1.bf16.msra.mxu0 %v7877
        %8052 = vmatprep.subr.bf16.mxu0 0
        %8053 = vmatpush1.bf16.msra.mxu0 %v7878
        %8054 = vmatprep.subr.bf16.mxu0 0
        %8055 = vmatpush1.bf16.msra.mxu0 %v7879
        %8056 = vmatprep.mubr.bf16.mxu0 %v7382
        %8057 = vmatmul.mubr.bf16.gmra.mrb[0].mxu0 %v7381
        %v8058 = vpop.f32.mrb[0].mxu0
        %v8059 = vadd.f32 %v7543, %v8058
        %v8060 = vpop.f32.mrb[0].mxu0
        %v8061 = vpop.f32.mrb[0].mxu0
        %v8062 = vpop.f32.mrb[0].mxu0
        %8063 = vdwg.mxu0
        %8064 = vmatprep.subr.bf16.mxu0 0
        %8065 = vmatpush1.bf16.msra.mxu0 %v7880
        %8066 = vmatprep.subr.bf16.mxu0 0
        %8067 = vmatpush1.bf16.msra.mxu0 %v7881
        %8068 = vmatprep.subr.bf16.mxu0 0
        %8069 = vmatpush1.bf16.msra.mxu0 %v7882
        %8070 = vmatprep.subr.bf16.mxu0 0
        %8071 = vmatpush1.bf16.msra.mxu0 %v7883
        %8072 = vmatprep.subr.bf16.mxu0 0
        %8073 = vmatpush1.bf16.msra.mxu0 %v7884
        %8074 = vmatprep.subr.bf16.mxu0 0
        %8075 = vmatpush1.bf16.msra.mxu0 %v7885
        %8076 = vmatprep.subr.bf16.mxu0 0
        %8077 = vmatpush1.bf16.msra.mxu0 %v7886
        %8078 = vmatprep.subr.bf16.mxu0 0
        %8079 = vmatpush1.bf16.msra.mxu0 %v7887
        %8080 = vmatprep.subr.bf16.mxu0 0
        %8081 = vmatpush1.bf16.msra.mxu0 %v7888
        %8082 = vmatprep.subr.bf16.mxu0 0
        %8083 = vmatpush1.bf16.msra.mxu0 %v7889
        %8084 = vmatprep.subr.bf16.mxu0 0
        %8085 = vmatpush1.bf16.msra.mxu0 %v7890
        %8086 = vmatprep.subr.bf16.mxu0 0
        %8087 = vmatpush1.bf16.msra.mxu0 %v7891
        %8088 = vmatprep.subr.bf16.mxu0 0
        %8089 = vmatpush1.bf16.msra.mxu0 %v7892
        %8090 = vmatprep.subr.bf16.mxu0 0
        %8091 = vmatpush1.bf16.msra.mxu0 %v7893
        %8092 = vmatprep.subr.bf16.mxu0 0
        %8093 = vmatpush1.bf16.msra.mxu0 %v7894
        %8094 = vmatprep.subr.bf16.mxu0 0
        %8095 = vmatpush1.bf16.msra.mxu0 %v7895
        %8096 = vmatprep.mubr.bf16.mxu0 %v1206
        %8097 = vmatmul.mubr.bf16.gmra.mrb[0].mxu0 %v1205
        %v8098 = vpop.f32.mrb[0].mxu0
        %v8099 = vadd.f32 %v8059, %v8098
        %v8100 = vpop.f32.mrb[0].mxu0
        %v8101 = vpop.f32.mrb[0].mxu0
        %v8102 = vpop.f32.mrb[0].mxu0
        %8103 = vdwg.mxu0
        %8104 = vmatprep.subr.bf16.mxu0 0
        %8105 = vmatpush1.bf16.msra.mxu0 %v7896
        %8106 = vmatprep.subr.bf16.mxu0 0
        %8107 = vmatpush1.bf16.msra.mxu0 %v7897
        %8108 = vmatprep.subr.bf16.mxu0 0
        %8109 = vmatpush1.bf16.msra.mxu0 %v7898
        %8110 = vmatprep.subr.bf16.mxu0 0
        %8111 = vmatpush1.bf16.msra.mxu0 %v7899
        %8112 = vmatprep.subr.bf16.mxu0 0
        %8113 = vmatpush1.bf16.msra.mxu0 %v7900
        %8114 = vmatprep.subr.bf16.mxu0 0
        %8115 = vmatpush1.bf16.msra.mxu0 %v7901
        %8116 = vmatprep.subr.bf16.mxu0 0
        %8117 = vmatpush1.bf16.msra.mxu0 %v7902
        %8118 = vmatprep.subr.bf16.mxu0 0
        %8119 = vmatpush1.bf16.msra.mxu0 %v7903
        %8120 = vmatprep.subr.bf16.mxu0 0
        %8121 = vmatpush1.bf16.msra.mxu0 %v7904
        %8122 = vmatprep.subr.bf16.mxu0 0
        %8123 = vmatpush1.bf16.msra.mxu0 %v7905
        %8124 = vmatprep.subr.bf16.mxu0 0
        %8125 = vmatpush1.bf16.msra.mxu0 %v7906
        %8126 = vmatprep.subr.bf16.mxu0 0
        %8127 = vmatpush1.bf16.msra.mxu0 %v7907
        %8128 = vmatprep.subr.bf16.mxu0 0
        %8129 = vmatpush1.bf16.msra.mxu0 %v7908
        %8130 = vmatprep.subr.bf16.mxu0 0
        %8131 = vmatpush1.bf16.msra.mxu0 %v7909
        %8132 = vmatprep.subr.bf16.mxu0 0
        %8133 = vmatpush1.bf16.msra.mxu0 %v7910
        %8134 = vmatprep.subr.bf16.mxu0 0
        %8135 = vmatpush1.bf16.msra.mxu0 %v7911
        %8136 = vmatprep.mubr.bf16.mxu0 %v4441
        %8137 = vmatmul.mubr.bf16.gmra.mrb[0].mxu0 %v4440
        %v8138 = vpop.f32.mrb[0].mxu0
        %v8139 = vadd.f32 %v8099, %v8138
        %v8140 = vpop.f32.mrb[0].mxu0
        %v8141 = vpop.f32.mrb[0].mxu0
        %v8142 = vpop.f32.mrb[0].mxu0
        %8143 = vdwg.mxu0
        %8144 = vmatprep.subr.bf16.mxu0 0
        %8145 = vmatpush1.bf16.msra.mxu0 %v7912
        %8146 = vmatprep.subr.bf16.mxu0 0
        %8147 = vmatpush1.bf16.msra.mxu0 %v7913
        %8148 = vmatprep.subr.bf16.mxu0 0
        %8149 = vmatpush1.bf16.msra.mxu0 %v7914
        %8150 = vmatprep.subr.bf16.mxu0 0
        %8151 = vmatpush1.bf16.msra.mxu0 %v7915
        %8152 = vmatprep.subr.bf16.mxu0 0
        %8153 = vmatpush1.bf16.msra.mxu0 %v7916
        %8154 = vmatprep.subr.bf16.mxu0 0
        %8155 = vmatpush1.bf16.msra.mxu0 %v7917
        %8156 = vmatprep.subr.bf16.mxu0 0
        %8157 = vmatpush1.bf16.msra.mxu0 %v7918
        %8158 = vmatprep.subr.bf16.mxu0 0
        %8159 = vmatpush1.bf16.msra.mxu0 %v7919
        %8160 = vmatprep.subr.bf16.mxu0 0
        %8161 = vmatpush1.bf16.msra.mxu0 %v7920
        %8162 = vmatprep.subr.bf16.mxu0 0
        %8163 = vmatpush1.bf16.msra.mxu0 %v7921
        %8164 = vmatprep.subr.bf16.mxu0 0
        %8165 = vmatpush1.bf16.msra.mxu0 %v7922
        %8166 = vmatprep.subr.bf16.mxu0 0
        %8167 = vmatpush1.bf16.msra.mxu0 %v7923
        %8168 = vmatprep.subr.bf16.mxu0 0
        %8169 = vmatpush1.bf16.msra.mxu0 %v7924
        %8170 = vmatprep.subr.bf16.mxu0 0
        %8171 = vmatpush1.bf16.msra.mxu0 %v7925
        %8172 = vmatprep.subr.bf16.mxu0 0
        %8173 = vmatpush1.bf16.msra.mxu0 %v7926
        %8174 = vmatprep.subr.bf16.mxu0 0
        %8175 = vmatpush1.bf16.msra.mxu0 %v7927
        %8176 = vmatprep.mubr.bf16.mxu0 %v4443
        %8177 = vmatmul.mubr.bf16.gmra.mrb[0].mxu0 %v4442
        %v8178 = vpop.f32.mrb[0].mxu0
        %v8179 = vadd.f32 %v8139, %v8178
        %v8180 = vpop.f32.mrb[0].mxu0
        %v8181 = vpop.f32.mrb[0].mxu0
        %v8182 = vpop.f32.mrb[0].mxu0
        %8183 = vdwg.mxu0
        %8184 = vmatprep.subr.bf16.mxu0 0
        %8185 = vmatpush1.bf16.msra.mxu0 %v7928
        %8186 = vmatprep.subr.bf16.mxu0 0
        %8187 = vmatpush1.bf16.msra.mxu0 %v7929
        %8188 = vmatprep.subr.bf16.mxu0 0
        %8189 = vmatpush1.bf16.msra.mxu0 %v7930
        %8190 = vmatprep.subr.bf16.mxu0 0
        %8191 = vmatpush1.bf16.msra.mxu0 %v7931
        %8192 = vmatprep.subr.bf16.mxu0 0
        %8193 = vmatpush1.bf16.msra.mxu0 %v7932
        %8194 = vmatprep.subr.bf16.mxu0 0
        %8195 = vmatpush1.bf16.msra.mxu0 %v7933
        %8196 = vmatprep.subr.bf16.mxu0 0
        %8197 = vmatpush1.bf16.msra.mxu0 %v7934
        %8198 = vmatprep.subr.bf16.mxu0 0
        %8199 = vmatpush1.bf16.msra.mxu0 %v7935
        %8200 = vmatprep.subr.bf16.mxu0 0
        %8201 = vmatpush1.bf16.msra.mxu0 %v7936
        %8202 = vmatprep.subr.bf16.mxu0 0
        %8203 = vmatpush1.bf16.msra.mxu0 %v7937
        %8204 = vmatprep.subr.bf16.mxu0 0
        %8205 = vmatpush1.bf16.msra.mxu0 %v7938
        %8206 = vmatprep.subr.bf16.mxu0 0
        %8207 = vmatpush1.bf16.msra.mxu0 %v7939
        %8208 = vmatprep.subr.bf16.mxu0 0
        %8209 = vmatpush1.bf16.msra.mxu0 %v7940
        %8210 = vmatprep.subr.bf16.mxu0 0
        %8211 = vmatpush1.bf16.msra.mxu0 %v7941
        %8212 = vmatprep.subr.bf16.mxu0 0
        %8213 = vmatpush1.bf16.msra.mxu0 %v7942
        %8214 = vmatprep.subr.bf16.mxu0 0
        %8215 = vmatpush1.bf16.msra.mxu0 %v7943
        %8216 = vmatprep.mubr.bf16.mxu0 %v4445
        %8217 = vmatmul.mubr.bf16.gmra.mrb[0].mxu0 %v4444
        %v8218 = vpop.f32.mrb[0].mxu0
        %v8219 = vadd.f32 %v8179, %v8218
        %v8220 = vpop.f32.mrb[0].mxu0
        %v8221 = vpop.f32.mrb[0].mxu0
        %v8222 = vpop.f32.mrb[0].mxu0
        %8223 = vdwg.mxu0
        %v8224 = vpack.c.bf16 %v8219, %v8219
        %v8225 = vld [vmem:[#allocation40] sm:$0xf]
        %v8226 = vld [vmem:[#allocation40 + $0x4] sm:$0xf]
        %v8227 = vld [vmem:[#allocation40 + $0x8] sm:$0xf]
        %v8228 = vld [vmem:[#allocation40 + $0xc] sm:$0xf]
        %v8229 = vld [vmem:[#allocation40 + $0x10] sm:$0xf]
        %v8230 = vld [vmem:[#allocation40 + $0x14] sm:$0xf]
        %v8231 = vld [vmem:[#allocation40 + $0x18] sm:$0xf]
        %v8232 = vld [vmem:[#allocation40 + $0x1c] sm:$0xf]
        %v8233 = vld [vmem:[#allocation40 + $0x20] sm:$0xf]
        %v8234 = vld [vmem:[#allocation40 + $0x24] sm:$0xf]
        %v8235 = vld [vmem:[#allocation40 + $0x28] sm:$0xf]
        %v8236 = vld [vmem:[#allocation40 + $0x2c] sm:$0xf]
        %v8237 = vld [vmem:[#allocation40 + $0x30] sm:$0xf]
        %v8238 = vld [vmem:[#allocation40 + $0x34] sm:$0xf]
        %v8239 = vld [vmem:[#allocation40 + $0x38] sm:$0xf]
        %v8240 = vld [vmem:[#allocation40 + $0x3c] sm:$0xf]
        %v8241 = vld [vmem:[#allocation41] sm:$0x1]
        %v8258 = vunpack.c.l.b16 %v8225
        %v8259 = vunpack.c.l.b16 %v8226
        %v8260 = vunpack.c.l.b16 %v8227
        %v8261 = vunpack.c.l.b16 %v8228
        %v8262 = vunpack.c.l.b16 %v8229
        %v8263 = vunpack.c.l.b16 %v8230
        %v8264 = vunpack.c.l.b16 %v8231
        %v8265 = vunpack.c.l.b16 %v8232
        %v8266 = vunpack.c.l.b16 %v8233
        %v8267 = vunpack.c.l.b16 %v8234
        %v8268 = vunpack.c.l.b16 %v8235
        %v8269 = vunpack.c.l.b16 %v8236
        %v8270 = vunpack.c.l.b16 %v8237
        %v8271 = vunpack.c.l.b16 %v8238
        %v8272 = vunpack.c.l.b16 %v8239
        %v8273 = vunpack.c.l.b16 %v8240
        %v8274 = vpack.c.b16 %v8259, %v8258
        %v8275 = vpack.c.b16 %v8261, %v8260
        %v8276 = vpack.c.b16 %v8263, %v8262
        %v8277 = vpack.c.b16 %v8265, %v8264
        %v8278 = vpack.c.b16 %v8267, %v8266
        %v8279 = vpack.c.b16 %v8269, %v8268
        %v8280 = vpack.c.b16 %v8271, %v8270
        %v8281 = vpack.c.b16 %v8273, %v8272
        %8290 = vmatprep.subr.bf16.mxu0 0
        %8291 = vmatpush1.bf16.msra.mxu0 %v8274
        %8292 = vmatprep.subr.bf16.mxu0 0
        %8293 = vmatpush1.bf16.msra.mxu0 %v8275
        %8294 = vmatprep.subr.bf16.mxu0 0
        %8295 = vmatpush1.bf16.msra.mxu0 %v8276
        %8296 = vmatprep.subr.bf16.mxu0 0
        %8297 = vmatpush1.bf16.msra.mxu0 %v8277
        %8298 = vmatprep.subr.bf16.mxu0 0
        %8299 = vmatpush1.bf16.msra.mxu0 %v8278
        %8300 = vmatprep.subr.bf16.mxu0 0
        %8301 = vmatpush1.bf16.msra.mxu0 %v8279
        %8302 = vmatprep.subr.bf16.mxu0 0
        %8303 = vmatpush1.bf16.msra.mxu0 %v8280
        %8304 = vmatprep.subr.bf16.mxu0 0
        %8305 = vmatpush1.bf16.msra.mxu0 %v8281
        %8306 = vmatprep.subr.bf16.mxu0 0
        %8307 = vmatpush1.bf16.msra.mxu0 0
        %8308 = vmatprep.subr.bf16.mxu0 0
        %8309 = vmatpush1.bf16.msra.mxu0 0
        %8310 = vmatprep.subr.bf16.mxu0 0
        %8311 = vmatpush1.bf16.msra.mxu0 0
        %8312 = vmatprep.subr.bf16.mxu0 0
        %8313 = vmatpush1.bf16.msra.mxu0 0
        %8314 = vmatprep.subr.bf16.mxu0 0
        %8315 = vmatpush1.bf16.msra.mxu0 0
        %8316 = vmatprep.subr.bf16.mxu0 0
        %8317 = vmatpush1.bf16.msra.mxu0 0
        %8318 = vmatprep.subr.bf16.mxu0 0
        %8319 = vmatpush1.bf16.msra.mxu0 0
        %8320 = vmatprep.subr.bf16.mxu0 0
        %8321 = vmatpush1.bf16.msra.mxu0 0
        %8322 = vmatprep.mubr.bf16.mxu0 0
        %8323 = vmatmul.mubr.bf16.gmra.mrb[0].mxu0 %v8224
        %v8324 = vpop.f32.mrb[0].mxu0
        %v8325 = vadd.f32 %v8241, %v8324
        %v8326 = vpop.f32.mrb[0].mxu0
        %v8327 = vpop.f32.mrb[0].mxu0
        %v8328 = vpop.f32.mrb[0].mxu0
        %8329 = vdwg.mxu0
        %v8330 = vsel %vm4020, %v8325, -inf
        %8331 = vmax.xlane.f32.xlu0 %v8330
        %v8332 = vpop.xlane.xlu0 %8331
        %v8333 = vsub.f32 %v8325, %v8332
        %v8334 = vmul.f32 %v8333, 1.442695
        %v8335 = vpow.pop %v8334
        %v8336 = vsel %vm4020, %v8335, 0.0
        %8337 = vadd.xlane.f32.xlu0 %v8336
        %v8338 = vpop.xlane.xlu0 %8337
        %v8339 = vlog2.pop %v8338
        %v8340 = vmul.f32 %v8339, 0.6931472
        %v8341 = vsub.f32 %v8333, %v8340
        %s8342 = scalar_lea.vmem [#allocation43], %s96
        %8343 = vst [vmem:[%s8342] sm:$0x1] %v8341
        // Predicated region
        $region217: #{tpu_custom_call.1} parent=123 // pred_check
          %p8344 = pneg %p655
        $region218: #{tpu_custom_call.1} parent=123 // pred_check_branch
          %8346 = sbr.rel (%p8344) target = $region220
        $region219: #{tpu_custom_call.1} parent=123 // pred_region
          %s8348 = ssub.s32 128, 128
          %8349 = vsyncadd [#allocation10], %s8348
          %s8351 = sshll.u32 [#allocation43], 4
          %s8352 = int_to_ptr.vmem [resolvable:$true] %s8351
          %8354 = dma.vmem_to_hbm [thread:$0]  %s8352, 128, %s55, [#allocation10]
        $region220: #{tpu_custom_call.1} parent=123 // pred_fallthru
          _
        // Predicated region
        $region221: #{tpu_custom_call.1} parent=123 // pred_check
          %p8355 = pneg %p676
        $region222: #{tpu_custom_call.1} parent=123 // pred_check_branch
          %8357 = sbr.rel (%p8355) target = $region224
        $region223: #{tpu_custom_call.1} parent=123 // pred_region
          %s8359 = ssub.s32 256, 256
          %8360 = vsyncadd [#allocation45], %s8359
          %s8362 = sshll.u32 [#allocation44], 4
          %s8363 = int_to_ptr.vmem [resolvable:$true] %s8362
          %8365 = dma.vmem_to_hbm [thread:$0]  %s8363, 256, %s57, [#allocation45]
        $region224: #{tpu_custom_call.1} parent=123 // pred_fallthru
          _
        // Predicated region
        $region225: #{tpu_custom_call.1} parent=123 // pred_check
          %p8366 = pneg %p697
        $region226: #{tpu_custom_call.1} parent=123 // pred_check_branch
          %8368 = sbr.rel (%p8366) target = $region228
        $region227: #{tpu_custom_call.1} parent=123 // pred_region
          %s8370 = ssub.s32 128, 128
          %8371 = vsyncadd [#allocation45], %s8370
          %s8373 = sshll.u32 [#allocation46], 4
          %s8374 = int_to_ptr.vmem [resolvable:$true] %s8373
          %8376 = dma.vmem_to_hbm [thread:$0]  %s8374, 128, %s59, [#allocation45]
        $region228: #{tpu_custom_call.1} parent=123 // pred_fallthru
          _
        // Predicated region
        $region229: #{tpu_custom_call.1} parent=123 // pred_check
          %p8377 = pneg %p718
        $region230: #{tpu_custom_call.1} parent=123 // pred_check_branch
          %8379 = sbr.rel (%p8377) target = $region232
        $region231: #{tpu_custom_call.1} parent=123 // pred_region
          %s8381 = ssub.s32 128, 128
          %8382 = vsyncadd [#allocation48], %s8381
          %s8384 = sshll.u32 [#allocation47], 4
          %s8385 = int_to_ptr.vmem [resolvable:$true] %s8384
          %8387 = dma.vmem_to_hbm [thread:$0]  %s8385, 128, %s61, [#allocation48]
        $region232: #{tpu_custom_call.1} parent=123 // pred_fallthru
          _
        // Predicated region
        $region233: #{tpu_custom_call.1} parent=123 // pred_check
          %p8388 = pneg %p655
        $region234: #{tpu_custom_call.1} parent=123 // pred_check_branch
          %8390 = sbr.rel (%p8388) target = $region236
        $region235: #{tpu_custom_call.1} parent=123 // pred_region
          %8391 = dma.done [#allocation10], 128
        $region236: #{tpu_custom_call.1} parent=123 // pred_fallthru
          _
        // Predicated region
        $region237: #{tpu_custom_call.1} parent=123 // pred_check
          %p8392 = pneg %p676
        $region238: #{tpu_custom_call.1} parent=123 // pred_check_branch
          %8394 = sbr.rel (%p8392) target = $region240
        $region239: #{tpu_custom_call.1} parent=123 // pred_region
          %8395 = dma.done [#allocation45], 256
        $region240: #{tpu_custom_call.1} parent=123 // pred_fallthru
          _
        // Predicated region
        $region241: #{tpu_custom_call.1} parent=123 // pred_check
          %p8396 = pneg %p697
        $region242: #{tpu_custom_call.1} parent=123 // pred_check_branch
          %8398 = sbr.rel (%p8396) target = $region244
        $region243: #{tpu_custom_call.1} parent=123 // pred_region
          %8399 = dma.done [#allocation45], 128
        $region244: #{tpu_custom_call.1} parent=123 // pred_fallthru
          _
        // Predicated region
        $region245: #{tpu_custom_call.1} parent=123 // pred_check
          %p8400 = pneg %p718
        $region246: #{tpu_custom_call.1} parent=123 // pred_check_branch
          %8402 = sbr.rel (%p8400) target = $region248
        $region247: #{tpu_custom_call.1} parent=123 // pred_region
          %8403 = dma.done [#allocation48], 128
        $region248: #{tpu_custom_call.1} parent=123 // pred_fallthru
          _
      $region124: #{tpu_custom_call.1} parent=5 // pred_fallthru
        _
      %p8404 = scmp.le.s32.totalorder 2, %s91
      // Predicated region
      $region249: #{tpu_custom_call.1} parent=5 // pred_check
        %p8405 = pneg %p8404
      $region250: #{tpu_custom_call.1} parent=5 // pred_check_branch
        %8407 = sbr.rel (%p8405) target = $region252
      $region251: #{tpu_custom_call.1} parent=5 // pred_region
        %s8408 = ssub.s32 %s91, 2
      $region252: #{tpu_custom_call.1} parent=5 // pred_fallthru
        _
    $region6: #{tpu_custom_call.1} parent=1 // loop_footer
      %s95 = sadd.s32 1, %s91
    $region7: #{tpu_custom_call.1} parent=1 // loop_footer_branch
      %90 = sbr.rel target = $region3
    $region8: #{tpu_custom_call.1} parent=1 // loop_exit
      _
    %8409 = vsyncpa [#allocation9], 1
    %s8410 = scalar_lea.sflag [#allocation9], 1
    %8411 = vsyncpa %s8410, 1
    %8412 = vsyncpa [#allocation12], 1
    %8413 = vsyncpa [#allocation15], 1
    %8414 = vsyncpa [#allocation18], 1
    %8415 = vsyncpa [#allocation21], 1
    %8416 = vsyncpa [#allocation24], 1
    %8417 = vsyncpa [#allocation27], 1
    %8418 = vsyncpa [#allocation30], 1
    %8419 = vsyncpa [#allocation33], 1
    %8420 = vsyncpa [#allocation36], 1
    %8421 = vsyncpa [#allocation39], 1
    %8422 = vsyncpa [#allocation42], 1
    %8423 = vsyncpa [#allocation10], 1
    %s8424 = scalar_lea.sflag [#allocation10], 1
    %8425 = vsyncpa %s8424, 1
    %8426 = vsyncpa [#allocation45], 1
    %8427 = vsyncpa [#allocation48], 1

</llo_original>
